<compile_context>
chip_gen: v6e
topology: v6e:2x2x1
jax: 0.10.0
libtpu: 0.0.40
codegen_flags: <defaults>
</compile_context>

<pallas_src>
import functools
import math

import numpy as np

import jax
import jax.numpy as jnp
from jax.experimental import pallas as pl
from jax.experimental.pallas import tpu as pltpu


# ----------------------------------------------------------------------------
# Kernel
# ----------------------------------------------------------------------------
def _attention_pooling_kernel(x_ref, xq_ref, mask_ref, bsel_ref, bselt_ref,
                              pool_ref, convw_ref, w1t_ref, b1_ref, w2_ref,
                              b2_ref, wc1_ref, bc1_ref, wc2_ref, bc2_ref,
                              out_ref, *scratch, img_w, seq_len, fast):
    n, feat = x_ref.shape                     # n = TILE_B * S
    tile_b = bsel_ref.shape[0]
    cls_hid = bc1_ref.shape[1]

    x_bf = x_ref[...]                         # (N, F) bf16, sequence-major rows
    xq_bf = xq_ref[...]                       # (N, F) bf16, position-major (.view) rows
    mask = mask_ref[...].astype(jnp.float32)  # (N, 9) conv neighbour validity (0/1)
    bsel_bf = bsel_ref[...]                   # (T, N) bf16 0/1 batch-segment selector
    bselt_bf = bselt_ref[...]                 # (N, T) bf16

    # ---- multi-scale adaptive-avg-pool means (scale1/2/3), all batches at once ----
    scales = jnp.dot(pool_ref[...], xq_bf, preferred_element_type=jnp.float32)   # (3T, F)

    # ---- spatial attention: 3x3 conv = one bf16 matmul + 9 masked neighbour shifts ----
    conv_all = jnp.dot(xq_bf, convw_ref[...], preferred_element_type=jnp.float32)  # (N, 9)
    conv_logit = jnp.zeros((n, 1), jnp.float32)
    if fast:
        # XLU sublane rolls; the host mask zeroes every wrapped / cross-batch /
        # out-of-image neighbour, so cyclic wrap-around never contributes.
        k = 0
        for dy in range(3):
            for dx in range(3):
                off = (dy - 1) * img_w + (dx - 1)
                col = conv_all[:, k:k + 1]
                if off % n != 0:
                    col = pltpu.roll(col, shift=(-off) % n, axis=0)
                conv_logit = conv_logit + mask[:, k:k + 1] * col
                k += 1
    else:
        convpad_ref, = scratch
        pad = (convpad_ref.shape[0] - n) // 2
        convpad_ref[...] = jnp.zeros_like(convpad_ref)
        convpad_ref[pl.ds(pad, n), :] = conv_all
        k = 0
        for dy in range(3):
            for dx in range(3):
                off = (dy - 1) * img_w + (dx - 1)
                shifted = convpad_ref[pl.ds(pad + off, n), :]
                conv_logit = conv_logit + mask[:, k:k + 1] * shifted[:, k:k + 1]
                k += 1

    # ---- 3 attention heads (Linear -> tanh -> Linear), fused along lanes ----
    h1 = jnp.tanh(jnp.dot(x_bf, w1t_ref[...], preferred_element_type=jnp.float32)
                  + b1_ref[...])                                     # (N, 3*mid)
    z = jnp.dot(h1, w2_ref[...], preferred_element_type=jnp.float32) + b2_ref[...]  # (N, 4)
    col0 = (jax.lax.broadcasted_iota(jnp.int32, (1, 4), 1) == 0).astype(jnp.float32)
    z = z + conv_logit * col0     # column 0 = spatial-conv logit, columns 1..3 = heads

    # ---- per-batch softmax over the S positions (segment sums on the MXU) ----
    if fast:
        # per-segment max -> no underflow-driven 0/0 across batch elements
        m_seg = jnp.max(z.reshape(tile_b, seq_len, 4), axis=1)          # (T, 4)
        m_rows = jnp.dot(bselt_bf, m_seg.astype(jnp.bfloat16),
                         preferred_element_type=jnp.float32)            # (N, 4)
    else:
        m_rows = jnp.max(z, axis=0, keepdims=True)                      # global shift
    e = jnp.exp(z - m_rows)                                             # (N, 4) f32
    denom = jnp.dot(bsel_bf, e.astype(jnp.bfloat16),
                    preferred_element_type=jnp.float32)                 # (T, 4)
    denom_rows = jnp.dot(bselt_bf, denom.astype(jnp.bfloat16),
                         preferred_element_type=jnp.float32)            # (N, 4)
    if fast:
        wgt = e * pl.reciprocal(denom_rows, approx=True)
    else:
        wgt = e / jnp.maximum(denom_rows, 1e-30)
    wgt_bf = wgt.astype(jnp.bfloat16)

    # ---- softmax-weighted sums over positions as MXU segment reductions ----
    feats = [jnp.dot(bsel_bf, wgt_bf[:, j:j + 1] * x_bf,
                     preferred_element_type=jnp.float32) for j in range(4)]

    # ---- classifier over the 7F concatenated features: 7 bf16 slabs, M = TILE_B ----
    segs = [scales[0:tile_b, :], scales[tile_b:2 * tile_b, :],
            scales[2 * tile_b:3 * tile_b, :]] + feats
    acc = jnp.zeros((tile_b, cls_hid), jnp.float32)
    for i, seg in enumerate(segs):
        acc = acc + jnp.dot(seg.astype(jnp.bfloat16),
                            wc1_ref[i * feat:(i + 1) * feat, :],
                            preferred_element_type=jnp.float32)
    hid = jnp.maximum(acc + bc1_ref[...], 0.0)
    y = jnp.dot(hid.astype(jnp.bfloat16), wc2_ref[...],
                preferred_element_type=jnp.float32) + bc2_ref[...]
    out_ref[...] = y.astype(out_ref.dtype)


# ----------------------------------------------------------------------------
# Host-side helpers (pure data-movement / static constant construction)
# ----------------------------------------------------------------------------
def _adaptive_bins(n, out):
    starts = [(i * n) // out for i in range(out)]
    ends = [int(math.ceil((i + 1) * n / out)) for i in range(out)]
    return starts, ends


def _pool_row(h, w, oh, ow):
    """Mean of the (oh x ow) adaptive-avg-pool region means as one (h*w,) weight row."""
    m = np.zeros((oh * ow, h * w), dtype=np.float32)
    ys, ye = _adaptive_bins(h, oh)
    xs, xe = _adaptive_bins(w, ow)
    for i in range(oh):
        for j in range(ow):
            cnt = (ye[i] - ys[i]) * (xe[j] - xs[j])
            for y in range(ys[i], ye[i]):
                for xx in range(xs[j], xe[j]):
                    m[i * ow + j, y * w + xx] = 1.0 / cnt
    return m.mean(axis=0)


def init_params(key, feat, mid, out_dim):
    ks = jax.random.split(key, 9)
    p = {}
    p['conv_w'] = jax.random.normal(ks[0], (1, feat, 3, 3), jnp.float32) * 0.1
    p['W1'] = jax.random.normal(ks[1], (3, mid, feat), jnp.float32) * 0.1
    p['b1'] = jax.random.normal(ks[2], (3, mid), jnp.float32) * 0.1
    p['W2'] = jax.random.normal(ks[3], (3, 1, mid), jnp.float32) * 0.1
    p['b2'] = jax.random.normal(ks[4], (3, 1), jnp.float32) * 0.1
    p['Wc1'] = jax.random.normal(ks[5], (512, 7 * feat), jnp.float32) * 0.05
    p['bc1'] = jax.random.normal(ks[6], (512,), jnp.float32) * 0.05
    p['Wc2'] = jax.random.normal(ks[7], (out_dim, 512), jnp.float32) * 0.05
    p['bc2'] = jax.random.normal(ks[8], (out_dim,), jnp.float32) * 0.05
    return p


def advanced_attention_pooling(x, params, mid, out_dim, *, tile_b=None):
    B, S, F = x.shape
    H = int(round(S ** 0.5))
    W = H
    assert H * W == S, "seq_len must be a perfect square (module reinterprets it as HxW)"

    if tile_b is None:
        # MXU-sized batch tiles, but always >= 2 "parallel" grid steps (v7x megacore).
        T = min(128, B)
        if T == B and B > 1:
            T = (B + 1) // 2
    else:
        T = max(1, min(tile_b, B))
    Bp = ((B + T - 1) // T) * T
    nb = Bp // T
    N = T * S
    cls_hid = params['Wc1'].shape[0]
    mid3 = 3 * mid

    # ---- activation prep (mirrors torch .view reinterpretation; one padded bf16 copy) ----
    xb = x if Bp == B else jnp.concatenate(
        [x, jnp.zeros((Bp - B, S, F), x.dtype)], axis=0)
    x2 = xb.reshape(Bp * S, F).astype(jnp.bfloat16)                    # sequence-major rows
    xq2 = xb.reshape(Bp, F, S).transpose(0, 2, 1).reshape(Bp * S, F).astype(jnp.bfloat16)

    # 3x3 conv neighbour-validity masks per position, tiled over the batch tile (exact 0/1)
    offs = [(dy, dx) for dy in range(3) for dx in range(3)]
    mask = np.zeros((S, 9), np.float32)
    for p in range(S):
        py, px = p // W, p % W
        for k, (dy, dx) in enumerate(offs):
            if 0 <= py + dy - 1 < H and 0 <= px + dx - 1 < W:
                mask[p, k] = 1.0
    mask9 = jnp.asarray(np.tile(mask, (T, 1)), jnp.bfloat16)           # (N, 9)

    # batch-segment selectors (0/1 -> bf16 is lossless)
    bsel = np.zeros((T, N), np.float32)
    for b in range(T):
        bsel[b, b * S:(b + 1) * S] = 1.0
    batchsel = jnp.asarray(bsel, jnp.bfloat16)                          # (T, N)
    batchsel_t = jnp.asarray(np.ascontiguousarray(bsel.T), jnp.bfloat16)  # (N, T)

    # block-diagonal pooling rows (segment-major: row i*T + b)
    pool3 = np.stack([_pool_row(H, W, 1, 1), _pool_row(H, W, 2, 2),
                      _pool_row(H, W, 4, 4)], axis=0)                   # (3, S)
    poolblk = np.zeros((3 * T, N), np.float32)
    for i in range(3):
        for b in range(T):
            poolblk[i * T + b, b * S:(b + 1) * S] = pool3[i]
    poolblk = jnp.asarray(poolblk, jnp.bfloat16)

    # ---- weights re-laid out for the fused kernel ----
    convw9 = params['conv_w'][0].reshape(F, 9).astype(jnp.bfloat16)     # (F, 9), k = dy*3+dx
    w1t = params['W1'].reshape(mid3, F).T.astype(jnp.bfloat16)          # (F, 3*mid)
    b1 = params['b1'].reshape(1, mid3).astype(jnp.float32)
    w2np = np.asarray(params['W2'], np.float32)                         # (3, 1, mid)
    w2blk4 = np.zeros((mid3, 4), np.float32)
    for h in range(3):
        w2blk4[h * mid:(h + 1) * mid, 1 + h] = w2np[h, 0]
    w2blk4 = jnp.asarray(w2blk4)                                        # (3*mid, 4)
    b24 = np.zeros((1, 4), np.float32)
    b24[0, 1:] = np.asarray(params['b2'], np.float32).reshape(3)
    b24 = jnp.asarray(b24)
    wc1t = params['Wc1'].T.astype(jnp.bfloat16)                         # (7F, 512)
    bc1 = params['bc1'].reshape(1, cls_hid).astype(jnp.float32)
    wc2t = params['Wc2'].T.astype(jnp.bfloat16)                         # (512, out_dim)
    bc2 = params['bc2'].reshape(1, out_dim).astype(jnp.float32)

    args = (x2, xq2, mask9, batchsel, batchsel_t, poolblk, convw9, w1t, b1,
            w2blk4, b24, wc1t, bc1, wc2t, bc2)

    # ---- explicit scoped-VMEM budget (cap at v7x's 64 MiB) + cost estimate ----
    def nbytes(shape, item):
        return int(np.prod(shape)) * item
    const_b = (nbytes((N, 9), 2) + nbytes((T, N), 2) + nbytes((N, T), 2)
               + nbytes((3 * T, N), 2) + nbytes((F, 9), 2) + nbytes((F, mid3), 2)
               + nbytes((mid3, 4), 4) + nbytes((7 * F, cls_hid), 2)
               + nbytes((cls_hid, out_dim), 2)
               + 4 * (mid3 + 4 + cls_hid + out_dim))
    stream_b = 2 * 2 * nbytes((N, F), 2)                     # x + xq, double-buffered bf16
    live_b = 6 * nbytes((N, max(F, mid3, 16)), 4)            # headroom for f32 temporaries
    vmem_limit = int(min(max(2 * (const_b + stream_b) + live_b, 32 * 1024 * 1024),
                         64 * 1024 * 1024))

    flops = (2 * Bp * S * F * (9 + mid3) + 2 * Bp * S * mid3 * 4
             + 2 * nb * (7 * T) * N * F
             + 2 * Bp * 7 * F * cls_hid + 2 * Bp * cls_hid * out_dim)
    cost = pl.CostEstimate(
        flops=int(flops),
        transcendentals=int(Bp * S * (mid3 + 4)),
        bytes_accessed=int(2 * Bp * S * F * 2 + const_b + Bp * out_dim * 4))

    def build(fast):
        def const_spec(shape):
            if fast:
                return pl.BlockSpec(shape, lambda b: (0, 0),
                                    pipeline_mode=pl.Buffered(1))       # single-buffer
            return pl.BlockSpec(shape, lambda b: (0, 0))

        in_specs = [
            pl.BlockSpec((N, F), lambda b: (b, 0)),               # x  (sequence-major)
            pl.BlockSpec((N, F), lambda b: (b, 0)),               # xq (position-major)
            const_spec((N, 9)),                                   # conv masks
            const_spec((T, N)),                                   # batch selector
            const_spec((N, T)),                                   # batch selector^T
            const_spec((3 * T, N)),                               # pooling rows
            const_spec((F, 9)),                                   # conv weights
            const_spec((F, mid3)),                                # head W1^T
            const_spec((1, mid3)),                                # head b1
            const_spec((mid3, 4)),                                # head W2 (block)
            const_spec((1, 4)),                                   # head b2
            const_spec((7 * F, cls_hid)),                         # Wc1^T
            const_spec((1, cls_hid)),                             # bc1
            const_spec((cls_hid, out_dim)),                       # Wc2^T
            const_spec((1, out_dim)),                             # bc2
        ]
        scratch = []
        if not fast:
            pad = ((W + 1 + 7) // 8) * 8
            scratch = [pltpu.VMEM((N + 2 * pad, 9), jnp.float32)]
        grid_spec = pltpu.PrefetchScalarGridSpec(
            num_scalar_prefetch=0, grid=(nb,), in_specs=in_specs,
            out_specs=pl.BlockSpec((None, T, out_dim), lambda b: (b, 0, 0)),
            scratch_shapes=scratch)
        return pl.pallas_call(
            functools.partial(_attention_pooling_kernel,
                              img_w=W, seq_len=S, fast=fast),
            out_shape=jax.ShapeDtypeStruct((nb, T, out_dim), jnp.float32),
            grid_spec=grid_spec,
            compiler_params=pltpu.CompilerParams(
                dimension_semantics=("parallel",),
                vmem_limit_bytes=vmem_limit),
            cost_estimate=cost)

    # Prefer the optimized lowering (single-buffered constants, XLU rolls, 3-D
    # per-segment max); fall back to the battle-tested path if Mosaic rejects it.
    try:
        out = jax.block_until_ready(build(True)(*args))
    except Exception:
        out = jax.block_until_ready(build(False)(*args))

    return out.reshape(Bp, out_dim)[:B]


# ----------------------------------------------------------------------------
# Pure-JAX reference (mirrors the PyTorch forward, minus the broken pos-enc add)
# ----------------------------------------------------------------------------
def reference_forward(x, p):
    B, S, F = x.shape
    H = W = int(round(S ** 0.5))
    xr = x.reshape(B, F, H, W)
    scale1 = xr.mean(axis=(2, 3))
    scale2 = xr.reshape(B, F, 2, H // 2, 2, W // 2).mean(axis=(3, 5)).reshape(B, F, 4).mean(axis=2)
    scale3 = xr.reshape(B, F, 4, H // 4, 4, W // 4).mean(axis=(3, 5)).reshape(B, F, 16).mean(axis=2)

    conv_out = jax.lax.conv_general_dilated(
        xr, p['conv_w'], (1, 1), ((1, 1), (1, 1)),
        dimension_numbers=('NCHW', 'OIHW', 'NCHW'))                     # (B,1,H,W)
    sw = jax.nn.softmax(conv_out.reshape(B, S), axis=1)
    spatial_feat = jnp.einsum('bs,bsf->bf', sw, x)

    att_feats = []
    for h in range(3):
        a = jnp.tanh(jnp.einsum('bsf,mf->bsm', x, p['W1'][h]) + p['b1'][h])
        a = jnp.einsum('bsm,om->bso', a, p['W2'][h]) + p['b2'][h]       # (B,S,1)
        a = jax.nn.softmax(a, axis=1)
        att_feats.append(jnp.einsum('bs,bsf->bf', a[:, :, 0], x))

    combined = jnp.concatenate([scale1, scale2, scale3, spatial_feat] + att_feats, axis=1)
    hid = jax.nn.relu(combined @ p['Wc1'].T + p['bc1'])
    return hid @ p['Wc2'].T + p['bc2']


# ----------------------------------------------------------------------------
if __name__ == "__main__":
    B, S, FEAT, MID, OUT = 4, 64, 32, 16, 1     # seq=64 -> 8x8 spatial reinterpretation

    key = jax.random.PRNGKey(0)
    kx, kp = jax.random.split(key)
    x = jax.random.normal(kx, (B, S, FEAT), jnp.float32)
    params = init_params(kp, FEAT, MID, OUT)

    # Quantise the tensors the kernel streams / holds in bf16 so the float32
    # reference sees the same values (isolates matmul-precision differences).
    def q(a):
        return a.astype(jnp.bfloat16).astype(jnp.float32)

    x = q(x)
    params = dict(params)
    for name in ('conv_w', 'W1', 'Wc1', 'Wc2'):
        params[name] = q(params[name])

    # default tile selection -> T=2, two "parallel" batch blocks over the grid
    y = advanced_attention_pooling(x, params, MID, OUT)
    y = jax.block_until_ready(y)

    y_ref = reference_forward(x, params)
    np.testing.assert_allclose(np.asarray(y), np.asarray(y_ref), rtol=2e-2, atol=2e-2)
    print("KERNEL_OK")
</pallas_src>

<mosaic_0001>
module attributes {stable_mosaic.version = 11 : i64} {
  func.func @_attention_pooling_kernel(%arg0: i32, %arg1: memref<128x32xbf16, #tpu.memory_space<vmem>>, %arg2: memref<128x32xbf16, #tpu.memory_space<vmem>>, %arg3: memref<128x9xbf16, #tpu.memory_space<vmem>>, %arg4: memref<2x128xbf16, #tpu.memory_space<vmem>>, %arg5: memref<128x2xbf16, #tpu.memory_space<vmem>>, %arg6: memref<6x128xbf16, #tpu.memory_space<vmem>>, %arg7: memref<32x9xbf16, #tpu.memory_space<vmem>>, %arg8: memref<32x48xbf16, #tpu.memory_space<vmem>>, %arg9: memref<1x48xf32, #tpu.memory_space<vmem>>, %arg10: memref<48x4xf32, #tpu.memory_space<vmem>>, %arg11: memref<1x4xf32, #tpu.memory_space<vmem>>, %arg12: memref<224x512xbf16, #tpu.memory_space<vmem>>, %arg13: memref<1x512xf32, #tpu.memory_space<vmem>>, %arg14: memref<512x1xbf16, #tpu.memory_space<vmem>>, %arg15: memref<1x1xf32, #tpu.memory_space<vmem>>, %arg16: memref<1x2x1xf32, #tpu.memory_space<vmem>>) attributes {dimension_semantics = [#tpu.dimension_semantics<parallel>], iteration_bounds = array<i64: 2>, scalar_prefetch = 0 : i64, scratch_operands = 0 : i64, tpu.core_type = #tpu.core_type<tc>, window_params = [{transform_indices = @transform_0, window_bounds = array<i64: 128, 32>}, {transform_indices = @transform_1, window_bounds = array<i64: 128, 32>}, {pipeline_mode = #tpu.pipeline_mode<synchronous>, transform_indices = @transform_2, window_bounds = array<i64: 128, 9>}, {pipeline_mode = #tpu.pipeline_mode<synchronous>, transform_indices = @transform_3, window_bounds = array<i64: 2, 128>}, {pipeline_mode = #tpu.pipeline_mode<synchronous>, transform_indices = @transform_4, window_bounds = array<i64: 128, 2>}, {pipeline_mode = #tpu.pipeline_mode<synchronous>, transform_indices = @transform_5, window_bounds = array<i64: 6, 128>}, {pipeline_mode = #tpu.pipeline_mode<synchronous>, transform_indices = @transform_6, window_bounds = array<i64: 32, 9>}, {pipeline_mode = #tpu.pipeline_mode<synchronous>, transform_indices = @transform_7, window_bounds = array<i64: 32, 48>}, {pipeline_mode = #tpu.pipeline_mode<synchronous>, transform_indices = @transform_8, window_bounds = array<i64: 1, 48>}, {pipeline_mode = #tpu.pipeline_mode<synchronous>, transform_indices = @transform_9, window_bounds = array<i64: 48, 4>}, {pipeline_mode = #tpu.pipeline_mode<synchronous>, transform_indices = @transform_10, window_bounds = array<i64: 1, 4>}, {pipeline_mode = #tpu.pipeline_mode<synchronous>, transform_indices = @transform_11, window_bounds = array<i64: 224, 512>}, {pipeline_mode = #tpu.pipeline_mode<synchronous>, transform_indices = @transform_12, window_bounds = array<i64: 1, 512>}, {pipeline_mode = #tpu.pipeline_mode<synchronous>, transform_indices = @transform_13, window_bounds = array<i64: 512, 1>}, {pipeline_mode = #tpu.pipeline_mode<synchronous>, transform_indices = @transform_14, window_bounds = array<i64: 1, 1>}, {transform_indices = @transform_15, window_bounds = array<i64: 1, 2, 1>}]} {
    %c0 = arith.constant 0 : index
    %c0_0 = arith.constant 0 : index
    %0 = vector.load %arg1[%c0, %c0_0] : memref<128x32xbf16, #tpu.memory_space<vmem>>, vector<128x32xbf16>
    %c0_1 = arith.constant 0 : index
    %c0_2 = arith.constant 0 : index
    %1 = vector.load %arg2[%c0_1, %c0_2] : memref<128x32xbf16, #tpu.memory_space<vmem>>, vector<128x32xbf16>
    %c0_3 = arith.constant 0 : index
    %c0_4 = arith.constant 0 : index
    %2 = vector.load %arg3[%c0_3, %c0_4] : memref<128x9xbf16, #tpu.memory_space<vmem>>, vector<128x9xbf16>
    %3 = arith.extf %2 : vector<128x9xbf16> to vector<128x9xf32>
    %c0_5 = arith.constant 0 : index
    %c0_6 = arith.constant 0 : index
    %4 = vector.load %arg4[%c0_5, %c0_6] : memref<2x128xbf16, #tpu.memory_space<vmem>>, vector<2x128xbf16>
    %c0_7 = arith.constant 0 : index
    %c0_8 = arith.constant 0 : index
    %5 = vector.load %arg5[%c0_7, %c0_8] : memref<128x2xbf16, #tpu.memory_space<vmem>>, vector<128x2xbf16>
    %c0_9 = arith.constant 0 : index
    %c0_10 = arith.constant 0 : index
    %6 = vector.load %arg6[%c0_9, %c0_10] : memref<6x128xbf16, #tpu.memory_space<vmem>>, vector<6x128xbf16>
    %cst = arith.constant dense<0.000000e+00> : vector<6x32xf32>
    %7 = tpu.matmul %6, %1, %cst {dimension_numbers = #tpu.dot_dimension_numbers<[1], [0], [0], [1], [0, 0, 1, 1], [], []>} : vector<6x128xbf16>, vector<128x32xbf16>, vector<6x32xf32> -> vector<6x32xf32>
    %c0_11 = arith.constant 0 : index
    %c0_12 = arith.constant 0 : index
    %8 = vector.load %arg7[%c0_11, %c0_12] : memref<32x9xbf16, #tpu.memory_space<vmem>>, vector<32x9xbf16>
    %cst_13 = arith.constant dense<0.000000e+00> : vector<128x9xf32>
    %9 = tpu.matmul %1, %8, %cst_13 {dimension_numbers = #tpu.dot_dimension_numbers<[1], [0], [0], [1], [0, 0, 1, 1], [], []>} : vector<128x32xbf16>, vector<32x9xbf16>, vector<128x9xf32> -> vector<128x9xf32>
    %cst_14 = arith.constant 0.000000e+00 : f32
    %10 = vector.broadcast %cst_14 : f32 to vector<128x1xf32>
    %11 = vector.extract_strided_slice %9 {offsets = [0, 0], sizes = [128, 1], strides = [1, 1]} : vector<128x9xf32> to vector<128x1xf32>
    %c9_i32 = arith.constant 9 : i32
    %12 = tpu.dynamic_rotate %11 by %c9_i32 dim 0 : vector<128x1xf32>, i32 -> vector<128x1xf32>
    %13 = vector.extract_strided_slice %3 {offsets = [0, 0], sizes = [128, 1], strides = [1, 1]} : vector<128x9xf32> to vector<128x1xf32>
    %14 = arith.mulf %13, %12 : vector<128x1xf32>
    %15 = arith.addf %10, %14 : vector<128x1xf32>
    %16 = vector.extract_strided_slice %9 {offsets = [0, 1], sizes = [128, 1], strides = [1, 1]} : vector<128x9xf32> to vector<128x1xf32>
    %c8_i32 = arith.constant 8 : i32
    %17 = tpu.dynamic_rotate %16 by %c8_i32 dim 0 : vector<128x1xf32>, i32 -> vector<128x1xf32>
    %18 = vector.extract_strided_slice %3 {offsets = [0, 1], sizes = [128, 1], strides = [1, 1]} : vector<128x9xf32> to vector<128x1xf32>
    %19 = arith.mulf %18, %17 : vector<128x1xf32>
    %20 = arith.addf %15, %19 : vector<128x1xf32>
    %21 = vector.extract_strided_slice %9 {offsets = [0, 2], sizes = [128, 1], strides = [1, 1]} : vector<128x9xf32> to vector<128x1xf32>
    %c7_i32 = arith.constant 7 : i32
    %22 = tpu.dynamic_rotate %21 by %c7_i32 dim 0 : vector<128x1xf32>, i32 -> vector<128x1xf32>
    %23 = vector.extract_strided_slice %3 {offsets = [0, 2], sizes = [128, 1], strides = [1, 1]} : vector<128x9xf32> to vector<128x1xf32>
    %24 = arith.mulf %23, %22 : vector<128x1xf32>
    %25 = arith.addf %20, %24 : vector<128x1xf32>
    %26 = vector.extract_strided_slice %9 {offsets = [0, 3], sizes = [128, 1], strides = [1, 1]} : vector<128x9xf32> to vector<128x1xf32>
    %c1_i32 = arith.constant 1 : i32
    %27 = tpu.dynamic_rotate %26 by %c1_i32 dim 0 : vector<128x1xf32>, i32 -> vector<128x1xf32>
    %28 = vector.extract_strided_slice %3 {offsets = [0, 3], sizes = [128, 1], strides = [1, 1]} : vector<128x9xf32> to vector<128x1xf32>
    %29 = arith.mulf %28, %27 : vector<128x1xf32>
    %30 = arith.addf %25, %29 : vector<128x1xf32>
    %31 = vector.extract_strided_slice %9 {offsets = [0, 4], sizes = [128, 1], strides = [1, 1]} : vector<128x9xf32> to vector<128x1xf32>
    %32 = vector.extract_strided_slice %3 {offsets = [0, 4], sizes = [128, 1], strides = [1, 1]} : vector<128x9xf32> to vector<128x1xf32>
    %33 = arith.mulf %32, %31 : vector<128x1xf32>
    %34 = arith.addf %30, %33 : vector<128x1xf32>
    %35 = vector.extract_strided_slice %9 {offsets = [0, 5], sizes = [128, 1], strides = [1, 1]} : vector<128x9xf32> to vector<128x1xf32>
    %c127_i32 = arith.constant 127 : i32
    %36 = tpu.dynamic_rotate %35 by %c127_i32 dim 0 : vector<128x1xf32>, i32 -> vector<128x1xf32>
    %37 = vector.extract_strided_slice %3 {offsets = [0, 5], sizes = [128, 1], strides = [1, 1]} : vector<128x9xf32> to vector<128x1xf32>
    %38 = arith.mulf %37, %36 : vector<128x1xf32>
    %39 = arith.addf %34, %38 : vector<128x1xf32>
    %40 = vector.extract_strided_slice %9 {offsets = [0, 6], sizes = [128, 1], strides = [1, 1]} : vector<128x9xf32> to vector<128x1xf32>
    %c121_i32 = arith.constant 121 : i32
    %41 = tpu.dynamic_rotate %40 by %c121_i32 dim 0 : vector<128x1xf32>, i32 -> vector<128x1xf32>
    %42 = vector.extract_strided_slice %3 {offsets = [0, 6], sizes = [128, 1], strides = [1, 1]} : vector<128x9xf32> to vector<128x1xf32>
    %43 = arith.mulf %42, %41 : vector<128x1xf32>
    %44 = arith.addf %39, %43 : vector<128x1xf32>
    %45 = vector.extract_strided_slice %9 {offsets = [0, 7], sizes = [128, 1], strides = [1, 1]} : vector<128x9xf32> to vector<128x1xf32>
    %c120_i32 = arith.constant 120 : i32
    %46 = tpu.dynamic_rotate %45 by %c120_i32 dim 0 : vector<128x1xf32>, i32 -> vector<128x1xf32>
    %47 = vector.extract_strided_slice %3 {offsets = [0, 7], sizes = [128, 1], strides = [1, 1]} : vector<128x9xf32> to vector<128x1xf32>
    %48 = arith.mulf %47, %46 : vector<128x1xf32>
    %49 = arith.addf %44, %48 : vector<128x1xf32>
    %50 = vector.extract_strided_slice %9 {offsets = [0, 8], sizes = [128, 1], strides = [1, 1]} : vector<128x9xf32> to vector<128x1xf32>
    %c119_i32 = arith.constant 119 : i32
    %51 = tpu.dynamic_rotate %50 by %c119_i32 dim 0 : vector<128x1xf32>, i32 -> vector<128x1xf32>
    %52 = vector.extract_strided_slice %3 {offsets = [0, 8], sizes = [128, 1], strides = [1, 1]} : vector<128x9xf32> to vector<128x1xf32>
    %53 = arith.mulf %52, %51 : vector<128x1xf32>
    %54 = arith.addf %49, %53 : vector<128x1xf32>
    %c0_15 = arith.constant 0 : index
    %c0_16 = arith.constant 0 : index
    %55 = vector.load %arg8[%c0_15, %c0_16] : memref<32x48xbf16, #tpu.memory_space<vmem>>, vector<32x48xbf16>
    %cst_17 = arith.constant dense<0.000000e+00> : vector<128x48xf32>
    %56 = tpu.matmul %0, %55, %cst_17 {dimension_numbers = #tpu.dot_dimension_numbers<[1], [0], [0], [1], [0, 0, 1, 1], [], []>} : vector<128x32xbf16>, vector<32x48xbf16>, vector<128x48xf32> -> vector<128x48xf32>
    %c0_18 = arith.constant 0 : index
    %c0_19 = arith.constant 0 : index
    %57 = vector.load %arg9[%c0_18, %c0_19] : memref<1x48xf32, #tpu.memory_space<vmem>>, vector<1x48xf32>
    %58 = vector.broadcast %57 : vector<1x48xf32> to vector<128x48xf32>
    %59 = arith.addf %56, %58 : vector<128x48xf32>
    %60 = math.tanh %59 : vector<128x48xf32>
    %c0_20 = arith.constant 0 : index
    %c0_21 = arith.constant 0 : index
    %61 = vector.load %arg10[%c0_20, %c0_21] : memref<48x4xf32, #tpu.memory_space<vmem>>, vector<48x4xf32>
    %cst_22 = arith.constant dense<0.000000e+00> : vector<128x4xf32>
    %62 = tpu.matmul %60, %61, %cst_22 {dimension_numbers = #tpu.dot_dimension_numbers<[1], [0], [0], [1], [0, 0, 1, 1], [], []>} : vector<128x48xf32>, vector<48x4xf32>, vector<128x4xf32> -> vector<128x4xf32>
    %c0_23 = arith.constant 0 : index
    %c0_24 = arith.constant 0 : index
    %63 = vector.load %arg11[%c0_23, %c0_24] : memref<1x4xf32, #tpu.memory_space<vmem>>, vector<1x4xf32>
    %64 = vector.broadcast %63 : vector<1x4xf32> to vector<128x4xf32>
    %65 = arith.addf %62, %64 : vector<128x4xf32>
    %66 = tpu.iota {dimensions = array<i32: 1>} : vector<1x4xi32>
    %c0_i32 = arith.constant 0 : i32
    %67 = vector.broadcast %c0_i32 : i32 to vector<1x4xi32>
    %68 = arith.cmpi eq, %66, %67 : vector<1x4xi32>
    %69 = arith.extui %68 : vector<1x4xi1> to vector<1x4xi32>
    %70 = arith.sitofp %69 : vector<1x4xi32> to vector<1x4xf32>
    %71 = vector.broadcast %54 : vector<128x1xf32> to vector<128x4xf32>
    %72 = vector.broadcast %70 : vector<1x4xf32> to vector<128x4xf32>
    %73 = arith.mulf %71, %72 : vector<128x4xf32>
    %74 = arith.addf %65, %73 : vector<128x4xf32>
    %75 = vector.shape_cast %74 : vector<128x4xf32> to vector<2x64x4xf32>
    %cst_25 = arith.constant dense<0xFF800000> : vector<2x4xf32>
    %76 = vector.multi_reduction <maximumf>, %75, %cst_25 [1] : vector<2x64x4xf32> to vector<2x4xf32>
    %77 = arith.truncf %76 : vector<2x4xf32> to vector<2x4xbf16>
    %cst_26 = arith.constant dense<0.000000e+00> : vector<128x4xf32>
    %78 = tpu.matmul %5, %77, %cst_26 {dimension_numbers = #tpu.dot_dimension_numbers<[1], [0], [0], [1], [0, 0, 1, 1], [], []>} : vector<128x2xbf16>, vector<2x4xbf16>, vector<128x4xf32> -> vector<128x4xf32>
    %79 = arith.subf %74, %78 : vector<128x4xf32>
    %80 = math.exp %79 : vector<128x4xf32>
    %81 = arith.truncf %80 : vector<128x4xf32> to vector<128x4xbf16>
    %cst_27 = arith.constant dense<0.000000e+00> : vector<2x4xf32>
    %82 = tpu.matmul %4, %81, %cst_27 {dimension_numbers = #tpu.dot_dimension_numbers<[1], [0], [0], [1], [0, 0, 1, 1], [], []>} : vector<2x128xbf16>, vector<128x4xbf16>, vector<2x4xf32> -> vector<2x4xf32>
    %83 = arith.truncf %82 : vector<2x4xf32> to vector<2x4xbf16>
    %cst_28 = arith.constant dense<0.000000e+00> : vector<128x4xf32>
    %84 = tpu.matmul %5, %83, %cst_28 {dimension_numbers = #tpu.dot_dimension_numbers<[1], [0], [0], [1], [0, 0, 1, 1], [], []>} : vector<128x2xbf16>, vector<2x4xbf16>, vector<128x4xf32> -> vector<128x4xf32>
    %85 = tpu.reciprocal %84 {approx = true} : vector<128x4xf32> -> vector<128x4xf32>
    %86 = arith.mulf %80, %85 : vector<128x4xf32>
    %87 = arith.truncf %86 : vector<128x4xf32> to vector<128x4xbf16>
    %88 = vector.extract_strided_slice %87 {offsets = [0, 0], sizes = [128, 1], strides = [1, 1]} : vector<128x4xbf16> to vector<128x1xbf16>
    %89 = vector.broadcast %88 : vector<128x1xbf16> to vector<128x32xbf16>
    %90 = arith.mulf %89, %0 : vector<128x32xbf16>
    %cst_29 = arith.constant dense<0.000000e+00> : vector<2x32xf32>
    %91 = tpu.matmul %4, %90, %cst_29 {dimension_numbers = #tpu.dot_dimension_numbers<[1], [0], [0], [1], [0, 0, 1, 1], [], []>} : vector<2x128xbf16>, vector<128x32xbf16>, vector<2x32xf32> -> vector<2x32xf32>
    %92 = vector.extract_strided_slice %87 {offsets = [0, 1], sizes = [128, 1], strides = [1, 1]} : vector<128x4xbf16> to vector<128x1xbf16>
    %93 = vector.broadcast %92 : vector<128x1xbf16> to vector<128x32xbf16>
    %94 = arith.mulf %93, %0 : vector<128x32xbf16>
    %cst_30 = arith.constant dense<0.000000e+00> : vector<2x32xf32>
    %95 = tpu.matmul %4, %94, %cst_30 {dimension_numbers = #tpu.dot_dimension_numbers<[1], [0], [0], [1], [0, 0, 1, 1], [], []>} : vector<2x128xbf16>, vector<128x32xbf16>, vector<2x32xf32> -> vector<2x32xf32>
    %96 = vector.extract_strided_slice %87 {offsets = [0, 2], sizes = [128, 1], strides = [1, 1]} : vector<128x4xbf16> to vector<128x1xbf16>
    %97 = vector.broadcast %96 : vector<128x1xbf16> to vector<128x32xbf16>
    %98 = arith.mulf %97, %0 : vector<128x32xbf16>
    %cst_31 = arith.constant dense<0.000000e+00> : vector<2x32xf32>
    %99 = tpu.matmul %4, %98, %cst_31 {dimension_numbers = #tpu.dot_dimension_numbers<[1], [0], [0], [1], [0, 0, 1, 1], [], []>} : vector<2x128xbf16>, vector<128x32xbf16>, vector<2x32xf32> -> vector<2x32xf32>
    %100 = vector.extract_strided_slice %87 {offsets = [0, 3], sizes = [128, 1], strides = [1, 1]} : vector<128x4xbf16> to vector<128x1xbf16>
    %101 = vector.broadcast %100 : vector<128x1xbf16> to vector<128x32xbf16>
    %102 = arith.mulf %101, %0 : vector<128x32xbf16>
    %cst_32 = arith.constant dense<0.000000e+00> : vector<2x32xf32>
    %103 = tpu.matmul %4, %102, %cst_32 {dimension_numbers = #tpu.dot_dimension_numbers<[1], [0], [0], [1], [0, 0, 1, 1], [], []>} : vector<2x128xbf16>, vector<128x32xbf16>, vector<2x32xf32> -> vector<2x32xf32>
    %104 = vector.extract_strided_slice %7 {offsets = [0, 0], sizes = [2, 32], strides = [1, 1]} : vector<6x32xf32> to vector<2x32xf32>
    %105 = vector.extract_strided_slice %7 {offsets = [2, 0], sizes = [2, 32], strides = [1, 1]} : vector<6x32xf32> to vector<2x32xf32>
    %106 = vector.extract_strided_slice %7 {offsets = [4, 0], sizes = [2, 32], strides = [1, 1]} : vector<6x32xf32> to vector<2x32xf32>
    %cst_33 = arith.constant 0.000000e+00 : f32
    %107 = vector.broadcast %cst_33 : f32 to vector<2x512xf32>
    %108 = arith.truncf %104 : vector<2x32xf32> to vector<2x32xbf16>
    %c0_34 = arith.constant 0 : index
    %c0_35 = arith.constant 0 : index
    %109 = vector.load %arg12[%c0_34, %c0_35] : memref<224x512xbf16, #tpu.memory_space<vmem>>, vector<32x512xbf16>
    %cst_36 = arith.constant dense<0.000000e+00> : vector<2x512xf32>
    %110 = tpu.matmul %108, %109, %cst_36 {dimension_numbers = #tpu.dot_dimension_numbers<[1], [0], [0], [1], [0, 0, 1, 1], [], []>} : vector<2x32xbf16>, vector<32x512xbf16>, vector<2x512xf32> -> vector<2x512xf32>
    %111 = arith.addf %107, %110 : vector<2x512xf32>
    %112 = arith.truncf %105 : vector<2x32xf32> to vector<2x32xbf16>
    %c32 = arith.constant 32 : index
    %c0_37 = arith.constant 0 : index
    %113 = vector.load %arg12[%c32, %c0_37] : memref<224x512xbf16, #tpu.memory_space<vmem>>, vector<32x512xbf16>
    %cst_38 = arith.constant dense<0.000000e+00> : vector<2x512xf32>
    %114 = tpu.matmul %112, %113, %cst_38 {dimension_numbers = #tpu.dot_dimension_numbers<[1], [0], [0], [1], [0, 0, 1, 1], [], []>} : vector<2x32xbf16>, vector<32x512xbf16>, vector<2x512xf32> -> vector<2x512xf32>
    %115 = arith.addf %111, %114 : vector<2x512xf32>
    %116 = arith.truncf %106 : vector<2x32xf32> to vector<2x32xbf16>
    %c64 = arith.constant 64 : index
    %c0_39 = arith.constant 0 : index
    %117 = vector.load %arg12[%c64, %c0_39] : memref<224x512xbf16, #tpu.memory_space<vmem>>, vector<32x512xbf16>
    %cst_40 = arith.constant dense<0.000000e+00> : vector<2x512xf32>
    %118 = tpu.matmul %116, %117, %cst_40 {dimension_numbers = #tpu.dot_dimension_numbers<[1], [0], [0], [1], [0, 0, 1, 1], [], []>} : vector<2x32xbf16>, vector<32x512xbf16>, vector<2x512xf32> -> vector<2x512xf32>
    %119 = arith.addf %115, %118 : vector<2x512xf32>
    %120 = arith.truncf %91 : vector<2x32xf32> to vector<2x32xbf16>
    %c96 = arith.constant 96 : index
    %c0_41 = arith.constant 0 : index
    %121 = vector.load %arg12[%c96, %c0_41] : memref<224x512xbf16, #tpu.memory_space<vmem>>, vector<32x512xbf16>
    %cst_42 = arith.constant dense<0.000000e+00> : vector<2x512xf32>
    %122 = tpu.matmul %120, %121, %cst_42 {dimension_numbers = #tpu.dot_dimension_numbers<[1], [0], [0], [1], [0, 0, 1, 1], [], []>} : vector<2x32xbf16>, vector<32x512xbf16>, vector<2x512xf32> -> vector<2x512xf32>
    %123 = arith.addf %119, %122 : vector<2x512xf32>
    %124 = arith.truncf %95 : vector<2x32xf32> to vector<2x32xbf16>
    %c128 = arith.constant 128 : index
    %c0_43 = arith.constant 0 : index
    %125 = vector.load %arg12[%c128, %c0_43] : memref<224x512xbf16, #tpu.memory_space<vmem>>, vector<32x512xbf16>
    %cst_44 = arith.constant dense<0.000000e+00> : vector<2x512xf32>
    %126 = tpu.matmul %124, %125, %cst_44 {dimension_numbers = #tpu.dot_dimension_numbers<[1], [0], [0], [1], [0, 0, 1, 1], [], []>} : vector<2x32xbf16>, vector<32x512xbf16>, vector<2x512xf32> -> vector<2x512xf32>
    %127 = arith.addf %123, %126 : vector<2x512xf32>
    %128 = arith.truncf %99 : vector<2x32xf32> to vector<2x32xbf16>
    %c160 = arith.constant 160 : index
    %c0_45 = arith.constant 0 : index
    %129 = vector.load %arg12[%c160, %c0_45] : memref<224x512xbf16, #tpu.memory_space<vmem>>, vector<32x512xbf16>
    %cst_46 = arith.constant dense<0.000000e+00> : vector<2x512xf32>
    %130 = tpu.matmul %128, %129, %cst_46 {dimension_numbers = #tpu.dot_dimension_numbers<[1], [0], [0], [1], [0, 0, 1, 1], [], []>} : vector<2x32xbf16>, vector<32x512xbf16>, vector<2x512xf32> -> vector<2x512xf32>
    %131 = arith.addf %127, %130 : vector<2x512xf32>
    %132 = arith.truncf %103 : vector<2x32xf32> to vector<2x32xbf16>
    %c192 = arith.constant 192 : index
    %c0_47 = arith.constant 0 : index
    %133 = vector.load %arg12[%c192, %c0_47] : memref<224x512xbf16, #tpu.memory_space<vmem>>, vector<32x512xbf16>
    %cst_48 = arith.constant dense<0.000000e+00> : vector<2x512xf32>
    %134 = tpu.matmul %132, %133, %cst_48 {dimension_numbers = #tpu.dot_dimension_numbers<[1], [0], [0], [1], [0, 0, 1, 1], [], []>} : vector<2x32xbf16>, vector<32x512xbf16>, vector<2x512xf32> -> vector<2x512xf32>
    %135 = arith.addf %131, %134 : vector<2x512xf32>
    %c0_49 = arith.constant 0 : index
    %c0_50 = arith.constant 0 : index
    %136 = vector.load %arg13[%c0_49, %c0_50] : memref<1x512xf32, #tpu.memory_space<vmem>>, vector<1x512xf32>
    %137 = vector.broadcast %136 : vector<1x512xf32> to vector<2x512xf32>
    %138 = arith.addf %135, %137 : vector<2x512xf32>
    %cst_51 = arith.constant 0.000000e+00 : f32
    %139 = vector.broadcast %cst_51 : f32 to vector<2x512xf32>
    %140 = arith.maximumf %138, %139 : vector<2x512xf32>
    %141 = arith.truncf %140 : vector<2x512xf32> to vector<2x512xbf16>
    %c0_52 = arith.constant 0 : index
    %c0_53 = arith.constant 0 : index
    %142 = vector.load %arg14[%c0_52, %c0_53] : memref<512x1xbf16, #tpu.memory_space<vmem>>, vector<512x1xbf16>
    %cst_54 = arith.constant dense<0.000000e+00> : vector<2x1xf32>
    %143 = tpu.matmul %141, %142, %cst_54 {dimension_numbers = #tpu.dot_dimension_numbers<[1], [0], [0], [1], [0, 0, 1, 1], [], []>} : vector<2x512xbf16>, vector<512x1xbf16>, vector<2x1xf32> -> vector<2x1xf32>
    %c0_55 = arith.constant 0 : index
    %c0_56 = arith.constant 0 : index
    %144 = vector.load %arg15[%c0_55, %c0_56] : memref<1x1xf32, #tpu.memory_space<vmem>>, vector<1x1xf32>
    %145 = vector.broadcast %144 : vector<1x1xf32> to vector<2x1xf32>
    %146 = arith.addf %143, %145 : vector<2x1xf32>
    %c0_57 = arith.constant 0 : index
    %c0_58 = arith.constant 0 : index
    %c0_59 = arith.constant 0 : index
    %147 = vector.load %arg16[%c0_57, %c0_58, %c0_59] : memref<1x2x1xf32, #tpu.memory_space<vmem>>, vector<1x2x1xf32>
    %148 = vector.shape_cast %147 : vector<1x2x1xf32> to vector<2x1xf32>
    %149 = vector.shape_cast %146 : vector<2x1xf32> to vector<1x2x1xf32>
    tpu.vector_store %arg16[%c0_57, %c0_58, %c0_59], %149 {strides = array<i32>} : memref<1x2x1xf32, #tpu.memory_space<vmem>>, vector<1x2x1xf32>,
    return
  }
  func.func @transform_0(%arg0: i32) -> (i32, i32) {
    %c0_i32 = arith.constant 0 : i32
    %c0_i32_0 = arith.constant 0 : i32
    return %arg0, %c0_i32 : i32, i32
  }
  func.func @transform_1(%arg0: i32) -> (i32, i32) {
    %c0_i32 = arith.constant 0 : i32
    %c0_i32_0 = arith.constant 0 : i32
    return %arg0, %c0_i32 : i32, i32
  }
  func.func @transform_2(%arg0: i32) -> (i32, i32) {
    %c0_i32 = arith.constant 0 : i32
    %c0_i32_0 = arith.constant 0 : i32
    %c0_i32_1 = arith.constant 0 : i32
    return %c0_i32, %c0_i32_0 : i32, i32
  }
  func.func @transform_3(%arg0: i32) -> (i32, i32) {
    %c0_i32 = arith.constant 0 : i32
    %c0_i32_0 = arith.constant 0 : i32
    %c0_i32_1 = arith.constant 0 : i32
    return %c0_i32, %c0_i32_0 : i32, i32
  }
  func.func @transform_4(%arg0: i32) -> (i32, i32) {
    %c0_i32 = arith.constant 0 : i32
    %c0_i32_0 = arith.constant 0 : i32
    %c0_i32_1 = arith.constant 0 : i32
    return %c0_i32, %c0_i32_0 : i32, i32
  }
  func.func @transform_5(%arg0: i32) -> (i32, i32) {
    %c0_i32 = arith.constant 0 : i32
    %c0_i32_0 = arith.constant 0 : i32
    %c0_i32_1 = arith.constant 0 : i32
    return %c0_i32, %c0_i32_0 : i32, i32
  }
  func.func @transform_6(%arg0: i32) -> (i32, i32) {
    %c0_i32 = arith.constant 0 : i32
    %c0_i32_0 = arith.constant 0 : i32
    %c0_i32_1 = arith.constant 0 : i32
    return %c0_i32, %c0_i32_0 : i32, i32
  }
  func.func @transform_7(%arg0: i32) -> (i32, i32) {
    %c0_i32 = arith.constant 0 : i32
    %c0_i32_0 = arith.constant 0 : i32
    %c0_i32_1 = arith.constant 0 : i32
    return %c0_i32, %c0_i32_0 : i32, i32
  }
  func.func @transform_8(%arg0: i32) -> (i32, i32) {
    %c0_i32 = arith.constant 0 : i32
    %c0_i32_0 = arith.constant 0 : i32
    %c0_i32_1 = arith.constant 0 : i32
    return %c0_i32, %c0_i32_0 : i32, i32
  }
  func.func @transform_9(%arg0: i32) -> (i32, i32) {
    %c0_i32 = arith.constant 0 : i32
    %c0_i32_0 = arith.constant 0 : i32
    %c0_i32_1 = arith.constant 0 : i32
    return %c0_i32, %c0_i32_0 : i32, i32
  }
  func.func @transform_10(%arg0: i32) -> (i32, i32) {
    %c0_i32 = arith.constant 0 : i32
    %c0_i32_0 = arith.constant 0 : i32
    %c0_i32_1 = arith.constant 0 : i32
    return %c0_i32, %c0_i32_0 : i32, i32
  }
  func.func @transform_11(%arg0: i32) -> (i32, i32) {
    %c0_i32 = arith.constant 0 : i32
    %c0_i32_0 = arith.constant 0 : i32
    %c0_i32_1 = arith.constant 0 : i32
    return %c0_i32, %c0_i32_0 : i32, i32
  }
  func.func @transform_12(%arg0: i32) -> (i32, i32) {
    %c0_i32 = arith.constant 0 : i32
    %c0_i32_0 = arith.constant 0 : i32
    %c0_i32_1 = arith.constant 0 : i32
    return %c0_i32, %c0_i32_0 : i32, i32
  }
  func.func @transform_13(%arg0: i32) -> (i32, i32) {
    %c0_i32 = arith.constant 0 : i32
    %c0_i32_0 = arith.constant 0 : i32
    %c0_i32_1 = arith.constant 0 : i32
    return %c0_i32, %c0_i32_0 : i32, i32
  }
  func.func @transform_14(%arg0: i32) -> (i32, i32) {
    %c0_i32 = arith.constant 0 : i32
    %c0_i32_0 = arith.constant 0 : i32
    %c0_i32_1 = arith.constant 0 : i32
    return %c0_i32, %c0_i32_0 : i32, i32
  }
  func.func @transform_15(%arg0: i32) -> (i32, i32, i32) {
    %c0_i32 = arith.constant 0 : i32
    %c0_i32_0 = arith.constant 0 : i32
    %c0_i32_1 = arith.constant 0 : i32
    return %arg0, %c0_i32, %c0_i32_0 : i32, i32, i32
  }
}

module attributes {stable_mosaic.version = 11 : i64} {
  func.func @_attention_pooling_kernel(%arg0: i32, %arg1: memref<128x32xbf16, #tpu.memory_space<vmem>>, %arg2: memref<128x32xbf16, #tpu.memory_space<vmem>>, %arg3: memref<128x9xbf16, #tpu.memory_space<vmem>>, %arg4: memref<2x128xbf16, #tpu.memory_space<vmem>>, %arg5: memref<128x2xbf16, #tpu.memory_space<vmem>>, %arg6: memref<6x128xbf16, #tpu.memory_space<vmem>>, %arg7: memref<32x9xbf16, #tpu.memory_space<vmem>>, %arg8: memref<32x48xbf16, #tpu.memory_space<vmem>>, %arg9: memref<1x48xf32, #tpu.memory_space<vmem>>, %arg10: memref<48x4xf32, #tpu.memory_space<vmem>>, %arg11: memref<1x4xf32, #tpu.memory_space<vmem>>, %arg12: memref<224x512xbf16, #tpu.memory_space<vmem>>, %arg13: memref<1x512xf32, #tpu.memory_space<vmem>>, %arg14: memref<512x1xbf16, #tpu.memory_space<vmem>>, %arg15: memref<1x1xf32, #tpu.memory_space<vmem>>, %arg16: memref<1x2x1xf32, #tpu.memory_space<vmem>>, %arg17: memref<160x9xf32, #tpu.memory_space<vmem>>) attributes {dimension_semantics = [#tpu.dimension_semantics<parallel>], iteration_bounds = array<i64: 2>, scalar_prefetch = 0 : i64, scratch_operands = 1 : i64, tpu.core_type = #tpu.core_type<tc>, window_params = [{transform_indices = @transform_0, window_bounds = array<i64: 128, 32>}, {transform_indices = @transform_1, window_bounds = array<i64: 128, 32>}, {pipeline_mode = #tpu.pipeline_mode<synchronous>, transform_indices = @transform_2, window_bounds = array<i64: 128, 9>}, {pipeline_mode = #tpu.pipeline_mode<synchronous>, transform_indices = @transform_3, window_bounds = array<i64: 2, 128>}, {pipeline_mode = #tpu.pipeline_mode<synchronous>, transform_indices = @transform_4, window_bounds = array<i64: 128, 2>}, {pipeline_mode = #tpu.pipeline_mode<synchronous>, transform_indices = @transform_5, window_bounds = array<i64: 6, 128>}, {pipeline_mode = #tpu.pipeline_mode<synchronous>, transform_indices = @transform_6, window_bounds = array<i64: 32, 9>}, {pipeline_mode = #tpu.pipeline_mode<synchronous>, transform_indices = @transform_7, window_bounds = array<i64: 32, 48>}, {pipeline_mode = #tpu.pipeline_mode<synchronous>, transform_indices = @transform_8, window_bounds = array<i64: 1, 48>}, {pipeline_mode = #tpu.pipeline_mode<synchronous>, transform_indices = @transform_9, window_bounds = array<i64: 48, 4>}, {pipeline_mode = #tpu.pipeline_mode<synchronous>, transform_indices = @transform_10, window_bounds = array<i64: 1, 4>}, {pipeline_mode = #tpu.pipeline_mode<synchronous>, transform_indices = @transform_11, window_bounds = array<i64: 224, 512>}, {pipeline_mode = #tpu.pipeline_mode<synchronous>, transform_indices = @transform_12, window_bounds = array<i64: 1, 512>}, {pipeline_mode = #tpu.pipeline_mode<synchronous>, transform_indices = @transform_13, window_bounds = array<i64: 512, 1>}, {pipeline_mode = #tpu.pipeline_mode<synchronous>, transform_indices = @transform_14, window_bounds = array<i64: 1, 1>}, {transform_indices = @transform_15, window_bounds = array<i64: 1, 2, 1>}]} {
    %c0 = arith.constant 0 : index
    %c0_0 = arith.constant 0 : index
    %0 = vector.load %arg1[%c0, %c0_0] : memref<128x32xbf16, #tpu.memory_space<vmem>>, vector<128x32xbf16>
    %c0_1 = arith.constant 0 : index
    %c0_2 = arith.constant 0 : index
    %1 = vector.load %arg2[%c0_1, %c0_2] : memref<128x32xbf16, #tpu.memory_space<vmem>>, vector<128x32xbf16>
    %c0_3 = arith.constant 0 : index
    %c0_4 = arith.constant 0 : index
    %2 = vector.load %arg3[%c0_3, %c0_4] : memref<128x9xbf16, #tpu.memory_space<vmem>>, vector<128x9xbf16>
    %3 = arith.extf %2 : vector<128x9xbf16> to vector<128x9xf32>
    %c0_5 = arith.constant 0 : index
    %c0_6 = arith.constant 0 : index
    %4 = vector.load %arg4[%c0_5, %c0_6] : memref<2x128xbf16, #tpu.memory_space<vmem>>, vector<2x128xbf16>
    %c0_7 = arith.constant 0 : index
    %c0_8 = arith.constant 0 : index
    %5 = vector.load %arg5[%c0_7, %c0_8] : memref<128x2xbf16, #tpu.memory_space<vmem>>, vector<128x2xbf16>
    %c0_9 = arith.constant 0 : index
    %c0_10 = arith.constant 0 : index
    %6 = vector.load %arg6[%c0_9, %c0_10] : memref<6x128xbf16, #tpu.memory_space<vmem>>, vector<6x128xbf16>
    %cst = arith.constant dense<0.000000e+00> : vector<6x32xf32>
    %7 = tpu.matmul %6, %1, %cst {dimension_numbers = #tpu.dot_dimension_numbers<[1], [0], [0], [1], [0, 0, 1, 1], [], []>} : vector<6x128xbf16>, vector<128x32xbf16>, vector<6x32xf32> -> vector<6x32xf32>
    %c0_11 = arith.constant 0 : index
    %c0_12 = arith.constant 0 : index
    %8 = vector.load %arg7[%c0_11, %c0_12] : memref<32x9xbf16, #tpu.memory_space<vmem>>, vector<32x9xbf16>
    %cst_13 = arith.constant dense<0.000000e+00> : vector<128x9xf32>
    %9 = tpu.matmul %1, %8, %cst_13 {dimension_numbers = #tpu.dot_dimension_numbers<[1], [0], [0], [1], [0, 0, 1, 1], [], []>} : vector<128x32xbf16>, vector<32x9xbf16>, vector<128x9xf32> -> vector<128x9xf32>
    %cst_14 = arith.constant 0.000000e+00 : f32
    %10 = vector.broadcast %cst_14 : f32 to vector<128x1xf32>
    %cst_15 = arith.constant 0.000000e+00 : f32
    %11 = vector.broadcast %cst_15 : f32 to vector<160x9xf32>
    %c0_16 = arith.constant 0 : index
    %c0_17 = arith.constant 0 : index
    %12 = vector.load %arg17[%c0_16, %c0_17] : memref<160x9xf32, #tpu.memory_space<vmem>>, vector<160x9xf32>
    tpu.vector_store %arg17[%c0_16, %c0_17], %11 {strides = array<i32>} : memref<160x9xf32, #tpu.memory_space<vmem>>, vector<160x9xf32>,
    %c16 = arith.constant 16 : index
    %c0_18 = arith.constant 0 : index
    %13 = vector.load %arg17[%c16, %c0_18] : memref<160x9xf32, #tpu.memory_space<vmem>>, vector<128x9xf32>
    tpu.vector_store %arg17[%c16, %c0_18], %9 {strides = array<i32>} : memref<160x9xf32, #tpu.memory_space<vmem>>, vector<128x9xf32>,
    %c7 = arith.constant 7 : index
    %c0_19 = arith.constant 0 : index
    %14 = vector.load %arg17[%c7, %c0_19] : memref<160x9xf32, #tpu.memory_space<vmem>>, vector<128x9xf32>
    %15 = vector.extract_strided_slice %3 {offsets = [0, 0], sizes = [128, 1], strides = [1, 1]} : vector<128x9xf32> to vector<128x1xf32>
    %16 = vector.extract_strided_slice %14 {offsets = [0, 0], sizes = [128, 1], strides = [1, 1]} : vector<128x9xf32> to vector<128x1xf32>
    %17 = arith.mulf %15, %16 : vector<128x1xf32>
    %18 = arith.addf %10, %17 : vector<128x1xf32>
    %c8 = arith.constant 8 : index
    %c0_20 = arith.constant 0 : index
    %19 = vector.load %arg17[%c8, %c0_20] : memref<160x9xf32, #tpu.memory_space<vmem>>, vector<128x9xf32>
    %20 = vector.extract_strided_slice %3 {offsets = [0, 1], sizes = [128, 1], strides = [1, 1]} : vector<128x9xf32> to vector<128x1xf32>
    %21 = vector.extract_strided_slice %19 {offsets = [0, 1], sizes = [128, 1], strides = [1, 1]} : vector<128x9xf32> to vector<128x1xf32>
    %22 = arith.mulf %20, %21 : vector<128x1xf32>
    %23 = arith.addf %18, %22 : vector<128x1xf32>
    %c9 = arith.constant 9 : index
    %c0_21 = arith.constant 0 : index
    %24 = vector.load %arg17[%c9, %c0_21] : memref<160x9xf32, #tpu.memory_space<vmem>>, vector<128x9xf32>
    %25 = vector.extract_strided_slice %3 {offsets = [0, 2], sizes = [128, 1], strides = [1, 1]} : vector<128x9xf32> to vector<128x1xf32>
    %26 = vector.extract_strided_slice %24 {offsets = [0, 2], sizes = [128, 1], strides = [1, 1]} : vector<128x9xf32> to vector<128x1xf32>
    %27 = arith.mulf %25, %26 : vector<128x1xf32>
    %28 = arith.addf %23, %27 : vector<128x1xf32>
    %c15 = arith.constant 15 : index
    %c0_22 = arith.constant 0 : index
    %29 = vector.load %arg17[%c15, %c0_22] : memref<160x9xf32, #tpu.memory_space<vmem>>, vector<128x9xf32>
    %30 = vector.extract_strided_slice %3 {offsets = [0, 3], sizes = [128, 1], strides = [1, 1]} : vector<128x9xf32> to vector<128x1xf32>
    %31 = vector.extract_strided_slice %29 {offsets = [0, 3], sizes = [128, 1], strides = [1, 1]} : vector<128x9xf32> to vector<128x1xf32>
    %32 = arith.mulf %30, %31 : vector<128x1xf32>
    %33 = arith.addf %28, %32 : vector<128x1xf32>
    %c16_23 = arith.constant 16 : index
    %c0_24 = arith.constant 0 : index
    %34 = vector.load %arg17[%c16_23, %c0_24] : memref<160x9xf32, #tpu.memory_space<vmem>>, vector<128x9xf32>
    %35 = vector.extract_strided_slice %3 {offsets = [0, 4], sizes = [128, 1], strides = [1, 1]} : vector<128x9xf32> to vector<128x1xf32>
    %36 = vector.extract_strided_slice %34 {offsets = [0, 4], sizes = [128, 1], strides = [1, 1]} : vector<128x9xf32> to vector<128x1xf32>
    %37 = arith.mulf %35, %36 : vector<128x1xf32>
    %38 = arith.addf %33, %37 : vector<128x1xf32>
    %c17 = arith.constant 17 : index
    %c0_25 = arith.constant 0 : index
    %39 = vector.load %arg17[%c17, %c0_25] : memref<160x9xf32, #tpu.memory_space<vmem>>, vector<128x9xf32>
    %40 = vector.extract_strided_slice %3 {offsets = [0, 5], sizes = [128, 1], strides = [1, 1]} : vector<128x9xf32> to vector<128x1xf32>
    %41 = vector.extract_strided_slice %39 {offsets = [0, 5], sizes = [128, 1], strides = [1, 1]} : vector<128x9xf32> to vector<128x1xf32>
    %42 = arith.mulf %40, %41 : vector<128x1xf32>
    %43 = arith.addf %38, %42 : vector<128x1xf32>
    %c23 = arith.constant 23 : index
    %c0_26 = arith.constant 0 : index
    %44 = vector.load %arg17[%c23, %c0_26] : memref<160x9xf32, #tpu.memory_space<vmem>>, vector<128x9xf32>
    %45 = vector.extract_strided_slice %3 {offsets = [0, 6], sizes = [128, 1], strides = [1, 1]} : vector<128x9xf32> to vector<128x1xf32>
    %46 = vector.extract_strided_slice %44 {offsets = [0, 6], sizes = [128, 1], strides = [1, 1]} : vector<128x9xf32> to vector<128x1xf32>
    %47 = arith.mulf %45, %46 : vector<128x1xf32>
    %48 = arith.addf %43, %47 : vector<128x1xf32>
    %c24 = arith.constant 24 : index
    %c0_27 = arith.constant 0 : index
    %49 = vector.load %arg17[%c24, %c0_27] : memref<160x9xf32, #tpu.memory_space<vmem>>, vector<128x9xf32>
    %50 = vector.extract_strided_slice %3 {offsets = [0, 7], sizes = [128, 1], strides = [1, 1]} : vector<128x9xf32> to vector<128x1xf32>
    %51 = vector.extract_strided_slice %49 {offsets = [0, 7], sizes = [128, 1], strides = [1, 1]} : vector<128x9xf32> to vector<128x1xf32>
    %52 = arith.mulf %50, %51 : vector<128x1xf32>
    %53 = arith.addf %48, %52 : vector<128x1xf32>
    %c25 = arith.constant 25 : index
    %c0_28 = arith.constant 0 : index
    %54 = vector.load %arg17[%c25, %c0_28] : memref<160x9xf32, #tpu.memory_space<vmem>>, vector<128x9xf32>
    %55 = vector.extract_strided_slice %3 {offsets = [0, 8], sizes = [128, 1], strides = [1, 1]} : vector<128x9xf32> to vector<128x1xf32>
    %56 = vector.extract_strided_slice %54 {offsets = [0, 8], sizes = [128, 1], strides = [1, 1]} : vector<128x9xf32> to vector<128x1xf32>
    %57 = arith.mulf %55, %56 : vector<128x1xf32>
    %58 = arith.addf %53, %57 : vector<128x1xf32>
    %c0_29 = arith.constant 0 : index
    %c0_30 = arith.constant 0 : index
    %59 = vector.load %arg8[%c0_29, %c0_30] : memref<32x48xbf16, #tpu.memory_space<vmem>>, vector<32x48xbf16>
    %cst_31 = arith.constant dense<0.000000e+00> : vector<128x48xf32>
    %60 = tpu.matmul %0, %59, %cst_31 {dimension_numbers = #tpu.dot_dimension_numbers<[1], [0], [0], [1], [0, 0, 1, 1], [], []>} : vector<128x32xbf16>, vector<32x48xbf16>, vector<128x48xf32> -> vector<128x48xf32>
    %c0_32 = arith.constant 0 : index
    %c0_33 = arith.constant 0 : index
    %61 = vector.load %arg9[%c0_32, %c0_33] : memref<1x48xf32, #tpu.memory_space<vmem>>, vector<1x48xf32>
    %62 = vector.broadcast %61 : vector<1x48xf32> to vector<128x48xf32>
    %63 = arith.addf %60, %62 : vector<128x48xf32>
    %64 = math.tanh %63 : vector<128x48xf32>
    %c0_34 = arith.constant 0 : index
    %c0_35 = arith.constant 0 : index
    %65 = vector.load %arg10[%c0_34, %c0_35] : memref<48x4xf32, #tpu.memory_space<vmem>>, vector<48x4xf32>
    %cst_36 = arith.constant dense<0.000000e+00> : vector<128x4xf32>
    %66 = tpu.matmul %64, %65, %cst_36 {dimension_numbers = #tpu.dot_dimension_numbers<[1], [0], [0], [1], [0, 0, 1, 1], [], []>} : vector<128x48xf32>, vector<48x4xf32>, vector<128x4xf32> -> vector<128x4xf32>
    %c0_37 = arith.constant 0 : index
    %c0_38 = arith.constant 0 : index
    %67 = vector.load %arg11[%c0_37, %c0_38] : memref<1x4xf32, #tpu.memory_space<vmem>>, vector<1x4xf32>
    %68 = vector.broadcast %67 : vector<1x4xf32> to vector<128x4xf32>
    %69 = arith.addf %66, %68 : vector<128x4xf32>
    %70 = tpu.iota {dimensions = array<i32: 1>} : vector<1x4xi32>
    %c0_i32 = arith.constant 0 : i32
    %71 = vector.broadcast %c0_i32 : i32 to vector<1x4xi32>
    %72 = arith.cmpi eq, %70, %71 : vector<1x4xi32>
    %73 = arith.extui %72 : vector<1x4xi1> to vector<1x4xi32>
    %74 = arith.sitofp %73 : vector<1x4xi32> to vector<1x4xf32>
    %75 = vector.broadcast %58 : vector<128x1xf32> to vector<128x4xf32>
    %76 = vector.broadcast %74 : vector<1x4xf32> to vector<128x4xf32>
    %77 = arith.mulf %75, %76 : vector<128x4xf32>
    %78 = arith.addf %69, %77 : vector<128x4xf32>
    %cst_39 = arith.constant dense<0xFF800000> : vector<4xf32>
    %79 = vector.multi_reduction <maximumf>, %78, %cst_39 [0] : vector<128x4xf32> to vector<4xf32>
    %80 = vector.shape_cast %79 : vector<4xf32> to vector<1x4xf32>
    %81 = vector.broadcast %80 : vector<1x4xf32> to vector<128x4xf32>
    %82 = arith.subf %78, %81 : vector<128x4xf32>
    %83 = math.exp %82 : vector<128x4xf32>
    %84 = arith.truncf %83 : vector<128x4xf32> to vector<128x4xbf16>
    %cst_40 = arith.constant dense<0.000000e+00> : vector<2x4xf32>
    %85 = tpu.matmul %4, %84, %cst_40 {dimension_numbers = #tpu.dot_dimension_numbers<[1], [0], [0], [1], [0, 0, 1, 1], [], []>} : vector<2x128xbf16>, vector<128x4xbf16>, vector<2x4xf32> -> vector<2x4xf32>
    %86 = arith.truncf %85 : vector<2x4xf32> to vector<2x4xbf16>
    %cst_41 = arith.constant dense<0.000000e+00> : vector<128x4xf32>
    %87 = tpu.matmul %5, %86, %cst_41 {dimension_numbers = #tpu.dot_dimension_numbers<[1], [0], [0], [1], [0, 0, 1, 1], [], []>} : vector<128x2xbf16>, vector<2x4xbf16>, vector<128x4xf32> -> vector<128x4xf32>
    %cst_42 = arith.constant 1.000000e-30 : f32
    %88 = vector.broadcast %cst_42 : f32 to vector<128x4xf32>
    %89 = arith.maximumf %87, %88 : vector<128x4xf32>
    %90 = arith.divf %83, %89 : vector<128x4xf32>
    %91 = arith.truncf %90 : vector<128x4xf32> to vector<128x4xbf16>
    %92 = vector.extract_strided_slice %91 {offsets = [0, 0], sizes = [128, 1], strides = [1, 1]} : vector<128x4xbf16> to vector<128x1xbf16>
    %93 = vector.broadcast %92 : vector<128x1xbf16> to vector<128x32xbf16>
    %94 = arith.mulf %93, %0 : vector<128x32xbf16>
    %cst_43 = arith.constant dense<0.000000e+00> : vector<2x32xf32>
    %95 = tpu.matmul %4, %94, %cst_43 {dimension_numbers = #tpu.dot_dimension_numbers<[1], [0], [0], [1], [0, 0, 1, 1], [], []>} : vector<2x128xbf16>, vector<128x32xbf16>, vector<2x32xf32> -> vector<2x32xf32>
    %96 = vector.extract_strided_slice %91 {offsets = [0, 1], sizes = [128, 1], strides = [1, 1]} : vector<128x4xbf16> to vector<128x1xbf16>
    %97 = vector.broadcast %96 : vector<128x1xbf16> to vector<128x32xbf16>
    %98 = arith.mulf %97, %0 : vector<128x32xbf16>
    %cst_44 = arith.constant dense<0.000000e+00> : vector<2x32xf32>
    %99 = tpu.matmul %4, %98, %cst_44 {dimension_numbers = #tpu.dot_dimension_numbers<[1], [0], [0], [1], [0, 0, 1, 1], [], []>} : vector<2x128xbf16>, vector<128x32xbf16>, vector<2x32xf32> -> vector<2x32xf32>
    %100 = vector.extract_strided_slice %91 {offsets = [0, 2], sizes = [128, 1], strides = [1, 1]} : vector<128x4xbf16> to vector<128x1xbf16>
    %101 = vector.broadcast %100 : vector<128x1xbf16> to vector<128x32xbf16>
    %102 = arith.mulf %101, %0 : vector<128x32xbf16>
    %cst_45 = arith.constant dense<0.000000e+00> : vector<2x32xf32>
    %103 = tpu.matmul %4, %102, %cst_45 {dimension_numbers = #tpu.dot_dimension_numbers<[1], [0], [0], [1], [0, 0, 1, 1], [], []>} : vector<2x128xbf16>, vector<128x32xbf16>, vector<2x32xf32> -> vector<2x32xf32>
    %104 = vector.extract_strided_slice %91 {offsets = [0, 3], sizes = [128, 1], strides = [1, 1]} : vector<128x4xbf16> to vector<128x1xbf16>
    %105 = vector.broadcast %104 : vector<128x1xbf16> to vector<128x32xbf16>
    %106 = arith.mulf %105, %0 : vector<128x32xbf16>
    %cst_46 = arith.constant dense<0.000000e+00> : vector<2x32xf32>
    %107 = tpu.matmul %4, %106, %cst_46 {dimension_numbers = #tpu.dot_dimension_numbers<[1], [0], [0], [1], [0, 0, 1, 1], [], []>} : vector<2x128xbf16>, vector<128x32xbf16>, vector<2x32xf32> -> vector<2x32xf32>
    %108 = vector.extract_strided_slice %7 {offsets = [0, 0], sizes = [2, 32], strides = [1, 1]} : vector<6x32xf32> to vector<2x32xf32>
    %109 = vector.extract_strided_slice %7 {offsets = [2, 0], sizes = [2, 32], strides = [1, 1]} : vector<6x32xf32> to vector<2x32xf32>
    %110 = vector.extract_strided_slice %7 {offsets = [4, 0], sizes = [2, 32], strides = [1, 1]} : vector<6x32xf32> to vector<2x32xf32>
    %cst_47 = arith.constant 0.000000e+00 : f32
    %111 = vector.broadcast %cst_47 : f32 to vector<2x512xf32>
    %112 = arith.truncf %108 : vector<2x32xf32> to vector<2x32xbf16>
    %c0_48 = arith.constant 0 : index
    %c0_49 = arith.constant 0 : index
    %113 = vector.load %arg12[%c0_48, %c0_49] : memref<224x512xbf16, #tpu.memory_space<vmem>>, vector<32x512xbf16>
    %cst_50 = arith.constant dense<0.000000e+00> : vector<2x512xf32>
    %114 = tpu.matmul %112, %113, %cst_50 {dimension_numbers = #tpu.dot_dimension_numbers<[1], [0], [0], [1], [0, 0, 1, 1], [], []>} : vector<2x32xbf16>, vector<32x512xbf16>, vector<2x512xf32> -> vector<2x512xf32>
    %115 = arith.addf %111, %114 : vector<2x512xf32>
    %116 = arith.truncf %109 : vector<2x32xf32> to vector<2x32xbf16>
    %c32 = arith.constant 32 : index
    %c0_51 = arith.constant 0 : index
    %117 = vector.load %arg12[%c32, %c0_51] : memref<224x512xbf16, #tpu.memory_space<vmem>>, vector<32x512xbf16>
    %cst_52 = arith.constant dense<0.000000e+00> : vector<2x512xf32>
    %118 = tpu.matmul %116, %117, %cst_52 {dimension_numbers = #tpu.dot_dimension_numbers<[1], [0], [0], [1], [0, 0, 1, 1], [], []>} : vector<2x32xbf16>, vector<32x512xbf16>, vector<2x512xf32> -> vector<2x512xf32>
    %119 = arith.addf %115, %118 : vector<2x512xf32>
    %120 = arith.truncf %110 : vector<2x32xf32> to vector<2x32xbf16>
    %c64 = arith.constant 64 : index
    %c0_53 = arith.constant 0 : index
    %121 = vector.load %arg12[%c64, %c0_53] : memref<224x512xbf16, #tpu.memory_space<vmem>>, vector<32x512xbf16>
    %cst_54 = arith.constant dense<0.000000e+00> : vector<2x512xf32>
    %122 = tpu.matmul %120, %121, %cst_54 {dimension_numbers = #tpu.dot_dimension_numbers<[1], [0], [0], [1], [0, 0, 1, 1], [], []>} : vector<2x32xbf16>, vector<32x512xbf16>, vector<2x512xf32> -> vector<2x512xf32>
    %123 = arith.addf %119, %122 : vector<2x512xf32>
    %124 = arith.truncf %95 : vector<2x32xf32> to vector<2x32xbf16>
    %c96 = arith.constant 96 : index
    %c0_55 = arith.constant 0 : index
    %125 = vector.load %arg12[%c96, %c0_55] : memref<224x512xbf16, #tpu.memory_space<vmem>>, vector<32x512xbf16>
    %cst_56 = arith.constant dense<0.000000e+00> : vector<2x512xf32>
    %126 = tpu.matmul %124, %125, %cst_56 {dimension_numbers = #tpu.dot_dimension_numbers<[1], [0], [0], [1], [0, 0, 1, 1], [], []>} : vector<2x32xbf16>, vector<32x512xbf16>, vector<2x512xf32> -> vector<2x512xf32>
    %127 = arith.addf %123, %126 : vector<2x512xf32>
    %128 = arith.truncf %99 : vector<2x32xf32> to vector<2x32xbf16>
    %c128 = arith.constant 128 : index
    %c0_57 = arith.constant 0 : index
    %129 = vector.load %arg12[%c128, %c0_57] : memref<224x512xbf16, #tpu.memory_space<vmem>>, vector<32x512xbf16>
    %cst_58 = arith.constant dense<0.000000e+00> : vector<2x512xf32>
    %130 = tpu.matmul %128, %129, %cst_58 {dimension_numbers = #tpu.dot_dimension_numbers<[1], [0], [0], [1], [0, 0, 1, 1], [], []>} : vector<2x32xbf16>, vector<32x512xbf16>, vector<2x512xf32> -> vector<2x512xf32>
    %131 = arith.addf %127, %130 : vector<2x512xf32>
    %132 = arith.truncf %103 : vector<2x32xf32> to vector<2x32xbf16>
    %c160 = arith.constant 160 : index
    %c0_59 = arith.constant 0 : index
    %133 = vector.load %arg12[%c160, %c0_59] : memref<224x512xbf16, #tpu.memory_space<vmem>>, vector<32x512xbf16>
    %cst_60 = arith.constant dense<0.000000e+00> : vector<2x512xf32>
    %134 = tpu.matmul %132, %133, %cst_60 {dimension_numbers = #tpu.dot_dimension_numbers<[1], [0], [0], [1], [0, 0, 1, 1], [], []>} : vector<2x32xbf16>, vector<32x512xbf16>, vector<2x512xf32> -> vector<2x512xf32>
    %135 = arith.addf %131, %134 : vector<2x512xf32>
    %136 = arith.truncf %107 : vector<2x32xf32> to vector<2x32xbf16>
    %c192 = arith.constant 192 : index
    %c0_61 = arith.constant 0 : index
    %137 = vector.load %arg12[%c192, %c0_61] : memref<224x512xbf16, #tpu.memory_space<vmem>>, vector<32x512xbf16>
    %cst_62 = arith.constant dense<0.000000e+00> : vector<2x512xf32>
    %138 = tpu.matmul %136, %137, %cst_62 {dimension_numbers = #tpu.dot_dimension_numbers<[1], [0], [0], [1], [0, 0, 1, 1], [], []>} : vector<2x32xbf16>, vector<32x512xbf16>, vector<2x512xf32> -> vector<2x512xf32>
    %139 = arith.addf %135, %138 : vector<2x512xf32>
    %c0_63 = arith.constant 0 : index
    %c0_64 = arith.constant 0 : index
    %140 = vector.load %arg13[%c0_63, %c0_64] : memref<1x512xf32, #tpu.memory_space<vmem>>, vector<1x512xf32>
    %141 = vector.broadcast %140 : vector<1x512xf32> to vector<2x512xf32>
    %142 = arith.addf %139, %141 : vector<2x512xf32>
    %cst_65 = arith.constant 0.000000e+00 : f32
    %143 = vector.broadcast %cst_65 : f32 to vector<2x512xf32>
    %144 = arith.maximumf %142, %143 : vector<2x512xf32>
    %145 = arith.truncf %144 : vector<2x512xf32> to vector<2x512xbf16>
    %c0_66 = arith.constant 0 : index
    %c0_67 = arith.constant 0 : index
    %146 = vector.load %arg14[%c0_66, %c0_67] : memref<512x1xbf16, #tpu.memory_space<vmem>>, vector<512x1xbf16>
    %cst_68 = arith.constant dense<0.000000e+00> : vector<2x1xf32>
    %147 = tpu.matmul %145, %146, %cst_68 {dimension_numbers = #tpu.dot_dimension_numbers<[1], [0], [0], [1], [0, 0, 1, 1], [], []>} : vector<2x512xbf16>, vector<512x1xbf16>, vector<2x1xf32> -> vector<2x1xf32>
    %c0_69 = arith.constant 0 : index
    %c0_70 = arith.constant 0 : index
    %148 = vector.load %arg15[%c0_69, %c0_70] : memref<1x1xf32, #tpu.memory_space<vmem>>, vector<1x1xf32>
    %149 = vector.broadcast %148 : vector<1x1xf32> to vector<2x1xf32>
    %150 = arith.addf %147, %149 : vector<2x1xf32>
    %c0_71 = arith.constant 0 : index
    %c0_72 = arith.constant 0 : index
    %c0_73 = arith.constant 0 : index
    %151 = vector.load %arg16[%c0_71, %c0_72, %c0_73] : memref<1x2x1xf32, #tpu.memory_space<vmem>>, vector<1x2x1xf32>
    %152 = vector.shape_cast %151 : vector<1x2x1xf32> to vector<2x1xf32>
    %153 = vector.shape_cast %150 : vector<2x1xf32> to vector<1x2x1xf32>
    tpu.vector_store %arg16[%c0_71, %c0_72, %c0_73], %153 {strides = array<i32>} : memref<1x2x1xf32, #tpu.memory_space<vmem>>, vector<1x2x1xf32>,
    return
  }
  func.func @transform_0(%arg0: i32) -> (i32, i32) {
    %c0_i32 = arith.constant 0 : i32
    %c0_i32_0 = arith.constant 0 : i32
    return %arg0, %c0_i32 : i32, i32
  }
  func.func @transform_1(%arg0: i32) -> (i32, i32) {
    %c0_i32 = arith.constant 0 : i32
    %c0_i32_0 = arith.constant 0 : i32
    return %arg0, %c0_i32 : i32, i32
  }
  func.func @transform_2(%arg0: i32) -> (i32, i32) {
    %c0_i32 = arith.constant 0 : i32
    %c0_i32_0 = arith.constant 0 : i32
    %c0_i32_1 = arith.constant 0 : i32
    return %c0_i32, %c0_i32_0 : i32, i32
  }
  func.func @transform_3(%arg0: i32) -> (i32, i32) {
    %c0_i32 = arith.constant 0 : i32
    %c0_i32_0 = arith.constant 0 : i32
    %c0_i32_1 = arith.constant 0 : i32
    return %c0_i32, %c0_i32_0 : i32, i32
  }
  func.func @transform_4(%arg0: i32) -> (i32, i32) {
    %c0_i32 = arith.constant 0 : i32
    %c0_i32_0 = arith.constant 0 : i32
    %c0_i32_1 = arith.constant 0 : i32
    return %c0_i32, %c0_i32_0 : i32, i32
  }
  func.func @transform_5(%arg0: i32) -> (i32, i32) {
    %c0_i32 = arith.constant 0 : i32
    %c0_i32_0 = arith.constant 0 : i32
    %c0_i32_1 = arith.constant 0 : i32
    return %c0_i32, %c0_i32_0 : i32, i32
  }
  func.func @transform_6(%arg0: i32) -> (i32, i32) {
    %c0_i32 = arith.constant 0 : i32
    %c0_i32_0 = arith.constant 0 : i32
    %c0_i32_1 = arith.constant 0 : i32
    return %c0_i32, %c0_i32_0 : i32, i32
  }
  func.func @transform_7(%arg0: i32) -> (i32, i32) {
    %c0_i32 = arith.constant 0 : i32
    %c0_i32_0 = arith.constant 0 : i32
    %c0_i32_1 = arith.constant 0 : i32
    return %c0_i32, %c0_i32_0 : i32, i32
  }
  func.func @transform_8(%arg0: i32) -> (i32, i32) {
    %c0_i32 = arith.constant 0 : i32
    %c0_i32_0 = arith.constant 0 : i32
    %c0_i32_1 = arith.constant 0 : i32
    return %c0_i32, %c0_i32_0 : i32, i32
  }
  func.func @transform_9(%arg0: i32) -> (i32, i32) {
    %c0_i32 = arith.constant 0 : i32
    %c0_i32_0 = arith.constant 0 : i32
    %c0_i32_1 = arith.constant 0 : i32
    return %c0_i32, %c0_i32_0 : i32, i32
  }
  func.func @transform_10(%arg0: i32) -> (i32, i32) {
    %c0_i32 = arith.constant 0 : i32
    %c0_i32_0 = arith.constant 0 : i32
    %c0_i32_1 = arith.constant 0 : i32
    return %c0_i32, %c0_i32_0 : i32, i32
  }
  func.func @transform_11(%arg0: i32) -> (i32, i32) {
    %c0_i32 = arith.constant 0 : i32
    %c0_i32_0 = arith.constant 0 : i32
    %c0_i32_1 = arith.constant 0 : i32
    return %c0_i32, %c0_i32_0 : i32, i32
  }
  func.func @transform_12(%arg0: i32) -> (i32, i32) {
    %c0_i32 = arith.constant 0 : i32
    %c0_i32_0 = arith.constant 0 : i32
    %c0_i32_1 = arith.constant 0 : i32
    return %c0_i32, %c0_i32_0 : i32, i32
  }
  func.func @transform_13(%arg0: i32) -> (i32, i32) {
    %c0_i32 = arith.constant 0 : i32
    %c0_i32_0 = arith.constant 0 : i32
    %c0_i32_1 = arith.constant 0 : i32
    return %c0_i32, %c0_i32_0 : i32, i32
  }
  func.func @transform_14(%arg0: i32) -> (i32, i32) {
    %c0_i32 = arith.constant 0 : i32
    %c0_i32_0 = arith.constant 0 : i32
    %c0_i32_1 = arith.constant 0 : i32
    return %c0_i32, %c0_i32_0 : i32, i32
  }
  func.func @transform_15(%arg0: i32) -> (i32, i32, i32) {
    %c0_i32 = arith.constant 0 : i32
    %c0_i32_0 = arith.constant 0 : i32
    %c0_i32_1 = arith.constant 0 : i32
    return %arg0, %c0_i32, %c0_i32_0 : i32, i32, i32
  }
}

</mosaic_0001>

<llo_original>
// kernel: tpu_custom_call.1
$region0: #{tpu_custom_call.1}
  #allocation0 [shape = 'u32[]', space=smem, size = 0x4, offset = 0x4, fixed_abs, tag = 'smem constant byte address 0x4 - core index']
  #allocation1 [shape = 'u32[144,128]{1,0:T(1,128)}', space=vmem, size = 0x12000, scoped, tag = 'internal scratch']
  #allocation2 [shape = 'f32[1,1]{1,0:T(1,128)S(1)}', space=vmem, size = 0x200, scoped, tag = 'scoped memory for tpu_custom_call.1']
  %s0 = inlined_call_operand.vmem [shape: bf16[256,32], index: 0, kind: input, shape index: {}]
  %s1 = inlined_call_operand.vmem [shape: bf16[256,32], index: 1, kind: input, shape index: {}]
  %s2 = inlined_call_operand.vmem [shape: bf16[128,9], index: 2, kind: input, shape index: {}]
  %s3 = inlined_call_operand.vmem [shape: bf16[2,128], index: 3, kind: input, shape index: {}]
  %s4 = inlined_call_operand.vmem [shape: bf16[128,2], index: 4, kind: input, shape index: {}]
  %s5 = inlined_call_operand.vmem [shape: bf16[6,128], index: 5, kind: input, shape index: {}]
  %s6 = inlined_call_operand.vmem [shape: bf16[32,9], index: 6, kind: input, shape index: {}]
  %s7 = inlined_call_operand.vmem [shape: bf16[32,48], index: 7, kind: input, shape index: {}]
  %s8 = inlined_call_operand.vmem [shape: f32[1,48], index: 8, kind: input, shape index: {}]
  %s9 = inlined_call_operand.vmem [shape: f32[48,4], index: 9, kind: input, shape index: {}]
  %s10 = inlined_call_operand.vmem [shape: f32[1,4], index: 10, kind: input, shape index: {}]
  %s11 = inlined_call_operand.vmem [shape: bf16[224,512], index: 11, kind: input, shape index: {}]
  %s12 = inlined_call_operand.vmem [shape: f32[1,512], index: 12, kind: input, shape index: {}]
  %s13 = inlined_call_operand.vmem [shape: bf16[512,1], index: 13, kind: input, shape index: {}]
  %s14 = inlined_call_operand.<no memory space> [shape: f32[1,1], index: 14, kind: input, shape index: {}]
  %s15 = inlined_call_operand.vmem [shape: f32[2,2,1], index: 15, kind: output, shape index: {}]
  %s16 = sld [smem:[#allocation0]]
  $region93: #{tpu_custom_call.1} parent=0
    _
  %s18 = ssub.s32 1, %s16
  %s19 = scalar_select 0, %s18, %s16
  %v20 = vstv %s14
  %21 = vst [vmem:[#allocation2] sm:$0x1] %v20
  loop: start=0, step=1, limit=4
  $region2: #{tpu_custom_call.1} parent=0 // loop_pre_header
    _
  $region3: #{tpu_custom_call.1} parent=0 // loop_header
    %s23 = sphi 0, %s27
    %p24 = scmp.ge.s32.totalorder %s23, 4
    %s33 = sphi 0, %s35
    %s36 = sphi 0, %s33
    %s37 = sphi 0, %s36
    %s53 = sphi 0, %s37
    %s59 = sphi 0, %s61
    %s62 = sphi 0, %s59
    %s63 = sphi 0, %s62
    %s79 = sphi 0, %s63
    %s83 = sphi 0, %s83
    %s85 = sphi 0, %s83
    %s86 = sphi 0, %s85
    %s100 = sphi 0, %s86
    %s104 = sphi 0, %s104
    %s106 = sphi 0, %s104
    %s107 = sphi 0, %s106
    %s121 = sphi 0, %s107
    %s125 = sphi 0, %s125
    %s127 = sphi 0, %s125
    %s128 = sphi 0, %s127
    %s142 = sphi 0, %s128
    %s146 = sphi 0, %s146
    %s148 = sphi 0, %s146
    %s149 = sphi 0, %s148
    %s163 = sphi 0, %s149
    %s167 = sphi 0, %s167
    %s169 = sphi 0, %s167
    %s170 = sphi 0, %s169
    %s184 = sphi 0, %s170
    %s188 = sphi 0, %s188
    %s190 = sphi 0, %s188
    %s191 = sphi 0, %s190
    %s205 = sphi 0, %s191
    %s209 = sphi 0, %s209
    %s211 = sphi 0, %s209
    %s212 = sphi 0, %s211
    %s226 = sphi 0, %s212
    %s230 = sphi 0, %s230
    %s232 = sphi 0, %s230
    %s233 = sphi 0, %s232
    %s247 = sphi 0, %s233
    %s251 = sphi 0, %s251
    %s253 = sphi 0, %s251
    %s254 = sphi 0, %s253
    %s268 = sphi 0, %s254
    %s272 = sphi 0, %s272
    %s274 = sphi 0, %s272
    %s275 = sphi 0, %s274
    %s289 = sphi 0, %s275
    %s293 = sphi 0, %s293
    %s295 = sphi 0, %s293
    %s296 = sphi 0, %s295
    %s310 = sphi 0, %s296
    %s314 = sphi 0, %s314
    %s316 = sphi 0, %s314
    %s317 = sphi 0, %s316
    %s331 = sphi 0, %s317
    %s335 = sphi 0, %s335
    %s337 = sphi 0, %s335
    %s338 = sphi 0, %s337
    %s352 = sphi 0, %s338
    %s358 = sphi 0, %s360
    %s361 = sphi 0, %s358
    %s362 = sphi 0, %s361
    %s378 = sphi 0, %s362
  $region4: #{tpu_custom_call.1} parent=0 // loop_header_branch
    %26 = sbr.rel (%p24) target = $region8
  $region5: #{tpu_custom_call.1} parent=0 // loop_body
    %s28 = ssub.s32 %s23, 1
    %s29 = ssub.s32 %s23, 2
    %s30 = sadd.s32 %s23, 1
    %s31 = ssub.s32 %s23, %s30
    %p32 = scmp.eq.s32.totalorder %s31, 0
    %s34 = sadd.s32 %s33, 1
    %s35 = scalar_select %p32, %s33, %s34
    %p38 = pneg %p32
    %p39 = scmp.eq.s32.totalorder %s23, 1
    %p40 = por %p38, %p39
    %p41 = scmp.ne.s32.totalorder %s33, %s36
    %p42 = scmp.eq.s32.totalorder %s23, 0
    %p43 = por %p41, %p42
    %p44 = scmp.ne.s32.totalorder %s33, %s36
    %p45 = scmp.eq.s32.totalorder %s28, 1
    %p46 = por %p44, %p45
    %p47 = scmp.ne.s32.totalorder %s36, %s37
    %p48 = scmp.eq.s32.totalorder %s28, 0
    %p49 = por %p47, %p48
    %p50 = scmp.ne.s32.totalorder %s36, %s37
    %p51 = scmp.eq.s32.totalorder %s29, 1
    %p52 = por %p50, %p51
    %p54 = scmp.ne.s32.totalorder %s37, %s53
    %p55 = scmp.eq.s32.totalorder %s29, 0
    %p56 = por %p54, %p55
    %s57 = ssub.s32 %s23, %s30
    %p58 = scmp.eq.s32.totalorder %s57, 0
    %s60 = sadd.s32 %s59, 1
    %s61 = scalar_select %p58, %s59, %s60
    %p64 = pneg %p58
    %p65 = scmp.eq.s32.totalorder %s23, 1
    %p66 = por %p64, %p65
    %p67 = scmp.ne.s32.totalorder %s59, %s62
    %p68 = scmp.eq.s32.totalorder %s23, 0
    %p69 = por %p67, %p68
    %p70 = scmp.ne.s32.totalorder %s59, %s62
    %p71 = scmp.eq.s32.totalorder %s28, 1
    %p72 = por %p70, %p71
    %p73 = scmp.ne.s32.totalorder %s62, %s63
    %p74 = scmp.eq.s32.totalorder %s28, 0
    %p75 = por %p73, %p74
    %p76 = scmp.ne.s32.totalorder %s62, %s63
    %p77 = scmp.eq.s32.totalorder %s29, 1
    %p78 = por %p76, %p77
    %p80 = scmp.ne.s32.totalorder %s63, %s79
    %p81 = scmp.eq.s32.totalorder %s29, 0
    %p82 = por %p80, %p81
    %s84 = sadd.s32 %s83, 1
    %p87 = scmp.eq.s32.totalorder %s23, 1
    %p88 = scmp.ne.s32.totalorder %s83, %s85
    %p89 = scmp.eq.s32.totalorder %s23, 0
    %p90 = por %p88, %p89
    %p91 = scmp.ne.s32.totalorder %s83, %s85
    %p92 = scmp.eq.s32.totalorder %s28, 1
    %p93 = por %p91, %p92
    %p94 = scmp.ne.s32.totalorder %s85, %s86
    %p95 = scmp.eq.s32.totalorder %s28, 0
    %p96 = por %p94, %p95
    %p97 = scmp.ne.s32.totalorder %s85, %s86
    %p98 = scmp.eq.s32.totalorder %s29, 1
    %p99 = por %p97, %p98
    %p101 = scmp.ne.s32.totalorder %s86, %s100
    %p102 = scmp.eq.s32.totalorder %s29, 0
    %p103 = por %p101, %p102
    %s105 = sadd.s32 %s104, 1
    %p108 = scmp.eq.s32.totalorder %s23, 1
    %p109 = scmp.ne.s32.totalorder %s104, %s106
    %p110 = scmp.eq.s32.totalorder %s23, 0
    %p111 = por %p109, %p110
    %p112 = scmp.ne.s32.totalorder %s104, %s106
    %p113 = scmp.eq.s32.totalorder %s28, 1
    %p114 = por %p112, %p113
    %p115 = scmp.ne.s32.totalorder %s106, %s107
    %p116 = scmp.eq.s32.totalorder %s28, 0
    %p117 = por %p115, %p116
    %p118 = scmp.ne.s32.totalorder %s106, %s107
    %p119 = scmp.eq.s32.totalorder %s29, 1
    %p120 = por %p118, %p119
    %p122 = scmp.ne.s32.totalorder %s107, %s121
    %p123 = scmp.eq.s32.totalorder %s29, 0
    %p124 = por %p122, %p123
    %s126 = sadd.s32 %s125, 1
    %p129 = scmp.eq.s32.totalorder %s23, 1
    %p130 = scmp.ne.s32.totalorder %s125, %s127
    %p131 = scmp.eq.s32.totalorder %s23, 0
    %p132 = por %p130, %p131
    %p133 = scmp.ne.s32.totalorder %s125, %s127
    %p134 = scmp.eq.s32.totalorder %s28, 1
    %p135 = por %p133, %p134
    %p136 = scmp.ne.s32.totalorder %s127, %s128
    %p137 = scmp.eq.s32.totalorder %s28, 0
    %p138 = por %p136, %p137
    %p139 = scmp.ne.s32.totalorder %s127, %s128
    %p140 = scmp.eq.s32.totalorder %s29, 1
    %p141 = por %p139, %p140
    %p143 = scmp.ne.s32.totalorder %s128, %s142
    %p144 = scmp.eq.s32.totalorder %s29, 0
    %p145 = por %p143, %p144
    %s147 = sadd.s32 %s146, 1
    %p150 = scmp.eq.s32.totalorder %s23, 1
    %p151 = scmp.ne.s32.totalorder %s146, %s148
    %p152 = scmp.eq.s32.totalorder %s23, 0
    %p153 = por %p151, %p152
    %p154 = scmp.ne.s32.totalorder %s146, %s148
    %p155 = scmp.eq.s32.totalorder %s28, 1
    %p156 = por %p154, %p155
    %p157 = scmp.ne.s32.totalorder %s148, %s149
    %p158 = scmp.eq.s32.totalorder %s28, 0
    %p159 = por %p157, %p158
    %p160 = scmp.ne.s32.totalorder %s148, %s149
    %p161 = scmp.eq.s32.totalorder %s29, 1
    %p162 = por %p160, %p161
    %p164 = scmp.ne.s32.totalorder %s149, %s163
    %p165 = scmp.eq.s32.totalorder %s29, 0
    %p166 = por %p164, %p165
    %s168 = sadd.s32 %s167, 1
    %p171 = scmp.eq.s32.totalorder %s23, 1
    %p172 = scmp.ne.s32.totalorder %s167, %s169
    %p173 = scmp.eq.s32.totalorder %s23, 0
    %p174 = por %p172, %p173
    %p175 = scmp.ne.s32.totalorder %s167, %s169
    %p176 = scmp.eq.s32.totalorder %s28, 1
    %p177 = por %p175, %p176
    %p178 = scmp.ne.s32.totalorder %s169, %s170
    %p179 = scmp.eq.s32.totalorder %s28, 0
    %p180 = por %p178, %p179
    %p181 = scmp.ne.s32.totalorder %s169, %s170
    %p182 = scmp.eq.s32.totalorder %s29, 1
    %p183 = por %p181, %p182
    %p185 = scmp.ne.s32.totalorder %s170, %s184
    %p186 = scmp.eq.s32.totalorder %s29, 0
    %p187 = por %p185, %p186
    %s189 = sadd.s32 %s188, 1
    %p192 = scmp.eq.s32.totalorder %s23, 1
    %p193 = scmp.ne.s32.totalorder %s188, %s190
    %p194 = scmp.eq.s32.totalorder %s23, 0
    %p195 = por %p193, %p194
    %p196 = scmp.ne.s32.totalorder %s188, %s190
    %p197 = scmp.eq.s32.totalorder %s28, 1
    %p198 = por %p196, %p197
    %p199 = scmp.ne.s32.totalorder %s190, %s191
    %p200 = scmp.eq.s32.totalorder %s28, 0
    %p201 = por %p199, %p200
    %p202 = scmp.ne.s32.totalorder %s190, %s191
    %p203 = scmp.eq.s32.totalorder %s29, 1
    %p204 = por %p202, %p203
    %p206 = scmp.ne.s32.totalorder %s191, %s205
    %p207 = scmp.eq.s32.totalorder %s29, 0
    %p208 = por %p206, %p207
    %s210 = sadd.s32 %s209, 1
    %p213 = scmp.eq.s32.totalorder %s23, 1
    %p214 = scmp.ne.s32.totalorder %s209, %s211
    %p215 = scmp.eq.s32.totalorder %s23, 0
    %p216 = por %p214, %p215
    %p217 = scmp.ne.s32.totalorder %s209, %s211
    %p218 = scmp.eq.s32.totalorder %s28, 1
    %p219 = por %p217, %p218
    %p220 = scmp.ne.s32.totalorder %s211, %s212
    %p221 = scmp.eq.s32.totalorder %s28, 0
    %p222 = por %p220, %p221
    %p223 = scmp.ne.s32.totalorder %s211, %s212
    %p224 = scmp.eq.s32.totalorder %s29, 1
    %p225 = por %p223, %p224
    %p227 = scmp.ne.s32.totalorder %s212, %s226
    %p228 = scmp.eq.s32.totalorder %s29, 0
    %p229 = por %p227, %p228
    %s231 = sadd.s32 %s230, 1
    %p234 = scmp.eq.s32.totalorder %s23, 1
    %p235 = scmp.ne.s32.totalorder %s230, %s232
    %p236 = scmp.eq.s32.totalorder %s23, 0
    %p237 = por %p235, %p236
    %p238 = scmp.ne.s32.totalorder %s230, %s232
    %p239 = scmp.eq.s32.totalorder %s28, 1
    %p240 = por %p238, %p239
    %p241 = scmp.ne.s32.totalorder %s232, %s233
    %p242 = scmp.eq.s32.totalorder %s28, 0
    %p243 = por %p241, %p242
    %p244 = scmp.ne.s32.totalorder %s232, %s233
    %p245 = scmp.eq.s32.totalorder %s29, 1
    %p246 = por %p244, %p245
    %p248 = scmp.ne.s32.totalorder %s233, %s247
    %p249 = scmp.eq.s32.totalorder %s29, 0
    %p250 = por %p248, %p249
    %s252 = sadd.s32 %s251, 1
    %p255 = scmp.eq.s32.totalorder %s23, 1
    %p256 = scmp.ne.s32.totalorder %s251, %s253
    %p257 = scmp.eq.s32.totalorder %s23, 0
    %p258 = por %p256, %p257
    %p259 = scmp.ne.s32.totalorder %s251, %s253
    %p260 = scmp.eq.s32.totalorder %s28, 1
    %p261 = por %p259, %p260
    %p262 = scmp.ne.s32.totalorder %s253, %s254
    %p263 = scmp.eq.s32.totalorder %s28, 0
    %p264 = por %p262, %p263
    %p265 = scmp.ne.s32.totalorder %s253, %s254
    %p266 = scmp.eq.s32.totalorder %s29, 1
    %p267 = por %p265, %p266
    %p269 = scmp.ne.s32.totalorder %s254, %s268
    %p270 = scmp.eq.s32.totalorder %s29, 0
    %p271 = por %p269, %p270
    %s273 = sadd.s32 %s272, 1
    %p276 = scmp.eq.s32.totalorder %s23, 1
    %p277 = scmp.ne.s32.totalorder %s272, %s274
    %p278 = scmp.eq.s32.totalorder %s23, 0
    %p279 = por %p277, %p278
    %p280 = scmp.ne.s32.totalorder %s272, %s274
    %p281 = scmp.eq.s32.totalorder %s28, 1
    %p282 = por %p280, %p281
    %p283 = scmp.ne.s32.totalorder %s274, %s275
    %p284 = scmp.eq.s32.totalorder %s28, 0
    %p285 = por %p283, %p284
    %p286 = scmp.ne.s32.totalorder %s274, %s275
    %p287 = scmp.eq.s32.totalorder %s29, 1
    %p288 = por %p286, %p287
    %p290 = scmp.ne.s32.totalorder %s275, %s289
    %p291 = scmp.eq.s32.totalorder %s29, 0
    %p292 = por %p290, %p291
    %s294 = sadd.s32 %s293, 1
    %p297 = scmp.eq.s32.totalorder %s23, 1
    %p298 = scmp.ne.s32.totalorder %s293, %s295
    %p299 = scmp.eq.s32.totalorder %s23, 0
    %p300 = por %p298, %p299
    %p301 = scmp.ne.s32.totalorder %s293, %s295
    %p302 = scmp.eq.s32.totalorder %s28, 1
    %p303 = por %p301, %p302
    %p304 = scmp.ne.s32.totalorder %s295, %s296
    %p305 = scmp.eq.s32.totalorder %s28, 0
    %p306 = por %p304, %p305
    %p307 = scmp.ne.s32.totalorder %s295, %s296
    %p308 = scmp.eq.s32.totalorder %s29, 1
    %p309 = por %p307, %p308
    %p311 = scmp.ne.s32.totalorder %s296, %s310
    %p312 = scmp.eq.s32.totalorder %s29, 0
    %p313 = por %p311, %p312
    %s315 = sadd.s32 %s314, 1
    %p318 = scmp.eq.s32.totalorder %s23, 1
    %p319 = scmp.ne.s32.totalorder %s314, %s316
    %p320 = scmp.eq.s32.totalorder %s23, 0
    %p321 = por %p319, %p320
    %p322 = scmp.ne.s32.totalorder %s314, %s316
    %p323 = scmp.eq.s32.totalorder %s28, 1
    %p324 = por %p322, %p323
    %p325 = scmp.ne.s32.totalorder %s316, %s317
    %p326 = scmp.eq.s32.totalorder %s28, 0
    %p327 = por %p325, %p326
    %p328 = scmp.ne.s32.totalorder %s316, %s317
    %p329 = scmp.eq.s32.totalorder %s29, 1
    %p330 = por %p328, %p329
    %p332 = scmp.ne.s32.totalorder %s317, %s331
    %p333 = scmp.eq.s32.totalorder %s29, 0
    %p334 = por %p332, %p333
    %s336 = sadd.s32 %s335, 1
    %p339 = scmp.eq.s32.totalorder %s23, 1
    %p340 = scmp.ne.s32.totalorder %s335, %s337
    %p341 = scmp.eq.s32.totalorder %s23, 0
    %p342 = por %p340, %p341
    %p343 = scmp.ne.s32.totalorder %s335, %s337
    %p344 = scmp.eq.s32.totalorder %s28, 1
    %p345 = por %p343, %p344
    %p346 = scmp.ne.s32.totalorder %s337, %s338
    %p347 = scmp.eq.s32.totalorder %s28, 0
    %p348 = por %p346, %p347
    %p349 = scmp.ne.s32.totalorder %s337, %s338
    %p350 = scmp.eq.s32.totalorder %s29, 1
    %p351 = por %p349, %p350
    %p353 = scmp.ne.s32.totalorder %s338, %s352
    %p354 = scmp.eq.s32.totalorder %s29, 0
    %p355 = por %p353, %p354
    %s356 = ssub.s32 %s23, %s30
    %p357 = scmp.eq.s32.totalorder %s356, 0
    %s359 = sadd.s32 %s358, 1
    %s360 = scalar_select %p357, %s358, %s359
    %p363 = pneg %p357
    %p364 = scmp.eq.s32.totalorder %s23, 1
    %p365 = por %p363, %p364
    %p366 = scmp.ne.s32.totalorder %s358, %s361
    %p367 = scmp.eq.s32.totalorder %s23, 0
    %p368 = por %p366, %p367
    %p369 = scmp.ne.s32.totalorder %s358, %s361
    %p370 = scmp.eq.s32.totalorder %s28, 1
    %p371 = por %p369, %p370
    %p372 = scmp.ne.s32.totalorder %s361, %s362
    %p373 = scmp.eq.s32.totalorder %s28, 0
    %p374 = por %p372, %p373
    %p375 = scmp.ne.s32.totalorder %s361, %s362
    %p376 = scmp.eq.s32.totalorder %s29, 1
    %p377 = por %p375, %p376
    %p379 = scmp.ne.s32.totalorder %s362, %s378
    %p380 = scmp.eq.s32.totalorder %s29, 0
    %p381 = por %p379, %p380
    %p382 = scmp.le.s32.totalorder 1, %s23
    %p383 = scmp.lt.s32.totalorder %s23, 3
    %p384 = pnand %p382, %p383
    %p385 = pneg %p384
    // Predicated region
    $region9: #{tpu_custom_call.1} parent=5 // pred_check
      _
    $region10: #{tpu_custom_call.1} parent=5 // pred_check_branch
      %387 = sbr.rel (%p384) target = $region12
    $region11: #{tpu_custom_call.1} parent=5 // pred_region
      %s388 = ssub.s32 %s23, 1
      // Predicated region
      $region13: #{tpu_custom_call.1} parent=11 // pred_check
        %p389 = pneg %p96
      $region14: #{tpu_custom_call.1} parent=11 // pred_check_branch
        %391 = sbr.rel (%p389) target = $region16
      $region15: #{tpu_custom_call.1} parent=11 // pred_region
        _
      $region16: #{tpu_custom_call.1} parent=11 // pred_fallthru
        _
      // Predicated region
      $region17: #{tpu_custom_call.1} parent=11 // pred_check
        %p392 = pneg %p117
      $region18: #{tpu_custom_call.1} parent=11 // pred_check_branch
        %394 = sbr.rel (%p392) target = $region20
      $region19: #{tpu_custom_call.1} parent=11 // pred_region
        _
      $region20: #{tpu_custom_call.1} parent=11 // pred_fallthru
        _
      // Predicated region
      $region21: #{tpu_custom_call.1} parent=11 // pred_check
        %p395 = pneg %p138
      $region22: #{tpu_custom_call.1} parent=11 // pred_check_branch
        %397 = sbr.rel (%p395) target = $region24
      $region23: #{tpu_custom_call.1} parent=11 // pred_region
        _
      $region24: #{tpu_custom_call.1} parent=11 // pred_fallthru
        _
      // Predicated region
      $region25: #{tpu_custom_call.1} parent=11 // pred_check
        %p398 = pneg %p159
      $region26: #{tpu_custom_call.1} parent=11 // pred_check_branch
        %400 = sbr.rel (%p398) target = $region28
      $region27: #{tpu_custom_call.1} parent=11 // pred_region
        _
      $region28: #{tpu_custom_call.1} parent=11 // pred_fallthru
        _
      // Predicated region
      $region29: #{tpu_custom_call.1} parent=11 // pred_check
        %p401 = pneg %p180
      $region30: #{tpu_custom_call.1} parent=11 // pred_check_branch
        %403 = sbr.rel (%p401) target = $region32
      $region31: #{tpu_custom_call.1} parent=11 // pred_region
        _
      $region32: #{tpu_custom_call.1} parent=11 // pred_fallthru
        _
      // Predicated region
      $region33: #{tpu_custom_call.1} parent=11 // pred_check
        %p404 = pneg %p201
      $region34: #{tpu_custom_call.1} parent=11 // pred_check_branch
        %406 = sbr.rel (%p404) target = $region36
      $region35: #{tpu_custom_call.1} parent=11 // pred_region
        _
      $region36: #{tpu_custom_call.1} parent=11 // pred_fallthru
        _
      // Predicated region
      $region37: #{tpu_custom_call.1} parent=11 // pred_check
        %p407 = pneg %p222
      $region38: #{tpu_custom_call.1} parent=11 // pred_check_branch
        %409 = sbr.rel (%p407) target = $region40
      $region39: #{tpu_custom_call.1} parent=11 // pred_region
        _
      $region40: #{tpu_custom_call.1} parent=11 // pred_fallthru
        _
      // Predicated region
      $region41: #{tpu_custom_call.1} parent=11 // pred_check
        %p410 = pneg %p243
      $region42: #{tpu_custom_call.1} parent=11 // pred_check_branch
        %412 = sbr.rel (%p410) target = $region44
      $region43: #{tpu_custom_call.1} parent=11 // pred_region
        _
      $region44: #{tpu_custom_call.1} parent=11 // pred_fallthru
        _
      // Predicated region
      $region45: #{tpu_custom_call.1} parent=11 // pred_check
        %p413 = pneg %p264
      $region46: #{tpu_custom_call.1} parent=11 // pred_check_branch
        %415 = sbr.rel (%p413) target = $region48
      $region47: #{tpu_custom_call.1} parent=11 // pred_region
        _
      $region48: #{tpu_custom_call.1} parent=11 // pred_fallthru
        _
      // Predicated region
      $region49: #{tpu_custom_call.1} parent=11 // pred_check
        %p416 = pneg %p285
      $region50: #{tpu_custom_call.1} parent=11 // pred_check_branch
        %418 = sbr.rel (%p416) target = $region52
      $region51: #{tpu_custom_call.1} parent=11 // pred_region
        _
      $region52: #{tpu_custom_call.1} parent=11 // pred_fallthru
        _
      // Predicated region
      $region53: #{tpu_custom_call.1} parent=11 // pred_check
        %p419 = pneg %p306
      $region54: #{tpu_custom_call.1} parent=11 // pred_check_branch
        %421 = sbr.rel (%p419) target = $region56
      $region55: #{tpu_custom_call.1} parent=11 // pred_region
        _
      $region56: #{tpu_custom_call.1} parent=11 // pred_fallthru
        _
      // Predicated region
      $region57: #{tpu_custom_call.1} parent=11 // pred_check
        %p422 = pneg %p327
      $region58: #{tpu_custom_call.1} parent=11 // pred_check_branch
        %424 = sbr.rel (%p422) target = $region60
      $region59: #{tpu_custom_call.1} parent=11 // pred_region
        _
      $region60: #{tpu_custom_call.1} parent=11 // pred_fallthru
        _
      // Predicated region
      $region61: #{tpu_custom_call.1} parent=11 // pred_check
        %p425 = pneg %p348
      $region62: #{tpu_custom_call.1} parent=11 // pred_check_branch
        %427 = sbr.rel (%p425) target = $region64
      $region63: #{tpu_custom_call.1} parent=11 // pred_region
        _
      $region64: #{tpu_custom_call.1} parent=11 // pred_fallthru
        _
    $region12: #{tpu_custom_call.1} parent=5 // pred_fallthru
      _
    %p428 = scmp.lt.s32.totalorder %s23, 2
    // Predicated region
    $region65: #{tpu_custom_call.1} parent=5 // pred_check
      %p429 = pneg %p428
    $region66: #{tpu_custom_call.1} parent=5 // pred_check_branch
      %431 = sbr.rel (%p429) target = $region68
    $region67: #{tpu_custom_call.1} parent=5 // pred_region
      // Predicated region
      $region69: #{tpu_custom_call.1} parent=67 // pred_check
        %p432 = pneg %p43
      $region70: #{tpu_custom_call.1} parent=67 // pred_check_branch
        %434 = sbr.rel (%p432) target = $region72
      $region71: #{tpu_custom_call.1} parent=67 // pred_region
        %s435 = smul.u32 16, %s23
        %p436 = scmp.lt.s32.totalorder %s435, 31
        %s437 = scalar_select %p436, %s435, 31
        %s438 = smul.addr %s437, 4
        %s439 = scalar_lea.vmem %s0, %s438
        %s440 = smul.u32 16, %s23
      $region72: #{tpu_custom_call.1} parent=67 // pred_fallthru
        _
      // Predicated region
      $region73: #{tpu_custom_call.1} parent=67 // pred_check
        %p441 = pneg %p69
      $region74: #{tpu_custom_call.1} parent=67 // pred_check_branch
        %443 = sbr.rel (%p441) target = $region76
      $region75: #{tpu_custom_call.1} parent=67 // pred_region
        %s444 = smul.u32 16, %s23
        %p445 = scmp.lt.s32.totalorder %s444, 31
        %s446 = scalar_select %p445, %s444, 31
        %s447 = smul.addr %s446, 4
        %s448 = scalar_lea.vmem %s1, %s447
        %s449 = smul.u32 16, %s23
      $region76: #{tpu_custom_call.1} parent=67 // pred_fallthru
        _
    $region68: #{tpu_custom_call.1} parent=5 // pred_fallthru
      _
    %p450 = scmp.le.s32.totalorder 1, %s23
    %p451 = scmp.lt.s32.totalorder %s23, 3
    %p452 = pnand %p450, %p451
    %p453 = pneg %p452
    // Predicated region
    $region77: #{tpu_custom_call.1} parent=5 // pred_check
      _
    $region78: #{tpu_custom_call.1} parent=5 // pred_check_branch
      %455 = sbr.rel (%p452) target = $region80
    $region79: #{tpu_custom_call.1} parent=5 // pred_region
      %s456 = ssub.s32 %s23, 1
      %s457 = smul.u32 16, %s28
      %p458 = scmp.lt.s32.totalorder %s457, 31
      %s459 = scalar_select %p458, %s457, 31
      %s460 = smul.addr %s459, 4
      %s461 = scalar_lea.vmem %s0, %s460
      %p462 = pneg %p49
      %p463 = pneg %p46
      %s464 = smul.u32 16, %s28
      %p465 = scmp.lt.s32.totalorder %s464, 31
      %s466 = scalar_select %p465, %s464, 31
      %s467 = smul.addr %s466, 4
      %s468 = scalar_lea.vmem %s1, %s467
      %p469 = pneg %p75
      %p470 = pneg %p72
      %p471 = pneg %p96
      %p472 = pneg %p93
      %p473 = pneg %p117
      %p474 = pneg %p114
      %p475 = pneg %p138
      %p476 = pneg %p135
      %p477 = pneg %p159
      %p478 = pneg %p156
      %p479 = pneg %p180
      %p480 = pneg %p177
      %p481 = pneg %p201
      %p482 = pneg %p198
      %p483 = pneg %p222
      %p484 = pneg %p219
      %p485 = pneg %p243
      %p486 = pneg %p240
      %p487 = pneg %p264
      %p488 = pneg %p261
      %p489 = pneg %p285
      %p490 = pneg %p282
      %p491 = pneg %p306
      %p492 = pneg %p303
      %p493 = pneg %p327
      %p494 = pneg %p324
      %p495 = pneg %p348
      %p496 = pneg %p345
      %p497 = pneg %p374
      %p498 = pneg %p371
      %p499 = scmp.lt.s32.totalorder %s28, 1
      %s500 = scalar_select %p499, %s28, 1
      %s501 = smul.addr %s500, 2
      %s502 = scalar_lea.vmem %s15, %s501
      %s503 = smul.u32 16, %s28
      %p504 = scmp.lt.s32.totalorder %s503, 31
      %s505 = scalar_select %p504, %s503, 31
      %s506 = smul.addr %s505, 4
      %s507 = scalar_lea.vmem %s0, %s506
      %s508 = smul.u32 16, %s28
      %s509 = smul.u32 16, %s28
      %p510 = scmp.lt.s32.totalorder %s509, 31
      %s511 = scalar_select %p510, %s509, 31
      %s512 = smul.addr %s511, 4
      %s513 = scalar_lea.vmem %s1, %s512
      %s514 = smul.u32 16, %s28
      %p515 = scmp.lt.s32.totalorder %s28, 1
      %s516 = scalar_select %p515, %s28, 1
      %s517 = smul.addr %s516, 2
      %s518 = scalar_lea.vmem %s15, %s517
      %v520 = vld [vmem:[%s507] sm:$0xf]
      %v521 = vld [vmem:[%s507 + $0x4] sm:$0xf]
      %v522 = vld [vmem:[%s507 + $0x8] sm:$0xf]
      %v523 = vld [vmem:[%s507 + $0xc] sm:$0xf]
      %v524 = vld [vmem:[%s507 + $0x10] sm:$0xf]
      %v525 = vld [vmem:[%s507 + $0x14] sm:$0xf]
      %v526 = vld [vmem:[%s507 + $0x18] sm:$0xf]
      %v527 = vld [vmem:[%s507 + $0x1c] sm:$0xf]
      %v528 = vld [vmem:[%s507 + $0x20] sm:$0xf]
      %v529 = vld [vmem:[%s507 + $0x24] sm:$0xf]
      %v530 = vld [vmem:[%s507 + $0x28] sm:$0xf]
      %v531 = vld [vmem:[%s507 + $0x2c] sm:$0xf]
      %v532 = vld [vmem:[%s507 + $0x30] sm:$0xf]
      %v533 = vld [vmem:[%s507 + $0x34] sm:$0xf]
      %v534 = vld [vmem:[%s507 + $0x38] sm:$0xf]
      %v535 = vld [vmem:[%s507 + $0x3c] sm:$0xf]
      %v536 = vld [vmem:[%s513] sm:$0xf]
      %v537 = vld [vmem:[%s513 + $0x4] sm:$0xf]
      %v538 = vld [vmem:[%s513 + $0x8] sm:$0xf]
      %v539 = vld [vmem:[%s513 + $0xc] sm:$0xf]
      %v540 = vld [vmem:[%s513 + $0x10] sm:$0xf]
      %v541 = vld [vmem:[%s513 + $0x14] sm:$0xf]
      %v542 = vld [vmem:[%s513 + $0x18] sm:$0xf]
      %v543 = vld [vmem:[%s513 + $0x1c] sm:$0xf]
      %v544 = vld [vmem:[%s513 + $0x20] sm:$0xf]
      %v545 = vld [vmem:[%s513 + $0x24] sm:$0xf]
      %v546 = vld [vmem:[%s513 + $0x28] sm:$0xf]
      %v547 = vld [vmem:[%s513 + $0x2c] sm:$0xf]
      %v548 = vld [vmem:[%s513 + $0x30] sm:$0xf]
      %v549 = vld [vmem:[%s513 + $0x34] sm:$0xf]
      %v550 = vld [vmem:[%s513 + $0x38] sm:$0xf]
      %v551 = vld [vmem:[%s513 + $0x3c] sm:$0xf]
      %v552 = vld [vmem:[%s2] sm:$0xf]
      %v553 = vld [vmem:[%s2 + $0x4] sm:$0xf]
      %v554 = vld [vmem:[%s2 + $0x8] sm:$0xf]
      %v555 = vld [vmem:[%s2 + $0xc] sm:$0xf]
      %v556 = vld [vmem:[%s2 + $0x10] sm:$0xf]
      %v557 = vld [vmem:[%s2 + $0x14] sm:$0xf]
      %v558 = vld [vmem:[%s2 + $0x18] sm:$0xf]
      %v559 = vld [vmem:[%s2 + $0x1c] sm:$0xf]
      %v560 = vld [vmem:[%s2 + $0x20] sm:$0xf]
      %v561 = vld [vmem:[%s2 + $0x24] sm:$0xf]
      %v562 = vld [vmem:[%s2 + $0x28] sm:$0xf]
      %v563 = vld [vmem:[%s2 + $0x2c] sm:$0xf]
      %v564 = vld [vmem:[%s2 + $0x30] sm:$0xf]
      %v565 = vld [vmem:[%s2 + $0x34] sm:$0xf]
      %v566 = vld [vmem:[%s2 + $0x38] sm:$0xf]
      %v567 = vld [vmem:[%s2 + $0x3c] sm:$0xf]
      %v568 = vunpack.c.l.bf16 %v552
      %v569 = vunpack.c.l.bf16 %v553
      %v570 = vunpack.c.l.bf16 %v554
      %v571 = vunpack.c.l.bf16 %v555
      %v572 = vunpack.c.l.bf16 %v556
      %v573 = vunpack.c.l.bf16 %v557
      %v574 = vunpack.c.l.bf16 %v558
      %v575 = vunpack.c.l.bf16 %v559
      %v576 = vunpack.c.l.bf16 %v560
      %v577 = vunpack.c.l.bf16 %v561
      %v578 = vunpack.c.l.bf16 %v562
      %v579 = vunpack.c.l.bf16 %v563
      %v580 = vunpack.c.l.bf16 %v564
      %v581 = vunpack.c.l.bf16 %v565
      %v582 = vunpack.c.l.bf16 %v566
      %v583 = vunpack.c.l.bf16 %v567
      %v584 = vld [vmem:[%s3] sm:$0x1]
      %v585 = vld [vmem:[%s4] sm:$0xf]
      %v586 = vld [vmem:[%s4 + $0x4] sm:$0xf]
      %v587 = vld [vmem:[%s4 + $0x8] sm:$0xf]
      %v588 = vld [vmem:[%s4 + $0xc] sm:$0xf]
      %v589 = vld [vmem:[%s4 + $0x10] sm:$0xf]
      %v590 = vld [vmem:[%s4 + $0x14] sm:$0xf]
      %v591 = vld [vmem:[%s4 + $0x18] sm:$0xf]
      %v592 = vld [vmem:[%s4 + $0x1c] sm:$0xf]
      %v593 = vld [vmem:[%s4 + $0x20] sm:$0xf]
      %v594 = vld [vmem:[%s4 + $0x24] sm:$0xf]
      %v595 = vld [vmem:[%s4 + $0x28] sm:$0xf]
      %v596 = vld [vmem:[%s4 + $0x2c] sm:$0xf]
      %v597 = vld [vmem:[%s4 + $0x30] sm:$0xf]
      %v598 = vld [vmem:[%s4 + $0x34] sm:$0xf]
      %v599 = vld [vmem:[%s4 + $0x38] sm:$0xf]
      %v600 = vld [vmem:[%s4 + $0x3c] sm:$0xf]
      %v601 = vld [vmem:[%s5] sm:$0x7]
      %v618 = vunpack.c.l.b16 %v536
      %v619 = vunpack.c.l.b16 %v537
      %v620 = vunpack.c.l.b16 %v538
      %v621 = vunpack.c.l.b16 %v539
      %v622 = vunpack.c.l.b16 %v540
      %v623 = vunpack.c.l.b16 %v541
      %v624 = vunpack.c.l.b16 %v542
      %v625 = vunpack.c.l.b16 %v543
      %v626 = vunpack.c.l.b16 %v544
      %v627 = vunpack.c.l.b16 %v545
      %v628 = vunpack.c.l.b16 %v546
      %v629 = vunpack.c.l.b16 %v547
      %v630 = vunpack.c.l.b16 %v548
      %v631 = vunpack.c.l.b16 %v549
      %v632 = vunpack.c.l.b16 %v550
      %v633 = vunpack.c.l.b16 %v551
      %v634 = vpack.c.b16 %v619, %v618
      %v635 = vpack.c.b16 %v621, %v620
      %v636 = vpack.c.b16 %v623, %v622
      %v637 = vpack.c.b16 %v625, %v624
      %v638 = vpack.c.b16 %v627, %v626
      %v639 = vpack.c.b16 %v629, %v628
      %v640 = vpack.c.b16 %v631, %v630
      %v641 = vpack.c.b16 %v633, %v632
      %650 = vmatprep.subr.bf16.mxu0 0
      %651 = vmatpush1.bf16.msra.mxu0 %v641
      %652 = vmatprep.subr.bf16.mxu0 0
      %653 = vmatpush1.bf16.msra.mxu0 %v640
      %654 = vmatprep.subr.bf16.mxu0 0
      %655 = vmatpush1.bf16.msra.mxu0 %v639
      %656 = vmatprep.subr.bf16.mxu0 0
      %657 = vmatpush1.bf16.msra.mxu0 %v638
      %658 = vmatprep.subr.bf16.mxu0 0
      %659 = vmatpush1.bf16.msra.mxu0 %v637
      %660 = vmatprep.subr.bf16.mxu0 0
      %661 = vmatpush1.bf16.msra.mxu0 %v636
      %662 = vmatprep.subr.bf16.mxu0 0
      %663 = vmatpush1.bf16.msra.mxu0 %v635
      %664 = vmatprep.subr.bf16.mxu0 0
      %665 = vmatpush1.bf16.msra.mxu0 %v634
      %666 = vmatprep.subr.bf16.mxu0 0
      %667 = vmatpush2.bf16.msra.mxu0 0
      %668 = vmatprep.subr.bf16.mxu0 0
      %669 = vmatpush2.bf16.msra.mxu0 0
      %670 = vmatprep.subr.bf16.mxu0 0
      %671 = vmatpush2.bf16.msra.mxu0 0
      %672 = vmatprep.subr.bf16.mxu0 0
      %673 = vmatpush2.bf16.msra.mxu0 0
      %674 = vmatprep.subr.bf16.mxu0 0
      %675 = vmatpush2.bf16.msra.mxu0 0
      %676 = vmatprep.subr.bf16.mxu0 0
      %677 = vmatpush2.bf16.msra.mxu0 0
      %678 = vmatprep.subr.bf16.mxu0 0
      %679 = vmatpush2.bf16.msra.mxu0 0
      %680 = vmatprep.subr.bf16.mxu0 0
      %681 = vmatpush2.bf16.msra.mxu0 0
      %682 = vmatprep.mubr.bf16.mxu0 0
      %683 = vmatmul.mubr.bf16.gmra.mxu0 %v601
      %v684 = vpop.f32.mrf.mxu0
      %v685 = vadd.f32 0.0, %v684
      %v686 = vpop.f32.mrf.mxu0
      %v687 = vpop.f32.mrf.mxu0
      %v688 = vpop.f32.mrf.mxu0
      %689 = vdwg.mxu0
      %v690 = vld [vmem:[%s6] sm:$0xf]
      %v691 = vld [vmem:[%s6 + $0x4] sm:$0xf]
      %v692 = vld [vmem:[%s6 + $0x8] sm:$0xf]
      %v693 = vld [vmem:[%s6 + $0xc] sm:$0xf]
      %v698 = vunpack.c.l.b16 %v690
      %v699 = vunpack.c.l.b16 %v691
      %v700 = vunpack.c.l.b16 %v692
      %v701 = vunpack.c.l.b16 %v693
      %v702 = vpack.c.b16 %v699, %v698
      %v703 = vpack.c.b16 %v701, %v700
      %vm706 = vcmask 261120
      %v708 = vsel %vm706, %v634, 0
      %v711 = vsel %vm706, %v635, 0
      %v714 = vsel %vm706, %v636, 0
      %v717 = vsel %vm706, %v637, 0
      %v720 = vsel %vm706, %v638, 0
      %v723 = vsel %vm706, %v639, 0
      %v726 = vsel %vm706, %v640, 0
      %v729 = vsel %vm706, %v641, 0
      %731 = vmatprep.subr.bf16.mxu0 0
      %732 = vmatpush1.bf16.msra.mxu0 0
      %733 = vmatprep.subr.bf16.mxu0 0
      %734 = vmatpush1.bf16.msra.mxu0 0
      %735 = vmatprep.subr.bf16.mxu0 0
      %736 = vmatpush1.bf16.msra.mxu0 0
      %737 = vmatprep.subr.bf16.mxu0 0
      %738 = vmatpush1.bf16.msra.mxu0 0
      %739 = vmatprep.subr.bf16.mxu0 0
      %740 = vmatpush1.bf16.msra.mxu0 0
      %741 = vmatprep.subr.bf16.mxu0 0
      %742 = vmatpush1.bf16.msra.mxu0 0
      %743 = vmatprep.subr.bf16.mxu0 0
      %744 = vmatpush1.bf16.msra.mxu0 %v703
      %745 = vmatprep.subr.bf16.mxu0 0
      %746 = vmatpush1.bf16.msra.mxu0 %v702
      %747 = vmatprep.subr.bf16.mxu0 0
      %748 = vmatpush2.bf16.msra.mxu0 0
      %749 = vmatprep.subr.bf16.mxu0 0
      %750 = vmatpush2.bf16.msra.mxu0 0
      %751 = vmatprep.subr.bf16.mxu0 0
      %752 = vmatpush2.bf16.msra.mxu0 0
      %753 = vmatprep.subr.bf16.mxu0 0
      %754 = vmatpush2.bf16.msra.mxu0 0
      %755 = vmatprep.subr.bf16.mxu0 0
      %756 = vmatpush2.bf16.msra.mxu0 0
      %757 = vmatprep.subr.bf16.mxu0 0
      %758 = vmatpush2.bf16.msra.mxu0 0
      %759 = vmatprep.subr.bf16.mxu0 0
      %760 = vmatpush2.bf16.msra.mxu0 0
      %761 = vmatprep.subr.bf16.mxu0 0
      %762 = vmatpush2.bf16.msra.mxu0 0
      %763 = vmatprep.mubr.bf16.mxu0 0
      %764 = vmatmul.mubr.bf16.gmra.mxu0 %v708
      %v765 = vpop.f32.mrf.mxu0
      %v766 = vadd.f32 0.0, %v765
      %v767 = vpop.f32.mrf.mxu0
      %v768 = vpop.f32.mrf.mxu0
      %v769 = vadd.f32 0.0, %v768
      %v770 = vpop.f32.mrf.mxu0
      %771 = vmatprep.mubr.bf16.mxu0 0
      %772 = vmatmul.mubr.bf16.gmra.mxu0 %v711
      %v773 = vpop.f32.mrf.mxu0
      %v774 = vadd.f32 0.0, %v773
      %v775 = vpop.f32.mrf.mxu0
      %v776 = vpop.f32.mrf.mxu0
      %v777 = vadd.f32 0.0, %v776
      %v778 = vpop.f32.mrf.mxu0
      %779 = vmatprep.mubr.bf16.mxu0 0
      %780 = vmatmul.mubr.bf16.gmra.mxu0 %v714
      %v781 = vpop.f32.mrf.mxu0
      %v782 = vadd.f32 0.0, %v781
      %v783 = vpop.f32.mrf.mxu0
      %v784 = vpop.f32.mrf.mxu0
      %v785 = vadd.f32 0.0, %v784
      %v786 = vpop.f32.mrf.mxu0
      %787 = vmatprep.mubr.bf16.mxu0 0
      %788 = vmatmul.mubr.bf16.gmra.mxu0 %v717
      %v789 = vpop.f32.mrf.mxu0
      %v790 = vadd.f32 0.0, %v789
      %v791 = vpop.f32.mrf.mxu0
      %v792 = vpop.f32.mrf.mxu0
      %v793 = vadd.f32 0.0, %v792
      %v794 = vpop.f32.mrf.mxu0
      %795 = vmatprep.mubr.bf16.mxu0 0
      %796 = vmatmul.mubr.bf16.gmra.mxu0 %v720
      %v797 = vpop.f32.mrf.mxu0
      %v798 = vadd.f32 0.0, %v797
      %v799 = vpop.f32.mrf.mxu0
      %v800 = vpop.f32.mrf.mxu0
      %v801 = vadd.f32 0.0, %v800
      %v802 = vpop.f32.mrf.mxu0
      %803 = vmatprep.mubr.bf16.mxu0 0
      %804 = vmatmul.mubr.bf16.gmra.mxu0 %v723
      %v805 = vpop.f32.mrf.mxu0
      %v806 = vadd.f32 0.0, %v805
      %v807 = vpop.f32.mrf.mxu0
      %v808 = vpop.f32.mrf.mxu0
      %v809 = vadd.f32 0.0, %v808
      %v810 = vpop.f32.mrf.mxu0
      %811 = vmatprep.mubr.bf16.mxu0 0
      %812 = vmatmul.mubr.bf16.gmra.mxu0 %v726
      %v813 = vpop.f32.mrf.mxu0
      %v814 = vadd.f32 0.0, %v813
      %v815 = vpop.f32.mrf.mxu0
      %v816 = vpop.f32.mrf.mxu0
      %v817 = vadd.f32 0.0, %v816
      %v818 = vpop.f32.mrf.mxu0
      %819 = vmatprep.mubr.bf16.mxu0 0
      %820 = vmatmul.mubr.bf16.gmra.mxu0 %v729
      %v821 = vpop.f32.mrf.mxu0
      %v822 = vadd.f32 0.0, %v821
      %v823 = vpop.f32.mrf.mxu0
      %v824 = vpop.f32.mrf.mxu0
      %v825 = vadd.f32 0.0, %v824
      %v826 = vpop.f32.mrf.mxu0
      %827 = vdwg.mxu0
      %v828 = vrot.slane %v766, 7
      %v829 = vrot.slane %v769, 7
      %v830 = vrot.slane %v774, 7
      %v831 = vrot.slane %v777, 7
      %v832 = vrot.slane %v782, 7
      %v833 = vrot.slane %v785, 7
      %v834 = vrot.slane %v790, 7
      %v835 = vrot.slane %v793, 7
      %v836 = vrot.slane %v798, 7
      %v837 = vrot.slane %v801, 7
      %v838 = vrot.slane %v806, 7
      %v839 = vrot.slane %v809, 7
      %v840 = vrot.slane %v814, 7
      %v841 = vrot.slane %v817, 7
      %v842 = vrot.slane %v822, 7
      %v843 = vrot.slane %v825, 7
      %v844 = vlaneseq
      %v845 = vshrl.u32 %v844, 7
      %vm846 = vcmp.lt.s32.totalorder %v845, 1
      %v847 = vsel %vm846, %v842, %v843
      %v848 = vsel %vm846, %v841, %v842
      %v849 = vsel %vm846, %v840, %v841
      %v850 = vsel %vm846, %v839, %v840
      %v851 = vsel %vm846, %v838, %v839
      %v852 = vsel %vm846, %v837, %v838
      %v853 = vsel %vm846, %v836, %v837
      %v854 = vsel %vm846, %v835, %v836
      %v855 = vsel %vm846, %v834, %v835
      %v856 = vsel %vm846, %v833, %v834
      %v857 = vsel %vm846, %v832, %v833
      %v858 = vsel %vm846, %v831, %v832
      %v859 = vsel %vm846, %v830, %v831
      %v860 = vsel %vm846, %v829, %v830
      %v861 = vsel %vm846, %v828, %v829
      %v862 = vsel %vm846, %v843, %v828
      %v863 = vmul.f32 %v568, %v847
      %v864 = vmul.f32 %v569, %v862
      %v865 = vmul.f32 %v570, %v861
      %v866 = vmul.f32 %v571, %v860
      %v867 = vmul.f32 %v572, %v859
      %v868 = vmul.f32 %v573, %v858
      %v869 = vmul.f32 %v574, %v857
      %v870 = vmul.f32 %v575, %v856
      %v871 = vmul.f32 %v576, %v855
      %v872 = vmul.f32 %v577, %v854
      %v873 = vmul.f32 %v578, %v853
      %v874 = vmul.f32 %v579, %v852
      %v875 = vmul.f32 %v580, %v851
      %v876 = vmul.f32 %v581, %v850
      %v877 = vmul.f32 %v582, %v849
      %v878 = vmul.f32 %v583, %v848
      %v879 = vadd.f32 %v863, 0.0
      %v880 = vadd.f32 %v864, 0.0
      %v881 = vadd.f32 %v865, 0.0
      %v882 = vadd.f32 %v866, 0.0
      %v883 = vadd.f32 %v867, 0.0
      %v884 = vadd.f32 %v868, 0.0
      %v885 = vadd.f32 %v869, 0.0
      %v886 = vadd.f32 %v870, 0.0
      %v887 = vadd.f32 %v871, 0.0
      %v888 = vadd.f32 %v872, 0.0
      %v889 = vadd.f32 %v873, 0.0
      %v890 = vadd.f32 %v874, 0.0
      %v891 = vadd.f32 %v875, 0.0
      %v892 = vadd.f32 %v876, 0.0
      %v893 = vadd.f32 %v877, 0.0
      %v894 = vadd.f32 %v878, 0.0
      %911 = vrot.lane.b32.xlu0 %v766, 127
      %v912 = vpop.permute.xlu0 %911
      %913 = vrot.lane.b32.xlu0 %v769, 127
      %v914 = vpop.permute.xlu0 %913
      %915 = vrot.lane.b32.xlu0 %v774, 127
      %v916 = vpop.permute.xlu0 %915
      %917 = vrot.lane.b32.xlu0 %v777, 127
      %v918 = vpop.permute.xlu0 %917
      %919 = vrot.lane.b32.xlu0 %v782, 127
      %v920 = vpop.permute.xlu0 %919
      %921 = vrot.lane.b32.xlu0 %v785, 127
      %v922 = vpop.permute.xlu0 %921
      %923 = vrot.lane.b32.xlu0 %v790, 127
      %v924 = vpop.permute.xlu0 %923
      %925 = vrot.lane.b32.xlu0 %v793, 127
      %v926 = vpop.permute.xlu0 %925
      %927 = vrot.lane.b32.xlu0 %v798, 127
      %v928 = vpop.permute.xlu0 %927
      %929 = vrot.lane.b32.xlu0 %v801, 127
      %v930 = vpop.permute.xlu0 %929
      %931 = vrot.lane.b32.xlu0 %v806, 127
      %v932 = vpop.permute.xlu0 %931
      %933 = vrot.lane.b32.xlu0 %v809, 127
      %v934 = vpop.permute.xlu0 %933
      %935 = vrot.lane.b32.xlu0 %v814, 127
      %v936 = vpop.permute.xlu0 %935
      %937 = vrot.lane.b32.xlu0 %v817, 127
      %v938 = vpop.permute.xlu0 %937
      %939 = vrot.lane.b32.xlu0 %v822, 127
      %v940 = vpop.permute.xlu0 %939
      %941 = vrot.lane.b32.xlu0 %v825, 127
      %v942 = vpop.permute.xlu0 %941
      %943 = vrot.lane.b32.xlu0 %v942, 1
      %v944 = vpop.permute.xlu0 %943
      %945 = vrot.lane.b32.xlu0 %v912, 1
      %v946 = vpop.permute.xlu0 %945
      %947 = vrot.lane.b32.xlu0 %v914, 1
      %v948 = vpop.permute.xlu0 %947
      %949 = vrot.lane.b32.xlu0 %v916, 1
      %v950 = vpop.permute.xlu0 %949
      %951 = vrot.lane.b32.xlu0 %v918, 1
      %v952 = vpop.permute.xlu0 %951
      %953 = vrot.lane.b32.xlu0 %v920, 1
      %v954 = vpop.permute.xlu0 %953
      %955 = vrot.lane.b32.xlu0 %v922, 1
      %v956 = vpop.permute.xlu0 %955
      %957 = vrot.lane.b32.xlu0 %v924, 1
      %v958 = vpop.permute.xlu0 %957
      %959 = vrot.lane.b32.xlu0 %v926, 1
      %v960 = vpop.permute.xlu0 %959
      %961 = vrot.lane.b32.xlu0 %v928, 1
      %v962 = vpop.permute.xlu0 %961
      %963 = vrot.lane.b32.xlu0 %v930, 1
      %v964 = vpop.permute.xlu0 %963
      %965 = vrot.lane.b32.xlu0 %v932, 1
      %v966 = vpop.permute.xlu0 %965
      %967 = vrot.lane.b32.xlu0 %v934, 1
      %v968 = vpop.permute.xlu0 %967
      %969 = vrot.lane.b32.xlu0 %v936, 1
      %v970 = vpop.permute.xlu0 %969
      %971 = vrot.lane.b32.xlu0 %v938, 1
      %v972 = vpop.permute.xlu0 %971
      %973 = vrot.lane.b32.xlu0 %v940, 1
      %v974 = vpop.permute.xlu0 %973
      %v991 = vmul.f32 %v568, %v944
      %v992 = vmul.f32 %v569, %v946
      %v993 = vmul.f32 %v570, %v948
      %v994 = vmul.f32 %v571, %v950
      %v995 = vmul.f32 %v572, %v952
      %v996 = vmul.f32 %v573, %v954
      %v997 = vmul.f32 %v574, %v956
      %v998 = vmul.f32 %v575, %v958
      %v999 = vmul.f32 %v576, %v960
      %v1000 = vmul.f32 %v577, %v962
      %v1001 = vmul.f32 %v578, %v964
      %v1002 = vmul.f32 %v579, %v966
      %v1003 = vmul.f32 %v580, %v968
      %v1004 = vmul.f32 %v581, %v970
      %v1005 = vmul.f32 %v582, %v972
      %v1006 = vmul.f32 %v583, %v974
      %1023 = vrot.lane.b32.xlu0 %v991, 127
      %v1024 = vpop.permute.xlu0 %1023
      %1025 = vrot.lane.b32.xlu0 %v992, 127
      %v1026 = vpop.permute.xlu0 %1025
      %1027 = vrot.lane.b32.xlu0 %v993, 127
      %v1028 = vpop.permute.xlu0 %1027
      %1029 = vrot.lane.b32.xlu0 %v994, 127
      %v1030 = vpop.permute.xlu0 %1029
      %1031 = vrot.lane.b32.xlu0 %v995, 127
      %v1032 = vpop.permute.xlu0 %1031
      %1033 = vrot.lane.b32.xlu0 %v996, 127
      %v1034 = vpop.permute.xlu0 %1033
      %1035 = vrot.lane.b32.xlu0 %v997, 127
      %v1036 = vpop.permute.xlu0 %1035
      %1037 = vrot.lane.b32.xlu0 %v998, 127
      %v1038 = vpop.permute.xlu0 %1037
      %1039 = vrot.lane.b32.xlu0 %v999, 127
      %v1040 = vpop.permute.xlu0 %1039
      %1041 = vrot.lane.b32.xlu0 %v1000, 127
      %v1042 = vpop.permute.xlu0 %1041
      %1043 = vrot.lane.b32.xlu0 %v1001, 127
      %v1044 = vpop.permute.xlu0 %1043
      %1045 = vrot.lane.b32.xlu0 %v1002, 127
      %v1046 = vpop.permute.xlu0 %1045
      %1047 = vrot.lane.b32.xlu0 %v1003, 127
      %v1048 = vpop.permute.xlu0 %1047
      %1049 = vrot.lane.b32.xlu0 %v1004, 127
      %v1050 = vpop.permute.xlu0 %1049
      %1051 = vrot.lane.b32.xlu0 %v1005, 127
      %v1052 = vpop.permute.xlu0 %1051
      %1053 = vrot.lane.b32.xlu0 %v1006, 127
      %v1054 = vpop.permute.xlu0 %1053
      %v1071 = vadd.f32 %v879, %v1024
      %v1072 = vadd.f32 %v880, %v1026
      %v1073 = vadd.f32 %v881, %v1028
      %v1074 = vadd.f32 %v882, %v1030
      %v1075 = vadd.f32 %v883, %v1032
      %v1076 = vadd.f32 %v884, %v1034
      %v1077 = vadd.f32 %v885, %v1036
      %v1078 = vadd.f32 %v886, %v1038
      %v1079 = vadd.f32 %v887, %v1040
      %v1080 = vadd.f32 %v888, %v1042
      %v1081 = vadd.f32 %v889, %v1044
      %v1082 = vadd.f32 %v890, %v1046
      %v1083 = vadd.f32 %v891, %v1048
      %v1084 = vadd.f32 %v892, %v1050
      %v1085 = vadd.f32 %v893, %v1052
      %v1086 = vadd.f32 %v894, %v1054
      %1087 = vrot.lane.b32.xlu0 %v766, 126
      %v1088 = vpop.permute.xlu0 %1087
      %1089 = vrot.lane.b32.xlu0 %v769, 126
      %v1090 = vpop.permute.xlu0 %1089
      %1091 = vrot.lane.b32.xlu0 %v774, 126
      %v1092 = vpop.permute.xlu0 %1091
      %1093 = vrot.lane.b32.xlu0 %v777, 126
      %v1094 = vpop.permute.xlu0 %1093
      %1095 = vrot.lane.b32.xlu0 %v782, 126
      %v1096 = vpop.permute.xlu0 %1095
      %1097 = vrot.lane.b32.xlu0 %v785, 126
      %v1098 = vpop.permute.xlu0 %1097
      %1099 = vrot.lane.b32.xlu0 %v790, 126
      %v1100 = vpop.permute.xlu0 %1099
      %1101 = vrot.lane.b32.xlu0 %v793, 126
      %v1102 = vpop.permute.xlu0 %1101
      %1103 = vrot.lane.b32.xlu0 %v798, 126
      %v1104 = vpop.permute.xlu0 %1103
      %1105 = vrot.lane.b32.xlu0 %v801, 126
      %v1106 = vpop.permute.xlu0 %1105
      %1107 = vrot.lane.b32.xlu0 %v806, 126
      %v1108 = vpop.permute.xlu0 %1107
      %1109 = vrot.lane.b32.xlu0 %v809, 126
      %v1110 = vpop.permute.xlu0 %1109
      %1111 = vrot.lane.b32.xlu0 %v814, 126
      %v1112 = vpop.permute.xlu0 %1111
      %1113 = vrot.lane.b32.xlu0 %v817, 126
      %v1114 = vpop.permute.xlu0 %1113
      %1115 = vrot.lane.b32.xlu0 %v822, 126
      %v1116 = vpop.permute.xlu0 %1115
      %1117 = vrot.lane.b32.xlu0 %v825, 126
      %v1118 = vpop.permute.xlu0 %1117
      %v1135 = vrot.slane %v1088, 1
      %v1136 = vrot.slane %v1090, 1
      %v1137 = vrot.slane %v1092, 1
      %v1138 = vrot.slane %v1094, 1
      %v1139 = vrot.slane %v1096, 1
      %v1140 = vrot.slane %v1098, 1
      %v1141 = vrot.slane %v1100, 1
      %v1142 = vrot.slane %v1102, 1
      %v1143 = vrot.slane %v1104, 1
      %v1144 = vrot.slane %v1106, 1
      %v1145 = vrot.slane %v1108, 1
      %v1146 = vrot.slane %v1110, 1
      %v1147 = vrot.slane %v1112, 1
      %v1148 = vrot.slane %v1114, 1
      %v1149 = vrot.slane %v1116, 1
      %v1150 = vrot.slane %v1118, 1
      %vm1151 = vcmp.lt.s32.totalorder %v845, 7
      %v1152 = vsel %vm1151, %v1149, %v1150
      %v1153 = vsel %vm1151, %v1148, %v1149
      %v1154 = vsel %vm1151, %v1147, %v1148
      %v1155 = vsel %vm1151, %v1146, %v1147
      %v1156 = vsel %vm1151, %v1145, %v1146
      %v1157 = vsel %vm1151, %v1144, %v1145
      %v1158 = vsel %vm1151, %v1143, %v1144
      %v1159 = vsel %vm1151, %v1142, %v1143
      %v1160 = vsel %vm1151, %v1141, %v1142
      %v1161 = vsel %vm1151, %v1140, %v1141
      %v1162 = vsel %vm1151, %v1139, %v1140
      %v1163 = vsel %vm1151, %v1138, %v1139
      %v1164 = vsel %vm1151, %v1137, %v1138
      %v1165 = vsel %vm1151, %v1136, %v1137
      %v1166 = vsel %vm1151, %v1135, %v1136
      %v1167 = vsel %vm1151, %v1150, %v1135
      %1184 = vrot.lane.b32.xlu0 %v1167, 2
      %v1185 = vpop.permute.xlu0 %1184
      %1186 = vrot.lane.b32.xlu0 %v1166, 2
      %v1187 = vpop.permute.xlu0 %1186
      %1188 = vrot.lane.b32.xlu0 %v1165, 2
      %v1189 = vpop.permute.xlu0 %1188
      %1190 = vrot.lane.b32.xlu0 %v1164, 2
      %v1191 = vpop.permute.xlu0 %1190
      %1192 = vrot.lane.b32.xlu0 %v1163, 2
      %v1193 = vpop.permute.xlu0 %1192
      %1194 = vrot.lane.b32.xlu0 %v1162, 2
      %v1195 = vpop.permute.xlu0 %1194
      %1196 = vrot.lane.b32.xlu0 %v1161, 2
      %v1197 = vpop.permute.xlu0 %1196
      %1198 = vrot.lane.b32.xlu0 %v1160, 2
      %v1199 = vpop.permute.xlu0 %1198
      %1200 = vrot.lane.b32.xlu0 %v1159, 2
      %v1201 = vpop.permute.xlu0 %1200
      %1202 = vrot.lane.b32.xlu0 %v1158, 2
      %v1203 = vpop.permute.xlu0 %1202
      %1204 = vrot.lane.b32.xlu0 %v1157, 2
      %v1205 = vpop.permute.xlu0 %1204
      %1206 = vrot.lane.b32.xlu0 %v1156, 2
      %v1207 = vpop.permute.xlu0 %1206
      %1208 = vrot.lane.b32.xlu0 %v1155, 2
      %v1209 = vpop.permute.xlu0 %1208
      %1210 = vrot.lane.b32.xlu0 %v1154, 2
      %v1211 = vpop.permute.xlu0 %1210
      %1212 = vrot.lane.b32.xlu0 %v1153, 2
      %v1213 = vpop.permute.xlu0 %1212
      %1214 = vrot.lane.b32.xlu0 %v1152, 2
      %v1215 = vpop.permute.xlu0 %1214
      %v1232 = vmul.f32 %v568, %v1185
      %v1233 = vmul.f32 %v569, %v1187
      %v1234 = vmul.f32 %v570, %v1189
      %v1235 = vmul.f32 %v571, %v1191
      %v1236 = vmul.f32 %v572, %v1193
      %v1237 = vmul.f32 %v573, %v1195
      %v1238 = vmul.f32 %v574, %v1197
      %v1239 = vmul.f32 %v575, %v1199
      %v1240 = vmul.f32 %v576, %v1201
      %v1241 = vmul.f32 %v577, %v1203
      %v1242 = vmul.f32 %v578, %v1205
      %v1243 = vmul.f32 %v579, %v1207
      %v1244 = vmul.f32 %v580, %v1209
      %v1245 = vmul.f32 %v581, %v1211
      %v1246 = vmul.f32 %v582, %v1213
      %v1247 = vmul.f32 %v583, %v1215
      %1264 = vrot.lane.b32.xlu0 %v1232, 126
      %v1265 = vpop.permute.xlu0 %1264
      %1266 = vrot.lane.b32.xlu0 %v1233, 126
      %v1267 = vpop.permute.xlu0 %1266
      %1268 = vrot.lane.b32.xlu0 %v1234, 126
      %v1269 = vpop.permute.xlu0 %1268
      %1270 = vrot.lane.b32.xlu0 %v1235, 126
      %v1271 = vpop.permute.xlu0 %1270
      %1272 = vrot.lane.b32.xlu0 %v1236, 126
      %v1273 = vpop.permute.xlu0 %1272
      %1274 = vrot.lane.b32.xlu0 %v1237, 126
      %v1275 = vpop.permute.xlu0 %1274
      %1276 = vrot.lane.b32.xlu0 %v1238, 126
      %v1277 = vpop.permute.xlu0 %1276
      %1278 = vrot.lane.b32.xlu0 %v1239, 126
      %v1279 = vpop.permute.xlu0 %1278
      %1280 = vrot.lane.b32.xlu0 %v1240, 126
      %v1281 = vpop.permute.xlu0 %1280
      %1282 = vrot.lane.b32.xlu0 %v1241, 126
      %v1283 = vpop.permute.xlu0 %1282
      %1284 = vrot.lane.b32.xlu0 %v1242, 126
      %v1285 = vpop.permute.xlu0 %1284
      %1286 = vrot.lane.b32.xlu0 %v1243, 126
      %v1287 = vpop.permute.xlu0 %1286
      %1288 = vrot.lane.b32.xlu0 %v1244, 126
      %v1289 = vpop.permute.xlu0 %1288
      %1290 = vrot.lane.b32.xlu0 %v1245, 126
      %v1291 = vpop.permute.xlu0 %1290
      %1292 = vrot.lane.b32.xlu0 %v1246, 126
      %v1293 = vpop.permute.xlu0 %1292
      %1294 = vrot.lane.b32.xlu0 %v1247, 126
      %v1295 = vpop.permute.xlu0 %1294
      %v1312 = vadd.f32 %v1071, %v1265
      %v1313 = vadd.f32 %v1072, %v1267
      %v1314 = vadd.f32 %v1073, %v1269
      %v1315 = vadd.f32 %v1074, %v1271
      %v1316 = vadd.f32 %v1075, %v1273
      %v1317 = vadd.f32 %v1076, %v1275
      %v1318 = vadd.f32 %v1077, %v1277
      %v1319 = vadd.f32 %v1078, %v1279
      %v1320 = vadd.f32 %v1079, %v1281
      %v1321 = vadd.f32 %v1080, %v1283
      %v1322 = vadd.f32 %v1081, %v1285
      %v1323 = vadd.f32 %v1082, %v1287
      %v1324 = vadd.f32 %v1083, %v1289
      %v1325 = vadd.f32 %v1084, %v1291
      %v1326 = vadd.f32 %v1085, %v1293
      %v1327 = vadd.f32 %v1086, %v1295
      %1328 = vrot.lane.b32.xlu0 %v766, 125
      %v1329 = vpop.permute.xlu0 %1328
      %1330 = vrot.lane.b32.xlu0 %v769, 125
      %v1331 = vpop.permute.xlu0 %1330
      %1332 = vrot.lane.b32.xlu0 %v774, 125
      %v1333 = vpop.permute.xlu0 %1332
      %1334 = vrot.lane.b32.xlu0 %v777, 125
      %v1335 = vpop.permute.xlu0 %1334
      %1336 = vrot.lane.b32.xlu0 %v782, 125
      %v1337 = vpop.permute.xlu0 %1336
      %1338 = vrot.lane.b32.xlu0 %v785, 125
      %v1339 = vpop.permute.xlu0 %1338
      %1340 = vrot.lane.b32.xlu0 %v790, 125
      %v1341 = vpop.permute.xlu0 %1340
      %1342 = vrot.lane.b32.xlu0 %v793, 125
      %v1343 = vpop.permute.xlu0 %1342
      %1344 = vrot.lane.b32.xlu0 %v798, 125
      %v1345 = vpop.permute.xlu0 %1344
      %1346 = vrot.lane.b32.xlu0 %v801, 125
      %v1347 = vpop.permute.xlu0 %1346
      %1348 = vrot.lane.b32.xlu0 %v806, 125
      %v1349 = vpop.permute.xlu0 %1348
      %1350 = vrot.lane.b32.xlu0 %v809, 125
      %v1351 = vpop.permute.xlu0 %1350
      %1352 = vrot.lane.b32.xlu0 %v814, 125
      %v1353 = vpop.permute.xlu0 %1352
      %1354 = vrot.lane.b32.xlu0 %v817, 125
      %v1355 = vpop.permute.xlu0 %1354
      %1356 = vrot.lane.b32.xlu0 %v822, 125
      %v1357 = vpop.permute.xlu0 %1356
      %1358 = vrot.lane.b32.xlu0 %v825, 125
      %v1359 = vpop.permute.xlu0 %1358
      %v1376 = vrot.slane %v1329, 7
      %v1377 = vrot.slane %v1331, 7
      %v1378 = vrot.slane %v1333, 7
      %v1379 = vrot.slane %v1335, 7
      %v1380 = vrot.slane %v1337, 7
      %v1381 = vrot.slane %v1339, 7
      %v1382 = vrot.slane %v1341, 7
      %v1383 = vrot.slane %v1343, 7
      %v1384 = vrot.slane %v1345, 7
      %v1385 = vrot.slane %v1347, 7
      %v1386 = vrot.slane %v1349, 7
      %v1387 = vrot.slane %v1351, 7
      %v1388 = vrot.slane %v1353, 7
      %v1389 = vrot.slane %v1355, 7
      %v1390 = vrot.slane %v1357, 7
      %v1391 = vrot.slane %v1359, 7
      %v1392 = vsel %vm846, %v1390, %v1391
      %v1393 = vsel %vm846, %v1389, %v1390
      %v1394 = vsel %vm846, %v1388, %v1389
      %v1395 = vsel %vm846, %v1387, %v1388
      %v1396 = vsel %vm846, %v1386, %v1387
      %v1397 = vsel %vm846, %v1385, %v1386
      %v1398 = vsel %vm846, %v1384, %v1385
      %v1399 = vsel %vm846, %v1383, %v1384
      %v1400 = vsel %vm846, %v1382, %v1383
      %v1401 = vsel %vm846, %v1381, %v1382
      %v1402 = vsel %vm846, %v1380, %v1381
      %v1403 = vsel %vm846, %v1379, %v1380
      %v1404 = vsel %vm846, %v1378, %v1379
      %v1405 = vsel %vm846, %v1377, %v1378
      %v1406 = vsel %vm846, %v1376, %v1377
      %v1407 = vsel %vm846, %v1391, %v1376
      %1424 = vrot.lane.b32.xlu0 %v1407, 3
      %v1425 = vpop.permute.xlu0 %1424
      %1426 = vrot.lane.b32.xlu0 %v1406, 3
      %v1427 = vpop.permute.xlu0 %1426
      %1428 = vrot.lane.b32.xlu0 %v1405, 3
      %v1429 = vpop.permute.xlu0 %1428
      %1430 = vrot.lane.b32.xlu0 %v1404, 3
      %v1431 = vpop.permute.xlu0 %1430
      %1432 = vrot.lane.b32.xlu0 %v1403, 3
      %v1433 = vpop.permute.xlu0 %1432
      %1434 = vrot.lane.b32.xlu0 %v1402, 3
      %v1435 = vpop.permute.xlu0 %1434
      %1436 = vrot.lane.b32.xlu0 %v1401, 3
      %v1437 = vpop.permute.xlu0 %1436
      %1438 = vrot.lane.b32.xlu0 %v1400, 3
      %v1439 = vpop.permute.xlu0 %1438
      %1440 = vrot.lane.b32.xlu0 %v1399, 3
      %v1441 = vpop.permute.xlu0 %1440
      %1442 = vrot.lane.b32.xlu0 %v1398, 3
      %v1443 = vpop.permute.xlu0 %1442
      %1444 = vrot.lane.b32.xlu0 %v1397, 3
      %v1445 = vpop.permute.xlu0 %1444
      %1446 = vrot.lane.b32.xlu0 %v1396, 3
      %v1447 = vpop.permute.xlu0 %1446
      %1448 = vrot.lane.b32.xlu0 %v1395, 3
      %v1449 = vpop.permute.xlu0 %1448
      %1450 = vrot.lane.b32.xlu0 %v1394, 3
      %v1451 = vpop.permute.xlu0 %1450
      %1452 = vrot.lane.b32.xlu0 %v1393, 3
      %v1453 = vpop.permute.xlu0 %1452
      %1454 = vrot.lane.b32.xlu0 %v1392, 3
      %v1455 = vpop.permute.xlu0 %1454
      %v1472 = vmul.f32 %v568, %v1425
      %v1473 = vmul.f32 %v569, %v1427
      %v1474 = vmul.f32 %v570, %v1429
      %v1475 = vmul.f32 %v571, %v1431
      %v1476 = vmul.f32 %v572, %v1433
      %v1477 = vmul.f32 %v573, %v1435
      %v1478 = vmul.f32 %v574, %v1437
      %v1479 = vmul.f32 %v575, %v1439
      %v1480 = vmul.f32 %v576, %v1441
      %v1481 = vmul.f32 %v577, %v1443
      %v1482 = vmul.f32 %v578, %v1445
      %v1483 = vmul.f32 %v579, %v1447
      %v1484 = vmul.f32 %v580, %v1449
      %v1485 = vmul.f32 %v581, %v1451
      %v1486 = vmul.f32 %v582, %v1453
      %v1487 = vmul.f32 %v583, %v1455
      %1504 = vrot.lane.b32.xlu0 %v1472, 125
      %v1505 = vpop.permute.xlu0 %1504
      %1506 = vrot.lane.b32.xlu0 %v1473, 125
      %v1507 = vpop.permute.xlu0 %1506
      %1508 = vrot.lane.b32.xlu0 %v1474, 125
      %v1509 = vpop.permute.xlu0 %1508
      %1510 = vrot.lane.b32.xlu0 %v1475, 125
      %v1511 = vpop.permute.xlu0 %1510
      %1512 = vrot.lane.b32.xlu0 %v1476, 125
      %v1513 = vpop.permute.xlu0 %1512
      %1514 = vrot.lane.b32.xlu0 %v1477, 125
      %v1515 = vpop.permute.xlu0 %1514
      %1516 = vrot.lane.b32.xlu0 %v1478, 125
      %v1517 = vpop.permute.xlu0 %1516
      %1518 = vrot.lane.b32.xlu0 %v1479, 125
      %v1519 = vpop.permute.xlu0 %1518
      %1520 = vrot.lane.b32.xlu0 %v1480, 125
      %v1521 = vpop.permute.xlu0 %1520
      %1522 = vrot.lane.b32.xlu0 %v1481, 125
      %v1523 = vpop.permute.xlu0 %1522
      %1524 = vrot.lane.b32.xlu0 %v1482, 125
      %v1525 = vpop.permute.xlu0 %1524
      %1526 = vrot.lane.b32.xlu0 %v1483, 125
      %v1527 = vpop.permute.xlu0 %1526
      %1528 = vrot.lane.b32.xlu0 %v1484, 125
      %v1529 = vpop.permute.xlu0 %1528
      %1530 = vrot.lane.b32.xlu0 %v1485, 125
      %v1531 = vpop.permute.xlu0 %1530
      %1532 = vrot.lane.b32.xlu0 %v1486, 125
      %v1533 = vpop.permute.xlu0 %1532
      %1534 = vrot.lane.b32.xlu0 %v1487, 125
      %v1535 = vpop.permute.xlu0 %1534
      %v1552 = vadd.f32 %v1312, %v1505
      %v1553 = vadd.f32 %v1313, %v1507
      %v1554 = vadd.f32 %v1314, %v1509
      %v1555 = vadd.f32 %v1315, %v1511
      %v1556 = vadd.f32 %v1316, %v1513
      %v1557 = vadd.f32 %v1317, %v1515
      %v1558 = vadd.f32 %v1318, %v1517
      %v1559 = vadd.f32 %v1319, %v1519
      %v1560 = vadd.f32 %v1320, %v1521
      %v1561 = vadd.f32 %v1321, %v1523
      %v1562 = vadd.f32 %v1322, %v1525
      %v1563 = vadd.f32 %v1323, %v1527
      %v1564 = vadd.f32 %v1324, %v1529
      %v1565 = vadd.f32 %v1325, %v1531
      %v1566 = vadd.f32 %v1326, %v1533
      %v1567 = vadd.f32 %v1327, %v1535
      %v1568 = vmul.f32 %v568, %v766
      %v1569 = vmul.f32 %v569, %v769
      %v1570 = vmul.f32 %v570, %v774
      %v1571 = vmul.f32 %v571, %v777
      %v1572 = vmul.f32 %v572, %v782
      %v1573 = vmul.f32 %v573, %v785
      %v1574 = vmul.f32 %v574, %v790
      %v1575 = vmul.f32 %v575, %v793
      %v1576 = vmul.f32 %v576, %v798
      %v1577 = vmul.f32 %v577, %v801
      %v1578 = vmul.f32 %v578, %v806
      %v1579 = vmul.f32 %v579, %v809
      %v1580 = vmul.f32 %v580, %v814
      %v1581 = vmul.f32 %v581, %v817
      %v1582 = vmul.f32 %v582, %v822
      %v1583 = vmul.f32 %v583, %v825
      %1600 = vrot.lane.b32.xlu0 %v1568, 124
      %v1601 = vpop.permute.xlu0 %1600
      %1602 = vrot.lane.b32.xlu0 %v1569, 124
      %v1603 = vpop.permute.xlu0 %1602
      %1604 = vrot.lane.b32.xlu0 %v1570, 124
      %v1605 = vpop.permute.xlu0 %1604
      %1606 = vrot.lane.b32.xlu0 %v1571, 124
      %v1607 = vpop.permute.xlu0 %1606
      %1608 = vrot.lane.b32.xlu0 %v1572, 124
      %v1609 = vpop.permute.xlu0 %1608
      %1610 = vrot.lane.b32.xlu0 %v1573, 124
      %v1611 = vpop.permute.xlu0 %1610
      %1612 = vrot.lane.b32.xlu0 %v1574, 124
      %v1613 = vpop.permute.xlu0 %1612
      %1614 = vrot.lane.b32.xlu0 %v1575, 124
      %v1615 = vpop.permute.xlu0 %1614
      %1616 = vrot.lane.b32.xlu0 %v1576, 124
      %v1617 = vpop.permute.xlu0 %1616
      %1618 = vrot.lane.b32.xlu0 %v1577, 124
      %v1619 = vpop.permute.xlu0 %1618
      %1620 = vrot.lane.b32.xlu0 %v1578, 124
      %v1621 = vpop.permute.xlu0 %1620
      %1622 = vrot.lane.b32.xlu0 %v1579, 124
      %v1623 = vpop.permute.xlu0 %1622
      %1624 = vrot.lane.b32.xlu0 %v1580, 124
      %v1625 = vpop.permute.xlu0 %1624
      %1626 = vrot.lane.b32.xlu0 %v1581, 124
      %v1627 = vpop.permute.xlu0 %1626
      %1628 = vrot.lane.b32.xlu0 %v1582, 124
      %v1629 = vpop.permute.xlu0 %1628
      %1630 = vrot.lane.b32.xlu0 %v1583, 124
      %v1631 = vpop.permute.xlu0 %1630
      %v1648 = vadd.f32 %v1552, %v1601
      %v1649 = vadd.f32 %v1553, %v1603
      %v1650 = vadd.f32 %v1554, %v1605
      %v1651 = vadd.f32 %v1555, %v1607
      %v1652 = vadd.f32 %v1556, %v1609
      %v1653 = vadd.f32 %v1557, %v1611
      %v1654 = vadd.f32 %v1558, %v1613
      %v1655 = vadd.f32 %v1559, %v1615
      %v1656 = vadd.f32 %v1560, %v1617
      %v1657 = vadd.f32 %v1561, %v1619
      %v1658 = vadd.f32 %v1562, %v1621
      %v1659 = vadd.f32 %v1563, %v1623
      %v1660 = vadd.f32 %v1564, %v1625
      %v1661 = vadd.f32 %v1565, %v1627
      %v1662 = vadd.f32 %v1566, %v1629
      %v1663 = vadd.f32 %v1567, %v1631
      %1664 = vrot.lane.b32.xlu0 %v766, 123
      %v1665 = vpop.permute.xlu0 %1664
      %1666 = vrot.lane.b32.xlu0 %v769, 123
      %v1667 = vpop.permute.xlu0 %1666
      %1668 = vrot.lane.b32.xlu0 %v774, 123
      %v1669 = vpop.permute.xlu0 %1668
      %1670 = vrot.lane.b32.xlu0 %v777, 123
      %v1671 = vpop.permute.xlu0 %1670
      %1672 = vrot.lane.b32.xlu0 %v782, 123
      %v1673 = vpop.permute.xlu0 %1672
      %1674 = vrot.lane.b32.xlu0 %v785, 123
      %v1675 = vpop.permute.xlu0 %1674
      %1676 = vrot.lane.b32.xlu0 %v790, 123
      %v1677 = vpop.permute.xlu0 %1676
      %1678 = vrot.lane.b32.xlu0 %v793, 123
      %v1679 = vpop.permute.xlu0 %1678
      %1680 = vrot.lane.b32.xlu0 %v798, 123
      %v1681 = vpop.permute.xlu0 %1680
      %1682 = vrot.lane.b32.xlu0 %v801, 123
      %v1683 = vpop.permute.xlu0 %1682
      %1684 = vrot.lane.b32.xlu0 %v806, 123
      %v1685 = vpop.permute.xlu0 %1684
      %1686 = vrot.lane.b32.xlu0 %v809, 123
      %v1687 = vpop.permute.xlu0 %1686
      %1688 = vrot.lane.b32.xlu0 %v814, 123
      %v1689 = vpop.permute.xlu0 %1688
      %1690 = vrot.lane.b32.xlu0 %v817, 123
      %v1691 = vpop.permute.xlu0 %1690
      %1692 = vrot.lane.b32.xlu0 %v822, 123
      %v1693 = vpop.permute.xlu0 %1692
      %1694 = vrot.lane.b32.xlu0 %v825, 123
      %v1695 = vpop.permute.xlu0 %1694
      %v1712 = vrot.slane %v1665, 1
      %v1713 = vrot.slane %v1667, 1
      %v1714 = vrot.slane %v1669, 1
      %v1715 = vrot.slane %v1671, 1
      %v1716 = vrot.slane %v1673, 1
      %v1717 = vrot.slane %v1675, 1
      %v1718 = vrot.slane %v1677, 1
      %v1719 = vrot.slane %v1679, 1
      %v1720 = vrot.slane %v1681, 1
      %v1721 = vrot.slane %v1683, 1
      %v1722 = vrot.slane %v1685, 1
      %v1723 = vrot.slane %v1687, 1
      %v1724 = vrot.slane %v1689, 1
      %v1725 = vrot.slane %v1691, 1
      %v1726 = vrot.slane %v1693, 1
      %v1727 = vrot.slane %v1695, 1
      %v1728 = vsel %vm1151, %v1726, %v1727
      %v1729 = vsel %vm1151, %v1725, %v1726
      %v1730 = vsel %vm1151, %v1724, %v1725
      %v1731 = vsel %vm1151, %v1723, %v1724
      %v1732 = vsel %vm1151, %v1722, %v1723
      %v1733 = vsel %vm1151, %v1721, %v1722
      %v1734 = vsel %vm1151, %v1720, %v1721
      %v1735 = vsel %vm1151, %v1719, %v1720
      %v1736 = vsel %vm1151, %v1718, %v1719
      %v1737 = vsel %vm1151, %v1717, %v1718
      %v1738 = vsel %vm1151, %v1716, %v1717
      %v1739 = vsel %vm1151, %v1715, %v1716
      %v1740 = vsel %vm1151, %v1714, %v1715
      %v1741 = vsel %vm1151, %v1713, %v1714
      %v1742 = vsel %vm1151, %v1712, %v1713
      %v1743 = vsel %vm1151, %v1727, %v1712
      %1760 = vrot.lane.b32.xlu0 %v1742, 5
      %v1761 = vpop.permute.xlu0 %1760
      %1762 = vrot.lane.b32.xlu0 %v1741, 5
      %v1763 = vpop.permute.xlu0 %1762
      %1764 = vrot.lane.b32.xlu0 %v1740, 5
      %v1765 = vpop.permute.xlu0 %1764
      %1766 = vrot.lane.b32.xlu0 %v1739, 5
      %v1767 = vpop.permute.xlu0 %1766
      %1768 = vrot.lane.b32.xlu0 %v1738, 5
      %v1769 = vpop.permute.xlu0 %1768
      %1770 = vrot.lane.b32.xlu0 %v1737, 5
      %v1771 = vpop.permute.xlu0 %1770
      %1772 = vrot.lane.b32.xlu0 %v1736, 5
      %v1773 = vpop.permute.xlu0 %1772
      %1774 = vrot.lane.b32.xlu0 %v1735, 5
      %v1775 = vpop.permute.xlu0 %1774
      %1776 = vrot.lane.b32.xlu0 %v1734, 5
      %v1777 = vpop.permute.xlu0 %1776
      %1778 = vrot.lane.b32.xlu0 %v1733, 5
      %v1779 = vpop.permute.xlu0 %1778
      %1780 = vrot.lane.b32.xlu0 %v1732, 5
      %v1781 = vpop.permute.xlu0 %1780
      %1782 = vrot.lane.b32.xlu0 %v1731, 5
      %v1783 = vpop.permute.xlu0 %1782
      %1784 = vrot.lane.b32.xlu0 %v1730, 5
      %v1785 = vpop.permute.xlu0 %1784
      %1786 = vrot.lane.b32.xlu0 %v1729, 5
      %v1787 = vpop.permute.xlu0 %1786
      %1788 = vrot.lane.b32.xlu0 %v1728, 5
      %v1789 = vpop.permute.xlu0 %1788
      %1790 = vrot.lane.b32.xlu0 %v1743, 5
      %v1791 = vpop.permute.xlu0 %1790
      %v1808 = vmul.f32 %v568, %v1761
      %v1809 = vmul.f32 %v569, %v1763
      %v1810 = vmul.f32 %v570, %v1765
      %v1811 = vmul.f32 %v571, %v1767
      %v1812 = vmul.f32 %v572, %v1769
      %v1813 = vmul.f32 %v573, %v1771
      %v1814 = vmul.f32 %v574, %v1773
      %v1815 = vmul.f32 %v575, %v1775
      %v1816 = vmul.f32 %v576, %v1777
      %v1817 = vmul.f32 %v577, %v1779
      %v1818 = vmul.f32 %v578, %v1781
      %v1819 = vmul.f32 %v579, %v1783
      %v1820 = vmul.f32 %v580, %v1785
      %v1821 = vmul.f32 %v581, %v1787
      %v1822 = vmul.f32 %v582, %v1789
      %v1823 = vmul.f32 %v583, %v1791
      %1840 = vrot.lane.b32.xlu0 %v1808, 123
      %v1841 = vpop.permute.xlu0 %1840
      %1842 = vrot.lane.b32.xlu0 %v1809, 123
      %v1843 = vpop.permute.xlu0 %1842
      %1844 = vrot.lane.b32.xlu0 %v1810, 123
      %v1845 = vpop.permute.xlu0 %1844
      %1846 = vrot.lane.b32.xlu0 %v1811, 123
      %v1847 = vpop.permute.xlu0 %1846
      %1848 = vrot.lane.b32.xlu0 %v1812, 123
      %v1849 = vpop.permute.xlu0 %1848
      %1850 = vrot.lane.b32.xlu0 %v1813, 123
      %v1851 = vpop.permute.xlu0 %1850
      %1852 = vrot.lane.b32.xlu0 %v1814, 123
      %v1853 = vpop.permute.xlu0 %1852
      %1854 = vrot.lane.b32.xlu0 %v1815, 123
      %v1855 = vpop.permute.xlu0 %1854
      %1856 = vrot.lane.b32.xlu0 %v1816, 123
      %v1857 = vpop.permute.xlu0 %1856
      %1858 = vrot.lane.b32.xlu0 %v1817, 123
      %v1859 = vpop.permute.xlu0 %1858
      %1860 = vrot.lane.b32.xlu0 %v1818, 123
      %v1861 = vpop.permute.xlu0 %1860
      %1862 = vrot.lane.b32.xlu0 %v1819, 123
      %v1863 = vpop.permute.xlu0 %1862
      %1864 = vrot.lane.b32.xlu0 %v1820, 123
      %v1865 = vpop.permute.xlu0 %1864
      %1866 = vrot.lane.b32.xlu0 %v1821, 123
      %v1867 = vpop.permute.xlu0 %1866
      %1868 = vrot.lane.b32.xlu0 %v1822, 123
      %v1869 = vpop.permute.xlu0 %1868
      %1870 = vrot.lane.b32.xlu0 %v1823, 123
      %v1871 = vpop.permute.xlu0 %1870
      %v1888 = vadd.f32 %v1648, %v1841
      %v1889 = vadd.f32 %v1649, %v1843
      %v1890 = vadd.f32 %v1650, %v1845
      %v1891 = vadd.f32 %v1651, %v1847
      %v1892 = vadd.f32 %v1652, %v1849
      %v1893 = vadd.f32 %v1653, %v1851
      %v1894 = vadd.f32 %v1654, %v1853
      %v1895 = vadd.f32 %v1655, %v1855
      %v1896 = vadd.f32 %v1656, %v1857
      %v1897 = vadd.f32 %v1657, %v1859
      %v1898 = vadd.f32 %v1658, %v1861
      %v1899 = vadd.f32 %v1659, %v1863
      %v1900 = vadd.f32 %v1660, %v1865
      %v1901 = vadd.f32 %v1661, %v1867
      %v1902 = vadd.f32 %v1662, %v1869
      %v1903 = vadd.f32 %v1663, %v1871
      %1904 = vrot.lane.b32.xlu0 %v766, 122
      %v1905 = vpop.permute.xlu0 %1904
      %1906 = vrot.lane.b32.xlu0 %v769, 122
      %v1907 = vpop.permute.xlu0 %1906
      %1908 = vrot.lane.b32.xlu0 %v774, 122
      %v1909 = vpop.permute.xlu0 %1908
      %1910 = vrot.lane.b32.xlu0 %v777, 122
      %v1911 = vpop.permute.xlu0 %1910
      %1912 = vrot.lane.b32.xlu0 %v782, 122
      %v1913 = vpop.permute.xlu0 %1912
      %1914 = vrot.lane.b32.xlu0 %v785, 122
      %v1915 = vpop.permute.xlu0 %1914
      %1916 = vrot.lane.b32.xlu0 %v790, 122
      %v1917 = vpop.permute.xlu0 %1916
      %1918 = vrot.lane.b32.xlu0 %v793, 122
      %v1919 = vpop.permute.xlu0 %1918
      %1920 = vrot.lane.b32.xlu0 %v798, 122
      %v1921 = vpop.permute.xlu0 %1920
      %1922 = vrot.lane.b32.xlu0 %v801, 122
      %v1923 = vpop.permute.xlu0 %1922
      %1924 = vrot.lane.b32.xlu0 %v806, 122
      %v1925 = vpop.permute.xlu0 %1924
      %1926 = vrot.lane.b32.xlu0 %v809, 122
      %v1927 = vpop.permute.xlu0 %1926
      %1928 = vrot.lane.b32.xlu0 %v814, 122
      %v1929 = vpop.permute.xlu0 %1928
      %1930 = vrot.lane.b32.xlu0 %v817, 122
      %v1931 = vpop.permute.xlu0 %1930
      %1932 = vrot.lane.b32.xlu0 %v822, 122
      %v1933 = vpop.permute.xlu0 %1932
      %1934 = vrot.lane.b32.xlu0 %v825, 122
      %v1935 = vpop.permute.xlu0 %1934
      %v1952 = vrot.slane %v1905, 7
      %v1953 = vrot.slane %v1907, 7
      %v1954 = vrot.slane %v1909, 7
      %v1955 = vrot.slane %v1911, 7
      %v1956 = vrot.slane %v1913, 7
      %v1957 = vrot.slane %v1915, 7
      %v1958 = vrot.slane %v1917, 7
      %v1959 = vrot.slane %v1919, 7
      %v1960 = vrot.slane %v1921, 7
      %v1961 = vrot.slane %v1923, 7
      %v1962 = vrot.slane %v1925, 7
      %v1963 = vrot.slane %v1927, 7
      %v1964 = vrot.slane %v1929, 7
      %v1965 = vrot.slane %v1931, 7
      %v1966 = vrot.slane %v1933, 7
      %v1967 = vrot.slane %v1935, 7
      %v1968 = vsel %vm846, %v1966, %v1967
      %v1969 = vsel %vm846, %v1965, %v1966
      %v1970 = vsel %vm846, %v1964, %v1965
      %v1971 = vsel %vm846, %v1963, %v1964
      %v1972 = vsel %vm846, %v1962, %v1963
      %v1973 = vsel %vm846, %v1961, %v1962
      %v1974 = vsel %vm846, %v1960, %v1961
      %v1975 = vsel %vm846, %v1959, %v1960
      %v1976 = vsel %vm846, %v1958, %v1959
      %v1977 = vsel %vm846, %v1957, %v1958
      %v1978 = vsel %vm846, %v1956, %v1957
      %v1979 = vsel %vm846, %v1955, %v1956
      %v1980 = vsel %vm846, %v1954, %v1955
      %v1981 = vsel %vm846, %v1953, %v1954
      %v1982 = vsel %vm846, %v1952, %v1953
      %v1983 = vsel %vm846, %v1967, %v1952
      %2000 = vrot.lane.b32.xlu0 %v1982, 6
      %v2001 = vpop.permute.xlu0 %2000
      %2002 = vrot.lane.b32.xlu0 %v1981, 6
      %v2003 = vpop.permute.xlu0 %2002
      %2004 = vrot.lane.b32.xlu0 %v1980, 6
      %v2005 = vpop.permute.xlu0 %2004
      %2006 = vrot.lane.b32.xlu0 %v1979, 6
      %v2007 = vpop.permute.xlu0 %2006
      %2008 = vrot.lane.b32.xlu0 %v1978, 6
      %v2009 = vpop.permute.xlu0 %2008
      %2010 = vrot.lane.b32.xlu0 %v1977, 6
      %v2011 = vpop.permute.xlu0 %2010
      %2012 = vrot.lane.b32.xlu0 %v1976, 6
      %v2013 = vpop.permute.xlu0 %2012
      %2014 = vrot.lane.b32.xlu0 %v1975, 6
      %v2015 = vpop.permute.xlu0 %2014
      %2016 = vrot.lane.b32.xlu0 %v1974, 6
      %v2017 = vpop.permute.xlu0 %2016
      %2018 = vrot.lane.b32.xlu0 %v1973, 6
      %v2019 = vpop.permute.xlu0 %2018
      %2020 = vrot.lane.b32.xlu0 %v1972, 6
      %v2021 = vpop.permute.xlu0 %2020
      %2022 = vrot.lane.b32.xlu0 %v1971, 6
      %v2023 = vpop.permute.xlu0 %2022
      %2024 = vrot.lane.b32.xlu0 %v1970, 6
      %v2025 = vpop.permute.xlu0 %2024
      %2026 = vrot.lane.b32.xlu0 %v1969, 6
      %v2027 = vpop.permute.xlu0 %2026
      %2028 = vrot.lane.b32.xlu0 %v1968, 6
      %v2029 = vpop.permute.xlu0 %2028
      %2030 = vrot.lane.b32.xlu0 %v1983, 6
      %v2031 = vpop.permute.xlu0 %2030
      %v2048 = vmul.f32 %v568, %v2001
      %v2049 = vmul.f32 %v569, %v2003
      %v2050 = vmul.f32 %v570, %v2005
      %v2051 = vmul.f32 %v571, %v2007
      %v2052 = vmul.f32 %v572, %v2009
      %v2053 = vmul.f32 %v573, %v2011
      %v2054 = vmul.f32 %v574, %v2013
      %v2055 = vmul.f32 %v575, %v2015
      %v2056 = vmul.f32 %v576, %v2017
      %v2057 = vmul.f32 %v577, %v2019
      %v2058 = vmul.f32 %v578, %v2021
      %v2059 = vmul.f32 %v579, %v2023
      %v2060 = vmul.f32 %v580, %v2025
      %v2061 = vmul.f32 %v581, %v2027
      %v2062 = vmul.f32 %v582, %v2029
      %v2063 = vmul.f32 %v583, %v2031
      %2080 = vrot.lane.b32.xlu0 %v2048, 122
      %v2081 = vpop.permute.xlu0 %2080
      %2082 = vrot.lane.b32.xlu0 %v2049, 122
      %v2083 = vpop.permute.xlu0 %2082
      %2084 = vrot.lane.b32.xlu0 %v2050, 122
      %v2085 = vpop.permute.xlu0 %2084
      %2086 = vrot.lane.b32.xlu0 %v2051, 122
      %v2087 = vpop.permute.xlu0 %2086
      %2088 = vrot.lane.b32.xlu0 %v2052, 122
      %v2089 = vpop.permute.xlu0 %2088
      %2090 = vrot.lane.b32.xlu0 %v2053, 122
      %v2091 = vpop.permute.xlu0 %2090
      %2092 = vrot.lane.b32.xlu0 %v2054, 122
      %v2093 = vpop.permute.xlu0 %2092
      %2094 = vrot.lane.b32.xlu0 %v2055, 122
      %v2095 = vpop.permute.xlu0 %2094
      %2096 = vrot.lane.b32.xlu0 %v2056, 122
      %v2097 = vpop.permute.xlu0 %2096
      %2098 = vrot.lane.b32.xlu0 %v2057, 122
      %v2099 = vpop.permute.xlu0 %2098
      %2100 = vrot.lane.b32.xlu0 %v2058, 122
      %v2101 = vpop.permute.xlu0 %2100
      %2102 = vrot.lane.b32.xlu0 %v2059, 122
      %v2103 = vpop.permute.xlu0 %2102
      %2104 = vrot.lane.b32.xlu0 %v2060, 122
      %v2105 = vpop.permute.xlu0 %2104
      %2106 = vrot.lane.b32.xlu0 %v2061, 122
      %v2107 = vpop.permute.xlu0 %2106
      %2108 = vrot.lane.b32.xlu0 %v2062, 122
      %v2109 = vpop.permute.xlu0 %2108
      %2110 = vrot.lane.b32.xlu0 %v2063, 122
      %v2111 = vpop.permute.xlu0 %2110
      %v2128 = vadd.f32 %v1888, %v2081
      %v2129 = vadd.f32 %v1889, %v2083
      %v2130 = vadd.f32 %v1890, %v2085
      %v2131 = vadd.f32 %v1891, %v2087
      %v2132 = vadd.f32 %v1892, %v2089
      %v2133 = vadd.f32 %v1893, %v2091
      %v2134 = vadd.f32 %v1894, %v2093
      %v2135 = vadd.f32 %v1895, %v2095
      %v2136 = vadd.f32 %v1896, %v2097
      %v2137 = vadd.f32 %v1897, %v2099
      %v2138 = vadd.f32 %v1898, %v2101
      %v2139 = vadd.f32 %v1899, %v2103
      %v2140 = vadd.f32 %v1900, %v2105
      %v2141 = vadd.f32 %v1901, %v2107
      %v2142 = vadd.f32 %v1902, %v2109
      %v2143 = vadd.f32 %v1903, %v2111
      %2144 = vrot.lane.b32.xlu0 %v766, 121
      %v2145 = vpop.permute.xlu0 %2144
      %2146 = vrot.lane.b32.xlu0 %v769, 121
      %v2147 = vpop.permute.xlu0 %2146
      %2148 = vrot.lane.b32.xlu0 %v774, 121
      %v2149 = vpop.permute.xlu0 %2148
      %2150 = vrot.lane.b32.xlu0 %v777, 121
      %v2151 = vpop.permute.xlu0 %2150
      %2152 = vrot.lane.b32.xlu0 %v782, 121
      %v2153 = vpop.permute.xlu0 %2152
      %2154 = vrot.lane.b32.xlu0 %v785, 121
      %v2155 = vpop.permute.xlu0 %2154
      %2156 = vrot.lane.b32.xlu0 %v790, 121
      %v2157 = vpop.permute.xlu0 %2156
      %2158 = vrot.lane.b32.xlu0 %v793, 121
      %v2159 = vpop.permute.xlu0 %2158
      %2160 = vrot.lane.b32.xlu0 %v798, 121
      %v2161 = vpop.permute.xlu0 %2160
      %2162 = vrot.lane.b32.xlu0 %v801, 121
      %v2163 = vpop.permute.xlu0 %2162
      %2164 = vrot.lane.b32.xlu0 %v806, 121
      %v2165 = vpop.permute.xlu0 %2164
      %2166 = vrot.lane.b32.xlu0 %v809, 121
      %v2167 = vpop.permute.xlu0 %2166
      %2168 = vrot.lane.b32.xlu0 %v814, 121
      %v2169 = vpop.permute.xlu0 %2168
      %2170 = vrot.lane.b32.xlu0 %v817, 121
      %v2171 = vpop.permute.xlu0 %2170
      %2172 = vrot.lane.b32.xlu0 %v822, 121
      %v2173 = vpop.permute.xlu0 %2172
      %2174 = vrot.lane.b32.xlu0 %v825, 121
      %v2175 = vpop.permute.xlu0 %2174
      %2176 = vrot.lane.b32.xlu0 %v2147, 7
      %v2177 = vpop.permute.xlu0 %2176
      %2178 = vrot.lane.b32.xlu0 %v2149, 7
      %v2179 = vpop.permute.xlu0 %2178
      %2180 = vrot.lane.b32.xlu0 %v2151, 7
      %v2181 = vpop.permute.xlu0 %2180
      %2182 = vrot.lane.b32.xlu0 %v2153, 7
      %v2183 = vpop.permute.xlu0 %2182
      %2184 = vrot.lane.b32.xlu0 %v2155, 7
      %v2185 = vpop.permute.xlu0 %2184
      %2186 = vrot.lane.b32.xlu0 %v2157, 7
      %v2187 = vpop.permute.xlu0 %2186
      %2188 = vrot.lane.b32.xlu0 %v2159, 7
      %v2189 = vpop.permute.xlu0 %2188
      %2190 = vrot.lane.b32.xlu0 %v2161, 7
      %v2191 = vpop.permute.xlu0 %2190
      %2192 = vrot.lane.b32.xlu0 %v2163, 7
      %v2193 = vpop.permute.xlu0 %2192
      %2194 = vrot.lane.b32.xlu0 %v2165, 7
      %v2195 = vpop.permute.xlu0 %2194
      %2196 = vrot.lane.b32.xlu0 %v2167, 7
      %v2197 = vpop.permute.xlu0 %2196
      %2198 = vrot.lane.b32.xlu0 %v2169, 7
      %v2199 = vpop.permute.xlu0 %2198
      %2200 = vrot.lane.b32.xlu0 %v2171, 7
      %v2201 = vpop.permute.xlu0 %2200
      %2202 = vrot.lane.b32.xlu0 %v2173, 7
      %v2203 = vpop.permute.xlu0 %2202
      %2204 = vrot.lane.b32.xlu0 %v2175, 7
      %v2205 = vpop.permute.xlu0 %2204
      %2206 = vrot.lane.b32.xlu0 %v2145, 7
      %v2207 = vpop.permute.xlu0 %2206
      %v2224 = vmul.f32 %v568, %v2177
      %v2225 = vmul.f32 %v569, %v2179
      %v2226 = vmul.f32 %v570, %v2181
      %v2227 = vmul.f32 %v571, %v2183
      %v2228 = vmul.f32 %v572, %v2185
      %v2229 = vmul.f32 %v573, %v2187
      %v2230 = vmul.f32 %v574, %v2189
      %v2231 = vmul.f32 %v575, %v2191
      %v2232 = vmul.f32 %v576, %v2193
      %v2233 = vmul.f32 %v577, %v2195
      %v2234 = vmul.f32 %v578, %v2197
      %v2235 = vmul.f32 %v579, %v2199
      %v2236 = vmul.f32 %v580, %v2201
      %v2237 = vmul.f32 %v581, %v2203
      %v2238 = vmul.f32 %v582, %v2205
      %v2239 = vmul.f32 %v583, %v2207
      %2256 = vrot.lane.b32.xlu0 %v2224, 121
      %v2257 = vpop.permute.xlu0 %2256
      %2258 = vrot.lane.b32.xlu0 %v2225, 121
      %v2259 = vpop.permute.xlu0 %2258
      %2260 = vrot.lane.b32.xlu0 %v2226, 121
      %v2261 = vpop.permute.xlu0 %2260
      %2262 = vrot.lane.b32.xlu0 %v2227, 121
      %v2263 = vpop.permute.xlu0 %2262
      %2264 = vrot.lane.b32.xlu0 %v2228, 121
      %v2265 = vpop.permute.xlu0 %2264
      %2266 = vrot.lane.b32.xlu0 %v2229, 121
      %v2267 = vpop.permute.xlu0 %2266
      %2268 = vrot.lane.b32.xlu0 %v2230, 121
      %v2269 = vpop.permute.xlu0 %2268
      %2270 = vrot.lane.b32.xlu0 %v2231, 121
      %v2271 = vpop.permute.xlu0 %2270
      %2272 = vrot.lane.b32.xlu0 %v2232, 121
      %v2273 = vpop.permute.xlu0 %2272
      %2274 = vrot.lane.b32.xlu0 %v2233, 121
      %v2275 = vpop.permute.xlu0 %2274
      %2276 = vrot.lane.b32.xlu0 %v2234, 121
      %v2277 = vpop.permute.xlu0 %2276
      %2278 = vrot.lane.b32.xlu0 %v2235, 121
      %v2279 = vpop.permute.xlu0 %2278
      %2280 = vrot.lane.b32.xlu0 %v2236, 121
      %v2281 = vpop.permute.xlu0 %2280
      %2282 = vrot.lane.b32.xlu0 %v2237, 121
      %v2283 = vpop.permute.xlu0 %2282
      %2284 = vrot.lane.b32.xlu0 %v2238, 121
      %v2285 = vpop.permute.xlu0 %2284
      %2286 = vrot.lane.b32.xlu0 %v2239, 121
      %v2287 = vpop.permute.xlu0 %2286
      %v2304 = vadd.f32 %v2128, %v2257
      %v2305 = vadd.f32 %v2129, %v2259
      %v2306 = vadd.f32 %v2130, %v2261
      %v2307 = vadd.f32 %v2131, %v2263
      %v2308 = vadd.f32 %v2132, %v2265
      %v2309 = vadd.f32 %v2133, %v2267
      %v2310 = vadd.f32 %v2134, %v2269
      %v2311 = vadd.f32 %v2135, %v2271
      %v2312 = vadd.f32 %v2136, %v2273
      %v2313 = vadd.f32 %v2137, %v2275
      %v2314 = vadd.f32 %v2138, %v2277
      %v2315 = vadd.f32 %v2139, %v2279
      %v2316 = vadd.f32 %v2140, %v2281
      %v2317 = vadd.f32 %v2141, %v2283
      %v2318 = vadd.f32 %v2142, %v2285
      %v2319 = vadd.f32 %v2143, %v2287
      %2320 = vrot.lane.b32.xlu0 %v766, 120
      %v2321 = vpop.permute.xlu0 %2320
      %2322 = vrot.lane.b32.xlu0 %v769, 120
      %v2323 = vpop.permute.xlu0 %2322
      %2324 = vrot.lane.b32.xlu0 %v774, 120
      %v2325 = vpop.permute.xlu0 %2324
      %2326 = vrot.lane.b32.xlu0 %v777, 120
      %v2327 = vpop.permute.xlu0 %2326
      %2328 = vrot.lane.b32.xlu0 %v782, 120
      %v2329 = vpop.permute.xlu0 %2328
      %2330 = vrot.lane.b32.xlu0 %v785, 120
      %v2331 = vpop.permute.xlu0 %2330
      %2332 = vrot.lane.b32.xlu0 %v790, 120
      %v2333 = vpop.permute.xlu0 %2332
      %2334 = vrot.lane.b32.xlu0 %v793, 120
      %v2335 = vpop.permute.xlu0 %2334
      %2336 = vrot.lane.b32.xlu0 %v798, 120
      %v2337 = vpop.permute.xlu0 %2336
      %2338 = vrot.lane.b32.xlu0 %v801, 120
      %v2339 = vpop.permute.xlu0 %2338
      %2340 = vrot.lane.b32.xlu0 %v806, 120
      %v2341 = vpop.permute.xlu0 %2340
      %2342 = vrot.lane.b32.xlu0 %v809, 120
      %v2343 = vpop.permute.xlu0 %2342
      %2344 = vrot.lane.b32.xlu0 %v814, 120
      %v2345 = vpop.permute.xlu0 %2344
      %2346 = vrot.lane.b32.xlu0 %v817, 120
      %v2347 = vpop.permute.xlu0 %2346
      %2348 = vrot.lane.b32.xlu0 %v822, 120
      %v2349 = vpop.permute.xlu0 %2348
      %2350 = vrot.lane.b32.xlu0 %v825, 120
      %v2351 = vpop.permute.xlu0 %2350
      %v2368 = vrot.slane %v2321, 1
      %v2369 = vrot.slane %v2323, 1
      %v2370 = vrot.slane %v2325, 1
      %v2371 = vrot.slane %v2327, 1
      %v2372 = vrot.slane %v2329, 1
      %v2373 = vrot.slane %v2331, 1
      %v2374 = vrot.slane %v2333, 1
      %v2375 = vrot.slane %v2335, 1
      %v2376 = vrot.slane %v2337, 1
      %v2377 = vrot.slane %v2339, 1
      %v2378 = vrot.slane %v2341, 1
      %v2379 = vrot.slane %v2343, 1
      %v2380 = vrot.slane %v2345, 1
      %v2381 = vrot.slane %v2347, 1
      %v2382 = vrot.slane %v2349, 1
      %v2383 = vrot.slane %v2351, 1
      %v2384 = vsel %vm1151, %v2382, %v2383
      %v2385 = vsel %vm1151, %v2381, %v2382
      %v2386 = vsel %vm1151, %v2380, %v2381
      %v2387 = vsel %vm1151, %v2379, %v2380
      %v2388 = vsel %vm1151, %v2378, %v2379
      %v2389 = vsel %vm1151, %v2377, %v2378
      %v2390 = vsel %vm1151, %v2376, %v2377
      %v2391 = vsel %vm1151, %v2375, %v2376
      %v2392 = vsel %vm1151, %v2374, %v2375
      %v2393 = vsel %vm1151, %v2373, %v2374
      %v2394 = vsel %vm1151, %v2372, %v2373
      %v2395 = vsel %vm1151, %v2371, %v2372
      %v2396 = vsel %vm1151, %v2370, %v2371
      %v2397 = vsel %vm1151, %v2369, %v2370
      %v2398 = vsel %vm1151, %v2368, %v2369
      %v2399 = vsel %vm1151, %v2383, %v2368
      %2416 = vrot.lane.b32.xlu0 %v2397, 8
      %v2417 = vpop.permute.xlu0 %2416
      %2418 = vrot.lane.b32.xlu0 %v2396, 8
      %v2419 = vpop.permute.xlu0 %2418
      %2420 = vrot.lane.b32.xlu0 %v2395, 8
      %v2421 = vpop.permute.xlu0 %2420
      %2422 = vrot.lane.b32.xlu0 %v2394, 8
      %v2423 = vpop.permute.xlu0 %2422
      %2424 = vrot.lane.b32.xlu0 %v2393, 8
      %v2425 = vpop.permute.xlu0 %2424
      %2426 = vrot.lane.b32.xlu0 %v2392, 8
      %v2427 = vpop.permute.xlu0 %2426
      %2428 = vrot.lane.b32.xlu0 %v2391, 8
      %v2429 = vpop.permute.xlu0 %2428
      %2430 = vrot.lane.b32.xlu0 %v2390, 8
      %v2431 = vpop.permute.xlu0 %2430
      %2432 = vrot.lane.b32.xlu0 %v2389, 8
      %v2433 = vpop.permute.xlu0 %2432
      %2434 = vrot.lane.b32.xlu0 %v2388, 8
      %v2435 = vpop.permute.xlu0 %2434
      %2436 = vrot.lane.b32.xlu0 %v2387, 8
      %v2437 = vpop.permute.xlu0 %2436
      %2438 = vrot.lane.b32.xlu0 %v2386, 8
      %v2439 = vpop.permute.xlu0 %2438
      %2440 = vrot.lane.b32.xlu0 %v2385, 8
      %v2441 = vpop.permute.xlu0 %2440
      %2442 = vrot.lane.b32.xlu0 %v2384, 8
      %v2443 = vpop.permute.xlu0 %2442
      %2444 = vrot.lane.b32.xlu0 %v2399, 8
      %v2445 = vpop.permute.xlu0 %2444
      %2446 = vrot.lane.b32.xlu0 %v2398, 8
      %v2447 = vpop.permute.xlu0 %2446
      %v2464 = vmul.f32 %v568, %v2417
      %v2465 = vmul.f32 %v569, %v2419
      %v2466 = vmul.f32 %v570, %v2421
      %v2467 = vmul.f32 %v571, %v2423
      %v2468 = vmul.f32 %v572, %v2425
      %v2469 = vmul.f32 %v573, %v2427
      %v2470 = vmul.f32 %v574, %v2429
      %v2471 = vmul.f32 %v575, %v2431
      %v2472 = vmul.f32 %v576, %v2433
      %v2473 = vmul.f32 %v577, %v2435
      %v2474 = vmul.f32 %v578, %v2437
      %v2475 = vmul.f32 %v579, %v2439
      %v2476 = vmul.f32 %v580, %v2441
      %v2477 = vmul.f32 %v581, %v2443
      %v2478 = vmul.f32 %v582, %v2445
      %v2479 = vmul.f32 %v583, %v2447
      %2496 = vrot.lane.b32.xlu0 %v2464, 120
      %v2497 = vpop.permute.xlu0 %2496
      %2498 = vrot.lane.b32.xlu0 %v2465, 120
      %v2499 = vpop.permute.xlu0 %2498
      %2500 = vrot.lane.b32.xlu0 %v2466, 120
      %v2501 = vpop.permute.xlu0 %2500
      %2502 = vrot.lane.b32.xlu0 %v2467, 120
      %v2503 = vpop.permute.xlu0 %2502
      %2504 = vrot.lane.b32.xlu0 %v2468, 120
      %v2505 = vpop.permute.xlu0 %2504
      %2506 = vrot.lane.b32.xlu0 %v2469, 120
      %v2507 = vpop.permute.xlu0 %2506
      %2508 = vrot.lane.b32.xlu0 %v2470, 120
      %v2509 = vpop.permute.xlu0 %2508
      %2510 = vrot.lane.b32.xlu0 %v2471, 120
      %v2511 = vpop.permute.xlu0 %2510
      %2512 = vrot.lane.b32.xlu0 %v2472, 120
      %v2513 = vpop.permute.xlu0 %2512
      %2514 = vrot.lane.b32.xlu0 %v2473, 120
      %v2515 = vpop.permute.xlu0 %2514
      %2516 = vrot.lane.b32.xlu0 %v2474, 120
      %v2517 = vpop.permute.xlu0 %2516
      %2518 = vrot.lane.b32.xlu0 %v2475, 120
      %v2519 = vpop.permute.xlu0 %2518
      %2520 = vrot.lane.b32.xlu0 %v2476, 120
      %v2521 = vpop.permute.xlu0 %2520
      %2522 = vrot.lane.b32.xlu0 %v2477, 120
      %v2523 = vpop.permute.xlu0 %2522
      %2524 = vrot.lane.b32.xlu0 %v2478, 120
      %v2525 = vpop.permute.xlu0 %2524
      %2526 = vrot.lane.b32.xlu0 %v2479, 120
      %v2527 = vpop.permute.xlu0 %2526
      %v2544 = vadd.f32 %v2304, %v2497
      %v2545 = vadd.f32 %v2305, %v2499
      %v2546 = vadd.f32 %v2306, %v2501
      %v2547 = vadd.f32 %v2307, %v2503
      %v2548 = vadd.f32 %v2308, %v2505
      %v2549 = vadd.f32 %v2309, %v2507
      %v2550 = vadd.f32 %v2310, %v2509
      %v2551 = vadd.f32 %v2311, %v2511
      %v2552 = vadd.f32 %v2312, %v2513
      %v2553 = vadd.f32 %v2313, %v2515
      %v2554 = vadd.f32 %v2314, %v2517
      %v2555 = vadd.f32 %v2315, %v2519
      %v2556 = vadd.f32 %v2316, %v2521
      %v2557 = vadd.f32 %v2317, %v2523
      %v2558 = vadd.f32 %v2318, %v2525
      %v2559 = vadd.f32 %v2319, %v2527
      %v2560 = vld [vmem:[%s7] sm:$0xf]
      %v2561 = vld [vmem:[%s7 + $0x4] sm:$0xf]
      %v2562 = vld [vmem:[%s7 + $0x8] sm:$0xf]
      %v2563 = vld [vmem:[%s7 + $0xc] sm:$0xf]
      %v2564 = vld [vmem:[%s8] sm:$0x1]
      %v2566 = vlaneseq
      %v2567 = vshrl.u32 %v2566, 7
      %v2568 = vsub.s32 0, %v2567
      %v2569 = vrot.slane %v2564, %v2568
      %v2587 = vunpack.c.l.b16 %v520
      %v2588 = vunpack.c.l.b16 %v521
      %v2589 = vunpack.c.l.b16 %v522
      %v2590 = vunpack.c.l.b16 %v523
      %v2591 = vunpack.c.l.b16 %v524
      %v2592 = vunpack.c.l.b16 %v525
      %v2593 = vunpack.c.l.b16 %v526
      %v2594 = vunpack.c.l.b16 %v527
      %v2595 = vunpack.c.l.b16 %v528
      %v2596 = vunpack.c.l.b16 %v529
      %v2597 = vunpack.c.l.b16 %v530
      %v2598 = vunpack.c.l.b16 %v531
      %v2599 = vunpack.c.l.b16 %v532
      %v2600 = vunpack.c.l.b16 %v533
      %v2601 = vunpack.c.l.b16 %v534
      %v2602 = vunpack.c.l.b16 %v535
      %v2603 = vpack.c.b16 %v2588, %v2587
      %v2604 = vpack.c.b16 %v2590, %v2589
      %v2605 = vpack.c.b16 %v2592, %v2591
      %v2606 = vpack.c.b16 %v2594, %v2593
      %v2607 = vpack.c.b16 %v2596, %v2595
      %v2608 = vpack.c.b16 %v2598, %v2597
      %v2609 = vpack.c.b16 %v2600, %v2599
      %v2610 = vpack.c.b16 %v2602, %v2601
      %v2615 = vunpack.c.l.b16 %v2560
      %v2616 = vunpack.c.l.b16 %v2561
      %v2617 = vunpack.c.l.b16 %v2562
      %v2618 = vunpack.c.l.b16 %v2563
      %v2619 = vpack.c.b16 %v2616, %v2615
      %v2620 = vpack.c.b16 %v2618, %v2617
      %v2624 = vsel %vm706, %v2603, 0
      %v2627 = vsel %vm706, %v2604, 0
      %v2630 = vsel %vm706, %v2605, 0
      %v2633 = vsel %vm706, %v2606, 0
      %v2636 = vsel %vm706, %v2607, 0
      %v2639 = vsel %vm706, %v2608, 0
      %v2642 = vsel %vm706, %v2609, 0
      %v2645 = vsel %vm706, %v2610, 0
      %2647 = vmatprep.subr.bf16.mxu0 0
      %2648 = vmatpush1.bf16.msra.mxu0 0
      %2649 = vmatprep.subr.bf16.mxu0 0
      %2650 = vmatpush1.bf16.msra.mxu0 0
      %2651 = vmatprep.subr.bf16.mxu0 0
      %2652 = vmatpush1.bf16.msra.mxu0 0
      %2653 = vmatprep.subr.bf16.mxu0 0
      %2654 = vmatpush1.bf16.msra.mxu0 0
      %2655 = vmatprep.subr.bf16.mxu0 0
      %2656 = vmatpush1.bf16.msra.mxu0 0
      %2657 = vmatprep.subr.bf16.mxu0 0
      %2658 = vmatpush1.bf16.msra.mxu0 0
      %2659 = vmatprep.subr.bf16.mxu0 0
      %2660 = vmatpush1.bf16.msra.mxu0 %v2620
      %2661 = vmatprep.subr.bf16.mxu0 0
      %2662 = vmatpush1.bf16.msra.mxu0 %v2619
      %2663 = vmatprep.subr.bf16.mxu0 0
      %2664 = vmatpush2.bf16.msra.mxu0 0
      %2665 = vmatprep.subr.bf16.mxu0 0
      %2666 = vmatpush2.bf16.msra.mxu0 0
      %2667 = vmatprep.subr.bf16.mxu0 0
      %2668 = vmatpush2.bf16.msra.mxu0 0
      %2669 = vmatprep.subr.bf16.mxu0 0
      %2670 = vmatpush2.bf16.msra.mxu0 0
      %2671 = vmatprep.subr.bf16.mxu0 0
      %2672 = vmatpush2.bf16.msra.mxu0 0
      %2673 = vmatprep.subr.bf16.mxu0 0
      %2674 = vmatpush2.bf16.msra.mxu0 0
      %2675 = vmatprep.subr.bf16.mxu0 0
      %2676 = vmatpush2.bf16.msra.mxu0 0
      %2677 = vmatprep.subr.bf16.mxu0 0
      %2678 = vmatpush2.bf16.msra.mxu0 0
      %2679 = vmatprep.mubr.bf16.mxu0 0
      %2680 = vmatmul.mubr.bf16.gmra.mxu0 %v2624
      %v2681 = vpop.f32.mrf.mxu0
      %v2682 = vadd.f32 %v2569, %v2681
      %v2683 = vpop.f32.mrf.mxu0
      %v2684 = vpop.f32.mrf.mxu0
      %v2685 = vadd.f32 %v2569, %v2684
      %v2686 = vpop.f32.mrf.mxu0
      %2687 = vmatprep.mubr.bf16.mxu0 0
      %2688 = vmatmul.mubr.bf16.gmra.mxu0 %v2627
      %v2689 = vpop.f32.mrf.mxu0
      %v2690 = vadd.f32 %v2569, %v2689
      %v2691 = vpop.f32.mrf.mxu0
      %v2692 = vpop.f32.mrf.mxu0
      %v2693 = vadd.f32 %v2569, %v2692
      %v2694 = vpop.f32.mrf.mxu0
      %2695 = vmatprep.mubr.bf16.mxu0 0
      %2696 = vmatmul.mubr.bf16.gmra.mxu0 %v2630
      %v2697 = vpop.f32.mrf.mxu0
      %v2698 = vadd.f32 %v2569, %v2697
      %v2699 = vpop.f32.mrf.mxu0
      %v2700 = vpop.f32.mrf.mxu0
      %v2701 = vadd.f32 %v2569, %v2700
      %v2702 = vpop.f32.mrf.mxu0
      %2703 = vmatprep.mubr.bf16.mxu0 0
      %2704 = vmatmul.mubr.bf16.gmra.mxu0 %v2633
      %v2705 = vpop.f32.mrf.mxu0
      %v2706 = vadd.f32 %v2569, %v2705
      %v2707 = vpop.f32.mrf.mxu0
      %v2708 = vpop.f32.mrf.mxu0
      %v2709 = vadd.f32 %v2569, %v2708
      %v2710 = vpop.f32.mrf.mxu0
      %2711 = vmatprep.mubr.bf16.mxu0 0
      %2712 = vmatmul.mubr.bf16.gmra.mxu0 %v2636
      %v2713 = vpop.f32.mrf.mxu0
      %v2714 = vadd.f32 %v2569, %v2713
      %v2715 = vpop.f32.mrf.mxu0
      %v2716 = vpop.f32.mrf.mxu0
      %v2717 = vadd.f32 %v2569, %v2716
      %v2718 = vpop.f32.mrf.mxu0
      %2719 = vmatprep.mubr.bf16.mxu0 0
      %2720 = vmatmul.mubr.bf16.gmra.mxu0 %v2639
      %v2721 = vpop.f32.mrf.mxu0
      %v2722 = vadd.f32 %v2569, %v2721
      %v2723 = vpop.f32.mrf.mxu0
      %v2724 = vpop.f32.mrf.mxu0
      %v2725 = vadd.f32 %v2569, %v2724
      %v2726 = vpop.f32.mrf.mxu0
      %2727 = vmatprep.mubr.bf16.mxu0 0
      %2728 = vmatmul.mubr.bf16.gmra.mxu0 %v2642
      %v2729 = vpop.f32.mrf.mxu0
      %v2730 = vadd.f32 %v2569, %v2729
      %v2731 = vpop.f32.mrf.mxu0
      %v2732 = vpop.f32.mrf.mxu0
      %v2733 = vadd.f32 %v2569, %v2732
      %v2734 = vpop.f32.mrf.mxu0
      %2735 = vmatprep.mubr.bf16.mxu0 0
      %2736 = vmatmul.mubr.bf16.gmra.mxu0 %v2645
      %v2737 = vpop.f32.mrf.mxu0
      %v2738 = vadd.f32 %v2569, %v2737
      %v2739 = vpop.f32.mrf.mxu0
      %v2740 = vpop.f32.mrf.mxu0
      %v2741 = vadd.f32 %v2569, %v2740
      %v2742 = vpop.f32.mrf.mxu0
      %2743 = vdwg.mxu0
      %v2744 = vtanh.pop %v2682
      %v2745 = vtanh.pop %v2685
      %v2746 = vtanh.pop %v2690
      %v2747 = vtanh.pop %v2693
      %v2748 = vtanh.pop %v2698
      %v2749 = vtanh.pop %v2701
      %v2750 = vtanh.pop %v2706
      %v2751 = vtanh.pop %v2709
      %v2752 = vtanh.pop %v2714
      %v2753 = vtanh.pop %v2717
      %v2754 = vtanh.pop %v2722
      %v2755 = vtanh.pop %v2725
      %v2756 = vtanh.pop %v2730
      %v2757 = vtanh.pop %v2733
      %v2758 = vtanh.pop %v2738
      %v2759 = vtanh.pop %v2741
      %v2760 = vld [vmem:[%s9] sm:$0xff]
      %v2761 = vld [vmem:[%s9 + $0x8] sm:$0xff]
      %v2762 = vld [vmem:[%s9 + $0x10] sm:$0xff]
      %v2763 = vld [vmem:[%s9 + $0x18] sm:$0xff]
      %v2764 = vld [vmem:[%s9 + $0x20] sm:$0xff]
      %v2765 = vld [vmem:[%s9 + $0x28] sm:$0xff]
      %v2766 = vld [vmem:[%s10] sm:$0x1]
      %v2768 = vlaneseq
      %v2769 = vshrl.u32 %v2768, 7
      %v2770 = vsub.s32 0, %v2769
      %v2771 = vrot.slane %v2766, %v2770
      %vm2773 = vcmask 392192
      %v2775 = vsel %vm2773, %v2744, 0
      %v2778 = vsel %vm2773, %v2745, 0
      %v2781 = vsel %vm2773, %v2746, 0
      %v2784 = vsel %vm2773, %v2747, 0
      %v2787 = vsel %vm2773, %v2748, 0
      %v2790 = vsel %vm2773, %v2749, 0
      %v2793 = vsel %vm2773, %v2750, 0
      %v2796 = vsel %vm2773, %v2751, 0
      %v2799 = vsel %vm2773, %v2752, 0
      %v2802 = vsel %vm2773, %v2753, 0
      %v2805 = vsel %vm2773, %v2754, 0
      %v2808 = vsel %vm2773, %v2755, 0
      %v2811 = vsel %vm2773, %v2756, 0
      %v2814 = vsel %vm2773, %v2757, 0
      %v2817 = vsel %vm2773, %v2758, 0
      %v2820 = vsel %vm2773, %v2759, 0
      %2822 = vmatprep.subr.mxu0 0.0
      %2823 = vmatpush1.msra.mxu0 0.0
      %2824 = vmatprep.subr.mxu0 0.0
      %2825 = vmatpush1.msra.mxu0 0.0
      %2826 = vmatprep.subr.mxu0 0.0
      %2827 = vmatpush1.msra.mxu0 0.0
      %2828 = vmatprep.subr.mxu0 0.0
      %2829 = vmatpush1.msra.mxu0 0.0
      %2830 = vmatprep.subr.mxu0 0.0
      %2831 = vmatpush1.msra.mxu0 0.0
      %2832 = vmatprep.subr.mxu0 0.0
      %2833 = vmatpush1.msra.mxu0 0.0
      %2834 = vmatprep.subr.mxu0 0.0
      %2835 = vmatpush1.msra.mxu0 0.0
      %2836 = vmatprep.subr.mxu0 0.0
      %2837 = vmatpush1.msra.mxu0 0.0
      %2838 = vmatprep.subr.mxu0 0.0
      %2839 = vmatpush1.msra.mxu0 0.0
      %2840 = vmatprep.subr.mxu0 0.0
      %2841 = vmatpush1.msra.mxu0 0.0
      %2842 = vmatprep.subr.mxu0 0.0
      %2843 = vmatpush1.msra.mxu0 %v2765
      %2844 = vmatprep.subr.mxu0 0.0
      %2845 = vmatpush1.msra.mxu0 %v2764
      %2846 = vmatprep.subr.mxu0 0.0
      %2847 = vmatpush1.msra.mxu0 %v2763
      %2848 = vmatprep.subr.mxu0 0.0
      %2849 = vmatpush1.msra.mxu0 %v2762
      %2850 = vmatprep.subr.mxu0 0.0
      %2851 = vmatpush1.msra.mxu0 %v2761
      %2852 = vmatprep.subr.mxu0 0.0
      %2853 = vmatpush1.msra.mxu0 %v2760
      %2854 = vmatprep.subr.mxu0 0.0
      %2855 = vmatpush2.msra.mxu0 0.0
      %2856 = vmatprep.subr.mxu0 0.0
      %2857 = vmatpush2.msra.mxu0 0.0
      %2858 = vmatprep.subr.mxu0 0.0
      %2859 = vmatpush2.msra.mxu0 0.0
      %2860 = vmatprep.subr.mxu0 0.0
      %2861 = vmatpush2.msra.mxu0 0.0
      %2862 = vmatprep.subr.mxu0 0.0
      %2863 = vmatpush2.msra.mxu0 0.0
      %2864 = vmatprep.subr.mxu0 0.0
      %2865 = vmatpush2.msra.mxu0 0.0
      %2866 = vmatprep.subr.mxu0 0.0
      %2867 = vmatpush2.msra.mxu0 0.0
      %2868 = vmatprep.subr.mxu0 0.0
      %2869 = vmatpush2.msra.mxu0 0.0
      %2870 = vmatprep.subr.mxu0 0.0
      %2871 = vmatpush2.msra.mxu0 0.0
      %2872 = vmatprep.subr.mxu0 0.0
      %2873 = vmatpush2.msra.mxu0 0.0
      %2874 = vmatprep.subr.mxu0 0.0
      %2875 = vmatpush2.msra.mxu0 0.0
      %2876 = vmatprep.subr.mxu0 0.0
      %2877 = vmatpush2.msra.mxu0 0.0
      %2878 = vmatprep.subr.mxu0 0.0
      %2879 = vmatpush2.msra.mxu0 0.0
      %2880 = vmatprep.subr.mxu0 0.0
      %2881 = vmatpush2.msra.mxu0 0.0
      %2882 = vmatprep.subr.mxu0 0.0
      %2883 = vmatpush2.msra.mxu0 0.0
      %2884 = vmatprep.subr.mxu0 0.0
      %2885 = vmatpush2.msra.mxu0 0.0
      %2886 = vmatprep.mubr.f32.mxu0 0.0
      %2887 = vmatmul.mubr.f32.gmra.mxu0 %v2775
      %v2888 = vpop.f32.mrf.mxu0
      %v2889 = vadd.f32 %v2771, %v2888
      %v2890 = vpop.f32.mrf.mxu0
      %2891 = vmatprep.mubr.f32.mxu0 0.0
      %2892 = vmatmul.mubr.f32.gmra.mxu0 %v2778
      %v2893 = vpop.f32.mrf.mxu0
      %v2894 = vadd.f32 %v2771, %v2893
      %v2895 = vpop.f32.mrf.mxu0
      %2896 = vmatprep.mubr.f32.mxu0 0.0
      %2897 = vmatmul.mubr.f32.gmra.mxu0 %v2781
      %v2898 = vpop.f32.mrf.mxu0
      %v2899 = vadd.f32 %v2771, %v2898
      %v2900 = vpop.f32.mrf.mxu0
      %2901 = vmatprep.mubr.f32.mxu0 0.0
      %2902 = vmatmul.mubr.f32.gmra.mxu0 %v2784
      %v2903 = vpop.f32.mrf.mxu0
      %v2904 = vadd.f32 %v2771, %v2903
      %v2905 = vpop.f32.mrf.mxu0
      %2906 = vmatprep.mubr.f32.mxu0 0.0
      %2907 = vmatmul.mubr.f32.gmra.mxu0 %v2787
      %v2908 = vpop.f32.mrf.mxu0
      %v2909 = vadd.f32 %v2771, %v2908
      %v2910 = vpop.f32.mrf.mxu0
      %2911 = vmatprep.mubr.f32.mxu0 0.0
      %2912 = vmatmul.mubr.f32.gmra.mxu0 %v2790
      %v2913 = vpop.f32.mrf.mxu0
      %v2914 = vadd.f32 %v2771, %v2913
      %v2915 = vpop.f32.mrf.mxu0
      %2916 = vmatprep.mubr.f32.mxu0 0.0
      %2917 = vmatmul.mubr.f32.gmra.mxu0 %v2793
      %v2918 = vpop.f32.mrf.mxu0
      %v2919 = vadd.f32 %v2771, %v2918
      %v2920 = vpop.f32.mrf.mxu0
      %2921 = vmatprep.mubr.f32.mxu0 0.0
      %2922 = vmatmul.mubr.f32.gmra.mxu0 %v2796
      %v2923 = vpop.f32.mrf.mxu0
      %v2924 = vadd.f32 %v2771, %v2923
      %v2925 = vpop.f32.mrf.mxu0
      %2926 = vmatprep.mubr.f32.mxu0 0.0
      %2927 = vmatmul.mubr.f32.gmra.mxu0 %v2799
      %v2928 = vpop.f32.mrf.mxu0
      %v2929 = vadd.f32 %v2771, %v2928
      %v2930 = vpop.f32.mrf.mxu0
      %2931 = vmatprep.mubr.f32.mxu0 0.0
      %2932 = vmatmul.mubr.f32.gmra.mxu0 %v2802
      %v2933 = vpop.f32.mrf.mxu0
      %v2934 = vadd.f32 %v2771, %v2933
      %v2935 = vpop.f32.mrf.mxu0
      %2936 = vmatprep.mubr.f32.mxu0 0.0
      %2937 = vmatmul.mubr.f32.gmra.mxu0 %v2805
      %v2938 = vpop.f32.mrf.mxu0
      %v2939 = vadd.f32 %v2771, %v2938
      %v2940 = vpop.f32.mrf.mxu0
      %2941 = vmatprep.mubr.f32.mxu0 0.0
      %2942 = vmatmul.mubr.f32.gmra.mxu0 %v2808
      %v2943 = vpop.f32.mrf.mxu0
      %v2944 = vadd.f32 %v2771, %v2943
      %v2945 = vpop.f32.mrf.mxu0
      %2946 = vmatprep.mubr.f32.mxu0 0.0
      %2947 = vmatmul.mubr.f32.gmra.mxu0 %v2811
      %v2948 = vpop.f32.mrf.mxu0
      %v2949 = vadd.f32 %v2771, %v2948
      %v2950 = vpop.f32.mrf.mxu0
      %2951 = vmatprep.mubr.f32.mxu0 0.0
      %2952 = vmatmul.mubr.f32.gmra.mxu0 %v2814
      %v2953 = vpop.f32.mrf.mxu0
      %v2954 = vadd.f32 %v2771, %v2953
      %v2955 = vpop.f32.mrf.mxu0
      %2956 = vmatprep.mubr.f32.mxu0 0.0
      %2957 = vmatmul.mubr.f32.gmra.mxu0 %v2817
      %v2958 = vpop.f32.mrf.mxu0
      %v2959 = vadd.f32 %v2771, %v2958
      %v2960 = vpop.f32.mrf.mxu0
      %2961 = vmatprep.mubr.f32.mxu0 0.0
      %2962 = vmatmul.mubr.f32.gmra.mxu0 %v2820
      %v2963 = vpop.f32.mrf.mxu0
      %v2964 = vadd.f32 %v2771, %v2963
      %v2965 = vpop.f32.mrf.mxu0
      %2966 = vdwg.mxu0
      %v2967 = vlaneseq
      %v2968 = vand.u32 %v2967, 127
      %vm2969 = vcmp.eq.s32.totalorder %v2968, 0
      %v2970 = vsel %vm2969, 1, 0
      %v2971 = vcvt.s32.f32 %v2970
      %2973 = vset.pattern.permute.xlu0 0
      %2974 = vperm.xlu0 %2973, %v2544
      %v2975 = vpop.permute.xlu0 %2974
      %2978 = vset.pattern.permute.xlu0 0
      %2979 = vperm.xlu0 %2978, %v2545
      %v2980 = vpop.permute.xlu0 %2979
      %2983 = vset.pattern.permute.xlu0 0
      %2984 = vperm.xlu0 %2983, %v2546
      %v2985 = vpop.permute.xlu0 %2984
      %2988 = vset.pattern.permute.xlu0 0
      %2989 = vperm.xlu0 %2988, %v2547
      %v2990 = vpop.permute.xlu0 %2989
      %2993 = vset.pattern.permute.xlu0 0
      %2994 = vperm.xlu0 %2993, %v2548
      %v2995 = vpop.permute.xlu0 %2994
      %2998 = vset.pattern.permute.xlu0 0
      %2999 = vperm.xlu0 %2998, %v2549
      %v3000 = vpop.permute.xlu0 %2999
      %3003 = vset.pattern.permute.xlu0 0
      %3004 = vperm.xlu0 %3003, %v2550
      %v3005 = vpop.permute.xlu0 %3004
      %3008 = vset.pattern.permute.xlu0 0
      %3009 = vperm.xlu0 %3008, %v2551
      %v3010 = vpop.permute.xlu0 %3009
      %3013 = vset.pattern.permute.xlu0 0
      %3014 = vperm.xlu0 %3013, %v2552
      %v3015 = vpop.permute.xlu0 %3014
      %3018 = vset.pattern.permute.xlu0 0
      %3019 = vperm.xlu0 %3018, %v2553
      %v3020 = vpop.permute.xlu0 %3019
      %3023 = vset.pattern.permute.xlu0 0
      %3024 = vperm.xlu0 %3023, %v2554
      %v3025 = vpop.permute.xlu0 %3024
      %3028 = vset.pattern.permute.xlu0 0
      %3029 = vperm.xlu0 %3028, %v2555
      %v3030 = vpop.permute.xlu0 %3029
      %3033 = vset.pattern.permute.xlu0 0
      %3034 = vperm.xlu0 %3033, %v2556
      %v3035 = vpop.permute.xlu0 %3034
      %3038 = vset.pattern.permute.xlu0 0
      %3039 = vperm.xlu0 %3038, %v2557
      %v3040 = vpop.permute.xlu0 %3039
      %3043 = vset.pattern.permute.xlu0 0
      %3044 = vperm.xlu0 %3043, %v2558
      %v3045 = vpop.permute.xlu0 %3044
      %3048 = vset.pattern.permute.xlu0 0
      %3049 = vperm.xlu0 %3048, %v2559
      %v3050 = vpop.permute.xlu0 %3049
      %v3052 = vmul.f32 %v2975, %v2971
      %v3053 = vmul.f32 %v2980, %v2971
      %v3054 = vmul.f32 %v2985, %v2971
      %v3055 = vmul.f32 %v2990, %v2971
      %v3056 = vmul.f32 %v2995, %v2971
      %v3057 = vmul.f32 %v3000, %v2971
      %v3058 = vmul.f32 %v3005, %v2971
      %v3059 = vmul.f32 %v3010, %v2971
      %v3060 = vmul.f32 %v3015, %v2971
      %v3061 = vmul.f32 %v3020, %v2971
      %v3062 = vmul.f32 %v3025, %v2971
      %v3063 = vmul.f32 %v3030, %v2971
      %v3064 = vmul.f32 %v3035, %v2971
      %v3065 = vmul.f32 %v3040, %v2971
      %v3066 = vmul.f32 %v3045, %v2971
      %v3067 = vmul.f32 %v3050, %v2971
      %v3068 = vadd.f32 %v2889, %v3052
      %v3069 = vadd.f32 %v2894, %v3053
      %v3070 = vadd.f32 %v2899, %v3054
      %v3071 = vadd.f32 %v2904, %v3055
      %v3072 = vadd.f32 %v2909, %v3056
      %v3073 = vadd.f32 %v2914, %v3057
      %v3074 = vadd.f32 %v2919, %v3058
      %v3075 = vadd.f32 %v2924, %v3059
      %v3076 = vadd.f32 %v2929, %v3060
      %v3077 = vadd.f32 %v2934, %v3061
      %v3078 = vadd.f32 %v2939, %v3062
      %v3079 = vadd.f32 %v2944, %v3063
      %v3080 = vadd.f32 %v2949, %v3064
      %v3081 = vadd.f32 %v2954, %v3065
      %v3082 = vadd.f32 %v2959, %v3066
      %v3083 = vadd.f32 %v2964, %v3067
      %vm3084 = vcmask 31744
      %v3085 = vsel %vm3084, %v3068, -inf
      %v3086 = vsel %vm3084, %v3069, -inf
      %v3087 = vsel %vm3084, %v3070, -inf
      %v3088 = vmax.f32 %v3085, %v3087
      %v3089 = vsel %vm3084, %v3071, -inf
      %v3090 = vmax.f32 %v3086, %v3089
      %v3091 = vsel %vm3084, %v3072, -inf
      %v3092 = vmax.f32 %v3088, %v3091
      %v3093 = vsel %vm3084, %v3073, -inf
      %v3094 = vmax.f32 %v3090, %v3093
      %v3095 = vsel %vm3084, %v3074, -inf
      %v3096 = vmax.f32 %v3092, %v3095
      %v3097 = vsel %vm3084, %v3075, -inf
      %v3098 = vmax.f32 %v3094, %v3097
      %v3099 = vmax.f32 %v3096, %v3098
      %v3100 = vrot.slane %v3099, 4
      %v3101 = vmax.f32 %v3099, %v3100
      %v3102 = vrot.slane %v3101, 2
      %v3103 = vmax.f32 %v3101, %v3102
      %v3104 = vrot.slane %v3103, 1
      %v3105 = vmax.f32 %v3103, %v3104
      %v3106 = vsel %vm3084, %v3076, -inf
      %v3107 = vsel %vm3084, %v3077, -inf
      %v3108 = vsel %vm3084, %v3078, -inf
      %v3109 = vmax.f32 %v3106, %v3108
      %v3110 = vsel %vm3084, %v3079, -inf
      %v3111 = vmax.f32 %v3107, %v3110
      %v3112 = vsel %vm3084, %v3080, -inf
      %v3113 = vmax.f32 %v3109, %v3112
      %v3114 = vsel %vm3084, %v3081, -inf
      %v3115 = vmax.f32 %v3111, %v3114
      %v3116 = vsel %vm3084, %v3082, -inf
      %v3117 = vmax.f32 %v3113, %v3116
      %v3118 = vsel %vm3084, %v3083, -inf
      %v3119 = vmax.f32 %v3115, %v3118
      %v3120 = vmax.f32 %v3117, %v3119
      %v3121 = vrot.slane %v3120, 4
      %v3122 = vmax.f32 %v3120, %v3121
      %v3123 = vrot.slane %v3122, 2
      %v3124 = vmax.f32 %v3122, %v3123
      %v3125 = vrot.slane %v3124, 1
      %v3126 = vmax.f32 %v3124, %v3125
      %v3127 = vpack.c.bf16 %v3105, %v3105
      %v3128 = vpack.c.bf16 %v3126, %v3126
      %v3145 = vunpack.c.l.b16 %v585
      %v3146 = vunpack.c.l.b16 %v586
      %v3147 = vunpack.c.l.b16 %v587
      %v3148 = vunpack.c.l.b16 %v588
      %v3149 = vunpack.c.l.b16 %v589
      %v3150 = vunpack.c.l.b16 %v590
      %v3151 = vunpack.c.l.b16 %v591
      %v3152 = vunpack.c.l.b16 %v592
      %v3153 = vunpack.c.l.b16 %v593
      %v3154 = vunpack.c.l.b16 %v594
      %v3155 = vunpack.c.l.b16 %v595
      %v3156 = vunpack.c.l.b16 %v596
      %v3157 = vunpack.c.l.b16 %v597
      %v3158 = vunpack.c.l.b16 %v598
      %v3159 = vunpack.c.l.b16 %v599
      %v3160 = vunpack.c.l.b16 %v600
      %v3161 = vpack.c.b16 %v3146, %v3145
      %v3162 = vpack.c.b16 %v3148, %v3147
      %v3163 = vpack.c.b16 %v3150, %v3149
      %v3164 = vpack.c.b16 %v3152, %v3151
      %v3165 = vpack.c.b16 %v3154, %v3153
      %v3166 = vpack.c.b16 %v3156, %v3155
      %v3167 = vpack.c.b16 %v3158, %v3157
      %v3168 = vpack.c.b16 %v3160, %v3159
      %v3171 = vunpack.c.l.b16 %v3127
      %v3172 = vunpack.c.l.b16 %v3128
      %vm3173 = vcmask 1041409
      %v3174 = vsel %vm3173, %v3172, %v3171
      %v3175 = vpack.c.b16 %v3174, %v3174
      %vm3176 = vcmask 15360
      %v3178 = vsel %vm3176, %v3161, 0
      %v3181 = vsel %vm3176, %v3162, 0
      %v3184 = vsel %vm3176, %v3163, 0
      %v3187 = vsel %vm3176, %v3164, 0
      %v3190 = vsel %vm3176, %v3165, 0
      %v3193 = vsel %vm3176, %v3166, 0
      %v3196 = vsel %vm3176, %v3167, 0
      %v3199 = vsel %vm3176, %v3168, 0
      %vm3201 = vcmask 1040384
      %v3203 = vsel %vm3201, %v3175, 0
      %3205 = vmatprep.subr.bf16.mxu0 0
      %3206 = vmatpush1.bf16.msra.mxu0 0
      %3207 = vmatprep.subr.bf16.mxu0 0
      %3208 = vmatpush1.bf16.msra.mxu0 0
      %3209 = vmatprep.subr.bf16.mxu0 0
      %3210 = vmatpush1.bf16.msra.mxu0 0
      %3211 = vmatprep.subr.bf16.mxu0 0
      %3212 = vmatpush1.bf16.msra.mxu0 0
      %3213 = vmatprep.subr.bf16.mxu0 0
      %3214 = vmatpush1.bf16.msra.mxu0 0
      %3215 = vmatprep.subr.bf16.mxu0 0
      %3216 = vmatpush1.bf16.msra.mxu0 0
      %3217 = vmatprep.subr.bf16.mxu0 0
      %3218 = vmatpush1.bf16.msra.mxu0 0
      %3219 = vmatprep.subr.bf16.mxu0 0
      %3220 = vmatpush1.bf16.msra.mxu0 %v3203
      %3221 = vmatprep.subr.bf16.mxu0 0
      %3222 = vmatpush2.bf16.msra.mxu0 0
      %3223 = vmatprep.subr.bf16.mxu0 0
      %3224 = vmatpush2.bf16.msra.mxu0 0
      %3225 = vmatprep.subr.bf16.mxu0 0
      %3226 = vmatpush2.bf16.msra.mxu0 0
      %3227 = vmatprep.subr.bf16.mxu0 0
      %3228 = vmatpush2.bf16.msra.mxu0 0
      %3229 = vmatprep.subr.bf16.mxu0 0
      %3230 = vmatpush2.bf16.msra.mxu0 0
      %3231 = vmatprep.subr.bf16.mxu0 0
      %3232 = vmatpush2.bf16.msra.mxu0 0
      %3233 = vmatprep.subr.bf16.mxu0 0
      %3234 = vmatpush2.bf16.msra.mxu0 0
      %3235 = vmatprep.subr.bf16.mxu0 0
      %3236 = vmatpush2.bf16.msra.mxu0 0
      %3237 = vmatprep.mubr.bf16.mxu0 0
      %3238 = vmatmul.mubr.bf16.gmra.mxu0 %v3178
      %v3239 = vpop.f32.mrf.mxu0
      %v3240 = vadd.f32 0.0, %v3239
      %v3241 = vpop.f32.mrf.mxu0
      %v3242 = vpop.f32.mrf.mxu0
      %v3243 = vadd.f32 0.0, %v3242
      %v3244 = vpop.f32.mrf.mxu0
      %3245 = vmatprep.mubr.bf16.mxu0 0
      %3246 = vmatmul.mubr.bf16.gmra.mxu0 %v3181
      %v3247 = vpop.f32.mrf.mxu0
      %v3248 = vadd.f32 0.0, %v3247
      %v3249 = vpop.f32.mrf.mxu0
      %v3250 = vpop.f32.mrf.mxu0
      %v3251 = vadd.f32 0.0, %v3250
      %v3252 = vpop.f32.mrf.mxu0
      %3253 = vmatprep.mubr.bf16.mxu0 0
      %3254 = vmatmul.mubr.bf16.gmra.mxu0 %v3184
      %v3255 = vpop.f32.mrf.mxu0
      %v3256 = vadd.f32 0.0, %v3255
      %v3257 = vpop.f32.mrf.mxu0
      %v3258 = vpop.f32.mrf.mxu0
      %v3259 = vadd.f32 0.0, %v3258
      %v3260 = vpop.f32.mrf.mxu0
      %3261 = vmatprep.mubr.bf16.mxu0 0
      %3262 = vmatmul.mubr.bf16.gmra.mxu0 %v3187
      %v3263 = vpop.f32.mrf.mxu0
      %v3264 = vadd.f32 0.0, %v3263
      %v3265 = vpop.f32.mrf.mxu0
      %v3266 = vpop.f32.mrf.mxu0
      %v3267 = vadd.f32 0.0, %v3266
      %v3268 = vpop.f32.mrf.mxu0
      %3269 = vmatprep.mubr.bf16.mxu0 0
      %3270 = vmatmul.mubr.bf16.gmra.mxu0 %v3190
      %v3271 = vpop.f32.mrf.mxu0
      %v3272 = vadd.f32 0.0, %v3271
      %v3273 = vpop.f32.mrf.mxu0
      %v3274 = vpop.f32.mrf.mxu0
      %v3275 = vadd.f32 0.0, %v3274
      %v3276 = vpop.f32.mrf.mxu0
      %3277 = vmatprep.mubr.bf16.mxu0 0
      %3278 = vmatmul.mubr.bf16.gmra.mxu0 %v3193
      %v3279 = vpop.f32.mrf.mxu0
      %v3280 = vadd.f32 0.0, %v3279
      %v3281 = vpop.f32.mrf.mxu0
      %v3282 = vpop.f32.mrf.mxu0
      %v3283 = vadd.f32 0.0, %v3282
      %v3284 = vpop.f32.mrf.mxu0
      %3285 = vmatprep.mubr.bf16.mxu0 0
      %3286 = vmatmul.mubr.bf16.gmra.mxu0 %v3196
      %v3287 = vpop.f32.mrf.mxu0
      %v3288 = vadd.f32 0.0, %v3287
      %v3289 = vpop.f32.mrf.mxu0
      %v3290 = vpop.f32.mrf.mxu0
      %v3291 = vadd.f32 0.0, %v3290
      %v3292 = vpop.f32.mrf.mxu0
      %3293 = vmatprep.mubr.bf16.mxu0 0
      %3294 = vmatmul.mubr.bf16.gmra.mxu0 %v3199
      %v3295 = vpop.f32.mrf.mxu0
      %v3296 = vadd.f32 0.0, %v3295
      %v3297 = vpop.f32.mrf.mxu0
      %v3298 = vpop.f32.mrf.mxu0
      %v3299 = vadd.f32 0.0, %v3298
      %v3300 = vpop.f32.mrf.mxu0
      %3301 = vdwg.mxu0
      %v3302 = vsub.f32 %v3068, %v3240
      %v3303 = vsub.f32 %v3069, %v3243
      %v3304 = vsub.f32 %v3070, %v3248
      %v3305 = vsub.f32 %v3071, %v3251
      %v3306 = vsub.f32 %v3072, %v3256
      %v3307 = vsub.f32 %v3073, %v3259
      %v3308 = vsub.f32 %v3074, %v3264
      %v3309 = vsub.f32 %v3075, %v3267
      %v3310 = vsub.f32 %v3076, %v3272
      %v3311 = vsub.f32 %v3077, %v3275
      %v3312 = vsub.f32 %v3078, %v3280
      %v3313 = vsub.f32 %v3079, %v3283
      %v3314 = vsub.f32 %v3080, %v3288
      %v3315 = vsub.f32 %v3081, %v3291
      %v3316 = vsub.f32 %v3082, %v3296
      %v3317 = vsub.f32 %v3083, %v3299
      %v3318 = vmul.f32 %v3302, 1.442695
      %v3319 = vpow.pop %v3318
      %v3320 = vmul.f32 %v3303, 1.442695
      %v3321 = vpow.pop %v3320
      %v3322 = vmul.f32 %v3304, 1.442695
      %v3323 = vpow.pop %v3322
      %v3324 = vmul.f32 %v3305, 1.442695
      %v3325 = vpow.pop %v3324
      %v3326 = vmul.f32 %v3306, 1.442695
      %v3327 = vpow.pop %v3326
      %v3328 = vmul.f32 %v3307, 1.442695
      %v3329 = vpow.pop %v3328
      %v3330 = vmul.f32 %v3308, 1.442695
      %v3331 = vpow.pop %v3330
      %v3332 = vmul.f32 %v3309, 1.442695
      %v3333 = vpow.pop %v3332
      %v3334 = vmul.f32 %v3310, 1.442695
      %v3335 = vpow.pop %v3334
      %v3336 = vmul.f32 %v3311, 1.442695
      %v3337 = vpow.pop %v3336
      %v3338 = vmul.f32 %v3312, 1.442695
      %v3339 = vpow.pop %v3338
      %v3340 = vmul.f32 %v3313, 1.442695
      %v3341 = vpow.pop %v3340
      %v3342 = vmul.f32 %v3314, 1.442695
      %v3343 = vpow.pop %v3342
      %v3344 = vmul.f32 %v3315, 1.442695
      %v3345 = vpow.pop %v3344
      %v3346 = vmul.f32 %v3316, 1.442695
      %v3347 = vpow.pop %v3346
      %v3348 = vmul.f32 %v3317, 1.442695
      %v3349 = vpow.pop %v3348
      %v3350 = vpack.c.bf16 %v3321, %v3319
      %v3351 = vpack.c.bf16 %v3325, %v3323
      %v3352 = vpack.c.bf16 %v3329, %v3327
      %v3353 = vpack.c.bf16 %v3333, %v3331
      %v3354 = vpack.c.bf16 %v3337, %v3335
      %v3355 = vpack.c.bf16 %v3341, %v3339
      %v3356 = vpack.c.bf16 %v3345, %v3343
      %v3357 = vpack.c.bf16 %v3349, %v3347
      %3358 = vmatprep.subr.bf16.mxu0 0
      %3359 = vmatpush1.bf16.msra.mxu0 %v3357
      %3360 = vmatprep.subr.bf16.mxu0 0
      %3361 = vmatpush1.bf16.msra.mxu0 %v3356
      %3362 = vmatprep.subr.bf16.mxu0 0
      %3363 = vmatpush1.bf16.msra.mxu0 %v3355
      %3364 = vmatprep.subr.bf16.mxu0 0
      %3365 = vmatpush1.bf16.msra.mxu0 %v3354
      %3366 = vmatprep.subr.bf16.mxu0 0
      %3367 = vmatpush1.bf16.msra.mxu0 %v3353
      %3368 = vmatprep.subr.bf16.mxu0 0
      %3369 = vmatpush1.bf16.msra.mxu0 %v3352
      %3370 = vmatprep.subr.bf16.mxu0 0
      %3371 = vmatpush1.bf16.msra.mxu0 %v3351
      %3372 = vmatprep.subr.bf16.mxu0 0
      %3373 = vmatpush1.bf16.msra.mxu0 %v3350
      %3374 = vmatprep.subr.bf16.mxu0 0
      %3375 = vmatpush2.bf16.msra.mxu0 0
      %3376 = vmatprep.subr.bf16.mxu0 0
      %3377 = vmatpush2.bf16.msra.mxu0 0
      %3378 = vmatprep.subr.bf16.mxu0 0
      %3379 = vmatpush2.bf16.msra.mxu0 0
      %3380 = vmatprep.subr.bf16.mxu0 0
      %3381 = vmatpush2.bf16.msra.mxu0 0
      %3382 = vmatprep.subr.bf16.mxu0 0
      %3383 = vmatpush2.bf16.msra.mxu0 0
      %3384 = vmatprep.subr.bf16.mxu0 0
      %3385 = vmatpush2.bf16.msra.mxu0 0
      %3386 = vmatprep.subr.bf16.mxu0 0
      %3387 = vmatpush2.bf16.msra.mxu0 0
      %3388 = vmatprep.subr.bf16.mxu0 0
      %3389 = vmatpush2.bf16.msra.mxu0 0
      %3390 = vmatprep.mubr.bf16.mxu0 0
      %3391 = vmatmul.mubr.bf16.gmra.mxu0 %v584
      %v3392 = vpop.f32.mrf.mxu0
      %v3393 = vadd.f32 0.0, %v3392
      %v3394 = vpop.f32.mrf.mxu0
      %v3395 = vpop.f32.mrf.mxu0
      %v3396 = vpop.f32.mrf.mxu0
      %3397 = vdwg.mxu0
      %v3398 = vpack.c.bf16 %v3393, %v3393
      %v3400 = vsel %vm3201, %v3398, 0
      %3402 = vmatprep.subr.bf16.mxu0 0
      %3403 = vmatpush1.bf16.msra.mxu0 0
      %3404 = vmatprep.subr.bf16.mxu0 0
      %3405 = vmatpush1.bf16.msra.mxu0 0
      %3406 = vmatprep.subr.bf16.mxu0 0
      %3407 = vmatpush1.bf16.msra.mxu0 0
      %3408 = vmatprep.subr.bf16.mxu0 0
      %3409 = vmatpush1.bf16.msra.mxu0 0
      %3410 = vmatprep.subr.bf16.mxu0 0
      %3411 = vmatpush1.bf16.msra.mxu0 0
      %3412 = vmatprep.subr.bf16.mxu0 0
      %3413 = vmatpush1.bf16.msra.mxu0 0
      %3414 = vmatprep.subr.bf16.mxu0 0
      %3415 = vmatpush1.bf16.msra.mxu0 0
      %3416 = vmatprep.subr.bf16.mxu0 0
      %3417 = vmatpush1.bf16.msra.mxu0 %v3400
      %3418 = vmatprep.subr.bf16.mxu0 0
      %3419 = vmatpush2.bf16.msra.mxu0 0
      %3420 = vmatprep.subr.bf16.mxu0 0
      %3421 = vmatpush2.bf16.msra.mxu0 0
      %3422 = vmatprep.subr.bf16.mxu0 0
      %3423 = vmatpush2.bf16.msra.mxu0 0
      %3424 = vmatprep.subr.bf16.mxu0 0
      %3425 = vmatpush2.bf16.msra.mxu0 0
      %3426 = vmatprep.subr.bf16.mxu0 0
      %3427 = vmatpush2.bf16.msra.mxu0 0
      %3428 = vmatprep.subr.bf16.mxu0 0
      %3429 = vmatpush2.bf16.msra.mxu0 0
      %3430 = vmatprep.subr.bf16.mxu0 0
      %3431 = vmatpush2.bf16.msra.mxu0 0
      %3432 = vmatprep.subr.bf16.mxu0 0
      %3433 = vmatpush2.bf16.msra.mxu0 0
      %3434 = vmatprep.mubr.bf16.mxu0 0
      %3435 = vmatmul.mubr.bf16.gmra.mxu0 %v3178
      %v3436 = vpop.f32.mrf.mxu0
      %v3437 = vadd.f32 0.0, %v3436
      %v3438 = vpop.f32.mrf.mxu0
      %v3439 = vpop.f32.mrf.mxu0
      %v3440 = vadd.f32 0.0, %v3439
      %v3441 = vpop.f32.mrf.mxu0
      %3442 = vmatprep.mubr.bf16.mxu0 0
      %3443 = vmatmul.mubr.bf16.gmra.mxu0 %v3181
      %v3444 = vpop.f32.mrf.mxu0
      %v3445 = vadd.f32 0.0, %v3444
      %v3446 = vpop.f32.mrf.mxu0
      %v3447 = vpop.f32.mrf.mxu0
      %v3448 = vadd.f32 0.0, %v3447
      %v3449 = vpop.f32.mrf.mxu0
      %3450 = vmatprep.mubr.bf16.mxu0 0
      %3451 = vmatmul.mubr.bf16.gmra.mxu0 %v3184
      %v3452 = vpop.f32.mrf.mxu0
      %v3453 = vadd.f32 0.0, %v3452
      %v3454 = vpop.f32.mrf.mxu0
      %v3455 = vpop.f32.mrf.mxu0
      %v3456 = vadd.f32 0.0, %v3455
      %v3457 = vpop.f32.mrf.mxu0
      %3458 = vmatprep.mubr.bf16.mxu0 0
      %3459 = vmatmul.mubr.bf16.gmra.mxu0 %v3187
      %v3460 = vpop.f32.mrf.mxu0
      %v3461 = vadd.f32 0.0, %v3460
      %v3462 = vpop.f32.mrf.mxu0
      %v3463 = vpop.f32.mrf.mxu0
      %v3464 = vadd.f32 0.0, %v3463
      %v3465 = vpop.f32.mrf.mxu0
      %3466 = vmatprep.mubr.bf16.mxu0 0
      %3467 = vmatmul.mubr.bf16.gmra.mxu0 %v3190
      %v3468 = vpop.f32.mrf.mxu0
      %v3469 = vadd.f32 0.0, %v3468
      %v3470 = vpop.f32.mrf.mxu0
      %v3471 = vpop.f32.mrf.mxu0
      %v3472 = vadd.f32 0.0, %v3471
      %v3473 = vpop.f32.mrf.mxu0
      %3474 = vmatprep.mubr.bf16.mxu0 0
      %3475 = vmatmul.mubr.bf16.gmra.mxu0 %v3193
      %v3476 = vpop.f32.mrf.mxu0
      %v3477 = vadd.f32 0.0, %v3476
      %v3478 = vpop.f32.mrf.mxu0
      %v3479 = vpop.f32.mrf.mxu0
      %v3480 = vadd.f32 0.0, %v3479
      %v3481 = vpop.f32.mrf.mxu0
      %3482 = vmatprep.mubr.bf16.mxu0 0
      %3483 = vmatmul.mubr.bf16.gmra.mxu0 %v3196
      %v3484 = vpop.f32.mrf.mxu0
      %v3485 = vadd.f32 0.0, %v3484
      %v3486 = vpop.f32.mrf.mxu0
      %v3487 = vpop.f32.mrf.mxu0
      %v3488 = vadd.f32 0.0, %v3487
      %v3489 = vpop.f32.mrf.mxu0
      %3490 = vmatprep.mubr.bf16.mxu0 0
      %3491 = vmatmul.mubr.bf16.gmra.mxu0 %v3199
      %v3492 = vpop.f32.mrf.mxu0
      %v3493 = vadd.f32 0.0, %v3492
      %v3494 = vpop.f32.mrf.mxu0
      %v3495 = vpop.f32.mrf.mxu0
      %v3496 = vadd.f32 0.0, %v3495
      %v3497 = vpop.f32.mrf.mxu0
      %3498 = vdwg.mxu0
      %v3499 = vrcp.pop %v3437
      %v3500 = vrcp.pop %v3440
      %v3501 = vrcp.pop %v3445
      %v3502 = vrcp.pop %v3448
      %v3503 = vrcp.pop %v3453
      %v3504 = vrcp.pop %v3456
      %v3505 = vrcp.pop %v3461
      %v3506 = vrcp.pop %v3464
      %v3507 = vrcp.pop %v3469
      %v3508 = vrcp.pop %v3472
      %v3509 = vrcp.pop %v3477
      %v3510 = vrcp.pop %v3480
      %v3511 = vrcp.pop %v3485
      %v3512 = vrcp.pop %v3488
      %v3513 = vrcp.pop %v3493
      %v3514 = vrcp.pop %v3496
      %v3515 = vmul.f32 %v3319, %v3499
      %v3516 = vmul.f32 %v3321, %v3500
      %v3517 = vmul.f32 %v3323, %v3501
      %v3518 = vmul.f32 %v3325, %v3502
      %v3519 = vmul.f32 %v3327, %v3503
      %v3520 = vmul.f32 %v3329, %v3504
      %v3521 = vmul.f32 %v3331, %v3505
      %v3522 = vmul.f32 %v3333, %v3506
      %v3523 = vmul.f32 %v3335, %v3507
      %v3524 = vmul.f32 %v3337, %v3508
      %v3525 = vmul.f32 %v3339, %v3509
      %v3526 = vmul.f32 %v3341, %v3510
      %v3527 = vmul.f32 %v3343, %v3511
      %v3528 = vmul.f32 %v3345, %v3512
      %v3529 = vmul.f32 %v3347, %v3513
      %v3530 = vmul.f32 %v3349, %v3514
      %v3531 = vpack.c.bf16 %v3516, %v3515
      %v3532 = vpack.c.bf16 %v3518, %v3517
      %v3533 = vpack.c.bf16 %v3520, %v3519
      %v3534 = vpack.c.bf16 %v3522, %v3521
      %v3535 = vpack.c.bf16 %v3524, %v3523
      %v3536 = vpack.c.bf16 %v3526, %v3525
      %v3537 = vpack.c.bf16 %v3528, %v3527
      %v3538 = vpack.c.bf16 %v3530, %v3529
      %3540 = vset.pattern.permute.xlu0 0
      %3541 = vperm.xlu0 %3540, %v3531
      %v3542 = vpop.permute.xlu0 %3541
      %3545 = vset.pattern.permute.xlu0 0
      %3546 = vperm.xlu0 %3545, %v3532
      %v3547 = vpop.permute.xlu0 %3546
      %3550 = vset.pattern.permute.xlu0 0
      %3551 = vperm.xlu0 %3550, %v3533
      %v3552 = vpop.permute.xlu0 %3551
      %3555 = vset.pattern.permute.xlu0 0
      %3556 = vperm.xlu0 %3555, %v3534
      %v3557 = vpop.permute.xlu0 %3556
      %3560 = vset.pattern.permute.xlu0 0
      %3561 = vperm.xlu0 %3560, %v3535
      %v3562 = vpop.permute.xlu0 %3561
      %3565 = vset.pattern.permute.xlu0 0
      %3566 = vperm.xlu0 %3565, %v3536
      %v3567 = vpop.permute.xlu0 %3566
      %3570 = vset.pattern.permute.xlu0 0
      %3571 = vperm.xlu0 %3570, %v3537
      %v3572 = vpop.permute.xlu0 %3571
      %3575 = vset.pattern.permute.xlu0 0
      %3576 = vperm.xlu0 %3575, %v3538
      %v3577 = vpop.permute.xlu0 %3576
      %v3587 = vmul.bf16 %v3542, %v2603
      %v3588 = vmul.bf16 %v3547, %v2604
      %v3589 = vmul.bf16 %v3552, %v2605
      %v3590 = vmul.bf16 %v3557, %v2606
      %v3591 = vmul.bf16 %v3562, %v2607
      %v3592 = vmul.bf16 %v3567, %v2608
      %v3593 = vmul.bf16 %v3572, %v2609
      %v3594 = vmul.bf16 %v3577, %v2610
      %3595 = vmatprep.subr.bf16.mxu0 0
      %3596 = vmatpush1.bf16.msra.mxu0 %v3594
      %3597 = vmatprep.subr.bf16.mxu0 0
      %3598 = vmatpush1.bf16.msra.mxu0 %v3593
      %3599 = vmatprep.subr.bf16.mxu0 0
      %3600 = vmatpush1.bf16.msra.mxu0 %v3592
      %3601 = vmatprep.subr.bf16.mxu0 0
      %3602 = vmatpush1.bf16.msra.mxu0 %v3591
      %3603 = vmatprep.subr.bf16.mxu0 0
      %3604 = vmatpush1.bf16.msra.mxu0 %v3590
      %3605 = vmatprep.subr.bf16.mxu0 0
      %3606 = vmatpush1.bf16.msra.mxu0 %v3589
      %3607 = vmatprep.subr.bf16.mxu0 0
      %3608 = vmatpush1.bf16.msra.mxu0 %v3588
      %3609 = vmatprep.subr.bf16.mxu0 0
      %3610 = vmatpush1.bf16.msra.mxu0 %v3587
      %3611 = vmatprep.subr.bf16.mxu0 0
      %3612 = vmatpush2.bf16.msra.mxu0 0
      %3613 = vmatprep.subr.bf16.mxu0 0
      %3614 = vmatpush2.bf16.msra.mxu0 0
      %3615 = vmatprep.subr.bf16.mxu0 0
      %3616 = vmatpush2.bf16.msra.mxu0 0
      %3617 = vmatprep.subr.bf16.mxu0 0
      %3618 = vmatpush2.bf16.msra.mxu0 0
      %3619 = vmatprep.subr.bf16.mxu0 0
      %3620 = vmatpush2.bf16.msra.mxu0 0
      %3621 = vmatprep.subr.bf16.mxu0 0
      %3622 = vmatpush2.bf16.msra.mxu0 0
      %3623 = vmatprep.subr.bf16.mxu0 0
      %3624 = vmatpush2.bf16.msra.mxu0 0
      %3625 = vmatprep.subr.bf16.mxu0 0
      %3626 = vmatpush2.bf16.msra.mxu0 0
      %3627 = vmatprep.mubr.bf16.mxu0 0
      %3628 = vmatmul.mubr.bf16.gmra.mxu0 %v584
      %v3629 = vpop.f32.mrf.mxu0
      %v3630 = vadd.f32 0.0, %v3629
      %v3631 = vpop.f32.mrf.mxu0
      %v3632 = vpop.f32.mrf.mxu0
      %v3633 = vpop.f32.mrf.mxu0
      %3634 = vdwg.mxu0
      %3635 = vset.pattern.permute.xlu0 1
      %3636 = vperm.xlu0 %3635, %v3531
      %v3637 = vpop.permute.xlu0 %3636
      %3639 = vset.pattern.permute.xlu0 1
      %3640 = vperm.xlu0 %3639, %v3532
      %v3641 = vpop.permute.xlu0 %3640
      %3643 = vset.pattern.permute.xlu0 1
      %3644 = vperm.xlu0 %3643, %v3533
      %v3645 = vpop.permute.xlu0 %3644
      %3647 = vset.pattern.permute.xlu0 1
      %3648 = vperm.xlu0 %3647, %v3534
      %v3649 = vpop.permute.xlu0 %3648
      %3651 = vset.pattern.permute.xlu0 1
      %3652 = vperm.xlu0 %3651, %v3535
      %v3653 = vpop.permute.xlu0 %3652
      %3655 = vset.pattern.permute.xlu0 1
      %3656 = vperm.xlu0 %3655, %v3536
      %v3657 = vpop.permute.xlu0 %3656
      %3659 = vset.pattern.permute.xlu0 1
      %3660 = vperm.xlu0 %3659, %v3537
      %v3661 = vpop.permute.xlu0 %3660
      %3663 = vset.pattern.permute.xlu0 1
      %3664 = vperm.xlu0 %3663, %v3538
      %v3665 = vpop.permute.xlu0 %3664
      %v3667 = vmul.bf16 %v3637, %v2603
      %v3668 = vmul.bf16 %v3641, %v2604
      %v3669 = vmul.bf16 %v3645, %v2605
      %v3670 = vmul.bf16 %v3649, %v2606
      %v3671 = vmul.bf16 %v3653, %v2607
      %v3672 = vmul.bf16 %v3657, %v2608
      %v3673 = vmul.bf16 %v3661, %v2609
      %v3674 = vmul.bf16 %v3665, %v2610
      %3675 = vmatprep.subr.bf16.mxu0 0
      %3676 = vmatpush1.bf16.msra.mxu0 %v3674
      %3677 = vmatprep.subr.bf16.mxu0 0
      %3678 = vmatpush1.bf16.msra.mxu0 %v3673
      %3679 = vmatprep.subr.bf16.mxu0 0
      %3680 = vmatpush1.bf16.msra.mxu0 %v3672
      %3681 = vmatprep.subr.bf16.mxu0 0
      %3682 = vmatpush1.bf16.msra.mxu0 %v3671
      %3683 = vmatprep.subr.bf16.mxu0 0
      %3684 = vmatpush1.bf16.msra.mxu0 %v3670
      %3685 = vmatprep.subr.bf16.mxu0 0
      %3686 = vmatpush1.bf16.msra.mxu0 %v3669
      %3687 = vmatprep.subr.bf16.mxu0 0
      %3688 = vmatpush1.bf16.msra.mxu0 %v3668
      %3689 = vmatprep.subr.bf16.mxu0 0
      %3690 = vmatpush1.bf16.msra.mxu0 %v3667
      %3691 = vmatprep.subr.bf16.mxu0 0
      %3692 = vmatpush2.bf16.msra.mxu0 0
      %3693 = vmatprep.subr.bf16.mxu0 0
      %3694 = vmatpush2.bf16.msra.mxu0 0
      %3695 = vmatprep.subr.bf16.mxu0 0
      %3696 = vmatpush2.bf16.msra.mxu0 0
      %3697 = vmatprep.subr.bf16.mxu0 0
      %3698 = vmatpush2.bf16.msra.mxu0 0
      %3699 = vmatprep.subr.bf16.mxu0 0
      %3700 = vmatpush2.bf16.msra.mxu0 0
      %3701 = vmatprep.subr.bf16.mxu0 0
      %3702 = vmatpush2.bf16.msra.mxu0 0
      %3703 = vmatprep.subr.bf16.mxu0 0
      %3704 = vmatpush2.bf16.msra.mxu0 0
      %3705 = vmatprep.subr.bf16.mxu0 0
      %3706 = vmatpush2.bf16.msra.mxu0 0
      %3707 = vmatprep.mubr.bf16.mxu0 0
      %3708 = vmatmul.mubr.bf16.gmra.mxu0 %v584
      %v3709 = vpop.f32.mrf.mxu0
      %v3710 = vadd.f32 0.0, %v3709
      %v3711 = vpop.f32.mrf.mxu0
      %v3712 = vpop.f32.mrf.mxu0
      %v3713 = vpop.f32.mrf.mxu0
      %3714 = vdwg.mxu0
      %3715 = vset.pattern.permute.xlu0 2
      %3716 = vperm.xlu0 %3715, %v3531
      %v3717 = vpop.permute.xlu0 %3716
      %3719 = vset.pattern.permute.xlu0 2
      %3720 = vperm.xlu0 %3719, %v3532
      %v3721 = vpop.permute.xlu0 %3720
      %3723 = vset.pattern.permute.xlu0 2
      %3724 = vperm.xlu0 %3723, %v3533
      %v3725 = vpop.permute.xlu0 %3724
      %3727 = vset.pattern.permute.xlu0 2
      %3728 = vperm.xlu0 %3727, %v3534
      %v3729 = vpop.permute.xlu0 %3728
      %3731 = vset.pattern.permute.xlu0 2
      %3732 = vperm.xlu0 %3731, %v3535
      %v3733 = vpop.permute.xlu0 %3732
      %3735 = vset.pattern.permute.xlu0 2
      %3736 = vperm.xlu0 %3735, %v3536
      %v3737 = vpop.permute.xlu0 %3736
      %3739 = vset.pattern.permute.xlu0 2
      %3740 = vperm.xlu0 %3739, %v3537
      %v3741 = vpop.permute.xlu0 %3740
      %3743 = vset.pattern.permute.xlu0 2
      %3744 = vperm.xlu0 %3743, %v3538
      %v3745 = vpop.permute.xlu0 %3744
      %v3747 = vmul.bf16 %v3717, %v2603
      %v3748 = vmul.bf16 %v3721, %v2604
      %v3749 = vmul.bf16 %v3725, %v2605
      %v3750 = vmul.bf16 %v3729, %v2606
      %v3751 = vmul.bf16 %v3733, %v2607
      %v3752 = vmul.bf16 %v3737, %v2608
      %v3753 = vmul.bf16 %v3741, %v2609
      %v3754 = vmul.bf16 %v3745, %v2610
      %3755 = vmatprep.subr.bf16.mxu0 0
      %3756 = vmatpush1.bf16.msra.mxu0 %v3754
      %3757 = vmatprep.subr.bf16.mxu0 0
      %3758 = vmatpush1.bf16.msra.mxu0 %v3753
      %3759 = vmatprep.subr.bf16.mxu0 0
      %3760 = vmatpush1.bf16.msra.mxu0 %v3752
      %3761 = vmatprep.subr.bf16.mxu0 0
      %3762 = vmatpush1.bf16.msra.mxu0 %v3751
      %3763 = vmatprep.subr.bf16.mxu0 0
      %3764 = vmatpush1.bf16.msra.mxu0 %v3750
      %3765 = vmatprep.subr.bf16.mxu0 0
      %3766 = vmatpush1.bf16.msra.mxu0 %v3749
      %3767 = vmatprep.subr.bf16.mxu0 0
      %3768 = vmatpush1.bf16.msra.mxu0 %v3748
      %3769 = vmatprep.subr.bf16.mxu0 0
      %3770 = vmatpush1.bf16.msra.mxu0 %v3747
      %3771 = vmatprep.subr.bf16.mxu0 0
      %3772 = vmatpush2.bf16.msra.mxu0 0
      %3773 = vmatprep.subr.bf16.mxu0 0
      %3774 = vmatpush2.bf16.msra.mxu0 0
      %3775 = vmatprep.subr.bf16.mxu0 0
      %3776 = vmatpush2.bf16.msra.mxu0 0
      %3777 = vmatprep.subr.bf16.mxu0 0
      %3778 = vmatpush2.bf16.msra.mxu0 0
      %3779 = vmatprep.subr.bf16.mxu0 0
      %3780 = vmatpush2.bf16.msra.mxu0 0
      %3781 = vmatprep.subr.bf16.mxu0 0
      %3782 = vmatpush2.bf16.msra.mxu0 0
      %3783 = vmatprep.subr.bf16.mxu0 0
      %3784 = vmatpush2.bf16.msra.mxu0 0
      %3785 = vmatprep.subr.bf16.mxu0 0
      %3786 = vmatpush2.bf16.msra.mxu0 0
      %3787 = vmatprep.mubr.bf16.mxu0 0
      %3788 = vmatmul.mubr.bf16.gmra.mxu0 %v584
      %v3789 = vpop.f32.mrf.mxu0
      %v3790 = vadd.f32 0.0, %v3789
      %v3791 = vpop.f32.mrf.mxu0
      %v3792 = vpop.f32.mrf.mxu0
      %v3793 = vpop.f32.mrf.mxu0
      %3794 = vdwg.mxu0
      %3795 = vset.pattern.permute.xlu0 3
      %3796 = vperm.xlu0 %3795, %v3531
      %v3797 = vpop.permute.xlu0 %3796
      %3799 = vset.pattern.permute.xlu0 3
      %3800 = vperm.xlu0 %3799, %v3532
      %v3801 = vpop.permute.xlu0 %3800
      %3803 = vset.pattern.permute.xlu0 3
      %3804 = vperm.xlu0 %3803, %v3533
      %v3805 = vpop.permute.xlu0 %3804
      %3807 = vset.pattern.permute.xlu0 3
      %3808 = vperm.xlu0 %3807, %v3534
      %v3809 = vpop.permute.xlu0 %3808
      %3811 = vset.pattern.permute.xlu0 3
      %3812 = vperm.xlu0 %3811, %v3535
      %v3813 = vpop.permute.xlu0 %3812
      %3815 = vset.pattern.permute.xlu0 3
      %3816 = vperm.xlu0 %3815, %v3536
      %v3817 = vpop.permute.xlu0 %3816
      %3819 = vset.pattern.permute.xlu0 3
      %3820 = vperm.xlu0 %3819, %v3537
      %v3821 = vpop.permute.xlu0 %3820
      %3823 = vset.pattern.permute.xlu0 3
      %3824 = vperm.xlu0 %3823, %v3538
      %v3825 = vpop.permute.xlu0 %3824
      %v3827 = vmul.bf16 %v3797, %v2603
      %v3828 = vmul.bf16 %v3801, %v2604
      %v3829 = vmul.bf16 %v3805, %v2605
      %v3830 = vmul.bf16 %v3809, %v2606
      %v3831 = vmul.bf16 %v3813, %v2607
      %v3832 = vmul.bf16 %v3817, %v2608
      %v3833 = vmul.bf16 %v3821, %v2609
      %v3834 = vmul.bf16 %v3825, %v2610
      %3835 = vmatprep.subr.bf16.mxu0 0
      %3836 = vmatpush1.bf16.msra.mxu0 %v3834
      %3837 = vmatprep.subr.bf16.mxu0 0
      %3838 = vmatpush1.bf16.msra.mxu0 %v3833
      %3839 = vmatprep.subr.bf16.mxu0 0
      %3840 = vmatpush1.bf16.msra.mxu0 %v3832
      %3841 = vmatprep.subr.bf16.mxu0 0
      %3842 = vmatpush1.bf16.msra.mxu0 %v3831
      %3843 = vmatprep.subr.bf16.mxu0 0
      %3844 = vmatpush1.bf16.msra.mxu0 %v3830
      %3845 = vmatprep.subr.bf16.mxu0 0
      %3846 = vmatpush1.bf16.msra.mxu0 %v3829
      %3847 = vmatprep.subr.bf16.mxu0 0
      %3848 = vmatpush1.bf16.msra.mxu0 %v3828
      %3849 = vmatprep.subr.bf16.mxu0 0
      %3850 = vmatpush1.bf16.msra.mxu0 %v3827
      %3851 = vmatprep.subr.bf16.mxu0 0
      %3852 = vmatpush2.bf16.msra.mxu0 0
      %3853 = vmatprep.subr.bf16.mxu0 0
      %3854 = vmatpush2.bf16.msra.mxu0 0
      %3855 = vmatprep.subr.bf16.mxu0 0
      %3856 = vmatpush2.bf16.msra.mxu0 0
      %3857 = vmatprep.subr.bf16.mxu0 0
      %3858 = vmatpush2.bf16.msra.mxu0 0
      %3859 = vmatprep.subr.bf16.mxu0 0
      %3860 = vmatpush2.bf16.msra.mxu0 0
      %3861 = vmatprep.subr.bf16.mxu0 0
      %3862 = vmatpush2.bf16.msra.mxu0 0
      %3863 = vmatprep.subr.bf16.mxu0 0
      %3864 = vmatpush2.bf16.msra.mxu0 0
      %3865 = vmatprep.subr.bf16.mxu0 0
      %3866 = vmatpush2.bf16.msra.mxu0 0
      %3867 = vmatprep.mubr.bf16.mxu0 0
      %3868 = vmatmul.mubr.bf16.gmra.mxu0 %v584
      %v3869 = vpop.f32.mrf.mxu0
      %v3870 = vadd.f32 0.0, %v3869
      %v3871 = vpop.f32.mrf.mxu0
      %v3872 = vpop.f32.mrf.mxu0
      %v3873 = vpop.f32.mrf.mxu0
      %3874 = vdwg.mxu0
      %v3875 = vpack.c.bf16 %v685, %v685
      %v3876 = vld [vmem:[%s11] sm:$0xff]
      %v3877 = vld [vmem:[%s11 + $0x8] sm:$0xff]
      %v3878 = vld [vmem:[%s11 + $0x10] sm:$0xff]
      %v3879 = vld [vmem:[%s11 + $0x18] sm:$0xff]
      %v3880 = vld [vmem:[%s11 + $0x20] sm:$0xff]
      %v3881 = vld [vmem:[%s11 + $0x28] sm:$0xff]
      %v3882 = vld [vmem:[%s11 + $0x30] sm:$0xff]
      %v3883 = vld [vmem:[%s11 + $0x38] sm:$0xff]
      %v3884 = vld [vmem:[%s11 + $0x40] sm:$0xff]
      %v3885 = vld [vmem:[%s11 + $0x48] sm:$0xff]
      %v3886 = vld [vmem:[%s11 + $0x50] sm:$0xff]
      %v3887 = vld [vmem:[%s11 + $0x58] sm:$0xff]
      %v3888 = vld [vmem:[%s11 + $0x60] sm:$0xff]
      %v3889 = vld [vmem:[%s11 + $0x68] sm:$0xff]
      %v3890 = vld [vmem:[%s11 + $0x70] sm:$0xff]
      %v3891 = vld [vmem:[%s11 + $0x78] sm:$0xff]
      %v3893 = vrot.slane %v3875, 1
      %v3902 = vunpack.c.l.b16 %v3884
      %v3903 = vunpack.c.h.b16 %v3884
      %v3904 = vunpack.c.l.b16 %v3885
      %v3905 = vunpack.c.h.b16 %v3885
      %v3906 = vunpack.c.l.b16 %v3886
      %v3907 = vunpack.c.h.b16 %v3886
      %v3908 = vunpack.c.l.b16 %v3887
      %v3909 = vunpack.c.h.b16 %v3887
      %v3910 = vunpack.c.l.b16 %v3888
      %v3911 = vunpack.c.h.b16 %v3888
      %v3912 = vunpack.c.l.b16 %v3889
      %v3913 = vunpack.c.h.b16 %v3889
      %v3914 = vunpack.c.l.b16 %v3890
      %v3915 = vunpack.c.h.b16 %v3890
      %v3916 = vunpack.c.l.b16 %v3891
      %v3917 = vunpack.c.h.b16 %v3891
      %v3918 = vpack.c.b16 %v3906, %v3902
      %v3919 = vpack.c.b16 %v3907, %v3903
      %v3920 = vpack.c.b16 %v3908, %v3904
      %v3921 = vpack.c.b16 %v3909, %v3905
      %v3922 = vpack.c.b16 %v3914, %v3910
      %v3923 = vpack.c.b16 %v3915, %v3911
      %v3924 = vpack.c.b16 %v3916, %v3912
      %v3925 = vpack.c.b16 %v3917, %v3913
      %v3935 = vsel %vm706, %v3893, 0
      %3937 = vmatprep.subr.bf16.mxu0 0
      %3938 = vmatpush1.bf16.msra.mxu0 0
      %3939 = vmatprep.subr.bf16.mxu0 0
      %3940 = vmatpush1.bf16.msra.mxu0 0
      %3941 = vmatprep.subr.bf16.mxu0 0
      %3942 = vmatpush1.bf16.msra.mxu0 0
      %3943 = vmatprep.subr.bf16.mxu0 0
      %3944 = vmatpush1.bf16.msra.mxu0 0
      %3945 = vmatprep.subr.bf16.mxu0 0
      %3946 = vmatpush1.bf16.msra.mxu0 0
      %3947 = vmatprep.subr.bf16.mxu0 0
      %3948 = vmatpush1.bf16.msra.mxu0 0
      %3949 = vmatprep.subr.bf16.mxu0 %v3923
      %3950 = vmatpush1.bf16.msra.mxu0 %v3922
      %3951 = vmatprep.subr.bf16.mxu0 %v3919
      %3952 = vmatpush1.bf16.msra.mxu0 %v3918
      %3953 = vmatprep.subr.bf16.mxu0 0
      %3954 = vmatpush2.bf16.msra.mxu0 0
      %3955 = vmatprep.subr.bf16.mxu0 0
      %3956 = vmatpush2.bf16.msra.mxu0 0
      %3957 = vmatprep.subr.bf16.mxu0 0
      %3958 = vmatpush2.bf16.msra.mxu0 0
      %3959 = vmatprep.subr.bf16.mxu0 0
      %3960 = vmatpush2.bf16.msra.mxu0 0
      %3961 = vmatprep.subr.bf16.mxu0 0
      %3962 = vmatpush2.bf16.msra.mxu0 0
      %3963 = vmatprep.subr.bf16.mxu0 0
      %3964 = vmatpush2.bf16.msra.mxu0 0
      %3965 = vmatprep.subr.bf16.mxu0 0
      %3966 = vmatpush2.bf16.msra.mxu0 0
      %3967 = vmatprep.subr.bf16.mxu0 0
      %3968 = vmatpush2.bf16.msra.mxu0 0
      %3969 = vmatprep.mubr.bf16.mxu0 0
      %3970 = vmatmul.mubr.bf16.gmra.mxu0 %v3935
      %v3971 = vpop.f32.mrf.mxu0
      %v3972 = vadd.f32 0.0, %v3971
      %v3973 = vpop.f32.mrf.mxu0
      %v3974 = vadd.f32 0.0, %v3973
      %v3975 = vpop.f32.mrf.mxu0
      %v3976 = vpop.f32.mrf.mxu0
      %3977 = vdwg.mxu0
      %3978 = vmatprep.subr.bf16.mxu0 0
      %3979 = vmatpush1.bf16.msra.mxu0 0
      %3980 = vmatprep.subr.bf16.mxu0 0
      %3981 = vmatpush1.bf16.msra.mxu0 0
      %3982 = vmatprep.subr.bf16.mxu0 0
      %3983 = vmatpush1.bf16.msra.mxu0 0
      %3984 = vmatprep.subr.bf16.mxu0 0
      %3985 = vmatpush1.bf16.msra.mxu0 0
      %3986 = vmatprep.subr.bf16.mxu0 0
      %3987 = vmatpush1.bf16.msra.mxu0 0
      %3988 = vmatprep.subr.bf16.mxu0 0
      %3989 = vmatpush1.bf16.msra.mxu0 0
      %3990 = vmatprep.subr.bf16.mxu0 %v3925
      %3991 = vmatpush1.bf16.msra.mxu0 %v3924
      %3992 = vmatprep.subr.bf16.mxu0 %v3921
      %3993 = vmatpush1.bf16.msra.mxu0 %v3920
      %3994 = vmatprep.subr.bf16.mxu0 0
      %3995 = vmatpush2.bf16.msra.mxu0 0
      %3996 = vmatprep.subr.bf16.mxu0 0
      %3997 = vmatpush2.bf16.msra.mxu0 0
      %3998 = vmatprep.subr.bf16.mxu0 0
      %3999 = vmatpush2.bf16.msra.mxu0 0
      %4000 = vmatprep.subr.bf16.mxu0 0
      %4001 = vmatpush2.bf16.msra.mxu0 0
      %4002 = vmatprep.subr.bf16.mxu0 0
      %4003 = vmatpush2.bf16.msra.mxu0 0
      %4004 = vmatprep.subr.bf16.mxu0 0
      %4005 = vmatpush2.bf16.msra.mxu0 0
      %4006 = vmatprep.subr.bf16.mxu0 0
      %4007 = vmatpush2.bf16.msra.mxu0 0
      %4008 = vmatprep.subr.bf16.mxu0 0
      %4009 = vmatpush2.bf16.msra.mxu0 0
      %4010 = vmatprep.mubr.bf16.mxu0 0
      %4011 = vmatmul.mubr.bf16.gmra.mxu0 %v3935
      %v4012 = vpop.f32.mrf.mxu0
      %v4013 = vadd.f32 0.0, %v4012
      %v4014 = vpop.f32.mrf.mxu0
      %v4015 = vadd.f32 0.0, %v4014
      %v4016 = vpop.f32.mrf.mxu0
      %v4017 = vpop.f32.mrf.mxu0
      %4018 = vdwg.mxu0
      %v4027 = vunpack.c.l.b16 %v3876
      %v4028 = vunpack.c.h.b16 %v3876
      %v4029 = vunpack.c.l.b16 %v3877
      %v4030 = vunpack.c.h.b16 %v3877
      %v4031 = vunpack.c.l.b16 %v3878
      %v4032 = vunpack.c.h.b16 %v3878
      %v4033 = vunpack.c.l.b16 %v3879
      %v4034 = vunpack.c.h.b16 %v3879
      %v4035 = vunpack.c.l.b16 %v3880
      %v4036 = vunpack.c.h.b16 %v3880
      %v4037 = vunpack.c.l.b16 %v3881
      %v4038 = vunpack.c.h.b16 %v3881
      %v4039 = vunpack.c.l.b16 %v3882
      %v4040 = vunpack.c.h.b16 %v3882
      %v4041 = vunpack.c.l.b16 %v3883
      %v4042 = vunpack.c.h.b16 %v3883
      %v4043 = vpack.c.b16 %v4031, %v4027
      %v4044 = vpack.c.b16 %v4032, %v4028
      %v4045 = vpack.c.b16 %v4033, %v4029
      %v4046 = vpack.c.b16 %v4034, %v4030
      %v4047 = vpack.c.b16 %v4039, %v4035
      %v4048 = vpack.c.b16 %v4040, %v4036
      %v4049 = vpack.c.b16 %v4041, %v4037
      %v4050 = vpack.c.b16 %v4042, %v4038
      %v4060 = vsel %vm706, %v3875, 0
      %4062 = vmatprep.subr.bf16.mxu0 0
      %4063 = vmatpush1.bf16.msra.mxu0 0
      %4064 = vmatprep.subr.bf16.mxu0 0
      %4065 = vmatpush1.bf16.msra.mxu0 0
      %4066 = vmatprep.subr.bf16.mxu0 0
      %4067 = vmatpush1.bf16.msra.mxu0 0
      %4068 = vmatprep.subr.bf16.mxu0 0
      %4069 = vmatpush1.bf16.msra.mxu0 0
      %4070 = vmatprep.subr.bf16.mxu0 0
      %4071 = vmatpush1.bf16.msra.mxu0 0
      %4072 = vmatprep.subr.bf16.mxu0 0
      %4073 = vmatpush1.bf16.msra.mxu0 0
      %4074 = vmatprep.subr.bf16.mxu0 %v4048
      %4075 = vmatpush1.bf16.msra.mxu0 %v4047
      %4076 = vmatprep.subr.bf16.mxu0 %v4044
      %4077 = vmatpush1.bf16.msra.mxu0 %v4043
      %4078 = vmatprep.subr.bf16.mxu0 0
      %4079 = vmatpush2.bf16.msra.mxu0 0
      %4080 = vmatprep.subr.bf16.mxu0 0
      %4081 = vmatpush2.bf16.msra.mxu0 0
      %4082 = vmatprep.subr.bf16.mxu0 0
      %4083 = vmatpush2.bf16.msra.mxu0 0
      %4084 = vmatprep.subr.bf16.mxu0 0
      %4085 = vmatpush2.bf16.msra.mxu0 0
      %4086 = vmatprep.subr.bf16.mxu0 0
      %4087 = vmatpush2.bf16.msra.mxu0 0
      %4088 = vmatprep.subr.bf16.mxu0 0
      %4089 = vmatpush2.bf16.msra.mxu0 0
      %4090 = vmatprep.subr.bf16.mxu0 0
      %4091 = vmatpush2.bf16.msra.mxu0 0
      %4092 = vmatprep.subr.bf16.mxu0 0
      %4093 = vmatpush2.bf16.msra.mxu0 0
      %4094 = vmatprep.mubr.bf16.mxu0 0
      %4095 = vmatmul.mubr.bf16.gmra.mxu0 %v4060
      %v4096 = vpop.f32.mrf.mxu0
      %v4097 = vadd.f32 %v3972, %v4096
      %v4098 = vpop.f32.mrf.mxu0
      %v4099 = vadd.f32 %v3974, %v4098
      %v4100 = vpop.f32.mrf.mxu0
      %v4101 = vpop.f32.mrf.mxu0
      %4102 = vdwg.mxu0
      %4103 = vmatprep.subr.bf16.mxu0 0
      %4104 = vmatpush1.bf16.msra.mxu0 0
      %4105 = vmatprep.subr.bf16.mxu0 0
      %4106 = vmatpush1.bf16.msra.mxu0 0
      %4107 = vmatprep.subr.bf16.mxu0 0
      %4108 = vmatpush1.bf16.msra.mxu0 0
      %4109 = vmatprep.subr.bf16.mxu0 0
      %4110 = vmatpush1.bf16.msra.mxu0 0
      %4111 = vmatprep.subr.bf16.mxu0 0
      %4112 = vmatpush1.bf16.msra.mxu0 0
      %4113 = vmatprep.subr.bf16.mxu0 0
      %4114 = vmatpush1.bf16.msra.mxu0 0
      %4115 = vmatprep.subr.bf16.mxu0 %v4050
      %4116 = vmatpush1.bf16.msra.mxu0 %v4049
      %4117 = vmatprep.subr.bf16.mxu0 %v4046
      %4118 = vmatpush1.bf16.msra.mxu0 %v4045
      %4119 = vmatprep.subr.bf16.mxu0 0
      %4120 = vmatpush2.bf16.msra.mxu0 0
      %4121 = vmatprep.subr.bf16.mxu0 0
      %4122 = vmatpush2.bf16.msra.mxu0 0
      %4123 = vmatprep.subr.bf16.mxu0 0
      %4124 = vmatpush2.bf16.msra.mxu0 0
      %4125 = vmatprep.subr.bf16.mxu0 0
      %4126 = vmatpush2.bf16.msra.mxu0 0
      %4127 = vmatprep.subr.bf16.mxu0 0
      %4128 = vmatpush2.bf16.msra.mxu0 0
      %4129 = vmatprep.subr.bf16.mxu0 0
      %4130 = vmatpush2.bf16.msra.mxu0 0
      %4131 = vmatprep.subr.bf16.mxu0 0
      %4132 = vmatpush2.bf16.msra.mxu0 0
      %4133 = vmatprep.subr.bf16.mxu0 0
      %4134 = vmatpush2.bf16.msra.mxu0 0
      %4135 = vmatprep.mubr.bf16.mxu0 0
      %4136 = vmatmul.mubr.bf16.gmra.mxu0 %v4060
      %v4137 = vpop.f32.mrf.mxu0
      %v4138 = vadd.f32 %v4013, %v4137
      %v4139 = vpop.f32.mrf.mxu0
      %v4140 = vadd.f32 %v4015, %v4139
      %v4141 = vpop.f32.mrf.mxu0
      %v4142 = vpop.f32.mrf.mxu0
      %4143 = vdwg.mxu0
      %v4144 = vld [vmem:[%s11 + $0x80] sm:$0xff]
      %v4145 = vld [vmem:[%s11 + $0x88] sm:$0xff]
      %v4146 = vld [vmem:[%s11 + $0x90] sm:$0xff]
      %v4147 = vld [vmem:[%s11 + $0x98] sm:$0xff]
      %v4148 = vld [vmem:[%s11 + $0xa0] sm:$0xff]
      %v4149 = vld [vmem:[%s11 + $0xa8] sm:$0xff]
      %v4150 = vld [vmem:[%s11 + $0xb0] sm:$0xff]
      %v4151 = vld [vmem:[%s11 + $0xb8] sm:$0xff]
      %v4152 = vrot.slane %v3875, 2
      %v4161 = vunpack.c.l.b16 %v4144
      %v4162 = vunpack.c.h.b16 %v4144
      %v4163 = vunpack.c.l.b16 %v4145
      %v4164 = vunpack.c.h.b16 %v4145
      %v4165 = vunpack.c.l.b16 %v4146
      %v4166 = vunpack.c.h.b16 %v4146
      %v4167 = vunpack.c.l.b16 %v4147
      %v4168 = vunpack.c.h.b16 %v4147
      %v4169 = vunpack.c.l.b16 %v4148
      %v4170 = vunpack.c.h.b16 %v4148
      %v4171 = vunpack.c.l.b16 %v4149
      %v4172 = vunpack.c.h.b16 %v4149
      %v4173 = vunpack.c.l.b16 %v4150
      %v4174 = vunpack.c.h.b16 %v4150
      %v4175 = vunpack.c.l.b16 %v4151
      %v4176 = vunpack.c.h.b16 %v4151
      %v4177 = vpack.c.b16 %v4165, %v4161
      %v4178 = vpack.c.b16 %v4166, %v4162
      %v4179 = vpack.c.b16 %v4167, %v4163
      %v4180 = vpack.c.b16 %v4168, %v4164
      %v4181 = vpack.c.b16 %v4173, %v4169
      %v4182 = vpack.c.b16 %v4174, %v4170
      %v4183 = vpack.c.b16 %v4175, %v4171
      %v4184 = vpack.c.b16 %v4176, %v4172
      %v4194 = vsel %vm706, %v4152, 0
      %4196 = vmatprep.subr.bf16.mxu0 0
      %4197 = vmatpush1.bf16.msra.mxu0 0
      %4198 = vmatprep.subr.bf16.mxu0 0
      %4199 = vmatpush1.bf16.msra.mxu0 0
      %4200 = vmatprep.subr.bf16.mxu0 0
      %4201 = vmatpush1.bf16.msra.mxu0 0
      %4202 = vmatprep.subr.bf16.mxu0 0
      %4203 = vmatpush1.bf16.msra.mxu0 0
      %4204 = vmatprep.subr.bf16.mxu0 0
      %4205 = vmatpush1.bf16.msra.mxu0 0
      %4206 = vmatprep.subr.bf16.mxu0 0
      %4207 = vmatpush1.bf16.msra.mxu0 0
      %4208 = vmatprep.subr.bf16.mxu0 %v4182
      %4209 = vmatpush1.bf16.msra.mxu0 %v4181
      %4210 = vmatprep.subr.bf16.mxu0 %v4178
      %4211 = vmatpush1.bf16.msra.mxu0 %v4177
      %4212 = vmatprep.subr.bf16.mxu0 0
      %4213 = vmatpush2.bf16.msra.mxu0 0
      %4214 = vmatprep.subr.bf16.mxu0 0
      %4215 = vmatpush2.bf16.msra.mxu0 0
      %4216 = vmatprep.subr.bf16.mxu0 0
      %4217 = vmatpush2.bf16.msra.mxu0 0
      %4218 = vmatprep.subr.bf16.mxu0 0
      %4219 = vmatpush2.bf16.msra.mxu0 0
      %4220 = vmatprep.subr.bf16.mxu0 0
      %4221 = vmatpush2.bf16.msra.mxu0 0
      %4222 = vmatprep.subr.bf16.mxu0 0
      %4223 = vmatpush2.bf16.msra.mxu0 0
      %4224 = vmatprep.subr.bf16.mxu0 0
      %4225 = vmatpush2.bf16.msra.mxu0 0
      %4226 = vmatprep.subr.bf16.mxu0 0
      %4227 = vmatpush2.bf16.msra.mxu0 0
      %4228 = vmatprep.mubr.bf16.mxu0 0
      %4229 = vmatmul.mubr.bf16.gmra.mxu0 %v4194
      %v4230 = vpop.f32.mrf.mxu0
      %v4231 = vadd.f32 0.0, %v4230
      %v4232 = vpop.f32.mrf.mxu0
      %v4233 = vadd.f32 0.0, %v4232
      %v4234 = vpop.f32.mrf.mxu0
      %v4235 = vpop.f32.mrf.mxu0
      %4236 = vdwg.mxu0
      %4237 = vmatprep.subr.bf16.mxu0 0
      %4238 = vmatpush1.bf16.msra.mxu0 0
      %4239 = vmatprep.subr.bf16.mxu0 0
      %4240 = vmatpush1.bf16.msra.mxu0 0
      %4241 = vmatprep.subr.bf16.mxu0 0
      %4242 = vmatpush1.bf16.msra.mxu0 0
      %4243 = vmatprep.subr.bf16.mxu0 0
      %4244 = vmatpush1.bf16.msra.mxu0 0
      %4245 = vmatprep.subr.bf16.mxu0 0
      %4246 = vmatpush1.bf16.msra.mxu0 0
      %4247 = vmatprep.subr.bf16.mxu0 0
      %4248 = vmatpush1.bf16.msra.mxu0 0
      %4249 = vmatprep.subr.bf16.mxu0 %v4184
      %4250 = vmatpush1.bf16.msra.mxu0 %v4183
      %4251 = vmatprep.subr.bf16.mxu0 %v4180
      %4252 = vmatpush1.bf16.msra.mxu0 %v4179
      %4253 = vmatprep.subr.bf16.mxu0 0
      %4254 = vmatpush2.bf16.msra.mxu0 0
      %4255 = vmatprep.subr.bf16.mxu0 0
      %4256 = vmatpush2.bf16.msra.mxu0 0
      %4257 = vmatprep.subr.bf16.mxu0 0
      %4258 = vmatpush2.bf16.msra.mxu0 0
      %4259 = vmatprep.subr.bf16.mxu0 0
      %4260 = vmatpush2.bf16.msra.mxu0 0
      %4261 = vmatprep.subr.bf16.mxu0 0
      %4262 = vmatpush2.bf16.msra.mxu0 0
      %4263 = vmatprep.subr.bf16.mxu0 0
      %4264 = vmatpush2.bf16.msra.mxu0 0
      %4265 = vmatprep.subr.bf16.mxu0 0
      %4266 = vmatpush2.bf16.msra.mxu0 0
      %4267 = vmatprep.subr.bf16.mxu0 0
      %4268 = vmatpush2.bf16.msra.mxu0 0
      %4269 = vmatprep.mubr.bf16.mxu0 0
      %4270 = vmatmul.mubr.bf16.gmra.mxu0 %v4194
      %v4271 = vpop.f32.mrf.mxu0
      %v4272 = vadd.f32 0.0, %v4271
      %v4273 = vpop.f32.mrf.mxu0
      %v4274 = vadd.f32 0.0, %v4273
      %v4275 = vpop.f32.mrf.mxu0
      %v4276 = vpop.f32.mrf.mxu0
      %4277 = vdwg.mxu0
      %v4278 = vadd.f32 %v4097, %v4231
      %v4279 = vadd.f32 %v4099, %v4233
      %v4280 = vadd.f32 %v4138, %v4272
      %v4281 = vadd.f32 %v4140, %v4274
      %v4282 = vpack.c.bf16 %v3630, %v3630
      %v4283 = vld [vmem:[%s11 + $0xc0] sm:$0xff]
      %v4284 = vld [vmem:[%s11 + $0xc8] sm:$0xff]
      %v4285 = vld [vmem:[%s11 + $0xd0] sm:$0xff]
      %v4286 = vld [vmem:[%s11 + $0xd8] sm:$0xff]
      %v4287 = vld [vmem:[%s11 + $0xe0] sm:$0xff]
      %v4288 = vld [vmem:[%s11 + $0xe8] sm:$0xff]
      %v4289 = vld [vmem:[%s11 + $0xf0] sm:$0xff]
      %v4290 = vld [vmem:[%s11 + $0xf8] sm:$0xff]
      %v4299 = vunpack.c.l.b16 %v4283
      %v4300 = vunpack.c.h.b16 %v4283
      %v4301 = vunpack.c.l.b16 %v4284
      %v4302 = vunpack.c.h.b16 %v4284
      %v4303 = vunpack.c.l.b16 %v4285
      %v4304 = vunpack.c.h.b16 %v4285
      %v4305 = vunpack.c.l.b16 %v4286
      %v4306 = vunpack.c.h.b16 %v4286
      %v4307 = vunpack.c.l.b16 %v4287
      %v4308 = vunpack.c.h.b16 %v4287
      %v4309 = vunpack.c.l.b16 %v4288
      %v4310 = vunpack.c.h.b16 %v4288
      %v4311 = vunpack.c.l.b16 %v4289
      %v4312 = vunpack.c.h.b16 %v4289
      %v4313 = vunpack.c.l.b16 %v4290
      %v4314 = vunpack.c.h.b16 %v4290
      %v4315 = vpack.c.b16 %v4303, %v4299
      %v4316 = vpack.c.b16 %v4304, %v4300
      %v4317 = vpack.c.b16 %v4305, %v4301
      %v4318 = vpack.c.b16 %v4306, %v4302
      %v4319 = vpack.c.b16 %v4311, %v4307
      %v4320 = vpack.c.b16 %v4312, %v4308
      %v4321 = vpack.c.b16 %v4313, %v4309
      %v4322 = vpack.c.b16 %v4314, %v4310
      %v4332 = vsel %vm706, %v4282, 0
      %4334 = vmatprep.subr.bf16.mxu0 0
      %4335 = vmatpush1.bf16.msra.mxu0 0
      %4336 = vmatprep.subr.bf16.mxu0 0
      %4337 = vmatpush1.bf16.msra.mxu0 0
      %4338 = vmatprep.subr.bf16.mxu0 0
      %4339 = vmatpush1.bf16.msra.mxu0 0
      %4340 = vmatprep.subr.bf16.mxu0 0
      %4341 = vmatpush1.bf16.msra.mxu0 0
      %4342 = vmatprep.subr.bf16.mxu0 0
      %4343 = vmatpush1.bf16.msra.mxu0 0
      %4344 = vmatprep.subr.bf16.mxu0 0
      %4345 = vmatpush1.bf16.msra.mxu0 0
      %4346 = vmatprep.subr.bf16.mxu0 %v4320
      %4347 = vmatpush1.bf16.msra.mxu0 %v4319
      %4348 = vmatprep.subr.bf16.mxu0 %v4316
      %4349 = vmatpush1.bf16.msra.mxu0 %v4315
      %4350 = vmatprep.subr.bf16.mxu0 0
      %4351 = vmatpush2.bf16.msra.mxu0 0
      %4352 = vmatprep.subr.bf16.mxu0 0
      %4353 = vmatpush2.bf16.msra.mxu0 0
      %4354 = vmatprep.subr.bf16.mxu0 0
      %4355 = vmatpush2.bf16.msra.mxu0 0
      %4356 = vmatprep.subr.bf16.mxu0 0
      %4357 = vmatpush2.bf16.msra.mxu0 0
      %4358 = vmatprep.subr.bf16.mxu0 0
      %4359 = vmatpush2.bf16.msra.mxu0 0
      %4360 = vmatprep.subr.bf16.mxu0 0
      %4361 = vmatpush2.bf16.msra.mxu0 0
      %4362 = vmatprep.subr.bf16.mxu0 0
      %4363 = vmatpush2.bf16.msra.mxu0 0
      %4364 = vmatprep.subr.bf16.mxu0 0
      %4365 = vmatpush2.bf16.msra.mxu0 0
      %4366 = vmatprep.mubr.bf16.mxu0 0
      %4367 = vmatmul.mubr.bf16.gmra.mxu0 %v4332
      %v4368 = vpop.f32.mrf.mxu0
      %v4369 = vadd.f32 0.0, %v4368
      %v4370 = vpop.f32.mrf.mxu0
      %v4371 = vadd.f32 0.0, %v4370
      %v4372 = vpop.f32.mrf.mxu0
      %v4373 = vpop.f32.mrf.mxu0
      %4374 = vdwg.mxu0
      %4375 = vmatprep.subr.bf16.mxu0 0
      %4376 = vmatpush1.bf16.msra.mxu0 0
      %4377 = vmatprep.subr.bf16.mxu0 0
      %4378 = vmatpush1.bf16.msra.mxu0 0
      %4379 = vmatprep.subr.bf16.mxu0 0
      %4380 = vmatpush1.bf16.msra.mxu0 0
      %4381 = vmatprep.subr.bf16.mxu0 0
      %4382 = vmatpush1.bf16.msra.mxu0 0
      %4383 = vmatprep.subr.bf16.mxu0 0
      %4384 = vmatpush1.bf16.msra.mxu0 0
      %4385 = vmatprep.subr.bf16.mxu0 0
      %4386 = vmatpush1.bf16.msra.mxu0 0
      %4387 = vmatprep.subr.bf16.mxu0 %v4322
      %4388 = vmatpush1.bf16.msra.mxu0 %v4321
      %4389 = vmatprep.subr.bf16.mxu0 %v4318
      %4390 = vmatpush1.bf16.msra.mxu0 %v4317
      %4391 = vmatprep.subr.bf16.mxu0 0
      %4392 = vmatpush2.bf16.msra.mxu0 0
      %4393 = vmatprep.subr.bf16.mxu0 0
      %4394 = vmatpush2.bf16.msra.mxu0 0
      %4395 = vmatprep.subr.bf16.mxu0 0
      %4396 = vmatpush2.bf16.msra.mxu0 0
      %4397 = vmatprep.subr.bf16.mxu0 0
      %4398 = vmatpush2.bf16.msra.mxu0 0
      %4399 = vmatprep.subr.bf16.mxu0 0
      %4400 = vmatpush2.bf16.msra.mxu0 0
      %4401 = vmatprep.subr.bf16.mxu0 0
      %4402 = vmatpush2.bf16.msra.mxu0 0
      %4403 = vmatprep.subr.bf16.mxu0 0
      %4404 = vmatpush2.bf16.msra.mxu0 0
      %4405 = vmatprep.subr.bf16.mxu0 0
      %4406 = vmatpush2.bf16.msra.mxu0 0
      %4407 = vmatprep.mubr.bf16.mxu0 0
      %4408 = vmatmul.mubr.bf16.gmra.mxu0 %v4332
      %v4409 = vpop.f32.mrf.mxu0
      %v4410 = vadd.f32 0.0, %v4409
      %v4411 = vpop.f32.mrf.mxu0
      %v4412 = vadd.f32 0.0, %v4411
      %v4413 = vpop.f32.mrf.mxu0
      %v4414 = vpop.f32.mrf.mxu0
      %4415 = vdwg.mxu0
      %v4416 = vadd.f32 %v4278, %v4369
      %v4417 = vadd.f32 %v4279, %v4371
      %v4418 = vadd.f32 %v4280, %v4410
      %v4419 = vadd.f32 %v4281, %v4412
      %v4420 = vpack.c.bf16 %v3710, %v3710
      %v4421 = vld [vmem:[%s11 + $0x100] sm:$0xff]
      %v4422 = vld [vmem:[%s11 + $0x108] sm:$0xff]
      %v4423 = vld [vmem:[%s11 + $0x110] sm:$0xff]
      %v4424 = vld [vmem:[%s11 + $0x118] sm:$0xff]
      %v4425 = vld [vmem:[%s11 + $0x120] sm:$0xff]
      %v4426 = vld [vmem:[%s11 + $0x128] sm:$0xff]
      %v4427 = vld [vmem:[%s11 + $0x130] sm:$0xff]
      %v4428 = vld [vmem:[%s11 + $0x138] sm:$0xff]
      %v4437 = vunpack.c.l.b16 %v4421
      %v4438 = vunpack.c.h.b16 %v4421
      %v4439 = vunpack.c.l.b16 %v4422
      %v4440 = vunpack.c.h.b16 %v4422
      %v4441 = vunpack.c.l.b16 %v4423
      %v4442 = vunpack.c.h.b16 %v4423
      %v4443 = vunpack.c.l.b16 %v4424
      %v4444 = vunpack.c.h.b16 %v4424
      %v4445 = vunpack.c.l.b16 %v4425
      %v4446 = vunpack.c.h.b16 %v4425
      %v4447 = vunpack.c.l.b16 %v4426
      %v4448 = vunpack.c.h.b16 %v4426
      %v4449 = vunpack.c.l.b16 %v4427
      %v4450 = vunpack.c.h.b16 %v4427
      %v4451 = vunpack.c.l.b16 %v4428
      %v4452 = vunpack.c.h.b16 %v4428
      %v4453 = vpack.c.b16 %v4441, %v4437
      %v4454 = vpack.c.b16 %v4442, %v4438
      %v4455 = vpack.c.b16 %v4443, %v4439
      %v4456 = vpack.c.b16 %v4444, %v4440
      %v4457 = vpack.c.b16 %v4449, %v4445
      %v4458 = vpack.c.b16 %v4450, %v4446
      %v4459 = vpack.c.b16 %v4451, %v4447
      %v4460 = vpack.c.b16 %v4452, %v4448
      %v4470 = vsel %vm706, %v4420, 0
      %4472 = vmatprep.subr.bf16.mxu0 0
      %4473 = vmatpush1.bf16.msra.mxu0 0
      %4474 = vmatprep.subr.bf16.mxu0 0
      %4475 = vmatpush1.bf16.msra.mxu0 0
      %4476 = vmatprep.subr.bf16.mxu0 0
      %4477 = vmatpush1.bf16.msra.mxu0 0
      %4478 = vmatprep.subr.bf16.mxu0 0
      %4479 = vmatpush1.bf16.msra.mxu0 0
      %4480 = vmatprep.subr.bf16.mxu0 0
      %4481 = vmatpush1.bf16.msra.mxu0 0
      %4482 = vmatprep.subr.bf16.mxu0 0
      %4483 = vmatpush1.bf16.msra.mxu0 0
      %4484 = vmatprep.subr.bf16.mxu0 %v4458
      %4485 = vmatpush1.bf16.msra.mxu0 %v4457
      %4486 = vmatprep.subr.bf16.mxu0 %v4454
      %4487 = vmatpush1.bf16.msra.mxu0 %v4453
      %4488 = vmatprep.subr.bf16.mxu0 0
      %4489 = vmatpush2.bf16.msra.mxu0 0
      %4490 = vmatprep.subr.bf16.mxu0 0
      %4491 = vmatpush2.bf16.msra.mxu0 0
      %4492 = vmatprep.subr.bf16.mxu0 0
      %4493 = vmatpush2.bf16.msra.mxu0 0
      %4494 = vmatprep.subr.bf16.mxu0 0
      %4495 = vmatpush2.bf16.msra.mxu0 0
      %4496 = vmatprep.subr.bf16.mxu0 0
      %4497 = vmatpush2.bf16.msra.mxu0 0
      %4498 = vmatprep.subr.bf16.mxu0 0
      %4499 = vmatpush2.bf16.msra.mxu0 0
      %4500 = vmatprep.subr.bf16.mxu0 0
      %4501 = vmatpush2.bf16.msra.mxu0 0
      %4502 = vmatprep.subr.bf16.mxu0 0
      %4503 = vmatpush2.bf16.msra.mxu0 0
      %4504 = vmatprep.mubr.bf16.mxu0 0
      %4505 = vmatmul.mubr.bf16.gmra.mxu0 %v4470
      %v4506 = vpop.f32.mrf.mxu0
      %v4507 = vadd.f32 0.0, %v4506
      %v4508 = vpop.f32.mrf.mxu0
      %v4509 = vadd.f32 0.0, %v4508
      %v4510 = vpop.f32.mrf.mxu0
      %v4511 = vpop.f32.mrf.mxu0
      %4512 = vdwg.mxu0
      %4513 = vmatprep.subr.bf16.mxu0 0
      %4514 = vmatpush1.bf16.msra.mxu0 0
      %4515 = vmatprep.subr.bf16.mxu0 0
      %4516 = vmatpush1.bf16.msra.mxu0 0
      %4517 = vmatprep.subr.bf16.mxu0 0
      %4518 = vmatpush1.bf16.msra.mxu0 0
      %4519 = vmatprep.subr.bf16.mxu0 0
      %4520 = vmatpush1.bf16.msra.mxu0 0
      %4521 = vmatprep.subr.bf16.mxu0 0
      %4522 = vmatpush1.bf16.msra.mxu0 0
      %4523 = vmatprep.subr.bf16.mxu0 0
      %4524 = vmatpush1.bf16.msra.mxu0 0
      %4525 = vmatprep.subr.bf16.mxu0 %v4460
      %4526 = vmatpush1.bf16.msra.mxu0 %v4459
      %4527 = vmatprep.subr.bf16.mxu0 %v4456
      %4528 = vmatpush1.bf16.msra.mxu0 %v4455
      %4529 = vmatprep.subr.bf16.mxu0 0
      %4530 = vmatpush2.bf16.msra.mxu0 0
      %4531 = vmatprep.subr.bf16.mxu0 0
      %4532 = vmatpush2.bf16.msra.mxu0 0
      %4533 = vmatprep.subr.bf16.mxu0 0
      %4534 = vmatpush2.bf16.msra.mxu0 0
      %4535 = vmatprep.subr.bf16.mxu0 0
      %4536 = vmatpush2.bf16.msra.mxu0 0
      %4537 = vmatprep.subr.bf16.mxu0 0
      %4538 = vmatpush2.bf16.msra.mxu0 0
      %4539 = vmatprep.subr.bf16.mxu0 0
      %4540 = vmatpush2.bf16.msra.mxu0 0
      %4541 = vmatprep.subr.bf16.mxu0 0
      %4542 = vmatpush2.bf16.msra.mxu0 0
      %4543 = vmatprep.subr.bf16.mxu0 0
      %4544 = vmatpush2.bf16.msra.mxu0 0
      %4545 = vmatprep.mubr.bf16.mxu0 0
      %4546 = vmatmul.mubr.bf16.gmra.mxu0 %v4470
      %v4547 = vpop.f32.mrf.mxu0
      %v4548 = vadd.f32 0.0, %v4547
      %v4549 = vpop.f32.mrf.mxu0
      %v4550 = vadd.f32 0.0, %v4549
      %v4551 = vpop.f32.mrf.mxu0
      %v4552 = vpop.f32.mrf.mxu0
      %4553 = vdwg.mxu0
      %v4554 = vadd.f32 %v4416, %v4507
      %v4555 = vadd.f32 %v4417, %v4509
      %v4556 = vadd.f32 %v4418, %v4548
      %v4557 = vadd.f32 %v4419, %v4550
      %v4558 = vpack.c.bf16 %v3790, %v3790
      %v4559 = vld [vmem:[%s11 + $0x140] sm:$0xff]
      %v4560 = vld [vmem:[%s11 + $0x148] sm:$0xff]
      %v4561 = vld [vmem:[%s11 + $0x150] sm:$0xff]
      %v4562 = vld [vmem:[%s11 + $0x158] sm:$0xff]
      %v4563 = vld [vmem:[%s11 + $0x160] sm:$0xff]
      %v4564 = vld [vmem:[%s11 + $0x168] sm:$0xff]
      %v4565 = vld [vmem:[%s11 + $0x170] sm:$0xff]
      %v4566 = vld [vmem:[%s11 + $0x178] sm:$0xff]
      %v4575 = vunpack.c.l.b16 %v4559
      %v4576 = vunpack.c.h.b16 %v4559
      %v4577 = vunpack.c.l.b16 %v4560
      %v4578 = vunpack.c.h.b16 %v4560
      %v4579 = vunpack.c.l.b16 %v4561
      %v4580 = vunpack.c.h.b16 %v4561
      %v4581 = vunpack.c.l.b16 %v4562
      %v4582 = vunpack.c.h.b16 %v4562
      %v4583 = vunpack.c.l.b16 %v4563
      %v4584 = vunpack.c.h.b16 %v4563
      %v4585 = vunpack.c.l.b16 %v4564
      %v4586 = vunpack.c.h.b16 %v4564
      %v4587 = vunpack.c.l.b16 %v4565
      %v4588 = vunpack.c.h.b16 %v4565
      %v4589 = vunpack.c.l.b16 %v4566
      %v4590 = vunpack.c.h.b16 %v4566
      %v4591 = vpack.c.b16 %v4579, %v4575
      %v4592 = vpack.c.b16 %v4580, %v4576
      %v4593 = vpack.c.b16 %v4581, %v4577
      %v4594 = vpack.c.b16 %v4582, %v4578
      %v4595 = vpack.c.b16 %v4587, %v4583
      %v4596 = vpack.c.b16 %v4588, %v4584
      %v4597 = vpack.c.b16 %v4589, %v4585
      %v4598 = vpack.c.b16 %v4590, %v4586
      %v4608 = vsel %vm706, %v4558, 0
      %4610 = vmatprep.subr.bf16.mxu0 0
      %4611 = vmatpush1.bf16.msra.mxu0 0
      %4612 = vmatprep.subr.bf16.mxu0 0
      %4613 = vmatpush1.bf16.msra.mxu0 0
      %4614 = vmatprep.subr.bf16.mxu0 0
      %4615 = vmatpush1.bf16.msra.mxu0 0
      %4616 = vmatprep.subr.bf16.mxu0 0
      %4617 = vmatpush1.bf16.msra.mxu0 0
      %4618 = vmatprep.subr.bf16.mxu0 0
      %4619 = vmatpush1.bf16.msra.mxu0 0
      %4620 = vmatprep.subr.bf16.mxu0 0
      %4621 = vmatpush1.bf16.msra.mxu0 0
      %4622 = vmatprep.subr.bf16.mxu0 %v4596
      %4623 = vmatpush1.bf16.msra.mxu0 %v4595
      %4624 = vmatprep.subr.bf16.mxu0 %v4592
      %4625 = vmatpush1.bf16.msra.mxu0 %v4591
      %4626 = vmatprep.subr.bf16.mxu0 0
      %4627 = vmatpush2.bf16.msra.mxu0 0
      %4628 = vmatprep.subr.bf16.mxu0 0
      %4629 = vmatpush2.bf16.msra.mxu0 0
      %4630 = vmatprep.subr.bf16.mxu0 0
      %4631 = vmatpush2.bf16.msra.mxu0 0
      %4632 = vmatprep.subr.bf16.mxu0 0
      %4633 = vmatpush2.bf16.msra.mxu0 0
      %4634 = vmatprep.subr.bf16.mxu0 0
      %4635 = vmatpush2.bf16.msra.mxu0 0
      %4636 = vmatprep.subr.bf16.mxu0 0
      %4637 = vmatpush2.bf16.msra.mxu0 0
      %4638 = vmatprep.subr.bf16.mxu0 0
      %4639 = vmatpush2.bf16.msra.mxu0 0
      %4640 = vmatprep.subr.bf16.mxu0 0
      %4641 = vmatpush2.bf16.msra.mxu0 0
      %4642 = vmatprep.mubr.bf16.mxu0 0
      %4643 = vmatmul.mubr.bf16.gmra.mxu0 %v4608
      %v4644 = vpop.f32.mrf.mxu0
      %v4645 = vadd.f32 0.0, %v4644
      %v4646 = vpop.f32.mrf.mxu0
      %v4647 = vadd.f32 0.0, %v4646
      %v4648 = vpop.f32.mrf.mxu0
      %v4649 = vpop.f32.mrf.mxu0
      %4650 = vdwg.mxu0
      %4651 = vmatprep.subr.bf16.mxu0 0
      %4652 = vmatpush1.bf16.msra.mxu0 0
      %4653 = vmatprep.subr.bf16.mxu0 0
      %4654 = vmatpush1.bf16.msra.mxu0 0
      %4655 = vmatprep.subr.bf16.mxu0 0
      %4656 = vmatpush1.bf16.msra.mxu0 0
      %4657 = vmatprep.subr.bf16.mxu0 0
      %4658 = vmatpush1.bf16.msra.mxu0 0
      %4659 = vmatprep.subr.bf16.mxu0 0
      %4660 = vmatpush1.bf16.msra.mxu0 0
      %4661 = vmatprep.subr.bf16.mxu0 0
      %4662 = vmatpush1.bf16.msra.mxu0 0
      %4663 = vmatprep.subr.bf16.mxu0 %v4598
      %4664 = vmatpush1.bf16.msra.mxu0 %v4597
      %4665 = vmatprep.subr.bf16.mxu0 %v4594
      %4666 = vmatpush1.bf16.msra.mxu0 %v4593
      %4667 = vmatprep.subr.bf16.mxu0 0
      %4668 = vmatpush2.bf16.msra.mxu0 0
      %4669 = vmatprep.subr.bf16.mxu0 0
      %4670 = vmatpush2.bf16.msra.mxu0 0
      %4671 = vmatprep.subr.bf16.mxu0 0
      %4672 = vmatpush2.bf16.msra.mxu0 0
      %4673 = vmatprep.subr.bf16.mxu0 0
      %4674 = vmatpush2.bf16.msra.mxu0 0
      %4675 = vmatprep.subr.bf16.mxu0 0
      %4676 = vmatpush2.bf16.msra.mxu0 0
      %4677 = vmatprep.subr.bf16.mxu0 0
      %4678 = vmatpush2.bf16.msra.mxu0 0
      %4679 = vmatprep.subr.bf16.mxu0 0
      %4680 = vmatpush2.bf16.msra.mxu0 0
      %4681 = vmatprep.subr.bf16.mxu0 0
      %4682 = vmatpush2.bf16.msra.mxu0 0
      %4683 = vmatprep.mubr.bf16.mxu0 0
      %4684 = vmatmul.mubr.bf16.gmra.mxu0 %v4608
      %v4685 = vpop.f32.mrf.mxu0
      %v4686 = vadd.f32 0.0, %v4685
      %v4687 = vpop.f32.mrf.mxu0
      %v4688 = vadd.f32 0.0, %v4687
      %v4689 = vpop.f32.mrf.mxu0
      %v4690 = vpop.f32.mrf.mxu0
      %4691 = vdwg.mxu0
      %v4692 = vadd.f32 %v4554, %v4645
      %v4693 = vadd.f32 %v4555, %v4647
      %v4694 = vadd.f32 %v4556, %v4686
      %v4695 = vadd.f32 %v4557, %v4688
      %v4696 = vpack.c.bf16 %v3870, %v3870
      %v4697 = vld [vmem:[%s11 + $0x180] sm:$0xff]
      %v4698 = vld [vmem:[%s11 + $0x188] sm:$0xff]
      %v4699 = vld [vmem:[%s11 + $0x190] sm:$0xff]
      %v4700 = vld [vmem:[%s11 + $0x198] sm:$0xff]
      %v4701 = vld [vmem:[%s11 + $0x1a0] sm:$0xff]
      %v4702 = vld [vmem:[%s11 + $0x1a8] sm:$0xff]
      %v4703 = vld [vmem:[%s11 + $0x1b0] sm:$0xff]
      %v4704 = vld [vmem:[%s11 + $0x1b8] sm:$0xff]
      %v4713 = vunpack.c.l.b16 %v4697
      %v4714 = vunpack.c.h.b16 %v4697
      %v4715 = vunpack.c.l.b16 %v4698
      %v4716 = vunpack.c.h.b16 %v4698
      %v4717 = vunpack.c.l.b16 %v4699
      %v4718 = vunpack.c.h.b16 %v4699
      %v4719 = vunpack.c.l.b16 %v4700
      %v4720 = vunpack.c.h.b16 %v4700
      %v4721 = vunpack.c.l.b16 %v4701
      %v4722 = vunpack.c.h.b16 %v4701
      %v4723 = vunpack.c.l.b16 %v4702
      %v4724 = vunpack.c.h.b16 %v4702
      %v4725 = vunpack.c.l.b16 %v4703
      %v4726 = vunpack.c.h.b16 %v4703
      %v4727 = vunpack.c.l.b16 %v4704
      %v4728 = vunpack.c.h.b16 %v4704
      %v4729 = vpack.c.b16 %v4717, %v4713
      %v4730 = vpack.c.b16 %v4718, %v4714
      %v4731 = vpack.c.b16 %v4719, %v4715
      %v4732 = vpack.c.b16 %v4720, %v4716
      %v4733 = vpack.c.b16 %v4725, %v4721
      %v4734 = vpack.c.b16 %v4726, %v4722
      %v4735 = vpack.c.b16 %v4727, %v4723
      %v4736 = vpack.c.b16 %v4728, %v4724
      %v4746 = vsel %vm706, %v4696, 0
      %4748 = vmatprep.subr.bf16.mxu0 0
      %4749 = vmatpush1.bf16.msra.mxu0 0
      %4750 = vmatprep.subr.bf16.mxu0 0
      %4751 = vmatpush1.bf16.msra.mxu0 0
      %4752 = vmatprep.subr.bf16.mxu0 0
      %4753 = vmatpush1.bf16.msra.mxu0 0
      %4754 = vmatprep.subr.bf16.mxu0 0
      %4755 = vmatpush1.bf16.msra.mxu0 0
      %4756 = vmatprep.subr.bf16.mxu0 0
      %4757 = vmatpush1.bf16.msra.mxu0 0
      %4758 = vmatprep.subr.bf16.mxu0 0
      %4759 = vmatpush1.bf16.msra.mxu0 0
      %4760 = vmatprep.subr.bf16.mxu0 %v4734
      %4761 = vmatpush1.bf16.msra.mxu0 %v4733
      %4762 = vmatprep.subr.bf16.mxu0 %v4730
      %4763 = vmatpush1.bf16.msra.mxu0 %v4729
      %4764 = vmatprep.subr.bf16.mxu0 0
      %4765 = vmatpush2.bf16.msra.mxu0 0
      %4766 = vmatprep.subr.bf16.mxu0 0
      %4767 = vmatpush2.bf16.msra.mxu0 0
      %4768 = vmatprep.subr.bf16.mxu0 0
      %4769 = vmatpush2.bf16.msra.mxu0 0
      %4770 = vmatprep.subr.bf16.mxu0 0
      %4771 = vmatpush2.bf16.msra.mxu0 0
      %4772 = vmatprep.subr.bf16.mxu0 0
      %4773 = vmatpush2.bf16.msra.mxu0 0
      %4774 = vmatprep.subr.bf16.mxu0 0
      %4775 = vmatpush2.bf16.msra.mxu0 0
      %4776 = vmatprep.subr.bf16.mxu0 0
      %4777 = vmatpush2.bf16.msra.mxu0 0
      %4778 = vmatprep.subr.bf16.mxu0 0
      %4779 = vmatpush2.bf16.msra.mxu0 0
      %4780 = vmatprep.mubr.bf16.mxu0 0
      %4781 = vmatmul.mubr.bf16.gmra.mxu0 %v4746
      %v4782 = vpop.f32.mrf.mxu0
      %v4783 = vadd.f32 0.0, %v4782
      %v4784 = vpop.f32.mrf.mxu0
      %v4785 = vadd.f32 0.0, %v4784
      %v4786 = vpop.f32.mrf.mxu0
      %v4787 = vpop.f32.mrf.mxu0
      %4788 = vdwg.mxu0
      %4789 = vmatprep.subr.bf16.mxu0 0
      %4790 = vmatpush1.bf16.msra.mxu0 0
      %4791 = vmatprep.subr.bf16.mxu0 0
      %4792 = vmatpush1.bf16.msra.mxu0 0
      %4793 = vmatprep.subr.bf16.mxu0 0
      %4794 = vmatpush1.bf16.msra.mxu0 0
      %4795 = vmatprep.subr.bf16.mxu0 0
      %4796 = vmatpush1.bf16.msra.mxu0 0
      %4797 = vmatprep.subr.bf16.mxu0 0
      %4798 = vmatpush1.bf16.msra.mxu0 0
      %4799 = vmatprep.subr.bf16.mxu0 0
      %4800 = vmatpush1.bf16.msra.mxu0 0
      %4801 = vmatprep.subr.bf16.mxu0 %v4736
      %4802 = vmatpush1.bf16.msra.mxu0 %v4735
      %4803 = vmatprep.subr.bf16.mxu0 %v4732
      %4804 = vmatpush1.bf16.msra.mxu0 %v4731
      %4805 = vmatprep.subr.bf16.mxu0 0
      %4806 = vmatpush2.bf16.msra.mxu0 0
      %4807 = vmatprep.subr.bf16.mxu0 0
      %4808 = vmatpush2.bf16.msra.mxu0 0
      %4809 = vmatprep.subr.bf16.mxu0 0
      %4810 = vmatpush2.bf16.msra.mxu0 0
      %4811 = vmatprep.subr.bf16.mxu0 0
      %4812 = vmatpush2.bf16.msra.mxu0 0
      %4813 = vmatprep.subr.bf16.mxu0 0
      %4814 = vmatpush2.bf16.msra.mxu0 0
      %4815 = vmatprep.subr.bf16.mxu0 0
      %4816 = vmatpush2.bf16.msra.mxu0 0
      %4817 = vmatprep.subr.bf16.mxu0 0
      %4818 = vmatpush2.bf16.msra.mxu0 0
      %4819 = vmatprep.subr.bf16.mxu0 0
      %4820 = vmatpush2.bf16.msra.mxu0 0
      %4821 = vmatprep.mubr.bf16.mxu0 0
      %4822 = vmatmul.mubr.bf16.gmra.mxu0 %v4746
      %v4823 = vpop.f32.mrf.mxu0
      %v4824 = vadd.f32 0.0, %v4823
      %v4825 = vpop.f32.mrf.mxu0
      %v4826 = vadd.f32 0.0, %v4825
      %v4827 = vpop.f32.mrf.mxu0
      %v4828 = vpop.f32.mrf.mxu0
      %4829 = vdwg.mxu0
      %v4830 = vadd.f32 %v4692, %v4783
      %v4831 = vadd.f32 %v4693, %v4785
      %v4832 = vadd.f32 %v4694, %v4824
      %v4833 = vadd.f32 %v4695, %v4826
      %v4834 = vld [vmem:[%s12] sm:$0xf]
      %v4836 = vlaneseq
      %v4837 = vshrl.u32 %v4836, 7
      %v4838 = vsub.s32 0, %v4837
      %v4839 = vrot.slane %v4834, %v4838
      %v4840 = vlaneseq
      %v4841 = vshrl.u32 %v4840, 7
      %v4842 = vsub.s32 1, %v4841
      %v4843 = vrot.slane %v4834, %v4842
      %v4844 = vlaneseq
      %v4845 = vshrl.u32 %v4844, 7
      %v4846 = vsub.s32 2, %v4845
      %v4847 = vrot.slane %v4834, %v4846
      %v4848 = vlaneseq
      %v4849 = vshrl.u32 %v4848, 7
      %v4850 = vsub.s32 3, %v4849
      %v4851 = vrot.slane %v4834, %v4850
      %v4856 = vadd.f32 %v4830, %v4839
      %v4857 = vadd.f32 %v4831, %v4843
      %v4858 = vadd.f32 %v4832, %v4847
      %v4859 = vadd.f32 %v4833, %v4851
      %v4860 = vmax.f32 %v4856, 0.0
      %v4861 = vmax.f32 %v4857, 0.0
      %v4862 = vmax.f32 %v4858, 0.0
      %v4863 = vmax.f32 %v4859, 0.0
      %v4864 = vpack.c.bf16 %v4860, %v4860
      %v4865 = vpack.c.bf16 %v4861, %v4861
      %v4866 = vpack.c.bf16 %v4862, %v4862
      %v4867 = vpack.c.bf16 %v4863, %v4863
      %v4868 = vld [vmem:[%s13] sm:$0xf]
      %v4869 = vld [vmem:[%s13 + $0x4] sm:$0xf]
      %v4870 = vld [vmem:[%s13 + $0x8] sm:$0xf]
      %v4871 = vld [vmem:[%s13 + $0xc] sm:$0xf]
      %v4872 = vld [vmem:[%s13 + $0x10] sm:$0xf]
      %v4873 = vld [vmem:[%s13 + $0x14] sm:$0xf]
      %v4874 = vld [vmem:[%s13 + $0x18] sm:$0xf]
      %v4875 = vld [vmem:[%s13 + $0x1c] sm:$0xf]
      %v4876 = vld [vmem:[%s13 + $0x20] sm:$0xf]
      %v4877 = vld [vmem:[%s13 + $0x24] sm:$0xf]
      %v4878 = vld [vmem:[%s13 + $0x28] sm:$0xf]
      %v4879 = vld [vmem:[%s13 + $0x2c] sm:$0xf]
      %v4880 = vld [vmem:[%s13 + $0x30] sm:$0xf]
      %v4881 = vld [vmem:[%s13 + $0x34] sm:$0xf]
      %v4882 = vld [vmem:[%s13 + $0x38] sm:$0xf]
      %v4883 = vld [vmem:[%s13 + $0x3c] sm:$0xf]
      %v4884 = vld [vmem:[%s13 + $0x40] sm:$0xf]
      %v4885 = vld [vmem:[%s13 + $0x44] sm:$0xf]
      %v4886 = vld [vmem:[%s13 + $0x48] sm:$0xf]
      %v4887 = vld [vmem:[%s13 + $0x4c] sm:$0xf]
      %v4888 = vld [vmem:[%s13 + $0x50] sm:$0xf]
      %v4889 = vld [vmem:[%s13 + $0x54] sm:$0xf]
      %v4890 = vld [vmem:[%s13 + $0x58] sm:$0xf]
      %v4891 = vld [vmem:[%s13 + $0x5c] sm:$0xf]
      %v4892 = vld [vmem:[%s13 + $0x60] sm:$0xf]
      %v4893 = vld [vmem:[%s13 + $0x64] sm:$0xf]
      %v4894 = vld [vmem:[%s13 + $0x68] sm:$0xf]
      %v4895 = vld [vmem:[%s13 + $0x6c] sm:$0xf]
      %v4896 = vld [vmem:[%s13 + $0x70] sm:$0xf]
      %v4897 = vld [vmem:[%s13 + $0x74] sm:$0xf]
      %v4898 = vld [vmem:[%s13 + $0x78] sm:$0xf]
      %v4899 = vld [vmem:[%s13 + $0x7c] sm:$0xf]
      %v4900 = vld [vmem:[%s13 + $0x80] sm:$0xf]
      %v4901 = vld [vmem:[%s13 + $0x84] sm:$0xf]
      %v4902 = vld [vmem:[%s13 + $0x88] sm:$0xf]
      %v4903 = vld [vmem:[%s13 + $0x8c] sm:$0xf]
      %v4904 = vld [vmem:[%s13 + $0x90] sm:$0xf]
      %v4905 = vld [vmem:[%s13 + $0x94] sm:$0xf]
      %v4906 = vld [vmem:[%s13 + $0x98] sm:$0xf]
      %v4907 = vld [vmem:[%s13 + $0x9c] sm:$0xf]
      %v4908 = vld [vmem:[%s13 + $0xa0] sm:$0xf]
      %v4909 = vld [vmem:[%s13 + $0xa4] sm:$0xf]
      %v4910 = vld [vmem:[%s13 + $0xa8] sm:$0xf]
      %v4911 = vld [vmem:[%s13 + $0xac] sm:$0xf]
      %v4912 = vld [vmem:[%s13 + $0xb0] sm:$0xf]
      %v4913 = vld [vmem:[%s13 + $0xb4] sm:$0xf]
      %v4914 = vld [vmem:[%s13 + $0xb8] sm:$0xf]
      %v4915 = vld [vmem:[%s13 + $0xbc] sm:$0xf]
      %v4916 = vld [vmem:[%s13 + $0xc0] sm:$0xf]
      %v4917 = vld [vmem:[%s13 + $0xc4] sm:$0xf]
      %v4918 = vld [vmem:[%s13 + $0xc8] sm:$0xf]
      %v4919 = vld [vmem:[%s13 + $0xcc] sm:$0xf]
      %v4920 = vld [vmem:[%s13 + $0xd0] sm:$0xf]
      %v4921 = vld [vmem:[%s13 + $0xd4] sm:$0xf]
      %v4922 = vld [vmem:[%s13 + $0xd8] sm:$0xf]
      %v4923 = vld [vmem:[%s13 + $0xdc] sm:$0xf]
      %v4924 = vld [vmem:[%s13 + $0xe0] sm:$0xf]
      %v4925 = vld [vmem:[%s13 + $0xe4] sm:$0xf]
      %v4926 = vld [vmem:[%s13 + $0xe8] sm:$0xf]
      %v4927 = vld [vmem:[%s13 + $0xec] sm:$0xf]
      %v4928 = vld [vmem:[%s13 + $0xf0] sm:$0xf]
      %v4929 = vld [vmem:[%s13 + $0xf4] sm:$0xf]
      %v4930 = vld [vmem:[%s13 + $0xf8] sm:$0xf]
      %v4931 = vld [vmem:[%s13 + $0xfc] sm:$0xf]
      %v4932 = vld [vmem:[#allocation2] sm:$0x1]
      %v4934 = vlaneseq
      %v4935 = vshrl.u32 %v4934, 7
      %v4936 = vsub.s32 0, %v4935
      %v4937 = vrot.slane %v4932, %v4936
      %v5003 = vunpack.c.l.b16 %v4868
      %v5004 = vunpack.c.l.b16 %v4869
      %v5005 = vunpack.c.l.b16 %v4870
      %v5006 = vunpack.c.l.b16 %v4871
      %v5007 = vunpack.c.l.b16 %v4872
      %v5008 = vunpack.c.l.b16 %v4873
      %v5009 = vunpack.c.l.b16 %v4874
      %v5010 = vunpack.c.l.b16 %v4875
      %v5011 = vunpack.c.l.b16 %v4876
      %v5012 = vunpack.c.l.b16 %v4877
      %v5013 = vunpack.c.l.b16 %v4878
      %v5014 = vunpack.c.l.b16 %v4879
      %v5015 = vunpack.c.l.b16 %v4880
      %v5016 = vunpack.c.l.b16 %v4881
      %v5017 = vunpack.c.l.b16 %v4882
      %v5018 = vunpack.c.l.b16 %v4883
      %v5019 = vunpack.c.l.b16 %v4884
      %v5020 = vunpack.c.l.b16 %v4885
      %v5021 = vunpack.c.l.b16 %v4886
      %v5022 = vunpack.c.l.b16 %v4887
      %v5023 = vunpack.c.l.b16 %v4888
      %v5024 = vunpack.c.l.b16 %v4889
      %v5025 = vunpack.c.l.b16 %v4890
      %v5026 = vunpack.c.l.b16 %v4891
      %v5027 = vunpack.c.l.b16 %v4892
      %v5028 = vunpack.c.l.b16 %v4893
      %v5029 = vunpack.c.l.b16 %v4894
      %v5030 = vunpack.c.l.b16 %v4895
      %v5031 = vunpack.c.l.b16 %v4896
      %v5032 = vunpack.c.l.b16 %v4897
      %v5033 = vunpack.c.l.b16 %v4898
      %v5034 = vunpack.c.l.b16 %v4899
      %v5035 = vunpack.c.l.b16 %v4900
      %v5036 = vunpack.c.l.b16 %v4901
      %v5037 = vunpack.c.l.b16 %v4902
      %v5038 = vunpack.c.l.b16 %v4903
      %v5039 = vunpack.c.l.b16 %v4904
      %v5040 = vunpack.c.l.b16 %v4905
      %v5041 = vunpack.c.l.b16 %v4906
      %v5042 = vunpack.c.l.b16 %v4907
      %v5043 = vunpack.c.l.b16 %v4908
      %v5044 = vunpack.c.l.b16 %v4909
      %v5045 = vunpack.c.l.b16 %v4910
      %v5046 = vunpack.c.l.b16 %v4911
      %v5047 = vunpack.c.l.b16 %v4912
      %v5048 = vunpack.c.l.b16 %v4913
      %v5049 = vunpack.c.l.b16 %v4914
      %v5050 = vunpack.c.l.b16 %v4915
      %v5051 = vunpack.c.l.b16 %v4916
      %v5052 = vunpack.c.l.b16 %v4917
      %v5053 = vunpack.c.l.b16 %v4918
      %v5054 = vunpack.c.l.b16 %v4919
      %v5055 = vunpack.c.l.b16 %v4920
      %v5056 = vunpack.c.l.b16 %v4921
      %v5057 = vunpack.c.l.b16 %v4922
      %v5058 = vunpack.c.l.b16 %v4923
      %v5059 = vunpack.c.l.b16 %v4924
      %v5060 = vunpack.c.l.b16 %v4925
      %v5061 = vunpack.c.l.b16 %v4926
      %v5062 = vunpack.c.l.b16 %v4927
      %v5063 = vunpack.c.l.b16 %v4928
      %v5064 = vunpack.c.l.b16 %v4929
      %v5065 = vunpack.c.l.b16 %v4930
      %v5066 = vunpack.c.l.b16 %v4931
      %v5067 = vpack.c.b16 %v5004, %v5003
      %v5068 = vpack.c.b16 %v5006, %v5005
      %v5069 = vpack.c.b16 %v5008, %v5007
      %v5070 = vpack.c.b16 %v5010, %v5009
      %v5071 = vpack.c.b16 %v5012, %v5011
      %v5072 = vpack.c.b16 %v5014, %v5013
      %v5073 = vpack.c.b16 %v5016, %v5015
      %v5074 = vpack.c.b16 %v5018, %v5017
      %v5075 = vpack.c.b16 %v5020, %v5019
      %v5076 = vpack.c.b16 %v5022, %v5021
      %v5077 = vpack.c.b16 %v5024, %v5023
      %v5078 = vpack.c.b16 %v5026, %v5025
      %v5079 = vpack.c.b16 %v5028, %v5027
      %v5080 = vpack.c.b16 %v5030, %v5029
      %v5081 = vpack.c.b16 %v5032, %v5031
      %v5082 = vpack.c.b16 %v5034, %v5033
      %v5083 = vpack.c.b16 %v5036, %v5035
      %v5084 = vpack.c.b16 %v5038, %v5037
      %v5085 = vpack.c.b16 %v5040, %v5039
      %v5086 = vpack.c.b16 %v5042, %v5041
      %v5087 = vpack.c.b16 %v5044, %v5043
      %v5088 = vpack.c.b16 %v5046, %v5045
      %v5089 = vpack.c.b16 %v5048, %v5047
      %v5090 = vpack.c.b16 %v5050, %v5049
      %v5091 = vpack.c.b16 %v5052, %v5051
      %v5092 = vpack.c.b16 %v5054, %v5053
      %v5093 = vpack.c.b16 %v5056, %v5055
      %v5094 = vpack.c.b16 %v5058, %v5057
      %v5095 = vpack.c.b16 %v5060, %v5059
      %v5096 = vpack.c.b16 %v5062, %v5061
      %v5097 = vpack.c.b16 %v5064, %v5063
      %v5098 = vpack.c.b16 %v5066, %v5065
      %5131 = vmatprep.subr.bf16.mxu0 0
      %5132 = vmatpush1.bf16.msra.mxu0 %v5074
      %5133 = vmatprep.subr.bf16.mxu0 0
      %5134 = vmatpush1.bf16.msra.mxu0 %v5073
      %5135 = vmatprep.subr.bf16.mxu0 0
      %5136 = vmatpush1.bf16.msra.mxu0 %v5072
      %5137 = vmatprep.subr.bf16.mxu0 0
      %5138 = vmatpush1.bf16.msra.mxu0 %v5071
      %5139 = vmatprep.subr.bf16.mxu0 0
      %5140 = vmatpush1.bf16.msra.mxu0 %v5070
      %5141 = vmatprep.subr.bf16.mxu0 0
      %5142 = vmatpush1.bf16.msra.mxu0 %v5069
      %5143 = vmatprep.subr.bf16.mxu0 0
      %5144 = vmatpush1.bf16.msra.mxu0 %v5068
      %5145 = vmatprep.subr.bf16.mxu0 0
      %5146 = vmatpush1.bf16.msra.mxu0 %v5067
      %5147 = vmatprep.subr.bf16.mxu0 0
      %5148 = vmatpush2.bf16.msra.mxu0 %v5082
      %5149 = vmatprep.subr.bf16.mxu0 0
      %5150 = vmatpush2.bf16.msra.mxu0 %v5081
      %5151 = vmatprep.subr.bf16.mxu0 0
      %5152 = vmatpush2.bf16.msra.mxu0 %v5080
      %5153 = vmatprep.subr.bf16.mxu0 0
      %5154 = vmatpush2.bf16.msra.mxu0 %v5079
      %5155 = vmatprep.subr.bf16.mxu0 0
      %5156 = vmatpush2.bf16.msra.mxu0 %v5078
      %5157 = vmatprep.subr.bf16.mxu0 0
      %5158 = vmatpush2.bf16.msra.mxu0 %v5077
      %5159 = vmatprep.subr.bf16.mxu0 0
      %5160 = vmatpush2.bf16.msra.mxu0 %v5076
      %5161 = vmatprep.subr.bf16.mxu0 0
      %5162 = vmatpush2.bf16.msra.mxu0 %v5075
      %5163 = vmatprep.mubr.bf16.mxu0 %v4865
      %5164 = vmatmul.mubr.bf16.gmra.mxu0 %v4864
      %v5165 = vpop.f32.mrf.mxu0
      %v5166 = vadd.f32 %v4937, %v5165
      %v5167 = vpop.f32.mrf.mxu0
      %v5168 = vpop.f32.mrf.mxu0
      %v5169 = vpop.f32.mrf.mxu0
      %5170 = vdwg.mxu0
      %5171 = vmatprep.subr.bf16.mxu0 0
      %5172 = vmatpush1.bf16.msra.mxu0 %v5090
      %5173 = vmatprep.subr.bf16.mxu0 0
      %5174 = vmatpush1.bf16.msra.mxu0 %v5089
      %5175 = vmatprep.subr.bf16.mxu0 0
      %5176 = vmatpush1.bf16.msra.mxu0 %v5088
      %5177 = vmatprep.subr.bf16.mxu0 0
      %5178 = vmatpush1.bf16.msra.mxu0 %v5087
      %5179 = vmatprep.subr.bf16.mxu0 0
      %5180 = vmatpush1.bf16.msra.mxu0 %v5086
      %5181 = vmatprep.subr.bf16.mxu0 0
      %5182 = vmatpush1.bf16.msra.mxu0 %v5085
      %5183 = vmatprep.subr.bf16.mxu0 0
      %5184 = vmatpush1.bf16.msra.mxu0 %v5084
      %5185 = vmatprep.subr.bf16.mxu0 0
      %5186 = vmatpush1.bf16.msra.mxu0 %v5083
      %5187 = vmatprep.subr.bf16.mxu0 0
      %5188 = vmatpush2.bf16.msra.mxu0 %v5098
      %5189 = vmatprep.subr.bf16.mxu0 0
      %5190 = vmatpush2.bf16.msra.mxu0 %v5097
      %5191 = vmatprep.subr.bf16.mxu0 0
      %5192 = vmatpush2.bf16.msra.mxu0 %v5096
      %5193 = vmatprep.subr.bf16.mxu0 0
      %5194 = vmatpush2.bf16.msra.mxu0 %v5095
      %5195 = vmatprep.subr.bf16.mxu0 0
      %5196 = vmatpush2.bf16.msra.mxu0 %v5094
      %5197 = vmatprep.subr.bf16.mxu0 0
      %5198 = vmatpush2.bf16.msra.mxu0 %v5093
      %5199 = vmatprep.subr.bf16.mxu0 0
      %5200 = vmatpush2.bf16.msra.mxu0 %v5092
      %5201 = vmatprep.subr.bf16.mxu0 0
      %5202 = vmatpush2.bf16.msra.mxu0 %v5091
      %5203 = vmatprep.mubr.bf16.mxu0 %v4867
      %5204 = vmatmul.mubr.bf16.gmra.mxu0 %v4866
      %v5205 = vpop.f32.mrf.mxu0
      %v5206 = vadd.f32 %v5166, %v5205
      %v5207 = vpop.f32.mrf.mxu0
      %v5208 = vpop.f32.mrf.mxu0
      %v5209 = vpop.f32.mrf.mxu0
      %5210 = vdwg.mxu0
      %vm5211 = vcmask 1024
      %5212 = vst.msk [vmem:[%s518] sm:$0x3] %vm5211, %v5206
      %p5213 = scmp.lt.s32.totalorder %s28, 1
      %s5214 = scalar_select %p5213, %s28, 1
      %s5215 = smul.addr %s5214, 2
      %s5216 = scalar_lea.vmem %s15, %s5215
      // Predicated region
      $region81: #{tpu_custom_call.1} parent=79 // pred_check
        %p5217 = pneg %p371
      $region82: #{tpu_custom_call.1} parent=79 // pred_check_branch
        %5219 = sbr.rel (%p5217) target = $region84
      $region83: #{tpu_custom_call.1} parent=79 // pred_region
        _
      $region84: #{tpu_custom_call.1} parent=79 // pred_fallthru
        _
    $region80: #{tpu_custom_call.1} parent=5 // pred_fallthru
      _
    %p5220 = scmp.le.s32.totalorder 2, %s23
    // Predicated region
    $region85: #{tpu_custom_call.1} parent=5 // pred_check
      %p5221 = pneg %p5220
    $region86: #{tpu_custom_call.1} parent=5 // pred_check_branch
      %5223 = sbr.rel (%p5221) target = $region88
    $region87: #{tpu_custom_call.1} parent=5 // pred_region
      %s5224 = ssub.s32 %s23, 2
      // Predicated region
      $region89: #{tpu_custom_call.1} parent=87 // pred_check
        %p5225 = pneg %p377
      $region90: #{tpu_custom_call.1} parent=87 // pred_check_branch
        %5227 = sbr.rel (%p5225) target = $region92
      $region91: #{tpu_custom_call.1} parent=87 // pred_region
        %p5228 = scmp.lt.s32.totalorder %s29, 1
        %s5229 = scalar_select %p5228, %s29, 1
        %s5230 = smul.addr %s5229, 2
        %s5231 = scalar_lea.vmem %s15, %s5230
      $region92: #{tpu_custom_call.1} parent=87 // pred_fallthru
        _
    $region88: #{tpu_custom_call.1} parent=5 // pred_fallthru
      _
  $region6: #{tpu_custom_call.1} parent=0 // loop_footer
    %s27 = sadd.s32 1, %s23
  $region7: #{tpu_custom_call.1} parent=0 // loop_footer_branch
    %22 = sbr.rel target = $region3
  $region8: #{tpu_custom_call.1} parent=0 // loop_exit
    _

// kernel: tpu_custom_call.1
$region0: #{tpu_custom_call.1}
  #allocation0 [shape = 'u32[]', space=smem, size = 0x4, offset = 0x4, fixed_abs, tag = 'smem constant byte address 0x4 - core index']
  #allocation1 [shape = 'u32[144,128]{1,0:T(1,128)}', space=vmem, size = 0x12000, scoped, tag = 'internal scratch']
  #allocation2 [shape = 'f32[160,9]{1,0:T(8,128)}', space=vmem, size = 0x14000, scoped, tag = 'scratch operand']
  #allocation3 [shape = 'f32[1,1]{1,0:T(1,128)S(1)}', space=vmem, size = 0x200, scoped, tag = 'scoped memory for tpu_custom_call.1']
  %s0 = inlined_call_operand.vmem [shape: bf16[256,32], index: 0, kind: input, shape index: {}]
  %s1 = inlined_call_operand.vmem [shape: bf16[256,32], index: 1, kind: input, shape index: {}]
  %s2 = inlined_call_operand.vmem [shape: bf16[128,9], index: 2, kind: input, shape index: {}]
  %s3 = inlined_call_operand.vmem [shape: bf16[2,128], index: 3, kind: input, shape index: {}]
  %s4 = inlined_call_operand.vmem [shape: bf16[128,2], index: 4, kind: input, shape index: {}]
  %s5 = inlined_call_operand.vmem [shape: bf16[6,128], index: 5, kind: input, shape index: {}]
  %s6 = inlined_call_operand.vmem [shape: bf16[32,9], index: 6, kind: input, shape index: {}]
  %s7 = inlined_call_operand.vmem [shape: bf16[32,48], index: 7, kind: input, shape index: {}]
  %s8 = inlined_call_operand.vmem [shape: f32[1,48], index: 8, kind: input, shape index: {}]
  %s9 = inlined_call_operand.vmem [shape: f32[48,4], index: 9, kind: input, shape index: {}]
  %s10 = inlined_call_operand.vmem [shape: f32[1,4], index: 10, kind: input, shape index: {}]
  %s11 = inlined_call_operand.vmem [shape: bf16[224,512], index: 11, kind: input, shape index: {}]
  %s12 = inlined_call_operand.vmem [shape: f32[1,512], index: 12, kind: input, shape index: {}]
  %s13 = inlined_call_operand.vmem [shape: bf16[512,1], index: 13, kind: input, shape index: {}]
  %s14 = inlined_call_operand.<no memory space> [shape: f32[1,1], index: 14, kind: input, shape index: {}]
  %s15 = inlined_call_operand.vmem [shape: f32[2,2,1], index: 15, kind: output, shape index: {}]
  %s16 = sld [smem:[#allocation0]]
  $region93: #{tpu_custom_call.1} parent=0
    _
  %s18 = ssub.s32 1, %s16
  %s19 = scalar_select 0, %s18, %s16
  %v20 = vstv %s14
  %21 = vst [vmem:[#allocation3] sm:$0x1] %v20
  loop: start=0, step=1, limit=4
  $region2: #{tpu_custom_call.1} parent=0 // loop_pre_header
    _
  $region3: #{tpu_custom_call.1} parent=0 // loop_header
    %s23 = sphi 0, %s27
    %p24 = scmp.ge.s32.totalorder %s23, 4
    %s33 = sphi 0, %s35
    %s36 = sphi 0, %s33
    %s37 = sphi 0, %s36
    %s53 = sphi 0, %s37
    %s59 = sphi 0, %s61
    %s62 = sphi 0, %s59
    %s63 = sphi 0, %s62
    %s79 = sphi 0, %s63
    %s83 = sphi 0, %s83
    %s85 = sphi 0, %s83
    %s86 = sphi 0, %s85
    %s100 = sphi 0, %s86
    %s104 = sphi 0, %s104
    %s106 = sphi 0, %s104
    %s107 = sphi 0, %s106
    %s121 = sphi 0, %s107
    %s125 = sphi 0, %s125
    %s127 = sphi 0, %s125
    %s128 = sphi 0, %s127
    %s142 = sphi 0, %s128
    %s146 = sphi 0, %s146
    %s148 = sphi 0, %s146
    %s149 = sphi 0, %s148
    %s163 = sphi 0, %s149
    %s167 = sphi 0, %s167
    %s169 = sphi 0, %s167
    %s170 = sphi 0, %s169
    %s184 = sphi 0, %s170
    %s188 = sphi 0, %s188
    %s190 = sphi 0, %s188
    %s191 = sphi 0, %s190
    %s205 = sphi 0, %s191
    %s209 = sphi 0, %s209
    %s211 = sphi 0, %s209
    %s212 = sphi 0, %s211
    %s226 = sphi 0, %s212
    %s230 = sphi 0, %s230
    %s232 = sphi 0, %s230
    %s233 = sphi 0, %s232
    %s247 = sphi 0, %s233
    %s251 = sphi 0, %s251
    %s253 = sphi 0, %s251
    %s254 = sphi 0, %s253
    %s268 = sphi 0, %s254
    %s272 = sphi 0, %s272
    %s274 = sphi 0, %s272
    %s275 = sphi 0, %s274
    %s289 = sphi 0, %s275
    %s293 = sphi 0, %s293
    %s295 = sphi 0, %s293
    %s296 = sphi 0, %s295
    %s310 = sphi 0, %s296
    %s314 = sphi 0, %s314
    %s316 = sphi 0, %s314
    %s317 = sphi 0, %s316
    %s331 = sphi 0, %s317
    %s335 = sphi 0, %s335
    %s337 = sphi 0, %s335
    %s338 = sphi 0, %s337
    %s352 = sphi 0, %s338
    %s358 = sphi 0, %s360
    %s361 = sphi 0, %s358
    %s362 = sphi 0, %s361
    %s378 = sphi 0, %s362
  $region4: #{tpu_custom_call.1} parent=0 // loop_header_branch
    %26 = sbr.rel (%p24) target = $region8
  $region5: #{tpu_custom_call.1} parent=0 // loop_body
    %s28 = ssub.s32 %s23, 1
    %s29 = ssub.s32 %s23, 2
    %s30 = sadd.s32 %s23, 1
    %s31 = ssub.s32 %s23, %s30
    %p32 = scmp.eq.s32.totalorder %s31, 0
    %s34 = sadd.s32 %s33, 1
    %s35 = scalar_select %p32, %s33, %s34
    %p38 = pneg %p32
    %p39 = scmp.eq.s32.totalorder %s23, 1
    %p40 = por %p38, %p39
    %p41 = scmp.ne.s32.totalorder %s33, %s36
    %p42 = scmp.eq.s32.totalorder %s23, 0
    %p43 = por %p41, %p42
    %p44 = scmp.ne.s32.totalorder %s33, %s36
    %p45 = scmp.eq.s32.totalorder %s28, 1
    %p46 = por %p44, %p45
    %p47 = scmp.ne.s32.totalorder %s36, %s37
    %p48 = scmp.eq.s32.totalorder %s28, 0
    %p49 = por %p47, %p48
    %p50 = scmp.ne.s32.totalorder %s36, %s37
    %p51 = scmp.eq.s32.totalorder %s29, 1
    %p52 = por %p50, %p51
    %p54 = scmp.ne.s32.totalorder %s37, %s53
    %p55 = scmp.eq.s32.totalorder %s29, 0
    %p56 = por %p54, %p55
    %s57 = ssub.s32 %s23, %s30
    %p58 = scmp.eq.s32.totalorder %s57, 0
    %s60 = sadd.s32 %s59, 1
    %s61 = scalar_select %p58, %s59, %s60
    %p64 = pneg %p58
    %p65 = scmp.eq.s32.totalorder %s23, 1
    %p66 = por %p64, %p65
    %p67 = scmp.ne.s32.totalorder %s59, %s62
    %p68 = scmp.eq.s32.totalorder %s23, 0
    %p69 = por %p67, %p68
    %p70 = scmp.ne.s32.totalorder %s59, %s62
    %p71 = scmp.eq.s32.totalorder %s28, 1
    %p72 = por %p70, %p71
    %p73 = scmp.ne.s32.totalorder %s62, %s63
    %p74 = scmp.eq.s32.totalorder %s28, 0
    %p75 = por %p73, %p74
    %p76 = scmp.ne.s32.totalorder %s62, %s63
    %p77 = scmp.eq.s32.totalorder %s29, 1
    %p78 = por %p76, %p77
    %p80 = scmp.ne.s32.totalorder %s63, %s79
    %p81 = scmp.eq.s32.totalorder %s29, 0
    %p82 = por %p80, %p81
    %s84 = sadd.s32 %s83, 1
    %p87 = scmp.eq.s32.totalorder %s23, 1
    %p88 = scmp.ne.s32.totalorder %s83, %s85
    %p89 = scmp.eq.s32.totalorder %s23, 0
    %p90 = por %p88, %p89
    %p91 = scmp.ne.s32.totalorder %s83, %s85
    %p92 = scmp.eq.s32.totalorder %s28, 1
    %p93 = por %p91, %p92
    %p94 = scmp.ne.s32.totalorder %s85, %s86
    %p95 = scmp.eq.s32.totalorder %s28, 0
    %p96 = por %p94, %p95
    %p97 = scmp.ne.s32.totalorder %s85, %s86
    %p98 = scmp.eq.s32.totalorder %s29, 1
    %p99 = por %p97, %p98
    %p101 = scmp.ne.s32.totalorder %s86, %s100
    %p102 = scmp.eq.s32.totalorder %s29, 0
    %p103 = por %p101, %p102
    %s105 = sadd.s32 %s104, 1
    %p108 = scmp.eq.s32.totalorder %s23, 1
    %p109 = scmp.ne.s32.totalorder %s104, %s106
    %p110 = scmp.eq.s32.totalorder %s23, 0
    %p111 = por %p109, %p110
    %p112 = scmp.ne.s32.totalorder %s104, %s106
    %p113 = scmp.eq.s32.totalorder %s28, 1
    %p114 = por %p112, %p113
    %p115 = scmp.ne.s32.totalorder %s106, %s107
    %p116 = scmp.eq.s32.totalorder %s28, 0
    %p117 = por %p115, %p116
    %p118 = scmp.ne.s32.totalorder %s106, %s107
    %p119 = scmp.eq.s32.totalorder %s29, 1
    %p120 = por %p118, %p119
    %p122 = scmp.ne.s32.totalorder %s107, %s121
    %p123 = scmp.eq.s32.totalorder %s29, 0
    %p124 = por %p122, %p123
    %s126 = sadd.s32 %s125, 1
    %p129 = scmp.eq.s32.totalorder %s23, 1
    %p130 = scmp.ne.s32.totalorder %s125, %s127
    %p131 = scmp.eq.s32.totalorder %s23, 0
    %p132 = por %p130, %p131
    %p133 = scmp.ne.s32.totalorder %s125, %s127
    %p134 = scmp.eq.s32.totalorder %s28, 1
    %p135 = por %p133, %p134
    %p136 = scmp.ne.s32.totalorder %s127, %s128
    %p137 = scmp.eq.s32.totalorder %s28, 0
    %p138 = por %p136, %p137
    %p139 = scmp.ne.s32.totalorder %s127, %s128
    %p140 = scmp.eq.s32.totalorder %s29, 1
    %p141 = por %p139, %p140
    %p143 = scmp.ne.s32.totalorder %s128, %s142
    %p144 = scmp.eq.s32.totalorder %s29, 0
    %p145 = por %p143, %p144
    %s147 = sadd.s32 %s146, 1
    %p150 = scmp.eq.s32.totalorder %s23, 1
    %p151 = scmp.ne.s32.totalorder %s146, %s148
    %p152 = scmp.eq.s32.totalorder %s23, 0
    %p153 = por %p151, %p152
    %p154 = scmp.ne.s32.totalorder %s146, %s148
    %p155 = scmp.eq.s32.totalorder %s28, 1
    %p156 = por %p154, %p155
    %p157 = scmp.ne.s32.totalorder %s148, %s149
    %p158 = scmp.eq.s32.totalorder %s28, 0
    %p159 = por %p157, %p158
    %p160 = scmp.ne.s32.totalorder %s148, %s149
    %p161 = scmp.eq.s32.totalorder %s29, 1
    %p162 = por %p160, %p161
    %p164 = scmp.ne.s32.totalorder %s149, %s163
    %p165 = scmp.eq.s32.totalorder %s29, 0
    %p166 = por %p164, %p165
    %s168 = sadd.s32 %s167, 1
    %p171 = scmp.eq.s32.totalorder %s23, 1
    %p172 = scmp.ne.s32.totalorder %s167, %s169
    %p173 = scmp.eq.s32.totalorder %s23, 0
    %p174 = por %p172, %p173
    %p175 = scmp.ne.s32.totalorder %s167, %s169
    %p176 = scmp.eq.s32.totalorder %s28, 1
    %p177 = por %p175, %p176
    %p178 = scmp.ne.s32.totalorder %s169, %s170
    %p179 = scmp.eq.s32.totalorder %s28, 0
    %p180 = por %p178, %p179
    %p181 = scmp.ne.s32.totalorder %s169, %s170
    %p182 = scmp.eq.s32.totalorder %s29, 1
    %p183 = por %p181, %p182
    %p185 = scmp.ne.s32.totalorder %s170, %s184
    %p186 = scmp.eq.s32.totalorder %s29, 0
    %p187 = por %p185, %p186
    %s189 = sadd.s32 %s188, 1
    %p192 = scmp.eq.s32.totalorder %s23, 1
    %p193 = scmp.ne.s32.totalorder %s188, %s190
    %p194 = scmp.eq.s32.totalorder %s23, 0
    %p195 = por %p193, %p194
    %p196 = scmp.ne.s32.totalorder %s188, %s190
    %p197 = scmp.eq.s32.totalorder %s28, 1
    %p198 = por %p196, %p197
    %p199 = scmp.ne.s32.totalorder %s190, %s191
    %p200 = scmp.eq.s32.totalorder %s28, 0
    %p201 = por %p199, %p200
    %p202 = scmp.ne.s32.totalorder %s190, %s191
    %p203 = scmp.eq.s32.totalorder %s29, 1
    %p204 = por %p202, %p203
    %p206 = scmp.ne.s32.totalorder %s191, %s205
    %p207 = scmp.eq.s32.totalorder %s29, 0
    %p208 = por %p206, %p207
    %s210 = sadd.s32 %s209, 1
    %p213 = scmp.eq.s32.totalorder %s23, 1
    %p214 = scmp.ne.s32.totalorder %s209, %s211
    %p215 = scmp.eq.s32.totalorder %s23, 0
    %p216 = por %p214, %p215
    %p217 = scmp.ne.s32.totalorder %s209, %s211
    %p218 = scmp.eq.s32.totalorder %s28, 1
    %p219 = por %p217, %p218
    %p220 = scmp.ne.s32.totalorder %s211, %s212
    %p221 = scmp.eq.s32.totalorder %s28, 0
    %p222 = por %p220, %p221
    %p223 = scmp.ne.s32.totalorder %s211, %s212
    %p224 = scmp.eq.s32.totalorder %s29, 1
    %p225 = por %p223, %p224
    %p227 = scmp.ne.s32.totalorder %s212, %s226
    %p228 = scmp.eq.s32.totalorder %s29, 0
    %p229 = por %p227, %p228
    %s231 = sadd.s32 %s230, 1
    %p234 = scmp.eq.s32.totalorder %s23, 1
    %p235 = scmp.ne.s32.totalorder %s230, %s232
    %p236 = scmp.eq.s32.totalorder %s23, 0
    %p237 = por %p235, %p236
    %p238 = scmp.ne.s32.totalorder %s230, %s232
    %p239 = scmp.eq.s32.totalorder %s28, 1
    %p240 = por %p238, %p239
    %p241 = scmp.ne.s32.totalorder %s232, %s233
    %p242 = scmp.eq.s32.totalorder %s28, 0
    %p243 = por %p241, %p242
    %p244 = scmp.ne.s32.totalorder %s232, %s233
    %p245 = scmp.eq.s32.totalorder %s29, 1
    %p246 = por %p244, %p245
    %p248 = scmp.ne.s32.totalorder %s233, %s247
    %p249 = scmp.eq.s32.totalorder %s29, 0
    %p250 = por %p248, %p249
    %s252 = sadd.s32 %s251, 1
    %p255 = scmp.eq.s32.totalorder %s23, 1
    %p256 = scmp.ne.s32.totalorder %s251, %s253
    %p257 = scmp.eq.s32.totalorder %s23, 0
    %p258 = por %p256, %p257
    %p259 = scmp.ne.s32.totalorder %s251, %s253
    %p260 = scmp.eq.s32.totalorder %s28, 1
    %p261 = por %p259, %p260
    %p262 = scmp.ne.s32.totalorder %s253, %s254
    %p263 = scmp.eq.s32.totalorder %s28, 0
    %p264 = por %p262, %p263
    %p265 = scmp.ne.s32.totalorder %s253, %s254
    %p266 = scmp.eq.s32.totalorder %s29, 1
    %p267 = por %p265, %p266
    %p269 = scmp.ne.s32.totalorder %s254, %s268
    %p270 = scmp.eq.s32.totalorder %s29, 0
    %p271 = por %p269, %p270
    %s273 = sadd.s32 %s272, 1
    %p276 = scmp.eq.s32.totalorder %s23, 1
    %p277 = scmp.ne.s32.totalorder %s272, %s274
    %p278 = scmp.eq.s32.totalorder %s23, 0
    %p279 = por %p277, %p278
    %p280 = scmp.ne.s32.totalorder %s272, %s274
    %p281 = scmp.eq.s32.totalorder %s28, 1
    %p282 = por %p280, %p281
    %p283 = scmp.ne.s32.totalorder %s274, %s275
    %p284 = scmp.eq.s32.totalorder %s28, 0
    %p285 = por %p283, %p284
    %p286 = scmp.ne.s32.totalorder %s274, %s275
    %p287 = scmp.eq.s32.totalorder %s29, 1
    %p288 = por %p286, %p287
    %p290 = scmp.ne.s32.totalorder %s275, %s289
    %p291 = scmp.eq.s32.totalorder %s29, 0
    %p292 = por %p290, %p291
    %s294 = sadd.s32 %s293, 1
    %p297 = scmp.eq.s32.totalorder %s23, 1
    %p298 = scmp.ne.s32.totalorder %s293, %s295
    %p299 = scmp.eq.s32.totalorder %s23, 0
    %p300 = por %p298, %p299
    %p301 = scmp.ne.s32.totalorder %s293, %s295
    %p302 = scmp.eq.s32.totalorder %s28, 1
    %p303 = por %p301, %p302
    %p304 = scmp.ne.s32.totalorder %s295, %s296
    %p305 = scmp.eq.s32.totalorder %s28, 0
    %p306 = por %p304, %p305
    %p307 = scmp.ne.s32.totalorder %s295, %s296
    %p308 = scmp.eq.s32.totalorder %s29, 1
    %p309 = por %p307, %p308
    %p311 = scmp.ne.s32.totalorder %s296, %s310
    %p312 = scmp.eq.s32.totalorder %s29, 0
    %p313 = por %p311, %p312
    %s315 = sadd.s32 %s314, 1
    %p318 = scmp.eq.s32.totalorder %s23, 1
    %p319 = scmp.ne.s32.totalorder %s314, %s316
    %p320 = scmp.eq.s32.totalorder %s23, 0
    %p321 = por %p319, %p320
    %p322 = scmp.ne.s32.totalorder %s314, %s316
    %p323 = scmp.eq.s32.totalorder %s28, 1
    %p324 = por %p322, %p323
    %p325 = scmp.ne.s32.totalorder %s316, %s317
    %p326 = scmp.eq.s32.totalorder %s28, 0
    %p327 = por %p325, %p326
    %p328 = scmp.ne.s32.totalorder %s316, %s317
    %p329 = scmp.eq.s32.totalorder %s29, 1
    %p330 = por %p328, %p329
    %p332 = scmp.ne.s32.totalorder %s317, %s331
    %p333 = scmp.eq.s32.totalorder %s29, 0
    %p334 = por %p332, %p333
    %s336 = sadd.s32 %s335, 1
    %p339 = scmp.eq.s32.totalorder %s23, 1
    %p340 = scmp.ne.s32.totalorder %s335, %s337
    %p341 = scmp.eq.s32.totalorder %s23, 0
    %p342 = por %p340, %p341
    %p343 = scmp.ne.s32.totalorder %s335, %s337
    %p344 = scmp.eq.s32.totalorder %s28, 1
    %p345 = por %p343, %p344
    %p346 = scmp.ne.s32.totalorder %s337, %s338
    %p347 = scmp.eq.s32.totalorder %s28, 0
    %p348 = por %p346, %p347
    %p349 = scmp.ne.s32.totalorder %s337, %s338
    %p350 = scmp.eq.s32.totalorder %s29, 1
    %p351 = por %p349, %p350
    %p353 = scmp.ne.s32.totalorder %s338, %s352
    %p354 = scmp.eq.s32.totalorder %s29, 0
    %p355 = por %p353, %p354
    %s356 = ssub.s32 %s23, %s30
    %p357 = scmp.eq.s32.totalorder %s356, 0
    %s359 = sadd.s32 %s358, 1
    %s360 = scalar_select %p357, %s358, %s359
    %p363 = pneg %p357
    %p364 = scmp.eq.s32.totalorder %s23, 1
    %p365 = por %p363, %p364
    %p366 = scmp.ne.s32.totalorder %s358, %s361
    %p367 = scmp.eq.s32.totalorder %s23, 0
    %p368 = por %p366, %p367
    %p369 = scmp.ne.s32.totalorder %s358, %s361
    %p370 = scmp.eq.s32.totalorder %s28, 1
    %p371 = por %p369, %p370
    %p372 = scmp.ne.s32.totalorder %s361, %s362
    %p373 = scmp.eq.s32.totalorder %s28, 0
    %p374 = por %p372, %p373
    %p375 = scmp.ne.s32.totalorder %s361, %s362
    %p376 = scmp.eq.s32.totalorder %s29, 1
    %p377 = por %p375, %p376
    %p379 = scmp.ne.s32.totalorder %s362, %s378
    %p380 = scmp.eq.s32.totalorder %s29, 0
    %p381 = por %p379, %p380
    %p382 = scmp.le.s32.totalorder 1, %s23
    %p383 = scmp.lt.s32.totalorder %s23, 3
    %p384 = pnand %p382, %p383
    %p385 = pneg %p384
    // Predicated region
    $region9: #{tpu_custom_call.1} parent=5 // pred_check
      _
    $region10: #{tpu_custom_call.1} parent=5 // pred_check_branch
      %387 = sbr.rel (%p384) target = $region12
    $region11: #{tpu_custom_call.1} parent=5 // pred_region
      %s388 = ssub.s32 %s23, 1
      // Predicated region
      $region13: #{tpu_custom_call.1} parent=11 // pred_check
        %p389 = pneg %p96
      $region14: #{tpu_custom_call.1} parent=11 // pred_check_branch
        %391 = sbr.rel (%p389) target = $region16
      $region15: #{tpu_custom_call.1} parent=11 // pred_region
        _
      $region16: #{tpu_custom_call.1} parent=11 // pred_fallthru
        _
      // Predicated region
      $region17: #{tpu_custom_call.1} parent=11 // pred_check
        %p392 = pneg %p117
      $region18: #{tpu_custom_call.1} parent=11 // pred_check_branch
        %394 = sbr.rel (%p392) target = $region20
      $region19: #{tpu_custom_call.1} parent=11 // pred_region
        _
      $region20: #{tpu_custom_call.1} parent=11 // pred_fallthru
        _
      // Predicated region
      $region21: #{tpu_custom_call.1} parent=11 // pred_check
        %p395 = pneg %p138
      $region22: #{tpu_custom_call.1} parent=11 // pred_check_branch
        %397 = sbr.rel (%p395) target = $region24
      $region23: #{tpu_custom_call.1} parent=11 // pred_region
        _
      $region24: #{tpu_custom_call.1} parent=11 // pred_fallthru
        _
      // Predicated region
      $region25: #{tpu_custom_call.1} parent=11 // pred_check
        %p398 = pneg %p159
      $region26: #{tpu_custom_call.1} parent=11 // pred_check_branch
        %400 = sbr.rel (%p398) target = $region28
      $region27: #{tpu_custom_call.1} parent=11 // pred_region
        _
      $region28: #{tpu_custom_call.1} parent=11 // pred_fallthru
        _
      // Predicated region
      $region29: #{tpu_custom_call.1} parent=11 // pred_check
        %p401 = pneg %p180
      $region30: #{tpu_custom_call.1} parent=11 // pred_check_branch
        %403 = sbr.rel (%p401) target = $region32
      $region31: #{tpu_custom_call.1} parent=11 // pred_region
        _
      $region32: #{tpu_custom_call.1} parent=11 // pred_fallthru
        _
      // Predicated region
      $region33: #{tpu_custom_call.1} parent=11 // pred_check
        %p404 = pneg %p201
      $region34: #{tpu_custom_call.1} parent=11 // pred_check_branch
        %406 = sbr.rel (%p404) target = $region36
      $region35: #{tpu_custom_call.1} parent=11 // pred_region
        _
      $region36: #{tpu_custom_call.1} parent=11 // pred_fallthru
        _
      // Predicated region
      $region37: #{tpu_custom_call.1} parent=11 // pred_check
        %p407 = pneg %p222
      $region38: #{tpu_custom_call.1} parent=11 // pred_check_branch
        %409 = sbr.rel (%p407) target = $region40
      $region39: #{tpu_custom_call.1} parent=11 // pred_region
        _
      $region40: #{tpu_custom_call.1} parent=11 // pred_fallthru
        _
      // Predicated region
      $region41: #{tpu_custom_call.1} parent=11 // pred_check
        %p410 = pneg %p243
      $region42: #{tpu_custom_call.1} parent=11 // pred_check_branch
        %412 = sbr.rel (%p410) target = $region44
      $region43: #{tpu_custom_call.1} parent=11 // pred_region
        _
      $region44: #{tpu_custom_call.1} parent=11 // pred_fallthru
        _
      // Predicated region
      $region45: #{tpu_custom_call.1} parent=11 // pred_check
        %p413 = pneg %p264
      $region46: #{tpu_custom_call.1} parent=11 // pred_check_branch
        %415 = sbr.rel (%p413) target = $region48
      $region47: #{tpu_custom_call.1} parent=11 // pred_region
        _
      $region48: #{tpu_custom_call.1} parent=11 // pred_fallthru
        _
      // Predicated region
      $region49: #{tpu_custom_call.1} parent=11 // pred_check
        %p416 = pneg %p285
      $region50: #{tpu_custom_call.1} parent=11 // pred_check_branch
        %418 = sbr.rel (%p416) target = $region52
      $region51: #{tpu_custom_call.1} parent=11 // pred_region
        _
      $region52: #{tpu_custom_call.1} parent=11 // pred_fallthru
        _
      // Predicated region
      $region53: #{tpu_custom_call.1} parent=11 // pred_check
        %p419 = pneg %p306
      $region54: #{tpu_custom_call.1} parent=11 // pred_check_branch
        %421 = sbr.rel (%p419) target = $region56
      $region55: #{tpu_custom_call.1} parent=11 // pred_region
        _
      $region56: #{tpu_custom_call.1} parent=11 // pred_fallthru
        _
      // Predicated region
      $region57: #{tpu_custom_call.1} parent=11 // pred_check
        %p422 = pneg %p327
      $region58: #{tpu_custom_call.1} parent=11 // pred_check_branch
        %424 = sbr.rel (%p422) target = $region60
      $region59: #{tpu_custom_call.1} parent=11 // pred_region
        _
      $region60: #{tpu_custom_call.1} parent=11 // pred_fallthru
        _
      // Predicated region
      $region61: #{tpu_custom_call.1} parent=11 // pred_check
        %p425 = pneg %p348
      $region62: #{tpu_custom_call.1} parent=11 // pred_check_branch
        %427 = sbr.rel (%p425) target = $region64
      $region63: #{tpu_custom_call.1} parent=11 // pred_region
        _
      $region64: #{tpu_custom_call.1} parent=11 // pred_fallthru
        _
    $region12: #{tpu_custom_call.1} parent=5 // pred_fallthru
      _
    %p428 = scmp.lt.s32.totalorder %s23, 2
    // Predicated region
    $region65: #{tpu_custom_call.1} parent=5 // pred_check
      %p429 = pneg %p428
    $region66: #{tpu_custom_call.1} parent=5 // pred_check_branch
      %431 = sbr.rel (%p429) target = $region68
    $region67: #{tpu_custom_call.1} parent=5 // pred_region
      // Predicated region
      $region69: #{tpu_custom_call.1} parent=67 // pred_check
        %p432 = pneg %p43
      $region70: #{tpu_custom_call.1} parent=67 // pred_check_branch
        %434 = sbr.rel (%p432) target = $region72
      $region71: #{tpu_custom_call.1} parent=67 // pred_region
        %s435 = smul.u32 16, %s23
        %p436 = scmp.lt.s32.totalorder %s435, 31
        %s437 = scalar_select %p436, %s435, 31
        %s438 = smul.addr %s437, 4
        %s439 = scalar_lea.vmem %s0, %s438
        %s440 = smul.u32 16, %s23
      $region72: #{tpu_custom_call.1} parent=67 // pred_fallthru
        _
      // Predicated region
      $region73: #{tpu_custom_call.1} parent=67 // pred_check
        %p441 = pneg %p69
      $region74: #{tpu_custom_call.1} parent=67 // pred_check_branch
        %443 = sbr.rel (%p441) target = $region76
      $region75: #{tpu_custom_call.1} parent=67 // pred_region
        %s444 = smul.u32 16, %s23
        %p445 = scmp.lt.s32.totalorder %s444, 31
        %s446 = scalar_select %p445, %s444, 31
        %s447 = smul.addr %s446, 4
        %s448 = scalar_lea.vmem %s1, %s447
        %s449 = smul.u32 16, %s23
      $region76: #{tpu_custom_call.1} parent=67 // pred_fallthru
        _
    $region68: #{tpu_custom_call.1} parent=5 // pred_fallthru
      _
    %p450 = scmp.le.s32.totalorder 1, %s23
    %p451 = scmp.lt.s32.totalorder %s23, 3
    %p452 = pnand %p450, %p451
    %p453 = pneg %p452
    // Predicated region
    $region77: #{tpu_custom_call.1} parent=5 // pred_check
      _
    $region78: #{tpu_custom_call.1} parent=5 // pred_check_branch
      %455 = sbr.rel (%p452) target = $region80
    $region79: #{tpu_custom_call.1} parent=5 // pred_region
      %s456 = ssub.s32 %s23, 1
      %s457 = smul.u32 16, %s28
      %p458 = scmp.lt.s32.totalorder %s457, 31
      %s459 = scalar_select %p458, %s457, 31
      %s460 = smul.addr %s459, 4
      %s461 = scalar_lea.vmem %s0, %s460
      %p462 = pneg %p49
      %p463 = pneg %p46
      %s464 = smul.u32 16, %s28
      %p465 = scmp.lt.s32.totalorder %s464, 31
      %s466 = scalar_select %p465, %s464, 31
      %s467 = smul.addr %s466, 4
      %s468 = scalar_lea.vmem %s1, %s467
      %p469 = pneg %p75
      %p470 = pneg %p72
      %p471 = pneg %p96
      %p472 = pneg %p93
      %p473 = pneg %p117
      %p474 = pneg %p114
      %p475 = pneg %p138
      %p476 = pneg %p135
      %p477 = pneg %p159
      %p478 = pneg %p156
      %p479 = pneg %p180
      %p480 = pneg %p177
      %p481 = pneg %p201
      %p482 = pneg %p198
      %p483 = pneg %p222
      %p484 = pneg %p219
      %p485 = pneg %p243
      %p486 = pneg %p240
      %p487 = pneg %p264
      %p488 = pneg %p261
      %p489 = pneg %p285
      %p490 = pneg %p282
      %p491 = pneg %p306
      %p492 = pneg %p303
      %p493 = pneg %p327
      %p494 = pneg %p324
      %p495 = pneg %p348
      %p496 = pneg %p345
      %p497 = pneg %p374
      %p498 = pneg %p371
      %p499 = scmp.lt.s32.totalorder %s28, 1
      %s500 = scalar_select %p499, %s28, 1
      %s501 = smul.addr %s500, 2
      %s502 = scalar_lea.vmem %s15, %s501
      %s503 = smul.u32 16, %s28
      %p504 = scmp.lt.s32.totalorder %s503, 31
      %s505 = scalar_select %p504, %s503, 31
      %s506 = smul.addr %s505, 4
      %s507 = scalar_lea.vmem %s0, %s506
      %s508 = smul.u32 16, %s28
      %s509 = smul.u32 16, %s28
      %p510 = scmp.lt.s32.totalorder %s509, 31
      %s511 = scalar_select %p510, %s509, 31
      %s512 = smul.addr %s511, 4
      %s513 = scalar_lea.vmem %s1, %s512
      %s514 = smul.u32 16, %s28
      %p515 = scmp.lt.s32.totalorder %s28, 1
      %s516 = scalar_select %p515, %s28, 1
      %s517 = smul.addr %s516, 2
      %s518 = scalar_lea.vmem %s15, %s517
      %v520 = vld [vmem:[%s507] sm:$0xf]
      %v521 = vld [vmem:[%s507 + $0x4] sm:$0xf]
      %v522 = vld [vmem:[%s507 + $0x8] sm:$0xf]
      %v523 = vld [vmem:[%s507 + $0xc] sm:$0xf]
      %v524 = vld [vmem:[%s507 + $0x10] sm:$0xf]
      %v525 = vld [vmem:[%s507 + $0x14] sm:$0xf]
      %v526 = vld [vmem:[%s507 + $0x18] sm:$0xf]
      %v527 = vld [vmem:[%s507 + $0x1c] sm:$0xf]
      %v528 = vld [vmem:[%s507 + $0x20] sm:$0xf]
      %v529 = vld [vmem:[%s507 + $0x24] sm:$0xf]
      %v530 = vld [vmem:[%s507 + $0x28] sm:$0xf]
      %v531 = vld [vmem:[%s507 + $0x2c] sm:$0xf]
      %v532 = vld [vmem:[%s507 + $0x30] sm:$0xf]
      %v533 = vld [vmem:[%s507 + $0x34] sm:$0xf]
      %v534 = vld [vmem:[%s507 + $0x38] sm:$0xf]
      %v535 = vld [vmem:[%s507 + $0x3c] sm:$0xf]
      %v536 = vld [vmem:[%s513] sm:$0xf]
      %v537 = vld [vmem:[%s513 + $0x4] sm:$0xf]
      %v538 = vld [vmem:[%s513 + $0x8] sm:$0xf]
      %v539 = vld [vmem:[%s513 + $0xc] sm:$0xf]
      %v540 = vld [vmem:[%s513 + $0x10] sm:$0xf]
      %v541 = vld [vmem:[%s513 + $0x14] sm:$0xf]
      %v542 = vld [vmem:[%s513 + $0x18] sm:$0xf]
      %v543 = vld [vmem:[%s513 + $0x1c] sm:$0xf]
      %v544 = vld [vmem:[%s513 + $0x20] sm:$0xf]
      %v545 = vld [vmem:[%s513 + $0x24] sm:$0xf]
      %v546 = vld [vmem:[%s513 + $0x28] sm:$0xf]
      %v547 = vld [vmem:[%s513 + $0x2c] sm:$0xf]
      %v548 = vld [vmem:[%s513 + $0x30] sm:$0xf]
      %v549 = vld [vmem:[%s513 + $0x34] sm:$0xf]
      %v550 = vld [vmem:[%s513 + $0x38] sm:$0xf]
      %v551 = vld [vmem:[%s513 + $0x3c] sm:$0xf]
      %v552 = vld [vmem:[%s2] sm:$0xf]
      %v553 = vld [vmem:[%s2 + $0x4] sm:$0xf]
      %v554 = vld [vmem:[%s2 + $0x8] sm:$0xf]
      %v555 = vld [vmem:[%s2 + $0xc] sm:$0xf]
      %v556 = vld [vmem:[%s2 + $0x10] sm:$0xf]
      %v557 = vld [vmem:[%s2 + $0x14] sm:$0xf]
      %v558 = vld [vmem:[%s2 + $0x18] sm:$0xf]
      %v559 = vld [vmem:[%s2 + $0x1c] sm:$0xf]
      %v560 = vld [vmem:[%s2 + $0x20] sm:$0xf]
      %v561 = vld [vmem:[%s2 + $0x24] sm:$0xf]
      %v562 = vld [vmem:[%s2 + $0x28] sm:$0xf]
      %v563 = vld [vmem:[%s2 + $0x2c] sm:$0xf]
      %v564 = vld [vmem:[%s2 + $0x30] sm:$0xf]
      %v565 = vld [vmem:[%s2 + $0x34] sm:$0xf]
      %v566 = vld [vmem:[%s2 + $0x38] sm:$0xf]
      %v567 = vld [vmem:[%s2 + $0x3c] sm:$0xf]
      %v568 = vunpack.c.l.bf16 %v552
      %v569 = vunpack.c.l.bf16 %v553
      %v570 = vunpack.c.l.bf16 %v554
      %v571 = vunpack.c.l.bf16 %v555
      %v572 = vunpack.c.l.bf16 %v556
      %v573 = vunpack.c.l.bf16 %v557
      %v574 = vunpack.c.l.bf16 %v558
      %v575 = vunpack.c.l.bf16 %v559
      %v576 = vunpack.c.l.bf16 %v560
      %v577 = vunpack.c.l.bf16 %v561
      %v578 = vunpack.c.l.bf16 %v562
      %v579 = vunpack.c.l.bf16 %v563
      %v580 = vunpack.c.l.bf16 %v564
      %v581 = vunpack.c.l.bf16 %v565
      %v582 = vunpack.c.l.bf16 %v566
      %v583 = vunpack.c.l.bf16 %v567
      %v584 = vld [vmem:[%s3] sm:$0x1]
      %v585 = vld [vmem:[%s4] sm:$0xf]
      %v586 = vld [vmem:[%s4 + $0x4] sm:$0xf]
      %v587 = vld [vmem:[%s4 + $0x8] sm:$0xf]
      %v588 = vld [vmem:[%s4 + $0xc] sm:$0xf]
      %v589 = vld [vmem:[%s4 + $0x10] sm:$0xf]
      %v590 = vld [vmem:[%s4 + $0x14] sm:$0xf]
      %v591 = vld [vmem:[%s4 + $0x18] sm:$0xf]
      %v592 = vld [vmem:[%s4 + $0x1c] sm:$0xf]
      %v593 = vld [vmem:[%s4 + $0x20] sm:$0xf]
      %v594 = vld [vmem:[%s4 + $0x24] sm:$0xf]
      %v595 = vld [vmem:[%s4 + $0x28] sm:$0xf]
      %v596 = vld [vmem:[%s4 + $0x2c] sm:$0xf]
      %v597 = vld [vmem:[%s4 + $0x30] sm:$0xf]
      %v598 = vld [vmem:[%s4 + $0x34] sm:$0xf]
      %v599 = vld [vmem:[%s4 + $0x38] sm:$0xf]
      %v600 = vld [vmem:[%s4 + $0x3c] sm:$0xf]
      %v601 = vld [vmem:[%s5] sm:$0x7]
      %v618 = vunpack.c.l.b16 %v536
      %v619 = vunpack.c.l.b16 %v537
      %v620 = vunpack.c.l.b16 %v538
      %v621 = vunpack.c.l.b16 %v539
      %v622 = vunpack.c.l.b16 %v540
      %v623 = vunpack.c.l.b16 %v541
      %v624 = vunpack.c.l.b16 %v542
      %v625 = vunpack.c.l.b16 %v543
      %v626 = vunpack.c.l.b16 %v544
      %v627 = vunpack.c.l.b16 %v545
      %v628 = vunpack.c.l.b16 %v546
      %v629 = vunpack.c.l.b16 %v547
      %v630 = vunpack.c.l.b16 %v548
      %v631 = vunpack.c.l.b16 %v549
      %v632 = vunpack.c.l.b16 %v550
      %v633 = vunpack.c.l.b16 %v551
      %v634 = vpack.c.b16 %v619, %v618
      %v635 = vpack.c.b16 %v621, %v620
      %v636 = vpack.c.b16 %v623, %v622
      %v637 = vpack.c.b16 %v625, %v624
      %v638 = vpack.c.b16 %v627, %v626
      %v639 = vpack.c.b16 %v629, %v628
      %v640 = vpack.c.b16 %v631, %v630
      %v641 = vpack.c.b16 %v633, %v632
      %650 = vmatprep.subr.bf16.mxu0 0
      %651 = vmatpush1.bf16.msra.mxu0 %v641
      %652 = vmatprep.subr.bf16.mxu0 0
      %653 = vmatpush1.bf16.msra.mxu0 %v640
      %654 = vmatprep.subr.bf16.mxu0 0
      %655 = vmatpush1.bf16.msra.mxu0 %v639
      %656 = vmatprep.subr.bf16.mxu0 0
      %657 = vmatpush1.bf16.msra.mxu0 %v638
      %658 = vmatprep.subr.bf16.mxu0 0
      %659 = vmatpush1.bf16.msra.mxu0 %v637
      %660 = vmatprep.subr.bf16.mxu0 0
      %661 = vmatpush1.bf16.msra.mxu0 %v636
      %662 = vmatprep.subr.bf16.mxu0 0
      %663 = vmatpush1.bf16.msra.mxu0 %v635
      %664 = vmatprep.subr.bf16.mxu0 0
      %665 = vmatpush1.bf16.msra.mxu0 %v634
      %666 = vmatprep.subr.bf16.mxu0 0
      %667 = vmatpush2.bf16.msra.mxu0 0
      %668 = vmatprep.subr.bf16.mxu0 0
      %669 = vmatpush2.bf16.msra.mxu0 0
      %670 = vmatprep.subr.bf16.mxu0 0
      %671 = vmatpush2.bf16.msra.mxu0 0
      %672 = vmatprep.subr.bf16.mxu0 0
      %673 = vmatpush2.bf16.msra.mxu0 0
      %674 = vmatprep.subr.bf16.mxu0 0
      %675 = vmatpush2.bf16.msra.mxu0 0
      %676 = vmatprep.subr.bf16.mxu0 0
      %677 = vmatpush2.bf16.msra.mxu0 0
      %678 = vmatprep.subr.bf16.mxu0 0
      %679 = vmatpush2.bf16.msra.mxu0 0
      %680 = vmatprep.subr.bf16.mxu0 0
      %681 = vmatpush2.bf16.msra.mxu0 0
      %682 = vmatprep.mubr.bf16.mxu0 0
      %683 = vmatmul.mubr.bf16.gmra.mxu0 %v601
      %v684 = vpop.f32.mrf.mxu0
      %v685 = vadd.f32 0.0, %v684
      %v686 = vpop.f32.mrf.mxu0
      %v687 = vpop.f32.mrf.mxu0
      %v688 = vpop.f32.mrf.mxu0
      %689 = vdwg.mxu0
      %v690 = vld [vmem:[%s6] sm:$0xf]
      %v691 = vld [vmem:[%s6 + $0x4] sm:$0xf]
      %v692 = vld [vmem:[%s6 + $0x8] sm:$0xf]
      %v693 = vld [vmem:[%s6 + $0xc] sm:$0xf]
      %v698 = vunpack.c.l.b16 %v690
      %v699 = vunpack.c.l.b16 %v691
      %v700 = vunpack.c.l.b16 %v692
      %v701 = vunpack.c.l.b16 %v693
      %v702 = vpack.c.b16 %v699, %v698
      %v703 = vpack.c.b16 %v701, %v700
      %vm706 = vcmask 261120
      %v708 = vsel %vm706, %v634, 0
      %v711 = vsel %vm706, %v635, 0
      %v714 = vsel %vm706, %v636, 0
      %v717 = vsel %vm706, %v637, 0
      %v720 = vsel %vm706, %v638, 0
      %v723 = vsel %vm706, %v639, 0
      %v726 = vsel %vm706, %v640, 0
      %v729 = vsel %vm706, %v641, 0
      %731 = vmatprep.subr.bf16.mxu0 0
      %732 = vmatpush1.bf16.msra.mxu0 0
      %733 = vmatprep.subr.bf16.mxu0 0
      %734 = vmatpush1.bf16.msra.mxu0 0
      %735 = vmatprep.subr.bf16.mxu0 0
      %736 = vmatpush1.bf16.msra.mxu0 0
      %737 = vmatprep.subr.bf16.mxu0 0
      %738 = vmatpush1.bf16.msra.mxu0 0
      %739 = vmatprep.subr.bf16.mxu0 0
      %740 = vmatpush1.bf16.msra.mxu0 0
      %741 = vmatprep.subr.bf16.mxu0 0
      %742 = vmatpush1.bf16.msra.mxu0 0
      %743 = vmatprep.subr.bf16.mxu0 0
      %744 = vmatpush1.bf16.msra.mxu0 %v703
      %745 = vmatprep.subr.bf16.mxu0 0
      %746 = vmatpush1.bf16.msra.mxu0 %v702
      %747 = vmatprep.subr.bf16.mxu0 0
      %748 = vmatpush2.bf16.msra.mxu0 0
      %749 = vmatprep.subr.bf16.mxu0 0
      %750 = vmatpush2.bf16.msra.mxu0 0
      %751 = vmatprep.subr.bf16.mxu0 0
      %752 = vmatpush2.bf16.msra.mxu0 0
      %753 = vmatprep.subr.bf16.mxu0 0
      %754 = vmatpush2.bf16.msra.mxu0 0
      %755 = vmatprep.subr.bf16.mxu0 0
      %756 = vmatpush2.bf16.msra.mxu0 0
      %757 = vmatprep.subr.bf16.mxu0 0
      %758 = vmatpush2.bf16.msra.mxu0 0
      %759 = vmatprep.subr.bf16.mxu0 0
      %760 = vmatpush2.bf16.msra.mxu0 0
      %761 = vmatprep.subr.bf16.mxu0 0
      %762 = vmatpush2.bf16.msra.mxu0 0
      %763 = vmatprep.mubr.bf16.mxu0 0
      %764 = vmatmul.mubr.bf16.gmra.mxu0 %v708
      %v765 = vpop.f32.mrf.mxu0
      %v766 = vadd.f32 0.0, %v765
      %v767 = vpop.f32.mrf.mxu0
      %v768 = vpop.f32.mrf.mxu0
      %v769 = vadd.f32 0.0, %v768
      %v770 = vpop.f32.mrf.mxu0
      %771 = vmatprep.mubr.bf16.mxu0 0
      %772 = vmatmul.mubr.bf16.gmra.mxu0 %v711
      %v773 = vpop.f32.mrf.mxu0
      %v774 = vadd.f32 0.0, %v773
      %v775 = vpop.f32.mrf.mxu0
      %v776 = vpop.f32.mrf.mxu0
      %v777 = vadd.f32 0.0, %v776
      %v778 = vpop.f32.mrf.mxu0
      %779 = vmatprep.mubr.bf16.mxu0 0
      %780 = vmatmul.mubr.bf16.gmra.mxu0 %v714
      %v781 = vpop.f32.mrf.mxu0
      %v782 = vadd.f32 0.0, %v781
      %v783 = vpop.f32.mrf.mxu0
      %v784 = vpop.f32.mrf.mxu0
      %v785 = vadd.f32 0.0, %v784
      %v786 = vpop.f32.mrf.mxu0
      %787 = vmatprep.mubr.bf16.mxu0 0
      %788 = vmatmul.mubr.bf16.gmra.mxu0 %v717
      %v789 = vpop.f32.mrf.mxu0
      %v790 = vadd.f32 0.0, %v789
      %v791 = vpop.f32.mrf.mxu0
      %v792 = vpop.f32.mrf.mxu0
      %v793 = vadd.f32 0.0, %v792
      %v794 = vpop.f32.mrf.mxu0
      %795 = vmatprep.mubr.bf16.mxu0 0
      %796 = vmatmul.mubr.bf16.gmra.mxu0 %v720
      %v797 = vpop.f32.mrf.mxu0
      %v798 = vadd.f32 0.0, %v797
      %v799 = vpop.f32.mrf.mxu0
      %v800 = vpop.f32.mrf.mxu0
      %v801 = vadd.f32 0.0, %v800
      %v802 = vpop.f32.mrf.mxu0
      %803 = vmatprep.mubr.bf16.mxu0 0
      %804 = vmatmul.mubr.bf16.gmra.mxu0 %v723
      %v805 = vpop.f32.mrf.mxu0
      %v806 = vadd.f32 0.0, %v805
      %v807 = vpop.f32.mrf.mxu0
      %v808 = vpop.f32.mrf.mxu0
      %v809 = vadd.f32 0.0, %v808
      %v810 = vpop.f32.mrf.mxu0
      %811 = vmatprep.mubr.bf16.mxu0 0
      %812 = vmatmul.mubr.bf16.gmra.mxu0 %v726
      %v813 = vpop.f32.mrf.mxu0
      %v814 = vadd.f32 0.0, %v813
      %v815 = vpop.f32.mrf.mxu0
      %v816 = vpop.f32.mrf.mxu0
      %v817 = vadd.f32 0.0, %v816
      %v818 = vpop.f32.mrf.mxu0
      %819 = vmatprep.mubr.bf16.mxu0 0
      %820 = vmatmul.mubr.bf16.gmra.mxu0 %v729
      %v821 = vpop.f32.mrf.mxu0
      %v822 = vadd.f32 0.0, %v821
      %v823 = vpop.f32.mrf.mxu0
      %v824 = vpop.f32.mrf.mxu0
      %v825 = vadd.f32 0.0, %v824
      %v826 = vpop.f32.mrf.mxu0
      %827 = vdwg.mxu0
      %vm828 = vcmask 72704
      %829 = vst.msk [vmem:[#allocation2] sm:$0xff] %vm828, 0.0
      %830 = vst.msk [vmem:[#allocation2 + $0x8] sm:$0xff] %vm828, 0.0
      %831 = vst.msk [vmem:[#allocation2 + $0x10] sm:$0xff] %vm828, 0.0
      %832 = vst.msk [vmem:[#allocation2 + $0x18] sm:$0xff] %vm828, 0.0
      %833 = vst.msk [vmem:[#allocation2 + $0x20] sm:$0xff] %vm828, 0.0
      %834 = vst.msk [vmem:[#allocation2 + $0x28] sm:$0xff] %vm828, 0.0
      %835 = vst.msk [vmem:[#allocation2 + $0x30] sm:$0xff] %vm828, 0.0
      %836 = vst.msk [vmem:[#allocation2 + $0x38] sm:$0xff] %vm828, 0.0
      %837 = vst.msk [vmem:[#allocation2 + $0x40] sm:$0xff] %vm828, 0.0
      %838 = vst.msk [vmem:[#allocation2 + $0x48] sm:$0xff] %vm828, 0.0
      %839 = vst.msk [vmem:[#allocation2 + $0x50] sm:$0xff] %vm828, 0.0
      %840 = vst.msk [vmem:[#allocation2 + $0x58] sm:$0xff] %vm828, 0.0
      %841 = vst.msk [vmem:[#allocation2 + $0x60] sm:$0xff] %vm828, 0.0
      %842 = vst.msk [vmem:[#allocation2 + $0x68] sm:$0xff] %vm828, 0.0
      %843 = vst.msk [vmem:[#allocation2 + $0x70] sm:$0xff] %vm828, 0.0
      %844 = vst.msk [vmem:[#allocation2 + $0x78] sm:$0xff] %vm828, 0.0
      %845 = vst.msk [vmem:[#allocation2 + $0x80] sm:$0xff] %vm828, 0.0
      %846 = vst.msk [vmem:[#allocation2 + $0x88] sm:$0xff] %vm828, 0.0
      %847 = vst.msk [vmem:[#allocation2 + $0x90] sm:$0xff] %vm828, 0.0
      %848 = vst.msk [vmem:[#allocation2 + $0x98] sm:$0xff] %vm828, 0.0
      %849 = vst.msk [vmem:[#allocation2 + $0x10] sm:$0xff] %vm828, %v766
      %850 = vst.msk [vmem:[#allocation2 + $0x18] sm:$0xff] %vm828, %v769
      %851 = vst.msk [vmem:[#allocation2 + $0x20] sm:$0xff] %vm828, %v774
      %852 = vst.msk [vmem:[#allocation2 + $0x28] sm:$0xff] %vm828, %v777
      %853 = vst.msk [vmem:[#allocation2 + $0x30] sm:$0xff] %vm828, %v782
      %854 = vst.msk [vmem:[#allocation2 + $0x38] sm:$0xff] %vm828, %v785
      %855 = vst.msk [vmem:[#allocation2 + $0x40] sm:$0xff] %vm828, %v790
      %856 = vst.msk [vmem:[#allocation2 + $0x48] sm:$0xff] %vm828, %v793
      %857 = vst.msk [vmem:[#allocation2 + $0x50] sm:$0xff] %vm828, %v798
      %858 = vst.msk [vmem:[#allocation2 + $0x58] sm:$0xff] %vm828, %v801
      %859 = vst.msk [vmem:[#allocation2 + $0x60] sm:$0xff] %vm828, %v806
      %860 = vst.msk [vmem:[#allocation2 + $0x68] sm:$0xff] %vm828, %v809
      %861 = vst.msk [vmem:[#allocation2 + $0x70] sm:$0xff] %vm828, %v814
      %862 = vst.msk [vmem:[#allocation2 + $0x78] sm:$0xff] %vm828, %v817
      %863 = vst.msk [vmem:[#allocation2 + $0x80] sm:$0xff] %vm828, %v822
      %864 = vst.msk [vmem:[#allocation2 + $0x88] sm:$0xff] %vm828, %v825
      %v865 = vld [vmem:[#allocation2 + $0x7] sm:$0xff]
      %v866 = vld [vmem:[#allocation2 + $0xf] sm:$0xff]
      %v867 = vld [vmem:[#allocation2 + $0x17] sm:$0xff]
      %v868 = vld [vmem:[#allocation2 + $0x1f] sm:$0xff]
      %v869 = vld [vmem:[#allocation2 + $0x27] sm:$0xff]
      %v870 = vld [vmem:[#allocation2 + $0x2f] sm:$0xff]
      %v871 = vld [vmem:[#allocation2 + $0x37] sm:$0xff]
      %v872 = vld [vmem:[#allocation2 + $0x3f] sm:$0xff]
      %v873 = vld [vmem:[#allocation2 + $0x47] sm:$0xff]
      %v874 = vld [vmem:[#allocation2 + $0x4f] sm:$0xff]
      %v875 = vld [vmem:[#allocation2 + $0x57] sm:$0xff]
      %v876 = vld [vmem:[#allocation2 + $0x5f] sm:$0xff]
      %v877 = vld [vmem:[#allocation2 + $0x67] sm:$0xff]
      %v878 = vld [vmem:[#allocation2 + $0x6f] sm:$0xff]
      %v879 = vld [vmem:[#allocation2 + $0x77] sm:$0xff]
      %v880 = vld [vmem:[#allocation2 + $0x7f] sm:$0xff]
      %v881 = vmul.f32 %v568, %v865
      %v882 = vmul.f32 %v569, %v866
      %v883 = vmul.f32 %v570, %v867
      %v884 = vmul.f32 %v571, %v868
      %v885 = vmul.f32 %v572, %v869
      %v886 = vmul.f32 %v573, %v870
      %v887 = vmul.f32 %v574, %v871
      %v888 = vmul.f32 %v575, %v872
      %v889 = vmul.f32 %v576, %v873
      %v890 = vmul.f32 %v577, %v874
      %v891 = vmul.f32 %v578, %v875
      %v892 = vmul.f32 %v579, %v876
      %v893 = vmul.f32 %v580, %v877
      %v894 = vmul.f32 %v581, %v878
      %v895 = vmul.f32 %v582, %v879
      %v896 = vmul.f32 %v583, %v880
      %v897 = vadd.f32 %v881, 0.0
      %v898 = vadd.f32 %v882, 0.0
      %v899 = vadd.f32 %v883, 0.0
      %v900 = vadd.f32 %v884, 0.0
      %v901 = vadd.f32 %v885, 0.0
      %v902 = vadd.f32 %v886, 0.0
      %v903 = vadd.f32 %v887, 0.0
      %v904 = vadd.f32 %v888, 0.0
      %v905 = vadd.f32 %v889, 0.0
      %v906 = vadd.f32 %v890, 0.0
      %v907 = vadd.f32 %v891, 0.0
      %v908 = vadd.f32 %v892, 0.0
      %v909 = vadd.f32 %v893, 0.0
      %v910 = vadd.f32 %v894, 0.0
      %v911 = vadd.f32 %v895, 0.0
      %v912 = vadd.f32 %v896, 0.0
      %v913 = vld [vmem:[#allocation2 + $0x8] sm:$0xff]
      %v914 = vld [vmem:[#allocation2 + $0x10] sm:$0xff]
      %v915 = vld [vmem:[#allocation2 + $0x18] sm:$0xff]
      %v916 = vld [vmem:[#allocation2 + $0x20] sm:$0xff]
      %v917 = vld [vmem:[#allocation2 + $0x28] sm:$0xff]
      %v918 = vld [vmem:[#allocation2 + $0x30] sm:$0xff]
      %v919 = vld [vmem:[#allocation2 + $0x38] sm:$0xff]
      %v920 = vld [vmem:[#allocation2 + $0x40] sm:$0xff]
      %v921 = vld [vmem:[#allocation2 + $0x48] sm:$0xff]
      %v922 = vld [vmem:[#allocation2 + $0x50] sm:$0xff]
      %v923 = vld [vmem:[#allocation2 + $0x58] sm:$0xff]
      %v924 = vld [vmem:[#allocation2 + $0x60] sm:$0xff]
      %v925 = vld [vmem:[#allocation2 + $0x68] sm:$0xff]
      %v926 = vld [vmem:[#allocation2 + $0x70] sm:$0xff]
      %v927 = vld [vmem:[#allocation2 + $0x78] sm:$0xff]
      %v928 = vld [vmem:[#allocation2 + $0x80] sm:$0xff]
      %v929 = vmul.f32 %v568, %v913
      %v930 = vmul.f32 %v569, %v914
      %v931 = vmul.f32 %v570, %v915
      %v932 = vmul.f32 %v571, %v916
      %v933 = vmul.f32 %v572, %v917
      %v934 = vmul.f32 %v573, %v918
      %v935 = vmul.f32 %v574, %v919
      %v936 = vmul.f32 %v575, %v920
      %v937 = vmul.f32 %v576, %v921
      %v938 = vmul.f32 %v577, %v922
      %v939 = vmul.f32 %v578, %v923
      %v940 = vmul.f32 %v579, %v924
      %v941 = vmul.f32 %v580, %v925
      %v942 = vmul.f32 %v581, %v926
      %v943 = vmul.f32 %v582, %v927
      %v944 = vmul.f32 %v583, %v928
      %961 = vrot.lane.b32.xlu0 %v929, 127
      %v962 = vpop.permute.xlu0 %961
      %963 = vrot.lane.b32.xlu0 %v930, 127
      %v964 = vpop.permute.xlu0 %963
      %965 = vrot.lane.b32.xlu0 %v931, 127
      %v966 = vpop.permute.xlu0 %965
      %967 = vrot.lane.b32.xlu0 %v932, 127
      %v968 = vpop.permute.xlu0 %967
      %969 = vrot.lane.b32.xlu0 %v933, 127
      %v970 = vpop.permute.xlu0 %969
      %971 = vrot.lane.b32.xlu0 %v934, 127
      %v972 = vpop.permute.xlu0 %971
      %973 = vrot.lane.b32.xlu0 %v935, 127
      %v974 = vpop.permute.xlu0 %973
      %975 = vrot.lane.b32.xlu0 %v936, 127
      %v976 = vpop.permute.xlu0 %975
      %977 = vrot.lane.b32.xlu0 %v937, 127
      %v978 = vpop.permute.xlu0 %977
      %979 = vrot.lane.b32.xlu0 %v938, 127
      %v980 = vpop.permute.xlu0 %979
      %981 = vrot.lane.b32.xlu0 %v939, 127
      %v982 = vpop.permute.xlu0 %981
      %983 = vrot.lane.b32.xlu0 %v940, 127
      %v984 = vpop.permute.xlu0 %983
      %985 = vrot.lane.b32.xlu0 %v941, 127
      %v986 = vpop.permute.xlu0 %985
      %987 = vrot.lane.b32.xlu0 %v942, 127
      %v988 = vpop.permute.xlu0 %987
      %989 = vrot.lane.b32.xlu0 %v943, 127
      %v990 = vpop.permute.xlu0 %989
      %991 = vrot.lane.b32.xlu0 %v944, 127
      %v992 = vpop.permute.xlu0 %991
      %v1009 = vadd.f32 %v897, %v962
      %v1010 = vadd.f32 %v898, %v964
      %v1011 = vadd.f32 %v899, %v966
      %v1012 = vadd.f32 %v900, %v968
      %v1013 = vadd.f32 %v901, %v970
      %v1014 = vadd.f32 %v902, %v972
      %v1015 = vadd.f32 %v903, %v974
      %v1016 = vadd.f32 %v904, %v976
      %v1017 = vadd.f32 %v905, %v978
      %v1018 = vadd.f32 %v906, %v980
      %v1019 = vadd.f32 %v907, %v982
      %v1020 = vadd.f32 %v908, %v984
      %v1021 = vadd.f32 %v909, %v986
      %v1022 = vadd.f32 %v910, %v988
      %v1023 = vadd.f32 %v911, %v990
      %v1024 = vadd.f32 %v912, %v992
      %v1025 = vld [vmem:[#allocation2 + $0x9] sm:$0xff]
      %v1026 = vld [vmem:[#allocation2 + $0x11] sm:$0xff]
      %v1027 = vld [vmem:[#allocation2 + $0x19] sm:$0xff]
      %v1028 = vld [vmem:[#allocation2 + $0x21] sm:$0xff]
      %v1029 = vld [vmem:[#allocation2 + $0x29] sm:$0xff]
      %v1030 = vld [vmem:[#allocation2 + $0x31] sm:$0xff]
      %v1031 = vld [vmem:[#allocation2 + $0x39] sm:$0xff]
      %v1032 = vld [vmem:[#allocation2 + $0x41] sm:$0xff]
      %v1033 = vld [vmem:[#allocation2 + $0x49] sm:$0xff]
      %v1034 = vld [vmem:[#allocation2 + $0x51] sm:$0xff]
      %v1035 = vld [vmem:[#allocation2 + $0x59] sm:$0xff]
      %v1036 = vld [vmem:[#allocation2 + $0x61] sm:$0xff]
      %v1037 = vld [vmem:[#allocation2 + $0x69] sm:$0xff]
      %v1038 = vld [vmem:[#allocation2 + $0x71] sm:$0xff]
      %v1039 = vld [vmem:[#allocation2 + $0x79] sm:$0xff]
      %v1040 = vld [vmem:[#allocation2 + $0x81] sm:$0xff]
      %v1041 = vmul.f32 %v568, %v1025
      %v1042 = vmul.f32 %v569, %v1026
      %v1043 = vmul.f32 %v570, %v1027
      %v1044 = vmul.f32 %v571, %v1028
      %v1045 = vmul.f32 %v572, %v1029
      %v1046 = vmul.f32 %v573, %v1030
      %v1047 = vmul.f32 %v574, %v1031
      %v1048 = vmul.f32 %v575, %v1032
      %v1049 = vmul.f32 %v576, %v1033
      %v1050 = vmul.f32 %v577, %v1034
      %v1051 = vmul.f32 %v578, %v1035
      %v1052 = vmul.f32 %v579, %v1036
      %v1053 = vmul.f32 %v580, %v1037
      %v1054 = vmul.f32 %v581, %v1038
      %v1055 = vmul.f32 %v582, %v1039
      %v1056 = vmul.f32 %v583, %v1040
      %1073 = vrot.lane.b32.xlu0 %v1041, 126
      %v1074 = vpop.permute.xlu0 %1073
      %1075 = vrot.lane.b32.xlu0 %v1042, 126
      %v1076 = vpop.permute.xlu0 %1075
      %1077 = vrot.lane.b32.xlu0 %v1043, 126
      %v1078 = vpop.permute.xlu0 %1077
      %1079 = vrot.lane.b32.xlu0 %v1044, 126
      %v1080 = vpop.permute.xlu0 %1079
      %1081 = vrot.lane.b32.xlu0 %v1045, 126
      %v1082 = vpop.permute.xlu0 %1081
      %1083 = vrot.lane.b32.xlu0 %v1046, 126
      %v1084 = vpop.permute.xlu0 %1083
      %1085 = vrot.lane.b32.xlu0 %v1047, 126
      %v1086 = vpop.permute.xlu0 %1085
      %1087 = vrot.lane.b32.xlu0 %v1048, 126
      %v1088 = vpop.permute.xlu0 %1087
      %1089 = vrot.lane.b32.xlu0 %v1049, 126
      %v1090 = vpop.permute.xlu0 %1089
      %1091 = vrot.lane.b32.xlu0 %v1050, 126
      %v1092 = vpop.permute.xlu0 %1091
      %1093 = vrot.lane.b32.xlu0 %v1051, 126
      %v1094 = vpop.permute.xlu0 %1093
      %1095 = vrot.lane.b32.xlu0 %v1052, 126
      %v1096 = vpop.permute.xlu0 %1095
      %1097 = vrot.lane.b32.xlu0 %v1053, 126
      %v1098 = vpop.permute.xlu0 %1097
      %1099 = vrot.lane.b32.xlu0 %v1054, 126
      %v1100 = vpop.permute.xlu0 %1099
      %1101 = vrot.lane.b32.xlu0 %v1055, 126
      %v1102 = vpop.permute.xlu0 %1101
      %1103 = vrot.lane.b32.xlu0 %v1056, 126
      %v1104 = vpop.permute.xlu0 %1103
      %v1121 = vadd.f32 %v1009, %v1074
      %v1122 = vadd.f32 %v1010, %v1076
      %v1123 = vadd.f32 %v1011, %v1078
      %v1124 = vadd.f32 %v1012, %v1080
      %v1125 = vadd.f32 %v1013, %v1082
      %v1126 = vadd.f32 %v1014, %v1084
      %v1127 = vadd.f32 %v1015, %v1086
      %v1128 = vadd.f32 %v1016, %v1088
      %v1129 = vadd.f32 %v1017, %v1090
      %v1130 = vadd.f32 %v1018, %v1092
      %v1131 = vadd.f32 %v1019, %v1094
      %v1132 = vadd.f32 %v1020, %v1096
      %v1133 = vadd.f32 %v1021, %v1098
      %v1134 = vadd.f32 %v1022, %v1100
      %v1135 = vadd.f32 %v1023, %v1102
      %v1136 = vadd.f32 %v1024, %v1104
      %v1137 = vld [vmem:[#allocation2 + $0x87] sm:$0xff]
      %v1138 = vmul.f32 %v568, %v866
      %v1139 = vmul.f32 %v569, %v867
      %v1140 = vmul.f32 %v570, %v868
      %v1141 = vmul.f32 %v571, %v869
      %v1142 = vmul.f32 %v572, %v870
      %v1143 = vmul.f32 %v573, %v871
      %v1144 = vmul.f32 %v574, %v872
      %v1145 = vmul.f32 %v575, %v873
      %v1146 = vmul.f32 %v576, %v874
      %v1147 = vmul.f32 %v577, %v875
      %v1148 = vmul.f32 %v578, %v876
      %v1149 = vmul.f32 %v579, %v877
      %v1150 = vmul.f32 %v580, %v878
      %v1151 = vmul.f32 %v581, %v879
      %v1152 = vmul.f32 %v582, %v880
      %v1153 = vmul.f32 %v583, %v1137
      %1170 = vrot.lane.b32.xlu0 %v1138, 125
      %v1171 = vpop.permute.xlu0 %1170
      %1172 = vrot.lane.b32.xlu0 %v1139, 125
      %v1173 = vpop.permute.xlu0 %1172
      %1174 = vrot.lane.b32.xlu0 %v1140, 125
      %v1175 = vpop.permute.xlu0 %1174
      %1176 = vrot.lane.b32.xlu0 %v1141, 125
      %v1177 = vpop.permute.xlu0 %1176
      %1178 = vrot.lane.b32.xlu0 %v1142, 125
      %v1179 = vpop.permute.xlu0 %1178
      %1180 = vrot.lane.b32.xlu0 %v1143, 125
      %v1181 = vpop.permute.xlu0 %1180
      %1182 = vrot.lane.b32.xlu0 %v1144, 125
      %v1183 = vpop.permute.xlu0 %1182
      %1184 = vrot.lane.b32.xlu0 %v1145, 125
      %v1185 = vpop.permute.xlu0 %1184
      %1186 = vrot.lane.b32.xlu0 %v1146, 125
      %v1187 = vpop.permute.xlu0 %1186
      %1188 = vrot.lane.b32.xlu0 %v1147, 125
      %v1189 = vpop.permute.xlu0 %1188
      %1190 = vrot.lane.b32.xlu0 %v1148, 125
      %v1191 = vpop.permute.xlu0 %1190
      %1192 = vrot.lane.b32.xlu0 %v1149, 125
      %v1193 = vpop.permute.xlu0 %1192
      %1194 = vrot.lane.b32.xlu0 %v1150, 125
      %v1195 = vpop.permute.xlu0 %1194
      %1196 = vrot.lane.b32.xlu0 %v1151, 125
      %v1197 = vpop.permute.xlu0 %1196
      %1198 = vrot.lane.b32.xlu0 %v1152, 125
      %v1199 = vpop.permute.xlu0 %1198
      %1200 = vrot.lane.b32.xlu0 %v1153, 125
      %v1201 = vpop.permute.xlu0 %1200
      %v1218 = vadd.f32 %v1121, %v1171
      %v1219 = vadd.f32 %v1122, %v1173
      %v1220 = vadd.f32 %v1123, %v1175
      %v1221 = vadd.f32 %v1124, %v1177
      %v1222 = vadd.f32 %v1125, %v1179
      %v1223 = vadd.f32 %v1126, %v1181
      %v1224 = vadd.f32 %v1127, %v1183
      %v1225 = vadd.f32 %v1128, %v1185
      %v1226 = vadd.f32 %v1129, %v1187
      %v1227 = vadd.f32 %v1130, %v1189
      %v1228 = vadd.f32 %v1131, %v1191
      %v1229 = vadd.f32 %v1132, %v1193
      %v1230 = vadd.f32 %v1133, %v1195
      %v1231 = vadd.f32 %v1134, %v1197
      %v1232 = vadd.f32 %v1135, %v1199
      %v1233 = vadd.f32 %v1136, %v1201
      %v1234 = vld [vmem:[#allocation2 + $0x88] sm:$0xff]
      %v1235 = vmul.f32 %v568, %v914
      %v1236 = vmul.f32 %v569, %v915
      %v1237 = vmul.f32 %v570, %v916
      %v1238 = vmul.f32 %v571, %v917
      %v1239 = vmul.f32 %v572, %v918
      %v1240 = vmul.f32 %v573, %v919
      %v1241 = vmul.f32 %v574, %v920
      %v1242 = vmul.f32 %v575, %v921
      %v1243 = vmul.f32 %v576, %v922
      %v1244 = vmul.f32 %v577, %v923
      %v1245 = vmul.f32 %v578, %v924
      %v1246 = vmul.f32 %v579, %v925
      %v1247 = vmul.f32 %v580, %v926
      %v1248 = vmul.f32 %v581, %v927
      %v1249 = vmul.f32 %v582, %v928
      %v1250 = vmul.f32 %v583, %v1234
      %1267 = vrot.lane.b32.xlu0 %v1235, 124
      %v1268 = vpop.permute.xlu0 %1267
      %1269 = vrot.lane.b32.xlu0 %v1236, 124
      %v1270 = vpop.permute.xlu0 %1269
      %1271 = vrot.lane.b32.xlu0 %v1237, 124
      %v1272 = vpop.permute.xlu0 %1271
      %1273 = vrot.lane.b32.xlu0 %v1238, 124
      %v1274 = vpop.permute.xlu0 %1273
      %1275 = vrot.lane.b32.xlu0 %v1239, 124
      %v1276 = vpop.permute.xlu0 %1275
      %1277 = vrot.lane.b32.xlu0 %v1240, 124
      %v1278 = vpop.permute.xlu0 %1277
      %1279 = vrot.lane.b32.xlu0 %v1241, 124
      %v1280 = vpop.permute.xlu0 %1279
      %1281 = vrot.lane.b32.xlu0 %v1242, 124
      %v1282 = vpop.permute.xlu0 %1281
      %1283 = vrot.lane.b32.xlu0 %v1243, 124
      %v1284 = vpop.permute.xlu0 %1283
      %1285 = vrot.lane.b32.xlu0 %v1244, 124
      %v1286 = vpop.permute.xlu0 %1285
      %1287 = vrot.lane.b32.xlu0 %v1245, 124
      %v1288 = vpop.permute.xlu0 %1287
      %1289 = vrot.lane.b32.xlu0 %v1246, 124
      %v1290 = vpop.permute.xlu0 %1289
      %1291 = vrot.lane.b32.xlu0 %v1247, 124
      %v1292 = vpop.permute.xlu0 %1291
      %1293 = vrot.lane.b32.xlu0 %v1248, 124
      %v1294 = vpop.permute.xlu0 %1293
      %1295 = vrot.lane.b32.xlu0 %v1249, 124
      %v1296 = vpop.permute.xlu0 %1295
      %1297 = vrot.lane.b32.xlu0 %v1250, 124
      %v1298 = vpop.permute.xlu0 %1297
      %v1315 = vadd.f32 %v1218, %v1268
      %v1316 = vadd.f32 %v1219, %v1270
      %v1317 = vadd.f32 %v1220, %v1272
      %v1318 = vadd.f32 %v1221, %v1274
      %v1319 = vadd.f32 %v1222, %v1276
      %v1320 = vadd.f32 %v1223, %v1278
      %v1321 = vadd.f32 %v1224, %v1280
      %v1322 = vadd.f32 %v1225, %v1282
      %v1323 = vadd.f32 %v1226, %v1284
      %v1324 = vadd.f32 %v1227, %v1286
      %v1325 = vadd.f32 %v1228, %v1288
      %v1326 = vadd.f32 %v1229, %v1290
      %v1327 = vadd.f32 %v1230, %v1292
      %v1328 = vadd.f32 %v1231, %v1294
      %v1329 = vadd.f32 %v1232, %v1296
      %v1330 = vadd.f32 %v1233, %v1298
      %v1331 = vld [vmem:[#allocation2 + $0x89] sm:$0xff]
      %v1332 = vmul.f32 %v568, %v1026
      %v1333 = vmul.f32 %v569, %v1027
      %v1334 = vmul.f32 %v570, %v1028
      %v1335 = vmul.f32 %v571, %v1029
      %v1336 = vmul.f32 %v572, %v1030
      %v1337 = vmul.f32 %v573, %v1031
      %v1338 = vmul.f32 %v574, %v1032
      %v1339 = vmul.f32 %v575, %v1033
      %v1340 = vmul.f32 %v576, %v1034
      %v1341 = vmul.f32 %v577, %v1035
      %v1342 = vmul.f32 %v578, %v1036
      %v1343 = vmul.f32 %v579, %v1037
      %v1344 = vmul.f32 %v580, %v1038
      %v1345 = vmul.f32 %v581, %v1039
      %v1346 = vmul.f32 %v582, %v1040
      %v1347 = vmul.f32 %v583, %v1331
      %1364 = vrot.lane.b32.xlu0 %v1332, 123
      %v1365 = vpop.permute.xlu0 %1364
      %1366 = vrot.lane.b32.xlu0 %v1333, 123
      %v1367 = vpop.permute.xlu0 %1366
      %1368 = vrot.lane.b32.xlu0 %v1334, 123
      %v1369 = vpop.permute.xlu0 %1368
      %1370 = vrot.lane.b32.xlu0 %v1335, 123
      %v1371 = vpop.permute.xlu0 %1370
      %1372 = vrot.lane.b32.xlu0 %v1336, 123
      %v1373 = vpop.permute.xlu0 %1372
      %1374 = vrot.lane.b32.xlu0 %v1337, 123
      %v1375 = vpop.permute.xlu0 %1374
      %1376 = vrot.lane.b32.xlu0 %v1338, 123
      %v1377 = vpop.permute.xlu0 %1376
      %1378 = vrot.lane.b32.xlu0 %v1339, 123
      %v1379 = vpop.permute.xlu0 %1378
      %1380 = vrot.lane.b32.xlu0 %v1340, 123
      %v1381 = vpop.permute.xlu0 %1380
      %1382 = vrot.lane.b32.xlu0 %v1341, 123
      %v1383 = vpop.permute.xlu0 %1382
      %1384 = vrot.lane.b32.xlu0 %v1342, 123
      %v1385 = vpop.permute.xlu0 %1384
      %1386 = vrot.lane.b32.xlu0 %v1343, 123
      %v1387 = vpop.permute.xlu0 %1386
      %1388 = vrot.lane.b32.xlu0 %v1344, 123
      %v1389 = vpop.permute.xlu0 %1388
      %1390 = vrot.lane.b32.xlu0 %v1345, 123
      %v1391 = vpop.permute.xlu0 %1390
      %1392 = vrot.lane.b32.xlu0 %v1346, 123
      %v1393 = vpop.permute.xlu0 %1392
      %1394 = vrot.lane.b32.xlu0 %v1347, 123
      %v1395 = vpop.permute.xlu0 %1394
      %v1412 = vadd.f32 %v1315, %v1365
      %v1413 = vadd.f32 %v1316, %v1367
      %v1414 = vadd.f32 %v1317, %v1369
      %v1415 = vadd.f32 %v1318, %v1371
      %v1416 = vadd.f32 %v1319, %v1373
      %v1417 = vadd.f32 %v1320, %v1375
      %v1418 = vadd.f32 %v1321, %v1377
      %v1419 = vadd.f32 %v1322, %v1379
      %v1420 = vadd.f32 %v1323, %v1381
      %v1421 = vadd.f32 %v1324, %v1383
      %v1422 = vadd.f32 %v1325, %v1385
      %v1423 = vadd.f32 %v1326, %v1387
      %v1424 = vadd.f32 %v1327, %v1389
      %v1425 = vadd.f32 %v1328, %v1391
      %v1426 = vadd.f32 %v1329, %v1393
      %v1427 = vadd.f32 %v1330, %v1395
      %v1428 = vld [vmem:[#allocation2 + $0x8f] sm:$0xff]
      %v1429 = vmul.f32 %v568, %v867
      %v1430 = vmul.f32 %v569, %v868
      %v1431 = vmul.f32 %v570, %v869
      %v1432 = vmul.f32 %v571, %v870
      %v1433 = vmul.f32 %v572, %v871
      %v1434 = vmul.f32 %v573, %v872
      %v1435 = vmul.f32 %v574, %v873
      %v1436 = vmul.f32 %v575, %v874
      %v1437 = vmul.f32 %v576, %v875
      %v1438 = vmul.f32 %v577, %v876
      %v1439 = vmul.f32 %v578, %v877
      %v1440 = vmul.f32 %v579, %v878
      %v1441 = vmul.f32 %v580, %v879
      %v1442 = vmul.f32 %v581, %v880
      %v1443 = vmul.f32 %v582, %v1137
      %v1444 = vmul.f32 %v583, %v1428
      %1461 = vrot.lane.b32.xlu0 %v1429, 122
      %v1462 = vpop.permute.xlu0 %1461
      %1463 = vrot.lane.b32.xlu0 %v1430, 122
      %v1464 = vpop.permute.xlu0 %1463
      %1465 = vrot.lane.b32.xlu0 %v1431, 122
      %v1466 = vpop.permute.xlu0 %1465
      %1467 = vrot.lane.b32.xlu0 %v1432, 122
      %v1468 = vpop.permute.xlu0 %1467
      %1469 = vrot.lane.b32.xlu0 %v1433, 122
      %v1470 = vpop.permute.xlu0 %1469
      %1471 = vrot.lane.b32.xlu0 %v1434, 122
      %v1472 = vpop.permute.xlu0 %1471
      %1473 = vrot.lane.b32.xlu0 %v1435, 122
      %v1474 = vpop.permute.xlu0 %1473
      %1475 = vrot.lane.b32.xlu0 %v1436, 122
      %v1476 = vpop.permute.xlu0 %1475
      %1477 = vrot.lane.b32.xlu0 %v1437, 122
      %v1478 = vpop.permute.xlu0 %1477
      %1479 = vrot.lane.b32.xlu0 %v1438, 122
      %v1480 = vpop.permute.xlu0 %1479
      %1481 = vrot.lane.b32.xlu0 %v1439, 122
      %v1482 = vpop.permute.xlu0 %1481
      %1483 = vrot.lane.b32.xlu0 %v1440, 122
      %v1484 = vpop.permute.xlu0 %1483
      %1485 = vrot.lane.b32.xlu0 %v1441, 122
      %v1486 = vpop.permute.xlu0 %1485
      %1487 = vrot.lane.b32.xlu0 %v1442, 122
      %v1488 = vpop.permute.xlu0 %1487
      %1489 = vrot.lane.b32.xlu0 %v1443, 122
      %v1490 = vpop.permute.xlu0 %1489
      %1491 = vrot.lane.b32.xlu0 %v1444, 122
      %v1492 = vpop.permute.xlu0 %1491
      %v1509 = vadd.f32 %v1412, %v1462
      %v1510 = vadd.f32 %v1413, %v1464
      %v1511 = vadd.f32 %v1414, %v1466
      %v1512 = vadd.f32 %v1415, %v1468
      %v1513 = vadd.f32 %v1416, %v1470
      %v1514 = vadd.f32 %v1417, %v1472
      %v1515 = vadd.f32 %v1418, %v1474
      %v1516 = vadd.f32 %v1419, %v1476
      %v1517 = vadd.f32 %v1420, %v1478
      %v1518 = vadd.f32 %v1421, %v1480
      %v1519 = vadd.f32 %v1422, %v1482
      %v1520 = vadd.f32 %v1423, %v1484
      %v1521 = vadd.f32 %v1424, %v1486
      %v1522 = vadd.f32 %v1425, %v1488
      %v1523 = vadd.f32 %v1426, %v1490
      %v1524 = vadd.f32 %v1427, %v1492
      %v1525 = vld [vmem:[#allocation2 + $0x90] sm:$0xff]
      %v1526 = vmul.f32 %v568, %v915
      %v1527 = vmul.f32 %v569, %v916
      %v1528 = vmul.f32 %v570, %v917
      %v1529 = vmul.f32 %v571, %v918
      %v1530 = vmul.f32 %v572, %v919
      %v1531 = vmul.f32 %v573, %v920
      %v1532 = vmul.f32 %v574, %v921
      %v1533 = vmul.f32 %v575, %v922
      %v1534 = vmul.f32 %v576, %v923
      %v1535 = vmul.f32 %v577, %v924
      %v1536 = vmul.f32 %v578, %v925
      %v1537 = vmul.f32 %v579, %v926
      %v1538 = vmul.f32 %v580, %v927
      %v1539 = vmul.f32 %v581, %v928
      %v1540 = vmul.f32 %v582, %v1234
      %v1541 = vmul.f32 %v583, %v1525
      %1558 = vrot.lane.b32.xlu0 %v1526, 121
      %v1559 = vpop.permute.xlu0 %1558
      %1560 = vrot.lane.b32.xlu0 %v1527, 121
      %v1561 = vpop.permute.xlu0 %1560
      %1562 = vrot.lane.b32.xlu0 %v1528, 121
      %v1563 = vpop.permute.xlu0 %1562
      %1564 = vrot.lane.b32.xlu0 %v1529, 121
      %v1565 = vpop.permute.xlu0 %1564
      %1566 = vrot.lane.b32.xlu0 %v1530, 121
      %v1567 = vpop.permute.xlu0 %1566
      %1568 = vrot.lane.b32.xlu0 %v1531, 121
      %v1569 = vpop.permute.xlu0 %1568
      %1570 = vrot.lane.b32.xlu0 %v1532, 121
      %v1571 = vpop.permute.xlu0 %1570
      %1572 = vrot.lane.b32.xlu0 %v1533, 121
      %v1573 = vpop.permute.xlu0 %1572
      %1574 = vrot.lane.b32.xlu0 %v1534, 121
      %v1575 = vpop.permute.xlu0 %1574
      %1576 = vrot.lane.b32.xlu0 %v1535, 121
      %v1577 = vpop.permute.xlu0 %1576
      %1578 = vrot.lane.b32.xlu0 %v1536, 121
      %v1579 = vpop.permute.xlu0 %1578
      %1580 = vrot.lane.b32.xlu0 %v1537, 121
      %v1581 = vpop.permute.xlu0 %1580
      %1582 = vrot.lane.b32.xlu0 %v1538, 121
      %v1583 = vpop.permute.xlu0 %1582
      %1584 = vrot.lane.b32.xlu0 %v1539, 121
      %v1585 = vpop.permute.xlu0 %1584
      %1586 = vrot.lane.b32.xlu0 %v1540, 121
      %v1587 = vpop.permute.xlu0 %1586
      %1588 = vrot.lane.b32.xlu0 %v1541, 121
      %v1589 = vpop.permute.xlu0 %1588
      %v1606 = vadd.f32 %v1509, %v1559
      %v1607 = vadd.f32 %v1510, %v1561
      %v1608 = vadd.f32 %v1511, %v1563
      %v1609 = vadd.f32 %v1512, %v1565
      %v1610 = vadd.f32 %v1513, %v1567
      %v1611 = vadd.f32 %v1514, %v1569
      %v1612 = vadd.f32 %v1515, %v1571
      %v1613 = vadd.f32 %v1516, %v1573
      %v1614 = vadd.f32 %v1517, %v1575
      %v1615 = vadd.f32 %v1518, %v1577
      %v1616 = vadd.f32 %v1519, %v1579
      %v1617 = vadd.f32 %v1520, %v1581
      %v1618 = vadd.f32 %v1521, %v1583
      %v1619 = vadd.f32 %v1522, %v1585
      %v1620 = vadd.f32 %v1523, %v1587
      %v1621 = vadd.f32 %v1524, %v1589
      %v1622 = vld [vmem:[#allocation2 + $0x91] sm:$0xff]
      %v1623 = vmul.f32 %v568, %v1027
      %v1624 = vmul.f32 %v569, %v1028
      %v1625 = vmul.f32 %v570, %v1029
      %v1626 = vmul.f32 %v571, %v1030
      %v1627 = vmul.f32 %v572, %v1031
      %v1628 = vmul.f32 %v573, %v1032
      %v1629 = vmul.f32 %v574, %v1033
      %v1630 = vmul.f32 %v575, %v1034
      %v1631 = vmul.f32 %v576, %v1035
      %v1632 = vmul.f32 %v577, %v1036
      %v1633 = vmul.f32 %v578, %v1037
      %v1634 = vmul.f32 %v579, %v1038
      %v1635 = vmul.f32 %v580, %v1039
      %v1636 = vmul.f32 %v581, %v1040
      %v1637 = vmul.f32 %v582, %v1331
      %v1638 = vmul.f32 %v583, %v1622
      %1655 = vrot.lane.b32.xlu0 %v1623, 120
      %v1656 = vpop.permute.xlu0 %1655
      %1657 = vrot.lane.b32.xlu0 %v1624, 120
      %v1658 = vpop.permute.xlu0 %1657
      %1659 = vrot.lane.b32.xlu0 %v1625, 120
      %v1660 = vpop.permute.xlu0 %1659
      %1661 = vrot.lane.b32.xlu0 %v1626, 120
      %v1662 = vpop.permute.xlu0 %1661
      %1663 = vrot.lane.b32.xlu0 %v1627, 120
      %v1664 = vpop.permute.xlu0 %1663
      %1665 = vrot.lane.b32.xlu0 %v1628, 120
      %v1666 = vpop.permute.xlu0 %1665
      %1667 = vrot.lane.b32.xlu0 %v1629, 120
      %v1668 = vpop.permute.xlu0 %1667
      %1669 = vrot.lane.b32.xlu0 %v1630, 120
      %v1670 = vpop.permute.xlu0 %1669
      %1671 = vrot.lane.b32.xlu0 %v1631, 120
      %v1672 = vpop.permute.xlu0 %1671
      %1673 = vrot.lane.b32.xlu0 %v1632, 120
      %v1674 = vpop.permute.xlu0 %1673
      %1675 = vrot.lane.b32.xlu0 %v1633, 120
      %v1676 = vpop.permute.xlu0 %1675
      %1677 = vrot.lane.b32.xlu0 %v1634, 120
      %v1678 = vpop.permute.xlu0 %1677
      %1679 = vrot.lane.b32.xlu0 %v1635, 120
      %v1680 = vpop.permute.xlu0 %1679
      %1681 = vrot.lane.b32.xlu0 %v1636, 120
      %v1682 = vpop.permute.xlu0 %1681
      %1683 = vrot.lane.b32.xlu0 %v1637, 120
      %v1684 = vpop.permute.xlu0 %1683
      %1685 = vrot.lane.b32.xlu0 %v1638, 120
      %v1686 = vpop.permute.xlu0 %1685
      %v1703 = vadd.f32 %v1606, %v1656
      %v1704 = vadd.f32 %v1607, %v1658
      %v1705 = vadd.f32 %v1608, %v1660
      %v1706 = vadd.f32 %v1609, %v1662
      %v1707 = vadd.f32 %v1610, %v1664
      %v1708 = vadd.f32 %v1611, %v1666
      %v1709 = vadd.f32 %v1612, %v1668
      %v1710 = vadd.f32 %v1613, %v1670
      %v1711 = vadd.f32 %v1614, %v1672
      %v1712 = vadd.f32 %v1615, %v1674
      %v1713 = vadd.f32 %v1616, %v1676
      %v1714 = vadd.f32 %v1617, %v1678
      %v1715 = vadd.f32 %v1618, %v1680
      %v1716 = vadd.f32 %v1619, %v1682
      %v1717 = vadd.f32 %v1620, %v1684
      %v1718 = vadd.f32 %v1621, %v1686
      %v1719 = vld [vmem:[%s7] sm:$0xf]
      %v1720 = vld [vmem:[%s7 + $0x4] sm:$0xf]
      %v1721 = vld [vmem:[%s7 + $0x8] sm:$0xf]
      %v1722 = vld [vmem:[%s7 + $0xc] sm:$0xf]
      %v1723 = vld [vmem:[%s8] sm:$0x1]
      %v1725 = vlaneseq
      %v1726 = vshrl.u32 %v1725, 7
      %v1727 = vsub.s32 0, %v1726
      %v1728 = vrot.slane %v1723, %v1727
      %v1746 = vunpack.c.l.b16 %v520
      %v1747 = vunpack.c.l.b16 %v521
      %v1748 = vunpack.c.l.b16 %v522
      %v1749 = vunpack.c.l.b16 %v523
      %v1750 = vunpack.c.l.b16 %v524
      %v1751 = vunpack.c.l.b16 %v525
      %v1752 = vunpack.c.l.b16 %v526
      %v1753 = vunpack.c.l.b16 %v527
      %v1754 = vunpack.c.l.b16 %v528
      %v1755 = vunpack.c.l.b16 %v529
      %v1756 = vunpack.c.l.b16 %v530
      %v1757 = vunpack.c.l.b16 %v531
      %v1758 = vunpack.c.l.b16 %v532
      %v1759 = vunpack.c.l.b16 %v533
      %v1760 = vunpack.c.l.b16 %v534
      %v1761 = vunpack.c.l.b16 %v535
      %v1762 = vpack.c.b16 %v1747, %v1746
      %v1763 = vpack.c.b16 %v1749, %v1748
      %v1764 = vpack.c.b16 %v1751, %v1750
      %v1765 = vpack.c.b16 %v1753, %v1752
      %v1766 = vpack.c.b16 %v1755, %v1754
      %v1767 = vpack.c.b16 %v1757, %v1756
      %v1768 = vpack.c.b16 %v1759, %v1758
      %v1769 = vpack.c.b16 %v1761, %v1760
      %v1774 = vunpack.c.l.b16 %v1719
      %v1775 = vunpack.c.l.b16 %v1720
      %v1776 = vunpack.c.l.b16 %v1721
      %v1777 = vunpack.c.l.b16 %v1722
      %v1778 = vpack.c.b16 %v1775, %v1774
      %v1779 = vpack.c.b16 %v1777, %v1776
      %v1783 = vsel %vm706, %v1762, 0
      %v1786 = vsel %vm706, %v1763, 0
      %v1789 = vsel %vm706, %v1764, 0
      %v1792 = vsel %vm706, %v1765, 0
      %v1795 = vsel %vm706, %v1766, 0
      %v1798 = vsel %vm706, %v1767, 0
      %v1801 = vsel %vm706, %v1768, 0
      %v1804 = vsel %vm706, %v1769, 0
      %1806 = vmatprep.subr.bf16.mxu0 0
      %1807 = vmatpush1.bf16.msra.mxu0 0
      %1808 = vmatprep.subr.bf16.mxu0 0
      %1809 = vmatpush1.bf16.msra.mxu0 0
      %1810 = vmatprep.subr.bf16.mxu0 0
      %1811 = vmatpush1.bf16.msra.mxu0 0
      %1812 = vmatprep.subr.bf16.mxu0 0
      %1813 = vmatpush1.bf16.msra.mxu0 0
      %1814 = vmatprep.subr.bf16.mxu0 0
      %1815 = vmatpush1.bf16.msra.mxu0 0
      %1816 = vmatprep.subr.bf16.mxu0 0
      %1817 = vmatpush1.bf16.msra.mxu0 0
      %1818 = vmatprep.subr.bf16.mxu0 0
      %1819 = vmatpush1.bf16.msra.mxu0 %v1779
      %1820 = vmatprep.subr.bf16.mxu0 0
      %1821 = vmatpush1.bf16.msra.mxu0 %v1778
      %1822 = vmatprep.subr.bf16.mxu0 0
      %1823 = vmatpush2.bf16.msra.mxu0 0
      %1824 = vmatprep.subr.bf16.mxu0 0
      %1825 = vmatpush2.bf16.msra.mxu0 0
      %1826 = vmatprep.subr.bf16.mxu0 0
      %1827 = vmatpush2.bf16.msra.mxu0 0
      %1828 = vmatprep.subr.bf16.mxu0 0
      %1829 = vmatpush2.bf16.msra.mxu0 0
      %1830 = vmatprep.subr.bf16.mxu0 0
      %1831 = vmatpush2.bf16.msra.mxu0 0
      %1832 = vmatprep.subr.bf16.mxu0 0
      %1833 = vmatpush2.bf16.msra.mxu0 0
      %1834 = vmatprep.subr.bf16.mxu0 0
      %1835 = vmatpush2.bf16.msra.mxu0 0
      %1836 = vmatprep.subr.bf16.mxu0 0
      %1837 = vmatpush2.bf16.msra.mxu0 0
      %1838 = vmatprep.mubr.bf16.mxu0 0
      %1839 = vmatmul.mubr.bf16.gmra.mxu0 %v1783
      %v1840 = vpop.f32.mrf.mxu0
      %v1841 = vadd.f32 %v1728, %v1840
      %v1842 = vpop.f32.mrf.mxu0
      %v1843 = vpop.f32.mrf.mxu0
      %v1844 = vadd.f32 %v1728, %v1843
      %v1845 = vpop.f32.mrf.mxu0
      %1846 = vmatprep.mubr.bf16.mxu0 0
      %1847 = vmatmul.mubr.bf16.gmra.mxu0 %v1786
      %v1848 = vpop.f32.mrf.mxu0
      %v1849 = vadd.f32 %v1728, %v1848
      %v1850 = vpop.f32.mrf.mxu0
      %v1851 = vpop.f32.mrf.mxu0
      %v1852 = vadd.f32 %v1728, %v1851
      %v1853 = vpop.f32.mrf.mxu0
      %1854 = vmatprep.mubr.bf16.mxu0 0
      %1855 = vmatmul.mubr.bf16.gmra.mxu0 %v1789
      %v1856 = vpop.f32.mrf.mxu0
      %v1857 = vadd.f32 %v1728, %v1856
      %v1858 = vpop.f32.mrf.mxu0
      %v1859 = vpop.f32.mrf.mxu0
      %v1860 = vadd.f32 %v1728, %v1859
      %v1861 = vpop.f32.mrf.mxu0
      %1862 = vmatprep.mubr.bf16.mxu0 0
      %1863 = vmatmul.mubr.bf16.gmra.mxu0 %v1792
      %v1864 = vpop.f32.mrf.mxu0
      %v1865 = vadd.f32 %v1728, %v1864
      %v1866 = vpop.f32.mrf.mxu0
      %v1867 = vpop.f32.mrf.mxu0
      %v1868 = vadd.f32 %v1728, %v1867
      %v1869 = vpop.f32.mrf.mxu0
      %1870 = vmatprep.mubr.bf16.mxu0 0
      %1871 = vmatmul.mubr.bf16.gmra.mxu0 %v1795
      %v1872 = vpop.f32.mrf.mxu0
      %v1873 = vadd.f32 %v1728, %v1872
      %v1874 = vpop.f32.mrf.mxu0
      %v1875 = vpop.f32.mrf.mxu0
      %v1876 = vadd.f32 %v1728, %v1875
      %v1877 = vpop.f32.mrf.mxu0
      %1878 = vmatprep.mubr.bf16.mxu0 0
      %1879 = vmatmul.mubr.bf16.gmra.mxu0 %v1798
      %v1880 = vpop.f32.mrf.mxu0
      %v1881 = vadd.f32 %v1728, %v1880
      %v1882 = vpop.f32.mrf.mxu0
      %v1883 = vpop.f32.mrf.mxu0
      %v1884 = vadd.f32 %v1728, %v1883
      %v1885 = vpop.f32.mrf.mxu0
      %1886 = vmatprep.mubr.bf16.mxu0 0
      %1887 = vmatmul.mubr.bf16.gmra.mxu0 %v1801
      %v1888 = vpop.f32.mrf.mxu0
      %v1889 = vadd.f32 %v1728, %v1888
      %v1890 = vpop.f32.mrf.mxu0
      %v1891 = vpop.f32.mrf.mxu0
      %v1892 = vadd.f32 %v1728, %v1891
      %v1893 = vpop.f32.mrf.mxu0
      %1894 = vmatprep.mubr.bf16.mxu0 0
      %1895 = vmatmul.mubr.bf16.gmra.mxu0 %v1804
      %v1896 = vpop.f32.mrf.mxu0
      %v1897 = vadd.f32 %v1728, %v1896
      %v1898 = vpop.f32.mrf.mxu0
      %v1899 = vpop.f32.mrf.mxu0
      %v1900 = vadd.f32 %v1728, %v1899
      %v1901 = vpop.f32.mrf.mxu0
      %1902 = vdwg.mxu0
      %v1903 = vtanh.pop %v1841
      %v1904 = vtanh.pop %v1844
      %v1905 = vtanh.pop %v1849
      %v1906 = vtanh.pop %v1852
      %v1907 = vtanh.pop %v1857
      %v1908 = vtanh.pop %v1860
      %v1909 = vtanh.pop %v1865
      %v1910 = vtanh.pop %v1868
      %v1911 = vtanh.pop %v1873
      %v1912 = vtanh.pop %v1876
      %v1913 = vtanh.pop %v1881
      %v1914 = vtanh.pop %v1884
      %v1915 = vtanh.pop %v1889
      %v1916 = vtanh.pop %v1892
      %v1917 = vtanh.pop %v1897
      %v1918 = vtanh.pop %v1900
      %v1919 = vld [vmem:[%s9] sm:$0xff]
      %v1920 = vld [vmem:[%s9 + $0x8] sm:$0xff]
      %v1921 = vld [vmem:[%s9 + $0x10] sm:$0xff]
      %v1922 = vld [vmem:[%s9 + $0x18] sm:$0xff]
      %v1923 = vld [vmem:[%s9 + $0x20] sm:$0xff]
      %v1924 = vld [vmem:[%s9 + $0x28] sm:$0xff]
      %v1925 = vld [vmem:[%s10] sm:$0x1]
      %v1927 = vlaneseq
      %v1928 = vshrl.u32 %v1927, 7
      %v1929 = vsub.s32 0, %v1928
      %v1930 = vrot.slane %v1925, %v1929
      %vm1932 = vcmask 392192
      %v1934 = vsel %vm1932, %v1903, 0
      %v1937 = vsel %vm1932, %v1904, 0
      %v1940 = vsel %vm1932, %v1905, 0
      %v1943 = vsel %vm1932, %v1906, 0
      %v1946 = vsel %vm1932, %v1907, 0
      %v1949 = vsel %vm1932, %v1908, 0
      %v1952 = vsel %vm1932, %v1909, 0
      %v1955 = vsel %vm1932, %v1910, 0
      %v1958 = vsel %vm1932, %v1911, 0
      %v1961 = vsel %vm1932, %v1912, 0
      %v1964 = vsel %vm1932, %v1913, 0
      %v1967 = vsel %vm1932, %v1914, 0
      %v1970 = vsel %vm1932, %v1915, 0
      %v1973 = vsel %vm1932, %v1916, 0
      %v1976 = vsel %vm1932, %v1917, 0
      %v1979 = vsel %vm1932, %v1918, 0
      %1981 = vmatprep.subr.mxu0 0.0
      %1982 = vmatpush1.msra.mxu0 0.0
      %1983 = vmatprep.subr.mxu0 0.0
      %1984 = vmatpush1.msra.mxu0 0.0
      %1985 = vmatprep.subr.mxu0 0.0
      %1986 = vmatpush1.msra.mxu0 0.0
      %1987 = vmatprep.subr.mxu0 0.0
      %1988 = vmatpush1.msra.mxu0 0.0
      %1989 = vmatprep.subr.mxu0 0.0
      %1990 = vmatpush1.msra.mxu0 0.0
      %1991 = vmatprep.subr.mxu0 0.0
      %1992 = vmatpush1.msra.mxu0 0.0
      %1993 = vmatprep.subr.mxu0 0.0
      %1994 = vmatpush1.msra.mxu0 0.0
      %1995 = vmatprep.subr.mxu0 0.0
      %1996 = vmatpush1.msra.mxu0 0.0
      %1997 = vmatprep.subr.mxu0 0.0
      %1998 = vmatpush1.msra.mxu0 0.0
      %1999 = vmatprep.subr.mxu0 0.0
      %2000 = vmatpush1.msra.mxu0 0.0
      %2001 = vmatprep.subr.mxu0 0.0
      %2002 = vmatpush1.msra.mxu0 %v1924
      %2003 = vmatprep.subr.mxu0 0.0
      %2004 = vmatpush1.msra.mxu0 %v1923
      %2005 = vmatprep.subr.mxu0 0.0
      %2006 = vmatpush1.msra.mxu0 %v1922
      %2007 = vmatprep.subr.mxu0 0.0
      %2008 = vmatpush1.msra.mxu0 %v1921
      %2009 = vmatprep.subr.mxu0 0.0
      %2010 = vmatpush1.msra.mxu0 %v1920
      %2011 = vmatprep.subr.mxu0 0.0
      %2012 = vmatpush1.msra.mxu0 %v1919
      %2013 = vmatprep.subr.mxu0 0.0
      %2014 = vmatpush2.msra.mxu0 0.0
      %2015 = vmatprep.subr.mxu0 0.0
      %2016 = vmatpush2.msra.mxu0 0.0
      %2017 = vmatprep.subr.mxu0 0.0
      %2018 = vmatpush2.msra.mxu0 0.0
      %2019 = vmatprep.subr.mxu0 0.0
      %2020 = vmatpush2.msra.mxu0 0.0
      %2021 = vmatprep.subr.mxu0 0.0
      %2022 = vmatpush2.msra.mxu0 0.0
      %2023 = vmatprep.subr.mxu0 0.0
      %2024 = vmatpush2.msra.mxu0 0.0
      %2025 = vmatprep.subr.mxu0 0.0
      %2026 = vmatpush2.msra.mxu0 0.0
      %2027 = vmatprep.subr.mxu0 0.0
      %2028 = vmatpush2.msra.mxu0 0.0
      %2029 = vmatprep.subr.mxu0 0.0
      %2030 = vmatpush2.msra.mxu0 0.0
      %2031 = vmatprep.subr.mxu0 0.0
      %2032 = vmatpush2.msra.mxu0 0.0
      %2033 = vmatprep.subr.mxu0 0.0
      %2034 = vmatpush2.msra.mxu0 0.0
      %2035 = vmatprep.subr.mxu0 0.0
      %2036 = vmatpush2.msra.mxu0 0.0
      %2037 = vmatprep.subr.mxu0 0.0
      %2038 = vmatpush2.msra.mxu0 0.0
      %2039 = vmatprep.subr.mxu0 0.0
      %2040 = vmatpush2.msra.mxu0 0.0
      %2041 = vmatprep.subr.mxu0 0.0
      %2042 = vmatpush2.msra.mxu0 0.0
      %2043 = vmatprep.subr.mxu0 0.0
      %2044 = vmatpush2.msra.mxu0 0.0
      %2045 = vmatprep.mubr.f32.mxu0 0.0
      %2046 = vmatmul.mubr.f32.gmra.mxu0 %v1934
      %v2047 = vpop.f32.mrf.mxu0
      %v2048 = vadd.f32 %v1930, %v2047
      %v2049 = vpop.f32.mrf.mxu0
      %2050 = vmatprep.mubr.f32.mxu0 0.0
      %2051 = vmatmul.mubr.f32.gmra.mxu0 %v1937
      %v2052 = vpop.f32.mrf.mxu0
      %v2053 = vadd.f32 %v1930, %v2052
      %v2054 = vpop.f32.mrf.mxu0
      %2055 = vmatprep.mubr.f32.mxu0 0.0
      %2056 = vmatmul.mubr.f32.gmra.mxu0 %v1940
      %v2057 = vpop.f32.mrf.mxu0
      %v2058 = vadd.f32 %v1930, %v2057
      %v2059 = vpop.f32.mrf.mxu0
      %2060 = vmatprep.mubr.f32.mxu0 0.0
      %2061 = vmatmul.mubr.f32.gmra.mxu0 %v1943
      %v2062 = vpop.f32.mrf.mxu0
      %v2063 = vadd.f32 %v1930, %v2062
      %v2064 = vpop.f32.mrf.mxu0
      %2065 = vmatprep.mubr.f32.mxu0 0.0
      %2066 = vmatmul.mubr.f32.gmra.mxu0 %v1946
      %v2067 = vpop.f32.mrf.mxu0
      %v2068 = vadd.f32 %v1930, %v2067
      %v2069 = vpop.f32.mrf.mxu0
      %2070 = vmatprep.mubr.f32.mxu0 0.0
      %2071 = vmatmul.mubr.f32.gmra.mxu0 %v1949
      %v2072 = vpop.f32.mrf.mxu0
      %v2073 = vadd.f32 %v1930, %v2072
      %v2074 = vpop.f32.mrf.mxu0
      %2075 = vmatprep.mubr.f32.mxu0 0.0
      %2076 = vmatmul.mubr.f32.gmra.mxu0 %v1952
      %v2077 = vpop.f32.mrf.mxu0
      %v2078 = vadd.f32 %v1930, %v2077
      %v2079 = vpop.f32.mrf.mxu0
      %2080 = vmatprep.mubr.f32.mxu0 0.0
      %2081 = vmatmul.mubr.f32.gmra.mxu0 %v1955
      %v2082 = vpop.f32.mrf.mxu0
      %v2083 = vadd.f32 %v1930, %v2082
      %v2084 = vpop.f32.mrf.mxu0
      %2085 = vmatprep.mubr.f32.mxu0 0.0
      %2086 = vmatmul.mubr.f32.gmra.mxu0 %v1958
      %v2087 = vpop.f32.mrf.mxu0
      %v2088 = vadd.f32 %v1930, %v2087
      %v2089 = vpop.f32.mrf.mxu0
      %2090 = vmatprep.mubr.f32.mxu0 0.0
      %2091 = vmatmul.mubr.f32.gmra.mxu0 %v1961
      %v2092 = vpop.f32.mrf.mxu0
      %v2093 = vadd.f32 %v1930, %v2092
      %v2094 = vpop.f32.mrf.mxu0
      %2095 = vmatprep.mubr.f32.mxu0 0.0
      %2096 = vmatmul.mubr.f32.gmra.mxu0 %v1964
      %v2097 = vpop.f32.mrf.mxu0
      %v2098 = vadd.f32 %v1930, %v2097
      %v2099 = vpop.f32.mrf.mxu0
      %2100 = vmatprep.mubr.f32.mxu0 0.0
      %2101 = vmatmul.mubr.f32.gmra.mxu0 %v1967
      %v2102 = vpop.f32.mrf.mxu0
      %v2103 = vadd.f32 %v1930, %v2102
      %v2104 = vpop.f32.mrf.mxu0
      %2105 = vmatprep.mubr.f32.mxu0 0.0
      %2106 = vmatmul.mubr.f32.gmra.mxu0 %v1970
      %v2107 = vpop.f32.mrf.mxu0
      %v2108 = vadd.f32 %v1930, %v2107
      %v2109 = vpop.f32.mrf.mxu0
      %2110 = vmatprep.mubr.f32.mxu0 0.0
      %2111 = vmatmul.mubr.f32.gmra.mxu0 %v1973
      %v2112 = vpop.f32.mrf.mxu0
      %v2113 = vadd.f32 %v1930, %v2112
      %v2114 = vpop.f32.mrf.mxu0
      %2115 = vmatprep.mubr.f32.mxu0 0.0
      %2116 = vmatmul.mubr.f32.gmra.mxu0 %v1976
      %v2117 = vpop.f32.mrf.mxu0
      %v2118 = vadd.f32 %v1930, %v2117
      %v2119 = vpop.f32.mrf.mxu0
      %2120 = vmatprep.mubr.f32.mxu0 0.0
      %2121 = vmatmul.mubr.f32.gmra.mxu0 %v1979
      %v2122 = vpop.f32.mrf.mxu0
      %v2123 = vadd.f32 %v1930, %v2122
      %v2124 = vpop.f32.mrf.mxu0
      %2125 = vdwg.mxu0
      %v2126 = vlaneseq
      %v2127 = vand.u32 %v2126, 127
      %vm2128 = vcmp.eq.s32.totalorder %v2127, 0
      %v2129 = vsel %vm2128, 1, 0
      %v2130 = vcvt.s32.f32 %v2129
      %2132 = vset.pattern.permute.xlu0 0
      %2133 = vperm.xlu0 %2132, %v1703
      %v2134 = vpop.permute.xlu0 %2133
      %2137 = vset.pattern.permute.xlu0 0
      %2138 = vperm.xlu0 %2137, %v1704
      %v2139 = vpop.permute.xlu0 %2138
      %2142 = vset.pattern.permute.xlu0 0
      %2143 = vperm.xlu0 %2142, %v1705
      %v2144 = vpop.permute.xlu0 %2143
      %2147 = vset.pattern.permute.xlu0 0
      %2148 = vperm.xlu0 %2147, %v1706
      %v2149 = vpop.permute.xlu0 %2148
      %2152 = vset.pattern.permute.xlu0 0
      %2153 = vperm.xlu0 %2152, %v1707
      %v2154 = vpop.permute.xlu0 %2153
      %2157 = vset.pattern.permute.xlu0 0
      %2158 = vperm.xlu0 %2157, %v1708
      %v2159 = vpop.permute.xlu0 %2158
      %2162 = vset.pattern.permute.xlu0 0
      %2163 = vperm.xlu0 %2162, %v1709
      %v2164 = vpop.permute.xlu0 %2163
      %2167 = vset.pattern.permute.xlu0 0
      %2168 = vperm.xlu0 %2167, %v1710
      %v2169 = vpop.permute.xlu0 %2168
      %2172 = vset.pattern.permute.xlu0 0
      %2173 = vperm.xlu0 %2172, %v1711
      %v2174 = vpop.permute.xlu0 %2173
      %2177 = vset.pattern.permute.xlu0 0
      %2178 = vperm.xlu0 %2177, %v1712
      %v2179 = vpop.permute.xlu0 %2178
      %2182 = vset.pattern.permute.xlu0 0
      %2183 = vperm.xlu0 %2182, %v1713
      %v2184 = vpop.permute.xlu0 %2183
      %2187 = vset.pattern.permute.xlu0 0
      %2188 = vperm.xlu0 %2187, %v1714
      %v2189 = vpop.permute.xlu0 %2188
      %2192 = vset.pattern.permute.xlu0 0
      %2193 = vperm.xlu0 %2192, %v1715
      %v2194 = vpop.permute.xlu0 %2193
      %2197 = vset.pattern.permute.xlu0 0
      %2198 = vperm.xlu0 %2197, %v1716
      %v2199 = vpop.permute.xlu0 %2198
      %2202 = vset.pattern.permute.xlu0 0
      %2203 = vperm.xlu0 %2202, %v1717
      %v2204 = vpop.permute.xlu0 %2203
      %2207 = vset.pattern.permute.xlu0 0
      %2208 = vperm.xlu0 %2207, %v1718
      %v2209 = vpop.permute.xlu0 %2208
      %v2211 = vmul.f32 %v2134, %v2130
      %v2212 = vmul.f32 %v2139, %v2130
      %v2213 = vmul.f32 %v2144, %v2130
      %v2214 = vmul.f32 %v2149, %v2130
      %v2215 = vmul.f32 %v2154, %v2130
      %v2216 = vmul.f32 %v2159, %v2130
      %v2217 = vmul.f32 %v2164, %v2130
      %v2218 = vmul.f32 %v2169, %v2130
      %v2219 = vmul.f32 %v2174, %v2130
      %v2220 = vmul.f32 %v2179, %v2130
      %v2221 = vmul.f32 %v2184, %v2130
      %v2222 = vmul.f32 %v2189, %v2130
      %v2223 = vmul.f32 %v2194, %v2130
      %v2224 = vmul.f32 %v2199, %v2130
      %v2225 = vmul.f32 %v2204, %v2130
      %v2226 = vmul.f32 %v2209, %v2130
      %v2227 = vadd.f32 %v2048, %v2211
      %v2228 = vadd.f32 %v2053, %v2212
      %v2229 = vadd.f32 %v2058, %v2213
      %v2230 = vadd.f32 %v2063, %v2214
      %v2231 = vadd.f32 %v2068, %v2215
      %v2232 = vadd.f32 %v2073, %v2216
      %v2233 = vadd.f32 %v2078, %v2217
      %v2234 = vadd.f32 %v2083, %v2218
      %v2235 = vadd.f32 %v2088, %v2219
      %v2236 = vadd.f32 %v2093, %v2220
      %v2237 = vadd.f32 %v2098, %v2221
      %v2238 = vadd.f32 %v2103, %v2222
      %v2239 = vadd.f32 %v2108, %v2223
      %v2240 = vadd.f32 %v2113, %v2224
      %v2241 = vadd.f32 %v2118, %v2225
      %v2242 = vadd.f32 %v2123, %v2226
      %vm2243 = vcmask 31744
      %v2244 = vsel %vm2243, %v2227, -inf
      %v2245 = vsel %vm2243, %v2228, -inf
      %v2246 = vsel %vm2243, %v2229, -inf
      %v2247 = vsel %vm2243, %v2230, -inf
      %v2248 = vsel %vm2243, %v2231, -inf
      %v2249 = vmax.f32 %v2244, %v2248
      %v2250 = vsel %vm2243, %v2232, -inf
      %v2251 = vmax.f32 %v2245, %v2250
      %v2252 = vsel %vm2243, %v2233, -inf
      %v2253 = vmax.f32 %v2246, %v2252
      %v2254 = vsel %vm2243, %v2234, -inf
      %v2255 = vmax.f32 %v2247, %v2254
      %v2256 = vsel %vm2243, %v2235, -inf
      %v2257 = vmax.f32 %v2249, %v2256
      %v2258 = vsel %vm2243, %v2236, -inf
      %v2259 = vmax.f32 %v2251, %v2258
      %v2260 = vsel %vm2243, %v2237, -inf
      %v2261 = vmax.f32 %v2253, %v2260
      %v2262 = vsel %vm2243, %v2238, -inf
      %v2263 = vmax.f32 %v2255, %v2262
      %v2264 = vsel %vm2243, %v2239, -inf
      %v2265 = vmax.f32 %v2257, %v2264
      %v2266 = vsel %vm2243, %v2240, -inf
      %v2267 = vmax.f32 %v2259, %v2266
      %v2268 = vsel %vm2243, %v2241, -inf
      %v2269 = vmax.f32 %v2261, %v2268
      %v2270 = vsel %vm2243, %v2242, -inf
      %v2271 = vmax.f32 %v2263, %v2270
      %v2272 = vmax.f32 %v2265, %v2267
      %v2273 = vmax.f32 %v2269, %v2271
      %v2274 = vmax.f32 %v2272, %v2273
      %v2275 = vrot.slane %v2274, 4
      %v2276 = vmax.f32 %v2274, %v2275
      %v2277 = vrot.slane %v2276, 2
      %v2278 = vmax.f32 %v2276, %v2277
      %v2279 = vrot.slane %v2278, 1
      %v2280 = vmax.f32 %v2278, %v2279
      %v2281 = vsub.f32 %v2227, %v2280
      %v2282 = vsub.f32 %v2228, %v2280
      %v2283 = vsub.f32 %v2229, %v2280
      %v2284 = vsub.f32 %v2230, %v2280
      %v2285 = vsub.f32 %v2231, %v2280
      %v2286 = vsub.f32 %v2232, %v2280
      %v2287 = vsub.f32 %v2233, %v2280
      %v2288 = vsub.f32 %v2234, %v2280
      %v2289 = vsub.f32 %v2235, %v2280
      %v2290 = vsub.f32 %v2236, %v2280
      %v2291 = vsub.f32 %v2237, %v2280
      %v2292 = vsub.f32 %v2238, %v2280
      %v2293 = vsub.f32 %v2239, %v2280
      %v2294 = vsub.f32 %v2240, %v2280
      %v2295 = vsub.f32 %v2241, %v2280
      %v2296 = vsub.f32 %v2242, %v2280
      %v2297 = vmul.f32 %v2281, 1.442695
      %v2298 = vpow.pop %v2297
      %v2299 = vmul.f32 %v2282, 1.442695
      %v2300 = vpow.pop %v2299
      %v2301 = vmul.f32 %v2283, 1.442695
      %v2302 = vpow.pop %v2301
      %v2303 = vmul.f32 %v2284, 1.442695
      %v2304 = vpow.pop %v2303
      %v2305 = vmul.f32 %v2285, 1.442695
      %v2306 = vpow.pop %v2305
      %v2307 = vmul.f32 %v2286, 1.442695
      %v2308 = vpow.pop %v2307
      %v2309 = vmul.f32 %v2287, 1.442695
      %v2310 = vpow.pop %v2309
      %v2311 = vmul.f32 %v2288, 1.442695
      %v2312 = vpow.pop %v2311
      %v2313 = vmul.f32 %v2289, 1.442695
      %v2314 = vpow.pop %v2313
      %v2315 = vmul.f32 %v2290, 1.442695
      %v2316 = vpow.pop %v2315
      %v2317 = vmul.f32 %v2291, 1.442695
      %v2318 = vpow.pop %v2317
      %v2319 = vmul.f32 %v2292, 1.442695
      %v2320 = vpow.pop %v2319
      %v2321 = vmul.f32 %v2293, 1.442695
      %v2322 = vpow.pop %v2321
      %v2323 = vmul.f32 %v2294, 1.442695
      %v2324 = vpow.pop %v2323
      %v2325 = vmul.f32 %v2295, 1.442695
      %v2326 = vpow.pop %v2325
      %v2327 = vmul.f32 %v2296, 1.442695
      %v2328 = vpow.pop %v2327
      %v2329 = vpack.c.bf16 %v2300, %v2298
      %v2330 = vpack.c.bf16 %v2304, %v2302
      %v2331 = vpack.c.bf16 %v2308, %v2306
      %v2332 = vpack.c.bf16 %v2312, %v2310
      %v2333 = vpack.c.bf16 %v2316, %v2314
      %v2334 = vpack.c.bf16 %v2320, %v2318
      %v2335 = vpack.c.bf16 %v2324, %v2322
      %v2336 = vpack.c.bf16 %v2328, %v2326
      %2337 = vmatprep.subr.bf16.mxu0 0
      %2338 = vmatpush1.bf16.msra.mxu0 %v2336
      %2339 = vmatprep.subr.bf16.mxu0 0
      %2340 = vmatpush1.bf16.msra.mxu0 %v2335
      %2341 = vmatprep.subr.bf16.mxu0 0
      %2342 = vmatpush1.bf16.msra.mxu0 %v2334
      %2343 = vmatprep.subr.bf16.mxu0 0
      %2344 = vmatpush1.bf16.msra.mxu0 %v2333
      %2345 = vmatprep.subr.bf16.mxu0 0
      %2346 = vmatpush1.bf16.msra.mxu0 %v2332
      %2347 = vmatprep.subr.bf16.mxu0 0
      %2348 = vmatpush1.bf16.msra.mxu0 %v2331
      %2349 = vmatprep.subr.bf16.mxu0 0
      %2350 = vmatpush1.bf16.msra.mxu0 %v2330
      %2351 = vmatprep.subr.bf16.mxu0 0
      %2352 = vmatpush1.bf16.msra.mxu0 %v2329
      %2353 = vmatprep.subr.bf16.mxu0 0
      %2354 = vmatpush2.bf16.msra.mxu0 0
      %2355 = vmatprep.subr.bf16.mxu0 0
      %2356 = vmatpush2.bf16.msra.mxu0 0
      %2357 = vmatprep.subr.bf16.mxu0 0
      %2358 = vmatpush2.bf16.msra.mxu0 0
      %2359 = vmatprep.subr.bf16.mxu0 0
      %2360 = vmatpush2.bf16.msra.mxu0 0
      %2361 = vmatprep.subr.bf16.mxu0 0
      %2362 = vmatpush2.bf16.msra.mxu0 0
      %2363 = vmatprep.subr.bf16.mxu0 0
      %2364 = vmatpush2.bf16.msra.mxu0 0
      %2365 = vmatprep.subr.bf16.mxu0 0
      %2366 = vmatpush2.bf16.msra.mxu0 0
      %2367 = vmatprep.subr.bf16.mxu0 0
      %2368 = vmatpush2.bf16.msra.mxu0 0
      %2369 = vmatprep.mubr.bf16.mxu0 0
      %2370 = vmatmul.mubr.bf16.gmra.mxu0 %v584
      %v2371 = vpop.f32.mrf.mxu0
      %v2372 = vadd.f32 0.0, %v2371
      %v2373 = vpop.f32.mrf.mxu0
      %v2374 = vpop.f32.mrf.mxu0
      %v2375 = vpop.f32.mrf.mxu0
      %2376 = vdwg.mxu0
      %v2377 = vpack.c.bf16 %v2372, %v2372
      %v2394 = vunpack.c.l.b16 %v585
      %v2395 = vunpack.c.l.b16 %v586
      %v2396 = vunpack.c.l.b16 %v587
      %v2397 = vunpack.c.l.b16 %v588
      %v2398 = vunpack.c.l.b16 %v589
      %v2399 = vunpack.c.l.b16 %v590
      %v2400 = vunpack.c.l.b16 %v591
      %v2401 = vunpack.c.l.b16 %v592
      %v2402 = vunpack.c.l.b16 %v593
      %v2403 = vunpack.c.l.b16 %v594
      %v2404 = vunpack.c.l.b16 %v595
      %v2405 = vunpack.c.l.b16 %v596
      %v2406 = vunpack.c.l.b16 %v597
      %v2407 = vunpack.c.l.b16 %v598
      %v2408 = vunpack.c.l.b16 %v599
      %v2409 = vunpack.c.l.b16 %v600
      %v2410 = vpack.c.b16 %v2395, %v2394
      %v2411 = vpack.c.b16 %v2397, %v2396
      %v2412 = vpack.c.b16 %v2399, %v2398
      %v2413 = vpack.c.b16 %v2401, %v2400
      %v2414 = vpack.c.b16 %v2403, %v2402
      %v2415 = vpack.c.b16 %v2405, %v2404
      %v2416 = vpack.c.b16 %v2407, %v2406
      %v2417 = vpack.c.b16 %v2409, %v2408
      %vm2418 = vcmask 15360
      %v2420 = vsel %vm2418, %v2410, 0
      %v2423 = vsel %vm2418, %v2411, 0
      %v2426 = vsel %vm2418, %v2412, 0
      %v2429 = vsel %vm2418, %v2413, 0
      %v2432 = vsel %vm2418, %v2414, 0
      %v2435 = vsel %vm2418, %v2415, 0
      %v2438 = vsel %vm2418, %v2416, 0
      %v2441 = vsel %vm2418, %v2417, 0
      %vm2443 = vcmask 1040384
      %v2445 = vsel %vm2443, %v2377, 0
      %2447 = vmatprep.subr.bf16.mxu0 0
      %2448 = vmatpush1.bf16.msra.mxu0 0
      %2449 = vmatprep.subr.bf16.mxu0 0
      %2450 = vmatpush1.bf16.msra.mxu0 0
      %2451 = vmatprep.subr.bf16.mxu0 0
      %2452 = vmatpush1.bf16.msra.mxu0 0
      %2453 = vmatprep.subr.bf16.mxu0 0
      %2454 = vmatpush1.bf16.msra.mxu0 0
      %2455 = vmatprep.subr.bf16.mxu0 0
      %2456 = vmatpush1.bf16.msra.mxu0 0
      %2457 = vmatprep.subr.bf16.mxu0 0
      %2458 = vmatpush1.bf16.msra.mxu0 0
      %2459 = vmatprep.subr.bf16.mxu0 0
      %2460 = vmatpush1.bf16.msra.mxu0 0
      %2461 = vmatprep.subr.bf16.mxu0 0
      %2462 = vmatpush1.bf16.msra.mxu0 %v2445
      %2463 = vmatprep.subr.bf16.mxu0 0
      %2464 = vmatpush2.bf16.msra.mxu0 0
      %2465 = vmatprep.subr.bf16.mxu0 0
      %2466 = vmatpush2.bf16.msra.mxu0 0
      %2467 = vmatprep.subr.bf16.mxu0 0
      %2468 = vmatpush2.bf16.msra.mxu0 0
      %2469 = vmatprep.subr.bf16.mxu0 0
      %2470 = vmatpush2.bf16.msra.mxu0 0
      %2471 = vmatprep.subr.bf16.mxu0 0
      %2472 = vmatpush2.bf16.msra.mxu0 0
      %2473 = vmatprep.subr.bf16.mxu0 0
      %2474 = vmatpush2.bf16.msra.mxu0 0
      %2475 = vmatprep.subr.bf16.mxu0 0
      %2476 = vmatpush2.bf16.msra.mxu0 0
      %2477 = vmatprep.subr.bf16.mxu0 0
      %2478 = vmatpush2.bf16.msra.mxu0 0
      %2479 = vmatprep.mubr.bf16.mxu0 0
      %2480 = vmatmul.mubr.bf16.gmra.mxu0 %v2420
      %v2481 = vpop.f32.mrf.mxu0
      %v2482 = vadd.f32 0.0, %v2481
      %v2483 = vpop.f32.mrf.mxu0
      %v2484 = vpop.f32.mrf.mxu0
      %v2485 = vadd.f32 0.0, %v2484
      %v2486 = vpop.f32.mrf.mxu0
      %2487 = vmatprep.mubr.bf16.mxu0 0
      %2488 = vmatmul.mubr.bf16.gmra.mxu0 %v2423
      %v2489 = vpop.f32.mrf.mxu0
      %v2490 = vadd.f32 0.0, %v2489
      %v2491 = vpop.f32.mrf.mxu0
      %v2492 = vpop.f32.mrf.mxu0
      %v2493 = vadd.f32 0.0, %v2492
      %v2494 = vpop.f32.mrf.mxu0
      %2495 = vmatprep.mubr.bf16.mxu0 0
      %2496 = vmatmul.mubr.bf16.gmra.mxu0 %v2426
      %v2497 = vpop.f32.mrf.mxu0
      %v2498 = vadd.f32 0.0, %v2497
      %v2499 = vpop.f32.mrf.mxu0
      %v2500 = vpop.f32.mrf.mxu0
      %v2501 = vadd.f32 0.0, %v2500
      %v2502 = vpop.f32.mrf.mxu0
      %2503 = vmatprep.mubr.bf16.mxu0 0
      %2504 = vmatmul.mubr.bf16.gmra.mxu0 %v2429
      %v2505 = vpop.f32.mrf.mxu0
      %v2506 = vadd.f32 0.0, %v2505
      %v2507 = vpop.f32.mrf.mxu0
      %v2508 = vpop.f32.mrf.mxu0
      %v2509 = vadd.f32 0.0, %v2508
      %v2510 = vpop.f32.mrf.mxu0
      %2511 = vmatprep.mubr.bf16.mxu0 0
      %2512 = vmatmul.mubr.bf16.gmra.mxu0 %v2432
      %v2513 = vpop.f32.mrf.mxu0
      %v2514 = vadd.f32 0.0, %v2513
      %v2515 = vpop.f32.mrf.mxu0
      %v2516 = vpop.f32.mrf.mxu0
      %v2517 = vadd.f32 0.0, %v2516
      %v2518 = vpop.f32.mrf.mxu0
      %2519 = vmatprep.mubr.bf16.mxu0 0
      %2520 = vmatmul.mubr.bf16.gmra.mxu0 %v2435
      %v2521 = vpop.f32.mrf.mxu0
      %v2522 = vadd.f32 0.0, %v2521
      %v2523 = vpop.f32.mrf.mxu0
      %v2524 = vpop.f32.mrf.mxu0
      %v2525 = vadd.f32 0.0, %v2524
      %v2526 = vpop.f32.mrf.mxu0
      %2527 = vmatprep.mubr.bf16.mxu0 0
      %2528 = vmatmul.mubr.bf16.gmra.mxu0 %v2438
      %v2529 = vpop.f32.mrf.mxu0
      %v2530 = vadd.f32 0.0, %v2529
      %v2531 = vpop.f32.mrf.mxu0
      %v2532 = vpop.f32.mrf.mxu0
      %v2533 = vadd.f32 0.0, %v2532
      %v2534 = vpop.f32.mrf.mxu0
      %2535 = vmatprep.mubr.bf16.mxu0 0
      %2536 = vmatmul.mubr.bf16.gmra.mxu0 %v2441
      %v2537 = vpop.f32.mrf.mxu0
      %v2538 = vadd.f32 0.0, %v2537
      %v2539 = vpop.f32.mrf.mxu0
      %v2540 = vpop.f32.mrf.mxu0
      %v2541 = vadd.f32 0.0, %v2540
      %v2542 = vpop.f32.mrf.mxu0
      %2543 = vdwg.mxu0
      %v2544 = vmax.f32 %v2482, 1e-30
      %v2545 = vmax.f32 %v2485, 1e-30
      %v2546 = vmax.f32 %v2490, 1e-30
      %v2547 = vmax.f32 %v2493, 1e-30
      %v2548 = vmax.f32 %v2498, 1e-30
      %v2549 = vmax.f32 %v2501, 1e-30
      %v2550 = vmax.f32 %v2506, 1e-30
      %v2551 = vmax.f32 %v2509, 1e-30
      %v2552 = vmax.f32 %v2514, 1e-30
      %v2553 = vmax.f32 %v2517, 1e-30
      %v2554 = vmax.f32 %v2522, 1e-30
      %v2555 = vmax.f32 %v2525, 1e-30
      %v2556 = vmax.f32 %v2530, 1e-30
      %v2557 = vmax.f32 %v2533, 1e-30
      %v2558 = vmax.f32 %v2538, 1e-30
      %v2559 = vmax.f32 %v2541, 1e-30
      %v2560 = vrcp.pop %v2544
      %v2561 = vmul.f32 %v2298, %v2560
      %v2562 = vrcp.pop %v2545
      %v2563 = vmul.f32 %v2300, %v2562
      %v2564 = vrcp.pop %v2546
      %v2565 = vmul.f32 %v2302, %v2564
      %v2566 = vrcp.pop %v2547
      %v2567 = vmul.f32 %v2304, %v2566
      %v2568 = vrcp.pop %v2548
      %v2569 = vmul.f32 %v2306, %v2568
      %v2570 = vrcp.pop %v2549
      %v2571 = vmul.f32 %v2308, %v2570
      %v2572 = vrcp.pop %v2550
      %v2573 = vmul.f32 %v2310, %v2572
      %v2574 = vrcp.pop %v2551
      %v2575 = vmul.f32 %v2312, %v2574
      %v2576 = vrcp.pop %v2552
      %v2577 = vmul.f32 %v2314, %v2576
      %v2578 = vrcp.pop %v2553
      %v2579 = vmul.f32 %v2316, %v2578
      %v2580 = vrcp.pop %v2554
      %v2581 = vmul.f32 %v2318, %v2580
      %v2582 = vrcp.pop %v2555
      %v2583 = vmul.f32 %v2320, %v2582
      %v2584 = vrcp.pop %v2556
      %v2585 = vmul.f32 %v2322, %v2584
      %v2586 = vrcp.pop %v2557
      %v2587 = vmul.f32 %v2324, %v2586
      %v2588 = vrcp.pop %v2558
      %v2589 = vmul.f32 %v2326, %v2588
      %v2590 = vrcp.pop %v2559
      %v2591 = vmul.f32 %v2328, %v2590
      %v2592 = vpack.c.bf16 %v2563, %v2561
      %v2593 = vpack.c.bf16 %v2567, %v2565
      %v2594 = vpack.c.bf16 %v2571, %v2569
      %v2595 = vpack.c.bf16 %v2575, %v2573
      %v2596 = vpack.c.bf16 %v2579, %v2577
      %v2597 = vpack.c.bf16 %v2583, %v2581
      %v2598 = vpack.c.bf16 %v2587, %v2585
      %v2599 = vpack.c.bf16 %v2591, %v2589
      %2601 = vset.pattern.permute.xlu0 0
      %2602 = vperm.xlu0 %2601, %v2592
      %v2603 = vpop.permute.xlu0 %2602
      %2606 = vset.pattern.permute.xlu0 0
      %2607 = vperm.xlu0 %2606, %v2593
      %v2608 = vpop.permute.xlu0 %2607
      %2611 = vset.pattern.permute.xlu0 0
      %2612 = vperm.xlu0 %2611, %v2594
      %v2613 = vpop.permute.xlu0 %2612
      %2616 = vset.pattern.permute.xlu0 0
      %2617 = vperm.xlu0 %2616, %v2595
      %v2618 = vpop.permute.xlu0 %2617
      %2621 = vset.pattern.permute.xlu0 0
      %2622 = vperm.xlu0 %2621, %v2596
      %v2623 = vpop.permute.xlu0 %2622
      %2626 = vset.pattern.permute.xlu0 0
      %2627 = vperm.xlu0 %2626, %v2597
      %v2628 = vpop.permute.xlu0 %2627
      %2631 = vset.pattern.permute.xlu0 0
      %2632 = vperm.xlu0 %2631, %v2598
      %v2633 = vpop.permute.xlu0 %2632
      %2636 = vset.pattern.permute.xlu0 0
      %2637 = vperm.xlu0 %2636, %v2599
      %v2638 = vpop.permute.xlu0 %2637
      %v2648 = vmul.bf16 %v2603, %v1762
      %v2649 = vmul.bf16 %v2608, %v1763
      %v2650 = vmul.bf16 %v2613, %v1764
      %v2651 = vmul.bf16 %v2618, %v1765
      %v2652 = vmul.bf16 %v2623, %v1766
      %v2653 = vmul.bf16 %v2628, %v1767
      %v2654 = vmul.bf16 %v2633, %v1768
      %v2655 = vmul.bf16 %v2638, %v1769
      %2656 = vmatprep.subr.bf16.mxu0 0
      %2657 = vmatpush1.bf16.msra.mxu0 %v2655
      %2658 = vmatprep.subr.bf16.mxu0 0
      %2659 = vmatpush1.bf16.msra.mxu0 %v2654
      %2660 = vmatprep.subr.bf16.mxu0 0
      %2661 = vmatpush1.bf16.msra.mxu0 %v2653
      %2662 = vmatprep.subr.bf16.mxu0 0
      %2663 = vmatpush1.bf16.msra.mxu0 %v2652
      %2664 = vmatprep.subr.bf16.mxu0 0
      %2665 = vmatpush1.bf16.msra.mxu0 %v2651
      %2666 = vmatprep.subr.bf16.mxu0 0
      %2667 = vmatpush1.bf16.msra.mxu0 %v2650
      %2668 = vmatprep.subr.bf16.mxu0 0
      %2669 = vmatpush1.bf16.msra.mxu0 %v2649
      %2670 = vmatprep.subr.bf16.mxu0 0
      %2671 = vmatpush1.bf16.msra.mxu0 %v2648
      %2672 = vmatprep.subr.bf16.mxu0 0
      %2673 = vmatpush2.bf16.msra.mxu0 0
      %2674 = vmatprep.subr.bf16.mxu0 0
      %2675 = vmatpush2.bf16.msra.mxu0 0
      %2676 = vmatprep.subr.bf16.mxu0 0
      %2677 = vmatpush2.bf16.msra.mxu0 0
      %2678 = vmatprep.subr.bf16.mxu0 0
      %2679 = vmatpush2.bf16.msra.mxu0 0
      %2680 = vmatprep.subr.bf16.mxu0 0
      %2681 = vmatpush2.bf16.msra.mxu0 0
      %2682 = vmatprep.subr.bf16.mxu0 0
      %2683 = vmatpush2.bf16.msra.mxu0 0
      %2684 = vmatprep.subr.bf16.mxu0 0
      %2685 = vmatpush2.bf16.msra.mxu0 0
      %2686 = vmatprep.subr.bf16.mxu0 0
      %2687 = vmatpush2.bf16.msra.mxu0 0
      %2688 = vmatprep.mubr.bf16.mxu0 0
      %2689 = vmatmul.mubr.bf16.gmra.mxu0 %v584
      %v2690 = vpop.f32.mrf.mxu0
      %v2691 = vadd.f32 0.0, %v2690
      %v2692 = vpop.f32.mrf.mxu0
      %v2693 = vpop.f32.mrf.mxu0
      %v2694 = vpop.f32.mrf.mxu0
      %2695 = vdwg.mxu0
      %2696 = vset.pattern.permute.xlu0 1
      %2697 = vperm.xlu0 %2696, %v2592
      %v2698 = vpop.permute.xlu0 %2697
      %2700 = vset.pattern.permute.xlu0 1
      %2701 = vperm.xlu0 %2700, %v2593
      %v2702 = vpop.permute.xlu0 %2701
      %2704 = vset.pattern.permute.xlu0 1
      %2705 = vperm.xlu0 %2704, %v2594
      %v2706 = vpop.permute.xlu0 %2705
      %2708 = vset.pattern.permute.xlu0 1
      %2709 = vperm.xlu0 %2708, %v2595
      %v2710 = vpop.permute.xlu0 %2709
      %2712 = vset.pattern.permute.xlu0 1
      %2713 = vperm.xlu0 %2712, %v2596
      %v2714 = vpop.permute.xlu0 %2713
      %2716 = vset.pattern.permute.xlu0 1
      %2717 = vperm.xlu0 %2716, %v2597
      %v2718 = vpop.permute.xlu0 %2717
      %2720 = vset.pattern.permute.xlu0 1
      %2721 = vperm.xlu0 %2720, %v2598
      %v2722 = vpop.permute.xlu0 %2721
      %2724 = vset.pattern.permute.xlu0 1
      %2725 = vperm.xlu0 %2724, %v2599
      %v2726 = vpop.permute.xlu0 %2725
      %v2728 = vmul.bf16 %v2698, %v1762
      %v2729 = vmul.bf16 %v2702, %v1763
      %v2730 = vmul.bf16 %v2706, %v1764
      %v2731 = vmul.bf16 %v2710, %v1765
      %v2732 = vmul.bf16 %v2714, %v1766
      %v2733 = vmul.bf16 %v2718, %v1767
      %v2734 = vmul.bf16 %v2722, %v1768
      %v2735 = vmul.bf16 %v2726, %v1769
      %2736 = vmatprep.subr.bf16.mxu0 0
      %2737 = vmatpush1.bf16.msra.mxu0 %v2735
      %2738 = vmatprep.subr.bf16.mxu0 0
      %2739 = vmatpush1.bf16.msra.mxu0 %v2734
      %2740 = vmatprep.subr.bf16.mxu0 0
      %2741 = vmatpush1.bf16.msra.mxu0 %v2733
      %2742 = vmatprep.subr.bf16.mxu0 0
      %2743 = vmatpush1.bf16.msra.mxu0 %v2732
      %2744 = vmatprep.subr.bf16.mxu0 0
      %2745 = vmatpush1.bf16.msra.mxu0 %v2731
      %2746 = vmatprep.subr.bf16.mxu0 0
      %2747 = vmatpush1.bf16.msra.mxu0 %v2730
      %2748 = vmatprep.subr.bf16.mxu0 0
      %2749 = vmatpush1.bf16.msra.mxu0 %v2729
      %2750 = vmatprep.subr.bf16.mxu0 0
      %2751 = vmatpush1.bf16.msra.mxu0 %v2728
      %2752 = vmatprep.subr.bf16.mxu0 0
      %2753 = vmatpush2.bf16.msra.mxu0 0
      %2754 = vmatprep.subr.bf16.mxu0 0
      %2755 = vmatpush2.bf16.msra.mxu0 0
      %2756 = vmatprep.subr.bf16.mxu0 0
      %2757 = vmatpush2.bf16.msra.mxu0 0
      %2758 = vmatprep.subr.bf16.mxu0 0
      %2759 = vmatpush2.bf16.msra.mxu0 0
      %2760 = vmatprep.subr.bf16.mxu0 0
      %2761 = vmatpush2.bf16.msra.mxu0 0
      %2762 = vmatprep.subr.bf16.mxu0 0
      %2763 = vmatpush2.bf16.msra.mxu0 0
      %2764 = vmatprep.subr.bf16.mxu0 0
      %2765 = vmatpush2.bf16.msra.mxu0 0
      %2766 = vmatprep.subr.bf16.mxu0 0
      %2767 = vmatpush2.bf16.msra.mxu0 0
      %2768 = vmatprep.mubr.bf16.mxu0 0
      %2769 = vmatmul.mubr.bf16.gmra.mxu0 %v584
      %v2770 = vpop.f32.mrf.mxu0
      %v2771 = vadd.f32 0.0, %v2770
      %v2772 = vpop.f32.mrf.mxu0
      %v2773 = vpop.f32.mrf.mxu0
      %v2774 = vpop.f32.mrf.mxu0
      %2775 = vdwg.mxu0
      %2776 = vset.pattern.permute.xlu0 2
      %2777 = vperm.xlu0 %2776, %v2592
      %v2778 = vpop.permute.xlu0 %2777
      %2780 = vset.pattern.permute.xlu0 2
      %2781 = vperm.xlu0 %2780, %v2593
      %v2782 = vpop.permute.xlu0 %2781
      %2784 = vset.pattern.permute.xlu0 2
      %2785 = vperm.xlu0 %2784, %v2594
      %v2786 = vpop.permute.xlu0 %2785
      %2788 = vset.pattern.permute.xlu0 2
      %2789 = vperm.xlu0 %2788, %v2595
      %v2790 = vpop.permute.xlu0 %2789
      %2792 = vset.pattern.permute.xlu0 2
      %2793 = vperm.xlu0 %2792, %v2596
      %v2794 = vpop.permute.xlu0 %2793
      %2796 = vset.pattern.permute.xlu0 2
      %2797 = vperm.xlu0 %2796, %v2597
      %v2798 = vpop.permute.xlu0 %2797
      %2800 = vset.pattern.permute.xlu0 2
      %2801 = vperm.xlu0 %2800, %v2598
      %v2802 = vpop.permute.xlu0 %2801
      %2804 = vset.pattern.permute.xlu0 2
      %2805 = vperm.xlu0 %2804, %v2599
      %v2806 = vpop.permute.xlu0 %2805
      %v2808 = vmul.bf16 %v2778, %v1762
      %v2809 = vmul.bf16 %v2782, %v1763
      %v2810 = vmul.bf16 %v2786, %v1764
      %v2811 = vmul.bf16 %v2790, %v1765
      %v2812 = vmul.bf16 %v2794, %v1766
      %v2813 = vmul.bf16 %v2798, %v1767
      %v2814 = vmul.bf16 %v2802, %v1768
      %v2815 = vmul.bf16 %v2806, %v1769
      %2816 = vmatprep.subr.bf16.mxu0 0
      %2817 = vmatpush1.bf16.msra.mxu0 %v2815
      %2818 = vmatprep.subr.bf16.mxu0 0
      %2819 = vmatpush1.bf16.msra.mxu0 %v2814
      %2820 = vmatprep.subr.bf16.mxu0 0
      %2821 = vmatpush1.bf16.msra.mxu0 %v2813
      %2822 = vmatprep.subr.bf16.mxu0 0
      %2823 = vmatpush1.bf16.msra.mxu0 %v2812
      %2824 = vmatprep.subr.bf16.mxu0 0
      %2825 = vmatpush1.bf16.msra.mxu0 %v2811
      %2826 = vmatprep.subr.bf16.mxu0 0
      %2827 = vmatpush1.bf16.msra.mxu0 %v2810
      %2828 = vmatprep.subr.bf16.mxu0 0
      %2829 = vmatpush1.bf16.msra.mxu0 %v2809
      %2830 = vmatprep.subr.bf16.mxu0 0
      %2831 = vmatpush1.bf16.msra.mxu0 %v2808
      %2832 = vmatprep.subr.bf16.mxu0 0
      %2833 = vmatpush2.bf16.msra.mxu0 0
      %2834 = vmatprep.subr.bf16.mxu0 0
      %2835 = vmatpush2.bf16.msra.mxu0 0
      %2836 = vmatprep.subr.bf16.mxu0 0
      %2837 = vmatpush2.bf16.msra.mxu0 0
      %2838 = vmatprep.subr.bf16.mxu0 0
      %2839 = vmatpush2.bf16.msra.mxu0 0
      %2840 = vmatprep.subr.bf16.mxu0 0
      %2841 = vmatpush2.bf16.msra.mxu0 0
      %2842 = vmatprep.subr.bf16.mxu0 0
      %2843 = vmatpush2.bf16.msra.mxu0 0
      %2844 = vmatprep.subr.bf16.mxu0 0
      %2845 = vmatpush2.bf16.msra.mxu0 0
      %2846 = vmatprep.subr.bf16.mxu0 0
      %2847 = vmatpush2.bf16.msra.mxu0 0
      %2848 = vmatprep.mubr.bf16.mxu0 0
      %2849 = vmatmul.mubr.bf16.gmra.mxu0 %v584
      %v2850 = vpop.f32.mrf.mxu0
      %v2851 = vadd.f32 0.0, %v2850
      %v2852 = vpop.f32.mrf.mxu0
      %v2853 = vpop.f32.mrf.mxu0
      %v2854 = vpop.f32.mrf.mxu0
      %2855 = vdwg.mxu0
      %2856 = vset.pattern.permute.xlu0 3
      %2857 = vperm.xlu0 %2856, %v2592
      %v2858 = vpop.permute.xlu0 %2857
      %2860 = vset.pattern.permute.xlu0 3
      %2861 = vperm.xlu0 %2860, %v2593
      %v2862 = vpop.permute.xlu0 %2861
      %2864 = vset.pattern.permute.xlu0 3
      %2865 = vperm.xlu0 %2864, %v2594
      %v2866 = vpop.permute.xlu0 %2865
      %2868 = vset.pattern.permute.xlu0 3
      %2869 = vperm.xlu0 %2868, %v2595
      %v2870 = vpop.permute.xlu0 %2869
      %2872 = vset.pattern.permute.xlu0 3
      %2873 = vperm.xlu0 %2872, %v2596
      %v2874 = vpop.permute.xlu0 %2873
      %2876 = vset.pattern.permute.xlu0 3
      %2877 = vperm.xlu0 %2876, %v2597
      %v2878 = vpop.permute.xlu0 %2877
      %2880 = vset.pattern.permute.xlu0 3
      %2881 = vperm.xlu0 %2880, %v2598
      %v2882 = vpop.permute.xlu0 %2881
      %2884 = vset.pattern.permute.xlu0 3
      %2885 = vperm.xlu0 %2884, %v2599
      %v2886 = vpop.permute.xlu0 %2885
      %v2888 = vmul.bf16 %v2858, %v1762
      %v2889 = vmul.bf16 %v2862, %v1763
      %v2890 = vmul.bf16 %v2866, %v1764
      %v2891 = vmul.bf16 %v2870, %v1765
      %v2892 = vmul.bf16 %v2874, %v1766
      %v2893 = vmul.bf16 %v2878, %v1767
      %v2894 = vmul.bf16 %v2882, %v1768
      %v2895 = vmul.bf16 %v2886, %v1769
      %2896 = vmatprep.subr.bf16.mxu0 0
      %2897 = vmatpush1.bf16.msra.mxu0 %v2895
      %2898 = vmatprep.subr.bf16.mxu0 0
      %2899 = vmatpush1.bf16.msra.mxu0 %v2894
      %2900 = vmatprep.subr.bf16.mxu0 0
      %2901 = vmatpush1.bf16.msra.mxu0 %v2893
      %2902 = vmatprep.subr.bf16.mxu0 0
      %2903 = vmatpush1.bf16.msra.mxu0 %v2892
      %2904 = vmatprep.subr.bf16.mxu0 0
      %2905 = vmatpush1.bf16.msra.mxu0 %v2891
      %2906 = vmatprep.subr.bf16.mxu0 0
      %2907 = vmatpush1.bf16.msra.mxu0 %v2890
      %2908 = vmatprep.subr.bf16.mxu0 0
      %2909 = vmatpush1.bf16.msra.mxu0 %v2889
      %2910 = vmatprep.subr.bf16.mxu0 0
      %2911 = vmatpush1.bf16.msra.mxu0 %v2888
      %2912 = vmatprep.subr.bf16.mxu0 0
      %2913 = vmatpush2.bf16.msra.mxu0 0
      %2914 = vmatprep.subr.bf16.mxu0 0
      %2915 = vmatpush2.bf16.msra.mxu0 0
      %2916 = vmatprep.subr.bf16.mxu0 0
      %2917 = vmatpush2.bf16.msra.mxu0 0
      %2918 = vmatprep.subr.bf16.mxu0 0
      %2919 = vmatpush2.bf16.msra.mxu0 0
      %2920 = vmatprep.subr.bf16.mxu0 0
      %2921 = vmatpush2.bf16.msra.mxu0 0
      %2922 = vmatprep.subr.bf16.mxu0 0
      %2923 = vmatpush2.bf16.msra.mxu0 0
      %2924 = vmatprep.subr.bf16.mxu0 0
      %2925 = vmatpush2.bf16.msra.mxu0 0
      %2926 = vmatprep.subr.bf16.mxu0 0
      %2927 = vmatpush2.bf16.msra.mxu0 0
      %2928 = vmatprep.mubr.bf16.mxu0 0
      %2929 = vmatmul.mubr.bf16.gmra.mxu0 %v584
      %v2930 = vpop.f32.mrf.mxu0
      %v2931 = vadd.f32 0.0, %v2930
      %v2932 = vpop.f32.mrf.mxu0
      %v2933 = vpop.f32.mrf.mxu0
      %v2934 = vpop.f32.mrf.mxu0
      %2935 = vdwg.mxu0
      %v2936 = vpack.c.bf16 %v685, %v685
      %v2937 = vld [vmem:[%s11] sm:$0xff]
      %v2938 = vld [vmem:[%s11 + $0x8] sm:$0xff]
      %v2939 = vld [vmem:[%s11 + $0x10] sm:$0xff]
      %v2940 = vld [vmem:[%s11 + $0x18] sm:$0xff]
      %v2941 = vld [vmem:[%s11 + $0x20] sm:$0xff]
      %v2942 = vld [vmem:[%s11 + $0x28] sm:$0xff]
      %v2943 = vld [vmem:[%s11 + $0x30] sm:$0xff]
      %v2944 = vld [vmem:[%s11 + $0x38] sm:$0xff]
      %v2945 = vld [vmem:[%s11 + $0x40] sm:$0xff]
      %v2946 = vld [vmem:[%s11 + $0x48] sm:$0xff]
      %v2947 = vld [vmem:[%s11 + $0x50] sm:$0xff]
      %v2948 = vld [vmem:[%s11 + $0x58] sm:$0xff]
      %v2949 = vld [vmem:[%s11 + $0x60] sm:$0xff]
      %v2950 = vld [vmem:[%s11 + $0x68] sm:$0xff]
      %v2951 = vld [vmem:[%s11 + $0x70] sm:$0xff]
      %v2952 = vld [vmem:[%s11 + $0x78] sm:$0xff]
      %v2954 = vrot.slane %v2936, 1
      %v2963 = vunpack.c.l.b16 %v2945
      %v2964 = vunpack.c.h.b16 %v2945
      %v2965 = vunpack.c.l.b16 %v2946
      %v2966 = vunpack.c.h.b16 %v2946
      %v2967 = vunpack.c.l.b16 %v2947
      %v2968 = vunpack.c.h.b16 %v2947
      %v2969 = vunpack.c.l.b16 %v2948
      %v2970 = vunpack.c.h.b16 %v2948
      %v2971 = vunpack.c.l.b16 %v2949
      %v2972 = vunpack.c.h.b16 %v2949
      %v2973 = vunpack.c.l.b16 %v2950
      %v2974 = vunpack.c.h.b16 %v2950
      %v2975 = vunpack.c.l.b16 %v2951
      %v2976 = vunpack.c.h.b16 %v2951
      %v2977 = vunpack.c.l.b16 %v2952
      %v2978 = vunpack.c.h.b16 %v2952
      %v2979 = vpack.c.b16 %v2967, %v2963
      %v2980 = vpack.c.b16 %v2968, %v2964
      %v2981 = vpack.c.b16 %v2969, %v2965
      %v2982 = vpack.c.b16 %v2970, %v2966
      %v2983 = vpack.c.b16 %v2975, %v2971
      %v2984 = vpack.c.b16 %v2976, %v2972
      %v2985 = vpack.c.b16 %v2977, %v2973
      %v2986 = vpack.c.b16 %v2978, %v2974
      %v2996 = vsel %vm706, %v2954, 0
      %2998 = vmatprep.subr.bf16.mxu0 0
      %2999 = vmatpush1.bf16.msra.mxu0 0
      %3000 = vmatprep.subr.bf16.mxu0 0
      %3001 = vmatpush1.bf16.msra.mxu0 0
      %3002 = vmatprep.subr.bf16.mxu0 0
      %3003 = vmatpush1.bf16.msra.mxu0 0
      %3004 = vmatprep.subr.bf16.mxu0 0
      %3005 = vmatpush1.bf16.msra.mxu0 0
      %3006 = vmatprep.subr.bf16.mxu0 0
      %3007 = vmatpush1.bf16.msra.mxu0 0
      %3008 = vmatprep.subr.bf16.mxu0 0
      %3009 = vmatpush1.bf16.msra.mxu0 0
      %3010 = vmatprep.subr.bf16.mxu0 %v2984
      %3011 = vmatpush1.bf16.msra.mxu0 %v2983
      %3012 = vmatprep.subr.bf16.mxu0 %v2980
      %3013 = vmatpush1.bf16.msra.mxu0 %v2979
      %3014 = vmatprep.subr.bf16.mxu0 0
      %3015 = vmatpush2.bf16.msra.mxu0 0
      %3016 = vmatprep.subr.bf16.mxu0 0
      %3017 = vmatpush2.bf16.msra.mxu0 0
      %3018 = vmatprep.subr.bf16.mxu0 0
      %3019 = vmatpush2.bf16.msra.mxu0 0
      %3020 = vmatprep.subr.bf16.mxu0 0
      %3021 = vmatpush2.bf16.msra.mxu0 0
      %3022 = vmatprep.subr.bf16.mxu0 0
      %3023 = vmatpush2.bf16.msra.mxu0 0
      %3024 = vmatprep.subr.bf16.mxu0 0
      %3025 = vmatpush2.bf16.msra.mxu0 0
      %3026 = vmatprep.subr.bf16.mxu0 0
      %3027 = vmatpush2.bf16.msra.mxu0 0
      %3028 = vmatprep.subr.bf16.mxu0 0
      %3029 = vmatpush2.bf16.msra.mxu0 0
      %3030 = vmatprep.mubr.bf16.mxu0 0
      %3031 = vmatmul.mubr.bf16.gmra.mxu0 %v2996
      %v3032 = vpop.f32.mrf.mxu0
      %v3033 = vadd.f32 0.0, %v3032
      %v3034 = vpop.f32.mrf.mxu0
      %v3035 = vadd.f32 0.0, %v3034
      %v3036 = vpop.f32.mrf.mxu0
      %v3037 = vpop.f32.mrf.mxu0
      %3038 = vdwg.mxu0
      %3039 = vmatprep.subr.bf16.mxu0 0
      %3040 = vmatpush1.bf16.msra.mxu0 0
      %3041 = vmatprep.subr.bf16.mxu0 0
      %3042 = vmatpush1.bf16.msra.mxu0 0
      %3043 = vmatprep.subr.bf16.mxu0 0
      %3044 = vmatpush1.bf16.msra.mxu0 0
      %3045 = vmatprep.subr.bf16.mxu0 0
      %3046 = vmatpush1.bf16.msra.mxu0 0
      %3047 = vmatprep.subr.bf16.mxu0 0
      %3048 = vmatpush1.bf16.msra.mxu0 0
      %3049 = vmatprep.subr.bf16.mxu0 0
      %3050 = vmatpush1.bf16.msra.mxu0 0
      %3051 = vmatprep.subr.bf16.mxu0 %v2986
      %3052 = vmatpush1.bf16.msra.mxu0 %v2985
      %3053 = vmatprep.subr.bf16.mxu0 %v2982
      %3054 = vmatpush1.bf16.msra.mxu0 %v2981
      %3055 = vmatprep.subr.bf16.mxu0 0
      %3056 = vmatpush2.bf16.msra.mxu0 0
      %3057 = vmatprep.subr.bf16.mxu0 0
      %3058 = vmatpush2.bf16.msra.mxu0 0
      %3059 = vmatprep.subr.bf16.mxu0 0
      %3060 = vmatpush2.bf16.msra.mxu0 0
      %3061 = vmatprep.subr.bf16.mxu0 0
      %3062 = vmatpush2.bf16.msra.mxu0 0
      %3063 = vmatprep.subr.bf16.mxu0 0
      %3064 = vmatpush2.bf16.msra.mxu0 0
      %3065 = vmatprep.subr.bf16.mxu0 0
      %3066 = vmatpush2.bf16.msra.mxu0 0
      %3067 = vmatprep.subr.bf16.mxu0 0
      %3068 = vmatpush2.bf16.msra.mxu0 0
      %3069 = vmatprep.subr.bf16.mxu0 0
      %3070 = vmatpush2.bf16.msra.mxu0 0
      %3071 = vmatprep.mubr.bf16.mxu0 0
      %3072 = vmatmul.mubr.bf16.gmra.mxu0 %v2996
      %v3073 = vpop.f32.mrf.mxu0
      %v3074 = vadd.f32 0.0, %v3073
      %v3075 = vpop.f32.mrf.mxu0
      %v3076 = vadd.f32 0.0, %v3075
      %v3077 = vpop.f32.mrf.mxu0
      %v3078 = vpop.f32.mrf.mxu0
      %3079 = vdwg.mxu0
      %v3088 = vunpack.c.l.b16 %v2937
      %v3089 = vunpack.c.h.b16 %v2937
      %v3090 = vunpack.c.l.b16 %v2938
      %v3091 = vunpack.c.h.b16 %v2938
      %v3092 = vunpack.c.l.b16 %v2939
      %v3093 = vunpack.c.h.b16 %v2939
      %v3094 = vunpack.c.l.b16 %v2940
      %v3095 = vunpack.c.h.b16 %v2940
      %v3096 = vunpack.c.l.b16 %v2941
      %v3097 = vunpack.c.h.b16 %v2941
      %v3098 = vunpack.c.l.b16 %v2942
      %v3099 = vunpack.c.h.b16 %v2942
      %v3100 = vunpack.c.l.b16 %v2943
      %v3101 = vunpack.c.h.b16 %v2943
      %v3102 = vunpack.c.l.b16 %v2944
      %v3103 = vunpack.c.h.b16 %v2944
      %v3104 = vpack.c.b16 %v3092, %v3088
      %v3105 = vpack.c.b16 %v3093, %v3089
      %v3106 = vpack.c.b16 %v3094, %v3090
      %v3107 = vpack.c.b16 %v3095, %v3091
      %v3108 = vpack.c.b16 %v3100, %v3096
      %v3109 = vpack.c.b16 %v3101, %v3097
      %v3110 = vpack.c.b16 %v3102, %v3098
      %v3111 = vpack.c.b16 %v3103, %v3099
      %v3121 = vsel %vm706, %v2936, 0
      %3123 = vmatprep.subr.bf16.mxu0 0
      %3124 = vmatpush1.bf16.msra.mxu0 0
      %3125 = vmatprep.subr.bf16.mxu0 0
      %3126 = vmatpush1.bf16.msra.mxu0 0
      %3127 = vmatprep.subr.bf16.mxu0 0
      %3128 = vmatpush1.bf16.msra.mxu0 0
      %3129 = vmatprep.subr.bf16.mxu0 0
      %3130 = vmatpush1.bf16.msra.mxu0 0
      %3131 = vmatprep.subr.bf16.mxu0 0
      %3132 = vmatpush1.bf16.msra.mxu0 0
      %3133 = vmatprep.subr.bf16.mxu0 0
      %3134 = vmatpush1.bf16.msra.mxu0 0
      %3135 = vmatprep.subr.bf16.mxu0 %v3109
      %3136 = vmatpush1.bf16.msra.mxu0 %v3108
      %3137 = vmatprep.subr.bf16.mxu0 %v3105
      %3138 = vmatpush1.bf16.msra.mxu0 %v3104
      %3139 = vmatprep.subr.bf16.mxu0 0
      %3140 = vmatpush2.bf16.msra.mxu0 0
      %3141 = vmatprep.subr.bf16.mxu0 0
      %3142 = vmatpush2.bf16.msra.mxu0 0
      %3143 = vmatprep.subr.bf16.mxu0 0
      %3144 = vmatpush2.bf16.msra.mxu0 0
      %3145 = vmatprep.subr.bf16.mxu0 0
      %3146 = vmatpush2.bf16.msra.mxu0 0
      %3147 = vmatprep.subr.bf16.mxu0 0
      %3148 = vmatpush2.bf16.msra.mxu0 0
      %3149 = vmatprep.subr.bf16.mxu0 0
      %3150 = vmatpush2.bf16.msra.mxu0 0
      %3151 = vmatprep.subr.bf16.mxu0 0
      %3152 = vmatpush2.bf16.msra.mxu0 0
      %3153 = vmatprep.subr.bf16.mxu0 0
      %3154 = vmatpush2.bf16.msra.mxu0 0
      %3155 = vmatprep.mubr.bf16.mxu0 0
      %3156 = vmatmul.mubr.bf16.gmra.mxu0 %v3121
      %v3157 = vpop.f32.mrf.mxu0
      %v3158 = vadd.f32 %v3033, %v3157
      %v3159 = vpop.f32.mrf.mxu0
      %v3160 = vadd.f32 %v3035, %v3159
      %v3161 = vpop.f32.mrf.mxu0
      %v3162 = vpop.f32.mrf.mxu0
      %3163 = vdwg.mxu0
      %3164 = vmatprep.subr.bf16.mxu0 0
      %3165 = vmatpush1.bf16.msra.mxu0 0
      %3166 = vmatprep.subr.bf16.mxu0 0
      %3167 = vmatpush1.bf16.msra.mxu0 0
      %3168 = vmatprep.subr.bf16.mxu0 0
      %3169 = vmatpush1.bf16.msra.mxu0 0
      %3170 = vmatprep.subr.bf16.mxu0 0
      %3171 = vmatpush1.bf16.msra.mxu0 0
      %3172 = vmatprep.subr.bf16.mxu0 0
      %3173 = vmatpush1.bf16.msra.mxu0 0
      %3174 = vmatprep.subr.bf16.mxu0 0
      %3175 = vmatpush1.bf16.msra.mxu0 0
      %3176 = vmatprep.subr.bf16.mxu0 %v3111
      %3177 = vmatpush1.bf16.msra.mxu0 %v3110
      %3178 = vmatprep.subr.bf16.mxu0 %v3107
      %3179 = vmatpush1.bf16.msra.mxu0 %v3106
      %3180 = vmatprep.subr.bf16.mxu0 0
      %3181 = vmatpush2.bf16.msra.mxu0 0
      %3182 = vmatprep.subr.bf16.mxu0 0
      %3183 = vmatpush2.bf16.msra.mxu0 0
      %3184 = vmatprep.subr.bf16.mxu0 0
      %3185 = vmatpush2.bf16.msra.mxu0 0
      %3186 = vmatprep.subr.bf16.mxu0 0
      %3187 = vmatpush2.bf16.msra.mxu0 0
      %3188 = vmatprep.subr.bf16.mxu0 0
      %3189 = vmatpush2.bf16.msra.mxu0 0
      %3190 = vmatprep.subr.bf16.mxu0 0
      %3191 = vmatpush2.bf16.msra.mxu0 0
      %3192 = vmatprep.subr.bf16.mxu0 0
      %3193 = vmatpush2.bf16.msra.mxu0 0
      %3194 = vmatprep.subr.bf16.mxu0 0
      %3195 = vmatpush2.bf16.msra.mxu0 0
      %3196 = vmatprep.mubr.bf16.mxu0 0
      %3197 = vmatmul.mubr.bf16.gmra.mxu0 %v3121
      %v3198 = vpop.f32.mrf.mxu0
      %v3199 = vadd.f32 %v3074, %v3198
      %v3200 = vpop.f32.mrf.mxu0
      %v3201 = vadd.f32 %v3076, %v3200
      %v3202 = vpop.f32.mrf.mxu0
      %v3203 = vpop.f32.mrf.mxu0
      %3204 = vdwg.mxu0
      %v3205 = vld [vmem:[%s11 + $0x80] sm:$0xff]
      %v3206 = vld [vmem:[%s11 + $0x88] sm:$0xff]
      %v3207 = vld [vmem:[%s11 + $0x90] sm:$0xff]
      %v3208 = vld [vmem:[%s11 + $0x98] sm:$0xff]
      %v3209 = vld [vmem:[%s11 + $0xa0] sm:$0xff]
      %v3210 = vld [vmem:[%s11 + $0xa8] sm:$0xff]
      %v3211 = vld [vmem:[%s11 + $0xb0] sm:$0xff]
      %v3212 = vld [vmem:[%s11 + $0xb8] sm:$0xff]
      %v3213 = vrot.slane %v2936, 2
      %v3222 = vunpack.c.l.b16 %v3205
      %v3223 = vunpack.c.h.b16 %v3205
      %v3224 = vunpack.c.l.b16 %v3206
      %v3225 = vunpack.c.h.b16 %v3206
      %v3226 = vunpack.c.l.b16 %v3207
      %v3227 = vunpack.c.h.b16 %v3207
      %v3228 = vunpack.c.l.b16 %v3208
      %v3229 = vunpack.c.h.b16 %v3208
      %v3230 = vunpack.c.l.b16 %v3209
      %v3231 = vunpack.c.h.b16 %v3209
      %v3232 = vunpack.c.l.b16 %v3210
      %v3233 = vunpack.c.h.b16 %v3210
      %v3234 = vunpack.c.l.b16 %v3211
      %v3235 = vunpack.c.h.b16 %v3211
      %v3236 = vunpack.c.l.b16 %v3212
      %v3237 = vunpack.c.h.b16 %v3212
      %v3238 = vpack.c.b16 %v3226, %v3222
      %v3239 = vpack.c.b16 %v3227, %v3223
      %v3240 = vpack.c.b16 %v3228, %v3224
      %v3241 = vpack.c.b16 %v3229, %v3225
      %v3242 = vpack.c.b16 %v3234, %v3230
      %v3243 = vpack.c.b16 %v3235, %v3231
      %v3244 = vpack.c.b16 %v3236, %v3232
      %v3245 = vpack.c.b16 %v3237, %v3233
      %v3255 = vsel %vm706, %v3213, 0
      %3257 = vmatprep.subr.bf16.mxu0 0
      %3258 = vmatpush1.bf16.msra.mxu0 0
      %3259 = vmatprep.subr.bf16.mxu0 0
      %3260 = vmatpush1.bf16.msra.mxu0 0
      %3261 = vmatprep.subr.bf16.mxu0 0
      %3262 = vmatpush1.bf16.msra.mxu0 0
      %3263 = vmatprep.subr.bf16.mxu0 0
      %3264 = vmatpush1.bf16.msra.mxu0 0
      %3265 = vmatprep.subr.bf16.mxu0 0
      %3266 = vmatpush1.bf16.msra.mxu0 0
      %3267 = vmatprep.subr.bf16.mxu0 0
      %3268 = vmatpush1.bf16.msra.mxu0 0
      %3269 = vmatprep.subr.bf16.mxu0 %v3243
      %3270 = vmatpush1.bf16.msra.mxu0 %v3242
      %3271 = vmatprep.subr.bf16.mxu0 %v3239
      %3272 = vmatpush1.bf16.msra.mxu0 %v3238
      %3273 = vmatprep.subr.bf16.mxu0 0
      %3274 = vmatpush2.bf16.msra.mxu0 0
      %3275 = vmatprep.subr.bf16.mxu0 0
      %3276 = vmatpush2.bf16.msra.mxu0 0
      %3277 = vmatprep.subr.bf16.mxu0 0
      %3278 = vmatpush2.bf16.msra.mxu0 0
      %3279 = vmatprep.subr.bf16.mxu0 0
      %3280 = vmatpush2.bf16.msra.mxu0 0
      %3281 = vmatprep.subr.bf16.mxu0 0
      %3282 = vmatpush2.bf16.msra.mxu0 0
      %3283 = vmatprep.subr.bf16.mxu0 0
      %3284 = vmatpush2.bf16.msra.mxu0 0
      %3285 = vmatprep.subr.bf16.mxu0 0
      %3286 = vmatpush2.bf16.msra.mxu0 0
      %3287 = vmatprep.subr.bf16.mxu0 0
      %3288 = vmatpush2.bf16.msra.mxu0 0
      %3289 = vmatprep.mubr.bf16.mxu0 0
      %3290 = vmatmul.mubr.bf16.gmra.mxu0 %v3255
      %v3291 = vpop.f32.mrf.mxu0
      %v3292 = vadd.f32 0.0, %v3291
      %v3293 = vpop.f32.mrf.mxu0
      %v3294 = vadd.f32 0.0, %v3293
      %v3295 = vpop.f32.mrf.mxu0
      %v3296 = vpop.f32.mrf.mxu0
      %3297 = vdwg.mxu0
      %3298 = vmatprep.subr.bf16.mxu0 0
      %3299 = vmatpush1.bf16.msra.mxu0 0
      %3300 = vmatprep.subr.bf16.mxu0 0
      %3301 = vmatpush1.bf16.msra.mxu0 0
      %3302 = vmatprep.subr.bf16.mxu0 0
      %3303 = vmatpush1.bf16.msra.mxu0 0
      %3304 = vmatprep.subr.bf16.mxu0 0
      %3305 = vmatpush1.bf16.msra.mxu0 0
      %3306 = vmatprep.subr.bf16.mxu0 0
      %3307 = vmatpush1.bf16.msra.mxu0 0
      %3308 = vmatprep.subr.bf16.mxu0 0
      %3309 = vmatpush1.bf16.msra.mxu0 0
      %3310 = vmatprep.subr.bf16.mxu0 %v3245
      %3311 = vmatpush1.bf16.msra.mxu0 %v3244
      %3312 = vmatprep.subr.bf16.mxu0 %v3241
      %3313 = vmatpush1.bf16.msra.mxu0 %v3240
      %3314 = vmatprep.subr.bf16.mxu0 0
      %3315 = vmatpush2.bf16.msra.mxu0 0
      %3316 = vmatprep.subr.bf16.mxu0 0
      %3317 = vmatpush2.bf16.msra.mxu0 0
      %3318 = vmatprep.subr.bf16.mxu0 0
      %3319 = vmatpush2.bf16.msra.mxu0 0
      %3320 = vmatprep.subr.bf16.mxu0 0
      %3321 = vmatpush2.bf16.msra.mxu0 0
      %3322 = vmatprep.subr.bf16.mxu0 0
      %3323 = vmatpush2.bf16.msra.mxu0 0
      %3324 = vmatprep.subr.bf16.mxu0 0
      %3325 = vmatpush2.bf16.msra.mxu0 0
      %3326 = vmatprep.subr.bf16.mxu0 0
      %3327 = vmatpush2.bf16.msra.mxu0 0
      %3328 = vmatprep.subr.bf16.mxu0 0
      %3329 = vmatpush2.bf16.msra.mxu0 0
      %3330 = vmatprep.mubr.bf16.mxu0 0
      %3331 = vmatmul.mubr.bf16.gmra.mxu0 %v3255
      %v3332 = vpop.f32.mrf.mxu0
      %v3333 = vadd.f32 0.0, %v3332
      %v3334 = vpop.f32.mrf.mxu0
      %v3335 = vadd.f32 0.0, %v3334
      %v3336 = vpop.f32.mrf.mxu0
      %v3337 = vpop.f32.mrf.mxu0
      %3338 = vdwg.mxu0
      %v3339 = vadd.f32 %v3158, %v3292
      %v3340 = vadd.f32 %v3160, %v3294
      %v3341 = vadd.f32 %v3199, %v3333
      %v3342 = vadd.f32 %v3201, %v3335
      %v3343 = vpack.c.bf16 %v2691, %v2691
      %v3344 = vld [vmem:[%s11 + $0xc0] sm:$0xff]
      %v3345 = vld [vmem:[%s11 + $0xc8] sm:$0xff]
      %v3346 = vld [vmem:[%s11 + $0xd0] sm:$0xff]
      %v3347 = vld [vmem:[%s11 + $0xd8] sm:$0xff]
      %v3348 = vld [vmem:[%s11 + $0xe0] sm:$0xff]
      %v3349 = vld [vmem:[%s11 + $0xe8] sm:$0xff]
      %v3350 = vld [vmem:[%s11 + $0xf0] sm:$0xff]
      %v3351 = vld [vmem:[%s11 + $0xf8] sm:$0xff]
      %v3360 = vunpack.c.l.b16 %v3344
      %v3361 = vunpack.c.h.b16 %v3344
      %v3362 = vunpack.c.l.b16 %v3345
      %v3363 = vunpack.c.h.b16 %v3345
      %v3364 = vunpack.c.l.b16 %v3346
      %v3365 = vunpack.c.h.b16 %v3346
      %v3366 = vunpack.c.l.b16 %v3347
      %v3367 = vunpack.c.h.b16 %v3347
      %v3368 = vunpack.c.l.b16 %v3348
      %v3369 = vunpack.c.h.b16 %v3348
      %v3370 = vunpack.c.l.b16 %v3349
      %v3371 = vunpack.c.h.b16 %v3349
      %v3372 = vunpack.c.l.b16 %v3350
      %v3373 = vunpack.c.h.b16 %v3350
      %v3374 = vunpack.c.l.b16 %v3351
      %v3375 = vunpack.c.h.b16 %v3351
      %v3376 = vpack.c.b16 %v3364, %v3360
      %v3377 = vpack.c.b16 %v3365, %v3361
      %v3378 = vpack.c.b16 %v3366, %v3362
      %v3379 = vpack.c.b16 %v3367, %v3363
      %v3380 = vpack.c.b16 %v3372, %v3368
      %v3381 = vpack.c.b16 %v3373, %v3369
      %v3382 = vpack.c.b16 %v3374, %v3370
      %v3383 = vpack.c.b16 %v3375, %v3371
      %v3393 = vsel %vm706, %v3343, 0
      %3395 = vmatprep.subr.bf16.mxu0 0
      %3396 = vmatpush1.bf16.msra.mxu0 0
      %3397 = vmatprep.subr.bf16.mxu0 0
      %3398 = vmatpush1.bf16.msra.mxu0 0
      %3399 = vmatprep.subr.bf16.mxu0 0
      %3400 = vmatpush1.bf16.msra.mxu0 0
      %3401 = vmatprep.subr.bf16.mxu0 0
      %3402 = vmatpush1.bf16.msra.mxu0 0
      %3403 = vmatprep.subr.bf16.mxu0 0
      %3404 = vmatpush1.bf16.msra.mxu0 0
      %3405 = vmatprep.subr.bf16.mxu0 0
      %3406 = vmatpush1.bf16.msra.mxu0 0
      %3407 = vmatprep.subr.bf16.mxu0 %v3381
      %3408 = vmatpush1.bf16.msra.mxu0 %v3380
      %3409 = vmatprep.subr.bf16.mxu0 %v3377
      %3410 = vmatpush1.bf16.msra.mxu0 %v3376
      %3411 = vmatprep.subr.bf16.mxu0 0
      %3412 = vmatpush2.bf16.msra.mxu0 0
      %3413 = vmatprep.subr.bf16.mxu0 0
      %3414 = vmatpush2.bf16.msra.mxu0 0
      %3415 = vmatprep.subr.bf16.mxu0 0
      %3416 = vmatpush2.bf16.msra.mxu0 0
      %3417 = vmatprep.subr.bf16.mxu0 0
      %3418 = vmatpush2.bf16.msra.mxu0 0
      %3419 = vmatprep.subr.bf16.mxu0 0
      %3420 = vmatpush2.bf16.msra.mxu0 0
      %3421 = vmatprep.subr.bf16.mxu0 0
      %3422 = vmatpush2.bf16.msra.mxu0 0
      %3423 = vmatprep.subr.bf16.mxu0 0
      %3424 = vmatpush2.bf16.msra.mxu0 0
      %3425 = vmatprep.subr.bf16.mxu0 0
      %3426 = vmatpush2.bf16.msra.mxu0 0
      %3427 = vmatprep.mubr.bf16.mxu0 0
      %3428 = vmatmul.mubr.bf16.gmra.mxu0 %v3393
      %v3429 = vpop.f32.mrf.mxu0
      %v3430 = vadd.f32 0.0, %v3429
      %v3431 = vpop.f32.mrf.mxu0
      %v3432 = vadd.f32 0.0, %v3431
      %v3433 = vpop.f32.mrf.mxu0
      %v3434 = vpop.f32.mrf.mxu0
      %3435 = vdwg.mxu0
      %3436 = vmatprep.subr.bf16.mxu0 0
      %3437 = vmatpush1.bf16.msra.mxu0 0
      %3438 = vmatprep.subr.bf16.mxu0 0
      %3439 = vmatpush1.bf16.msra.mxu0 0
      %3440 = vmatprep.subr.bf16.mxu0 0
      %3441 = vmatpush1.bf16.msra.mxu0 0
      %3442 = vmatprep.subr.bf16.mxu0 0
      %3443 = vmatpush1.bf16.msra.mxu0 0
      %3444 = vmatprep.subr.bf16.mxu0 0
      %3445 = vmatpush1.bf16.msra.mxu0 0
      %3446 = vmatprep.subr.bf16.mxu0 0
      %3447 = vmatpush1.bf16.msra.mxu0 0
      %3448 = vmatprep.subr.bf16.mxu0 %v3383
      %3449 = vmatpush1.bf16.msra.mxu0 %v3382
      %3450 = vmatprep.subr.bf16.mxu0 %v3379
      %3451 = vmatpush1.bf16.msra.mxu0 %v3378
      %3452 = vmatprep.subr.bf16.mxu0 0
      %3453 = vmatpush2.bf16.msra.mxu0 0
      %3454 = vmatprep.subr.bf16.mxu0 0
      %3455 = vmatpush2.bf16.msra.mxu0 0
      %3456 = vmatprep.subr.bf16.mxu0 0
      %3457 = vmatpush2.bf16.msra.mxu0 0
      %3458 = vmatprep.subr.bf16.mxu0 0
      %3459 = vmatpush2.bf16.msra.mxu0 0
      %3460 = vmatprep.subr.bf16.mxu0 0
      %3461 = vmatpush2.bf16.msra.mxu0 0
      %3462 = vmatprep.subr.bf16.mxu0 0
      %3463 = vmatpush2.bf16.msra.mxu0 0
      %3464 = vmatprep.subr.bf16.mxu0 0
      %3465 = vmatpush2.bf16.msra.mxu0 0
      %3466 = vmatprep.subr.bf16.mxu0 0
      %3467 = vmatpush2.bf16.msra.mxu0 0
      %3468 = vmatprep.mubr.bf16.mxu0 0
      %3469 = vmatmul.mubr.bf16.gmra.mxu0 %v3393
      %v3470 = vpop.f32.mrf.mxu0
      %v3471 = vadd.f32 0.0, %v3470
      %v3472 = vpop.f32.mrf.mxu0
      %v3473 = vadd.f32 0.0, %v3472
      %v3474 = vpop.f32.mrf.mxu0
      %v3475 = vpop.f32.mrf.mxu0
      %3476 = vdwg.mxu0
      %v3477 = vadd.f32 %v3339, %v3430
      %v3478 = vadd.f32 %v3340, %v3432
      %v3479 = vadd.f32 %v3341, %v3471
      %v3480 = vadd.f32 %v3342, %v3473
      %v3481 = vpack.c.bf16 %v2771, %v2771
      %v3482 = vld [vmem:[%s11 + $0x100] sm:$0xff]
      %v3483 = vld [vmem:[%s11 + $0x108] sm:$0xff]
      %v3484 = vld [vmem:[%s11 + $0x110] sm:$0xff]
      %v3485 = vld [vmem:[%s11 + $0x118] sm:$0xff]
      %v3486 = vld [vmem:[%s11 + $0x120] sm:$0xff]
      %v3487 = vld [vmem:[%s11 + $0x128] sm:$0xff]
      %v3488 = vld [vmem:[%s11 + $0x130] sm:$0xff]
      %v3489 = vld [vmem:[%s11 + $0x138] sm:$0xff]
      %v3498 = vunpack.c.l.b16 %v3482
      %v3499 = vunpack.c.h.b16 %v3482
      %v3500 = vunpack.c.l.b16 %v3483
      %v3501 = vunpack.c.h.b16 %v3483
      %v3502 = vunpack.c.l.b16 %v3484
      %v3503 = vunpack.c.h.b16 %v3484
      %v3504 = vunpack.c.l.b16 %v3485
      %v3505 = vunpack.c.h.b16 %v3485
      %v3506 = vunpack.c.l.b16 %v3486
      %v3507 = vunpack.c.h.b16 %v3486
      %v3508 = vunpack.c.l.b16 %v3487
      %v3509 = vunpack.c.h.b16 %v3487
      %v3510 = vunpack.c.l.b16 %v3488
      %v3511 = vunpack.c.h.b16 %v3488
      %v3512 = vunpack.c.l.b16 %v3489
      %v3513 = vunpack.c.h.b16 %v3489
      %v3514 = vpack.c.b16 %v3502, %v3498
      %v3515 = vpack.c.b16 %v3503, %v3499
      %v3516 = vpack.c.b16 %v3504, %v3500
      %v3517 = vpack.c.b16 %v3505, %v3501
      %v3518 = vpack.c.b16 %v3510, %v3506
      %v3519 = vpack.c.b16 %v3511, %v3507
      %v3520 = vpack.c.b16 %v3512, %v3508
      %v3521 = vpack.c.b16 %v3513, %v3509
      %v3531 = vsel %vm706, %v3481, 0
      %3533 = vmatprep.subr.bf16.mxu0 0
      %3534 = vmatpush1.bf16.msra.mxu0 0
      %3535 = vmatprep.subr.bf16.mxu0 0
      %3536 = vmatpush1.bf16.msra.mxu0 0
      %3537 = vmatprep.subr.bf16.mxu0 0
      %3538 = vmatpush1.bf16.msra.mxu0 0
      %3539 = vmatprep.subr.bf16.mxu0 0
      %3540 = vmatpush1.bf16.msra.mxu0 0
      %3541 = vmatprep.subr.bf16.mxu0 0
      %3542 = vmatpush1.bf16.msra.mxu0 0
      %3543 = vmatprep.subr.bf16.mxu0 0
      %3544 = vmatpush1.bf16.msra.mxu0 0
      %3545 = vmatprep.subr.bf16.mxu0 %v3519
      %3546 = vmatpush1.bf16.msra.mxu0 %v3518
      %3547 = vmatprep.subr.bf16.mxu0 %v3515
      %3548 = vmatpush1.bf16.msra.mxu0 %v3514
      %3549 = vmatprep.subr.bf16.mxu0 0
      %3550 = vmatpush2.bf16.msra.mxu0 0
      %3551 = vmatprep.subr.bf16.mxu0 0
      %3552 = vmatpush2.bf16.msra.mxu0 0
      %3553 = vmatprep.subr.bf16.mxu0 0
      %3554 = vmatpush2.bf16.msra.mxu0 0
      %3555 = vmatprep.subr.bf16.mxu0 0
      %3556 = vmatpush2.bf16.msra.mxu0 0
      %3557 = vmatprep.subr.bf16.mxu0 0
      %3558 = vmatpush2.bf16.msra.mxu0 0
      %3559 = vmatprep.subr.bf16.mxu0 0
      %3560 = vmatpush2.bf16.msra.mxu0 0
      %3561 = vmatprep.subr.bf16.mxu0 0
      %3562 = vmatpush2.bf16.msra.mxu0 0
      %3563 = vmatprep.subr.bf16.mxu0 0
      %3564 = vmatpush2.bf16.msra.mxu0 0
      %3565 = vmatprep.mubr.bf16.mxu0 0
      %3566 = vmatmul.mubr.bf16.gmra.mxu0 %v3531
      %v3567 = vpop.f32.mrf.mxu0
      %v3568 = vadd.f32 0.0, %v3567
      %v3569 = vpop.f32.mrf.mxu0
      %v3570 = vadd.f32 0.0, %v3569
      %v3571 = vpop.f32.mrf.mxu0
      %v3572 = vpop.f32.mrf.mxu0
      %3573 = vdwg.mxu0
      %3574 = vmatprep.subr.bf16.mxu0 0
      %3575 = vmatpush1.bf16.msra.mxu0 0
      %3576 = vmatprep.subr.bf16.mxu0 0
      %3577 = vmatpush1.bf16.msra.mxu0 0
      %3578 = vmatprep.subr.bf16.mxu0 0
      %3579 = vmatpush1.bf16.msra.mxu0 0
      %3580 = vmatprep.subr.bf16.mxu0 0
      %3581 = vmatpush1.bf16.msra.mxu0 0
      %3582 = vmatprep.subr.bf16.mxu0 0
      %3583 = vmatpush1.bf16.msra.mxu0 0
      %3584 = vmatprep.subr.bf16.mxu0 0
      %3585 = vmatpush1.bf16.msra.mxu0 0
      %3586 = vmatprep.subr.bf16.mxu0 %v3521
      %3587 = vmatpush1.bf16.msra.mxu0 %v3520
      %3588 = vmatprep.subr.bf16.mxu0 %v3517
      %3589 = vmatpush1.bf16.msra.mxu0 %v3516
      %3590 = vmatprep.subr.bf16.mxu0 0
      %3591 = vmatpush2.bf16.msra.mxu0 0
      %3592 = vmatprep.subr.bf16.mxu0 0
      %3593 = vmatpush2.bf16.msra.mxu0 0
      %3594 = vmatprep.subr.bf16.mxu0 0
      %3595 = vmatpush2.bf16.msra.mxu0 0
      %3596 = vmatprep.subr.bf16.mxu0 0
      %3597 = vmatpush2.bf16.msra.mxu0 0
      %3598 = vmatprep.subr.bf16.mxu0 0
      %3599 = vmatpush2.bf16.msra.mxu0 0
      %3600 = vmatprep.subr.bf16.mxu0 0
      %3601 = vmatpush2.bf16.msra.mxu0 0
      %3602 = vmatprep.subr.bf16.mxu0 0
      %3603 = vmatpush2.bf16.msra.mxu0 0
      %3604 = vmatprep.subr.bf16.mxu0 0
      %3605 = vmatpush2.bf16.msra.mxu0 0
      %3606 = vmatprep.mubr.bf16.mxu0 0
      %3607 = vmatmul.mubr.bf16.gmra.mxu0 %v3531
      %v3608 = vpop.f32.mrf.mxu0
      %v3609 = vadd.f32 0.0, %v3608
      %v3610 = vpop.f32.mrf.mxu0
      %v3611 = vadd.f32 0.0, %v3610
      %v3612 = vpop.f32.mrf.mxu0
      %v3613 = vpop.f32.mrf.mxu0
      %3614 = vdwg.mxu0
      %v3615 = vadd.f32 %v3477, %v3568
      %v3616 = vadd.f32 %v3478, %v3570
      %v3617 = vadd.f32 %v3479, %v3609
      %v3618 = vadd.f32 %v3480, %v3611
      %v3619 = vpack.c.bf16 %v2851, %v2851
      %v3620 = vld [vmem:[%s11 + $0x140] sm:$0xff]
      %v3621 = vld [vmem:[%s11 + $0x148] sm:$0xff]
      %v3622 = vld [vmem:[%s11 + $0x150] sm:$0xff]
      %v3623 = vld [vmem:[%s11 + $0x158] sm:$0xff]
      %v3624 = vld [vmem:[%s11 + $0x160] sm:$0xff]
      %v3625 = vld [vmem:[%s11 + $0x168] sm:$0xff]
      %v3626 = vld [vmem:[%s11 + $0x170] sm:$0xff]
      %v3627 = vld [vmem:[%s11 + $0x178] sm:$0xff]
      %v3636 = vunpack.c.l.b16 %v3620
      %v3637 = vunpack.c.h.b16 %v3620
      %v3638 = vunpack.c.l.b16 %v3621
      %v3639 = vunpack.c.h.b16 %v3621
      %v3640 = vunpack.c.l.b16 %v3622
      %v3641 = vunpack.c.h.b16 %v3622
      %v3642 = vunpack.c.l.b16 %v3623
      %v3643 = vunpack.c.h.b16 %v3623
      %v3644 = vunpack.c.l.b16 %v3624
      %v3645 = vunpack.c.h.b16 %v3624
      %v3646 = vunpack.c.l.b16 %v3625
      %v3647 = vunpack.c.h.b16 %v3625
      %v3648 = vunpack.c.l.b16 %v3626
      %v3649 = vunpack.c.h.b16 %v3626
      %v3650 = vunpack.c.l.b16 %v3627
      %v3651 = vunpack.c.h.b16 %v3627
      %v3652 = vpack.c.b16 %v3640, %v3636
      %v3653 = vpack.c.b16 %v3641, %v3637
      %v3654 = vpack.c.b16 %v3642, %v3638
      %v3655 = vpack.c.b16 %v3643, %v3639
      %v3656 = vpack.c.b16 %v3648, %v3644
      %v3657 = vpack.c.b16 %v3649, %v3645
      %v3658 = vpack.c.b16 %v3650, %v3646
      %v3659 = vpack.c.b16 %v3651, %v3647
      %v3669 = vsel %vm706, %v3619, 0
      %3671 = vmatprep.subr.bf16.mxu0 0
      %3672 = vmatpush1.bf16.msra.mxu0 0
      %3673 = vmatprep.subr.bf16.mxu0 0
      %3674 = vmatpush1.bf16.msra.mxu0 0
      %3675 = vmatprep.subr.bf16.mxu0 0
      %3676 = vmatpush1.bf16.msra.mxu0 0
      %3677 = vmatprep.subr.bf16.mxu0 0
      %3678 = vmatpush1.bf16.msra.mxu0 0
      %3679 = vmatprep.subr.bf16.mxu0 0
      %3680 = vmatpush1.bf16.msra.mxu0 0
      %3681 = vmatprep.subr.bf16.mxu0 0
      %3682 = vmatpush1.bf16.msra.mxu0 0
      %3683 = vmatprep.subr.bf16.mxu0 %v3657
      %3684 = vmatpush1.bf16.msra.mxu0 %v3656
      %3685 = vmatprep.subr.bf16.mxu0 %v3653
      %3686 = vmatpush1.bf16.msra.mxu0 %v3652
      %3687 = vmatprep.subr.bf16.mxu0 0
      %3688 = vmatpush2.bf16.msra.mxu0 0
      %3689 = vmatprep.subr.bf16.mxu0 0
      %3690 = vmatpush2.bf16.msra.mxu0 0
      %3691 = vmatprep.subr.bf16.mxu0 0
      %3692 = vmatpush2.bf16.msra.mxu0 0
      %3693 = vmatprep.subr.bf16.mxu0 0
      %3694 = vmatpush2.bf16.msra.mxu0 0
      %3695 = vmatprep.subr.bf16.mxu0 0
      %3696 = vmatpush2.bf16.msra.mxu0 0
      %3697 = vmatprep.subr.bf16.mxu0 0
      %3698 = vmatpush2.bf16.msra.mxu0 0
      %3699 = vmatprep.subr.bf16.mxu0 0
      %3700 = vmatpush2.bf16.msra.mxu0 0
      %3701 = vmatprep.subr.bf16.mxu0 0
      %3702 = vmatpush2.bf16.msra.mxu0 0
      %3703 = vmatprep.mubr.bf16.mxu0 0
      %3704 = vmatmul.mubr.bf16.gmra.mxu0 %v3669
      %v3705 = vpop.f32.mrf.mxu0
      %v3706 = vadd.f32 0.0, %v3705
      %v3707 = vpop.f32.mrf.mxu0
      %v3708 = vadd.f32 0.0, %v3707
      %v3709 = vpop.f32.mrf.mxu0
      %v3710 = vpop.f32.mrf.mxu0
      %3711 = vdwg.mxu0
      %3712 = vmatprep.subr.bf16.mxu0 0
      %3713 = vmatpush1.bf16.msra.mxu0 0
      %3714 = vmatprep.subr.bf16.mxu0 0
      %3715 = vmatpush1.bf16.msra.mxu0 0
      %3716 = vmatprep.subr.bf16.mxu0 0
      %3717 = vmatpush1.bf16.msra.mxu0 0
      %3718 = vmatprep.subr.bf16.mxu0 0
      %3719 = vmatpush1.bf16.msra.mxu0 0
      %3720 = vmatprep.subr.bf16.mxu0 0
      %3721 = vmatpush1.bf16.msra.mxu0 0
      %3722 = vmatprep.subr.bf16.mxu0 0
      %3723 = vmatpush1.bf16.msra.mxu0 0
      %3724 = vmatprep.subr.bf16.mxu0 %v3659
      %3725 = vmatpush1.bf16.msra.mxu0 %v3658
      %3726 = vmatprep.subr.bf16.mxu0 %v3655
      %3727 = vmatpush1.bf16.msra.mxu0 %v3654
      %3728 = vmatprep.subr.bf16.mxu0 0
      %3729 = vmatpush2.bf16.msra.mxu0 0
      %3730 = vmatprep.subr.bf16.mxu0 0
      %3731 = vmatpush2.bf16.msra.mxu0 0
      %3732 = vmatprep.subr.bf16.mxu0 0
      %3733 = vmatpush2.bf16.msra.mxu0 0
      %3734 = vmatprep.subr.bf16.mxu0 0
      %3735 = vmatpush2.bf16.msra.mxu0 0
      %3736 = vmatprep.subr.bf16.mxu0 0
      %3737 = vmatpush2.bf16.msra.mxu0 0
      %3738 = vmatprep.subr.bf16.mxu0 0
      %3739 = vmatpush2.bf16.msra.mxu0 0
      %3740 = vmatprep.subr.bf16.mxu0 0
      %3741 = vmatpush2.bf16.msra.mxu0 0
      %3742 = vmatprep.subr.bf16.mxu0 0
      %3743 = vmatpush2.bf16.msra.mxu0 0
      %3744 = vmatprep.mubr.bf16.mxu0 0
      %3745 = vmatmul.mubr.bf16.gmra.mxu0 %v3669
      %v3746 = vpop.f32.mrf.mxu0
      %v3747 = vadd.f32 0.0, %v3746
      %v3748 = vpop.f32.mrf.mxu0
      %v3749 = vadd.f32 0.0, %v3748
      %v3750 = vpop.f32.mrf.mxu0
      %v3751 = vpop.f32.mrf.mxu0
      %3752 = vdwg.mxu0
      %v3753 = vadd.f32 %v3615, %v3706
      %v3754 = vadd.f32 %v3616, %v3708
      %v3755 = vadd.f32 %v3617, %v3747
      %v3756 = vadd.f32 %v3618, %v3749
      %v3757 = vpack.c.bf16 %v2931, %v2931
      %v3758 = vld [vmem:[%s11 + $0x180] sm:$0xff]
      %v3759 = vld [vmem:[%s11 + $0x188] sm:$0xff]
      %v3760 = vld [vmem:[%s11 + $0x190] sm:$0xff]
      %v3761 = vld [vmem:[%s11 + $0x198] sm:$0xff]
      %v3762 = vld [vmem:[%s11 + $0x1a0] sm:$0xff]
      %v3763 = vld [vmem:[%s11 + $0x1a8] sm:$0xff]
      %v3764 = vld [vmem:[%s11 + $0x1b0] sm:$0xff]
      %v3765 = vld [vmem:[%s11 + $0x1b8] sm:$0xff]
      %v3774 = vunpack.c.l.b16 %v3758
      %v3775 = vunpack.c.h.b16 %v3758
      %v3776 = vunpack.c.l.b16 %v3759
      %v3777 = vunpack.c.h.b16 %v3759
      %v3778 = vunpack.c.l.b16 %v3760
      %v3779 = vunpack.c.h.b16 %v3760
      %v3780 = vunpack.c.l.b16 %v3761
      %v3781 = vunpack.c.h.b16 %v3761
      %v3782 = vunpack.c.l.b16 %v3762
      %v3783 = vunpack.c.h.b16 %v3762
      %v3784 = vunpack.c.l.b16 %v3763
      %v3785 = vunpack.c.h.b16 %v3763
      %v3786 = vunpack.c.l.b16 %v3764
      %v3787 = vunpack.c.h.b16 %v3764
      %v3788 = vunpack.c.l.b16 %v3765
      %v3789 = vunpack.c.h.b16 %v3765
      %v3790 = vpack.c.b16 %v3778, %v3774
      %v3791 = vpack.c.b16 %v3779, %v3775
      %v3792 = vpack.c.b16 %v3780, %v3776
      %v3793 = vpack.c.b16 %v3781, %v3777
      %v3794 = vpack.c.b16 %v3786, %v3782
      %v3795 = vpack.c.b16 %v3787, %v3783
      %v3796 = vpack.c.b16 %v3788, %v3784
      %v3797 = vpack.c.b16 %v3789, %v3785
      %v3807 = vsel %vm706, %v3757, 0
      %3809 = vmatprep.subr.bf16.mxu0 0
      %3810 = vmatpush1.bf16.msra.mxu0 0
      %3811 = vmatprep.subr.bf16.mxu0 0
      %3812 = vmatpush1.bf16.msra.mxu0 0
      %3813 = vmatprep.subr.bf16.mxu0 0
      %3814 = vmatpush1.bf16.msra.mxu0 0
      %3815 = vmatprep.subr.bf16.mxu0 0
      %3816 = vmatpush1.bf16.msra.mxu0 0
      %3817 = vmatprep.subr.bf16.mxu0 0
      %3818 = vmatpush1.bf16.msra.mxu0 0
      %3819 = vmatprep.subr.bf16.mxu0 0
      %3820 = vmatpush1.bf16.msra.mxu0 0
      %3821 = vmatprep.subr.bf16.mxu0 %v3795
      %3822 = vmatpush1.bf16.msra.mxu0 %v3794
      %3823 = vmatprep.subr.bf16.mxu0 %v3791
      %3824 = vmatpush1.bf16.msra.mxu0 %v3790
      %3825 = vmatprep.subr.bf16.mxu0 0
      %3826 = vmatpush2.bf16.msra.mxu0 0
      %3827 = vmatprep.subr.bf16.mxu0 0
      %3828 = vmatpush2.bf16.msra.mxu0 0
      %3829 = vmatprep.subr.bf16.mxu0 0
      %3830 = vmatpush2.bf16.msra.mxu0 0
      %3831 = vmatprep.subr.bf16.mxu0 0
      %3832 = vmatpush2.bf16.msra.mxu0 0
      %3833 = vmatprep.subr.bf16.mxu0 0
      %3834 = vmatpush2.bf16.msra.mxu0 0
      %3835 = vmatprep.subr.bf16.mxu0 0
      %3836 = vmatpush2.bf16.msra.mxu0 0
      %3837 = vmatprep.subr.bf16.mxu0 0
      %3838 = vmatpush2.bf16.msra.mxu0 0
      %3839 = vmatprep.subr.bf16.mxu0 0
      %3840 = vmatpush2.bf16.msra.mxu0 0
      %3841 = vmatprep.mubr.bf16.mxu0 0
      %3842 = vmatmul.mubr.bf16.gmra.mxu0 %v3807
      %v3843 = vpop.f32.mrf.mxu0
      %v3844 = vadd.f32 0.0, %v3843
      %v3845 = vpop.f32.mrf.mxu0
      %v3846 = vadd.f32 0.0, %v3845
      %v3847 = vpop.f32.mrf.mxu0
      %v3848 = vpop.f32.mrf.mxu0
      %3849 = vdwg.mxu0
      %3850 = vmatprep.subr.bf16.mxu0 0
      %3851 = vmatpush1.bf16.msra.mxu0 0
      %3852 = vmatprep.subr.bf16.mxu0 0
      %3853 = vmatpush1.bf16.msra.mxu0 0
      %3854 = vmatprep.subr.bf16.mxu0 0
      %3855 = vmatpush1.bf16.msra.mxu0 0
      %3856 = vmatprep.subr.bf16.mxu0 0
      %3857 = vmatpush1.bf16.msra.mxu0 0
      %3858 = vmatprep.subr.bf16.mxu0 0
      %3859 = vmatpush1.bf16.msra.mxu0 0
      %3860 = vmatprep.subr.bf16.mxu0 0
      %3861 = vmatpush1.bf16.msra.mxu0 0
      %3862 = vmatprep.subr.bf16.mxu0 %v3797
      %3863 = vmatpush1.bf16.msra.mxu0 %v3796
      %3864 = vmatprep.subr.bf16.mxu0 %v3793
      %3865 = vmatpush1.bf16.msra.mxu0 %v3792
      %3866 = vmatprep.subr.bf16.mxu0 0
      %3867 = vmatpush2.bf16.msra.mxu0 0
      %3868 = vmatprep.subr.bf16.mxu0 0
      %3869 = vmatpush2.bf16.msra.mxu0 0
      %3870 = vmatprep.subr.bf16.mxu0 0
      %3871 = vmatpush2.bf16.msra.mxu0 0
      %3872 = vmatprep.subr.bf16.mxu0 0
      %3873 = vmatpush2.bf16.msra.mxu0 0
      %3874 = vmatprep.subr.bf16.mxu0 0
      %3875 = vmatpush2.bf16.msra.mxu0 0
      %3876 = vmatprep.subr.bf16.mxu0 0
      %3877 = vmatpush2.bf16.msra.mxu0 0
      %3878 = vmatprep.subr.bf16.mxu0 0
      %3879 = vmatpush2.bf16.msra.mxu0 0
      %3880 = vmatprep.subr.bf16.mxu0 0
      %3881 = vmatpush2.bf16.msra.mxu0 0
      %3882 = vmatprep.mubr.bf16.mxu0 0
      %3883 = vmatmul.mubr.bf16.gmra.mxu0 %v3807
      %v3884 = vpop.f32.mrf.mxu0
      %v3885 = vadd.f32 0.0, %v3884
      %v3886 = vpop.f32.mrf.mxu0
      %v3887 = vadd.f32 0.0, %v3886
      %v3888 = vpop.f32.mrf.mxu0
      %v3889 = vpop.f32.mrf.mxu0
      %3890 = vdwg.mxu0
      %v3891 = vadd.f32 %v3753, %v3844
      %v3892 = vadd.f32 %v3754, %v3846
      %v3893 = vadd.f32 %v3755, %v3885
      %v3894 = vadd.f32 %v3756, %v3887
      %v3895 = vld [vmem:[%s12] sm:$0xf]
      %v3897 = vlaneseq
      %v3898 = vshrl.u32 %v3897, 7
      %v3899 = vsub.s32 0, %v3898
      %v3900 = vrot.slane %v3895, %v3899
      %v3901 = vlaneseq
      %v3902 = vshrl.u32 %v3901, 7
      %v3903 = vsub.s32 1, %v3902
      %v3904 = vrot.slane %v3895, %v3903
      %v3905 = vlaneseq
      %v3906 = vshrl.u32 %v3905, 7
      %v3907 = vsub.s32 2, %v3906
      %v3908 = vrot.slane %v3895, %v3907
      %v3909 = vlaneseq
      %v3910 = vshrl.u32 %v3909, 7
      %v3911 = vsub.s32 3, %v3910
      %v3912 = vrot.slane %v3895, %v3911
      %v3917 = vadd.f32 %v3891, %v3900
      %v3918 = vadd.f32 %v3892, %v3904
      %v3919 = vadd.f32 %v3893, %v3908
      %v3920 = vadd.f32 %v3894, %v3912
      %v3921 = vmax.f32 %v3917, 0.0
      %v3922 = vmax.f32 %v3918, 0.0
      %v3923 = vmax.f32 %v3919, 0.0
      %v3924 = vmax.f32 %v3920, 0.0
      %v3925 = vpack.c.bf16 %v3921, %v3921
      %v3926 = vpack.c.bf16 %v3922, %v3922
      %v3927 = vpack.c.bf16 %v3923, %v3923
      %v3928 = vpack.c.bf16 %v3924, %v3924
      %v3929 = vld [vmem:[%s13] sm:$0xf]
      %v3930 = vld [vmem:[%s13 + $0x4] sm:$0xf]
      %v3931 = vld [vmem:[%s13 + $0x8] sm:$0xf]
      %v3932 = vld [vmem:[%s13 + $0xc] sm:$0xf]
      %v3933 = vld [vmem:[%s13 + $0x10] sm:$0xf]
      %v3934 = vld [vmem:[%s13 + $0x14] sm:$0xf]
      %v3935 = vld [vmem:[%s13 + $0x18] sm:$0xf]
      %v3936 = vld [vmem:[%s13 + $0x1c] sm:$0xf]
      %v3937 = vld [vmem:[%s13 + $0x20] sm:$0xf]
      %v3938 = vld [vmem:[%s13 + $0x24] sm:$0xf]
      %v3939 = vld [vmem:[%s13 + $0x28] sm:$0xf]
      %v3940 = vld [vmem:[%s13 + $0x2c] sm:$0xf]
      %v3941 = vld [vmem:[%s13 + $0x30] sm:$0xf]
      %v3942 = vld [vmem:[%s13 + $0x34] sm:$0xf]
      %v3943 = vld [vmem:[%s13 + $0x38] sm:$0xf]
      %v3944 = vld [vmem:[%s13 + $0x3c] sm:$0xf]
      %v3945 = vld [vmem:[%s13 + $0x40] sm:$0xf]
      %v3946 = vld [vmem:[%s13 + $0x44] sm:$0xf]
      %v3947 = vld [vmem:[%s13 + $0x48] sm:$0xf]
      %v3948 = vld [vmem:[%s13 + $0x4c] sm:$0xf]
      %v3949 = vld [vmem:[%s13 + $0x50] sm:$0xf]
      %v3950 = vld [vmem:[%s13 + $0x54] sm:$0xf]
      %v3951 = vld [vmem:[%s13 + $0x58] sm:$0xf]
      %v3952 = vld [vmem:[%s13 + $0x5c] sm:$0xf]
      %v3953 = vld [vmem:[%s13 + $0x60] sm:$0xf]
      %v3954 = vld [vmem:[%s13 + $0x64] sm:$0xf]
      %v3955 = vld [vmem:[%s13 + $0x68] sm:$0xf]
      %v3956 = vld [vmem:[%s13 + $0x6c] sm:$0xf]
      %v3957 = vld [vmem:[%s13 + $0x70] sm:$0xf]
      %v3958 = vld [vmem:[%s13 + $0x74] sm:$0xf]
      %v3959 = vld [vmem:[%s13 + $0x78] sm:$0xf]
      %v3960 = vld [vmem:[%s13 + $0x7c] sm:$0xf]
      %v3961 = vld [vmem:[%s13 + $0x80] sm:$0xf]
      %v3962 = vld [vmem:[%s13 + $0x84] sm:$0xf]
      %v3963 = vld [vmem:[%s13 + $0x88] sm:$0xf]
      %v3964 = vld [vmem:[%s13 + $0x8c] sm:$0xf]
      %v3965 = vld [vmem:[%s13 + $0x90] sm:$0xf]
      %v3966 = vld [vmem:[%s13 + $0x94] sm:$0xf]
      %v3967 = vld [vmem:[%s13 + $0x98] sm:$0xf]
      %v3968 = vld [vmem:[%s13 + $0x9c] sm:$0xf]
      %v3969 = vld [vmem:[%s13 + $0xa0] sm:$0xf]
      %v3970 = vld [vmem:[%s13 + $0xa4] sm:$0xf]
      %v3971 = vld [vmem:[%s13 + $0xa8] sm:$0xf]
      %v3972 = vld [vmem:[%s13 + $0xac] sm:$0xf]
      %v3973 = vld [vmem:[%s13 + $0xb0] sm:$0xf]
      %v3974 = vld [vmem:[%s13 + $0xb4] sm:$0xf]
      %v3975 = vld [vmem:[%s13 + $0xb8] sm:$0xf]
      %v3976 = vld [vmem:[%s13 + $0xbc] sm:$0xf]
      %v3977 = vld [vmem:[%s13 + $0xc0] sm:$0xf]
      %v3978 = vld [vmem:[%s13 + $0xc4] sm:$0xf]
      %v3979 = vld [vmem:[%s13 + $0xc8] sm:$0xf]
      %v3980 = vld [vmem:[%s13 + $0xcc] sm:$0xf]
      %v3981 = vld [vmem:[%s13 + $0xd0] sm:$0xf]
      %v3982 = vld [vmem:[%s13 + $0xd4] sm:$0xf]
      %v3983 = vld [vmem:[%s13 + $0xd8] sm:$0xf]
      %v3984 = vld [vmem:[%s13 + $0xdc] sm:$0xf]
      %v3985 = vld [vmem:[%s13 + $0xe0] sm:$0xf]
      %v3986 = vld [vmem:[%s13 + $0xe4] sm:$0xf]
      %v3987 = vld [vmem:[%s13 + $0xe8] sm:$0xf]
      %v3988 = vld [vmem:[%s13 + $0xec] sm:$0xf]
      %v3989 = vld [vmem:[%s13 + $0xf0] sm:$0xf]
      %v3990 = vld [vmem:[%s13 + $0xf4] sm:$0xf]
      %v3991 = vld [vmem:[%s13 + $0xf8] sm:$0xf]
      %v3992 = vld [vmem:[%s13 + $0xfc] sm:$0xf]
      %v3993 = vld [vmem:[#allocation3] sm:$0x1]
      %v3995 = vlaneseq
      %v3996 = vshrl.u32 %v3995, 7
      %v3997 = vsub.s32 0, %v3996
      %v3998 = vrot.slane %v3993, %v3997
      %v4064 = vunpack.c.l.b16 %v3929
      %v4065 = vunpack.c.l.b16 %v3930
      %v4066 = vunpack.c.l.b16 %v3931
      %v4067 = vunpack.c.l.b16 %v3932
      %v4068 = vunpack.c.l.b16 %v3933
      %v4069 = vunpack.c.l.b16 %v3934
      %v4070 = vunpack.c.l.b16 %v3935
      %v4071 = vunpack.c.l.b16 %v3936
      %v4072 = vunpack.c.l.b16 %v3937
      %v4073 = vunpack.c.l.b16 %v3938
      %v4074 = vunpack.c.l.b16 %v3939
      %v4075 = vunpack.c.l.b16 %v3940
      %v4076 = vunpack.c.l.b16 %v3941
      %v4077 = vunpack.c.l.b16 %v3942
      %v4078 = vunpack.c.l.b16 %v3943
      %v4079 = vunpack.c.l.b16 %v3944
      %v4080 = vunpack.c.l.b16 %v3945
      %v4081 = vunpack.c.l.b16 %v3946
      %v4082 = vunpack.c.l.b16 %v3947
      %v4083 = vunpack.c.l.b16 %v3948
      %v4084 = vunpack.c.l.b16 %v3949
      %v4085 = vunpack.c.l.b16 %v3950
      %v4086 = vunpack.c.l.b16 %v3951
      %v4087 = vunpack.c.l.b16 %v3952
      %v4088 = vunpack.c.l.b16 %v3953
      %v4089 = vunpack.c.l.b16 %v3954
      %v4090 = vunpack.c.l.b16 %v3955
      %v4091 = vunpack.c.l.b16 %v3956
      %v4092 = vunpack.c.l.b16 %v3957
      %v4093 = vunpack.c.l.b16 %v3958
      %v4094 = vunpack.c.l.b16 %v3959
      %v4095 = vunpack.c.l.b16 %v3960
      %v4096 = vunpack.c.l.b16 %v3961
      %v4097 = vunpack.c.l.b16 %v3962
      %v4098 = vunpack.c.l.b16 %v3963
      %v4099 = vunpack.c.l.b16 %v3964
      %v4100 = vunpack.c.l.b16 %v3965
      %v4101 = vunpack.c.l.b16 %v3966
      %v4102 = vunpack.c.l.b16 %v3967
      %v4103 = vunpack.c.l.b16 %v3968
      %v4104 = vunpack.c.l.b16 %v3969
      %v4105 = vunpack.c.l.b16 %v3970
      %v4106 = vunpack.c.l.b16 %v3971
      %v4107 = vunpack.c.l.b16 %v3972
      %v4108 = vunpack.c.l.b16 %v3973
      %v4109 = vunpack.c.l.b16 %v3974
      %v4110 = vunpack.c.l.b16 %v3975
      %v4111 = vunpack.c.l.b16 %v3976
      %v4112 = vunpack.c.l.b16 %v3977
      %v4113 = vunpack.c.l.b16 %v3978
      %v4114 = vunpack.c.l.b16 %v3979
      %v4115 = vunpack.c.l.b16 %v3980
      %v4116 = vunpack.c.l.b16 %v3981
      %v4117 = vunpack.c.l.b16 %v3982
      %v4118 = vunpack.c.l.b16 %v3983
      %v4119 = vunpack.c.l.b16 %v3984
      %v4120 = vunpack.c.l.b16 %v3985
      %v4121 = vunpack.c.l.b16 %v3986
      %v4122 = vunpack.c.l.b16 %v3987
      %v4123 = vunpack.c.l.b16 %v3988
      %v4124 = vunpack.c.l.b16 %v3989
      %v4125 = vunpack.c.l.b16 %v3990
      %v4126 = vunpack.c.l.b16 %v3991
      %v4127 = vunpack.c.l.b16 %v3992
      %v4128 = vpack.c.b16 %v4065, %v4064
      %v4129 = vpack.c.b16 %v4067, %v4066
      %v4130 = vpack.c.b16 %v4069, %v4068
      %v4131 = vpack.c.b16 %v4071, %v4070
      %v4132 = vpack.c.b16 %v4073, %v4072
      %v4133 = vpack.c.b16 %v4075, %v4074
      %v4134 = vpack.c.b16 %v4077, %v4076
      %v4135 = vpack.c.b16 %v4079, %v4078
      %v4136 = vpack.c.b16 %v4081, %v4080
      %v4137 = vpack.c.b16 %v4083, %v4082
      %v4138 = vpack.c.b16 %v4085, %v4084
      %v4139 = vpack.c.b16 %v4087, %v4086
      %v4140 = vpack.c.b16 %v4089, %v4088
      %v4141 = vpack.c.b16 %v4091, %v4090
      %v4142 = vpack.c.b16 %v4093, %v4092
      %v4143 = vpack.c.b16 %v4095, %v4094
      %v4144 = vpack.c.b16 %v4097, %v4096
      %v4145 = vpack.c.b16 %v4099, %v4098
      %v4146 = vpack.c.b16 %v4101, %v4100
      %v4147 = vpack.c.b16 %v4103, %v4102
      %v4148 = vpack.c.b16 %v4105, %v4104
      %v4149 = vpack.c.b16 %v4107, %v4106
      %v4150 = vpack.c.b16 %v4109, %v4108
      %v4151 = vpack.c.b16 %v4111, %v4110
      %v4152 = vpack.c.b16 %v4113, %v4112
      %v4153 = vpack.c.b16 %v4115, %v4114
      %v4154 = vpack.c.b16 %v4117, %v4116
      %v4155 = vpack.c.b16 %v4119, %v4118
      %v4156 = vpack.c.b16 %v4121, %v4120
      %v4157 = vpack.c.b16 %v4123, %v4122
      %v4158 = vpack.c.b16 %v4125, %v4124
      %v4159 = vpack.c.b16 %v4127, %v4126
      %4192 = vmatprep.subr.bf16.mxu0 0
      %4193 = vmatpush1.bf16.msra.mxu0 %v4135
      %4194 = vmatprep.subr.bf16.mxu0 0
      %4195 = vmatpush1.bf16.msra.mxu0 %v4134
      %4196 = vmatprep.subr.bf16.mxu0 0
      %4197 = vmatpush1.bf16.msra.mxu0 %v4133
      %4198 = vmatprep.subr.bf16.mxu0 0
      %4199 = vmatpush1.bf16.msra.mxu0 %v4132
      %4200 = vmatprep.subr.bf16.mxu0 0
      %4201 = vmatpush1.bf16.msra.mxu0 %v4131
      %4202 = vmatprep.subr.bf16.mxu0 0
      %4203 = vmatpush1.bf16.msra.mxu0 %v4130
      %4204 = vmatprep.subr.bf16.mxu0 0
      %4205 = vmatpush1.bf16.msra.mxu0 %v4129
      %4206 = vmatprep.subr.bf16.mxu0 0
      %4207 = vmatpush1.bf16.msra.mxu0 %v4128
      %4208 = vmatprep.subr.bf16.mxu0 0
      %4209 = vmatpush2.bf16.msra.mxu0 %v4143
      %4210 = vmatprep.subr.bf16.mxu0 0
      %4211 = vmatpush2.bf16.msra.mxu0 %v4142
      %4212 = vmatprep.subr.bf16.mxu0 0
      %4213 = vmatpush2.bf16.msra.mxu0 %v4141
      %4214 = vmatprep.subr.bf16.mxu0 0
      %4215 = vmatpush2.bf16.msra.mxu0 %v4140
      %4216 = vmatprep.subr.bf16.mxu0 0
      %4217 = vmatpush2.bf16.msra.mxu0 %v4139
      %4218 = vmatprep.subr.bf16.mxu0 0
      %4219 = vmatpush2.bf16.msra.mxu0 %v4138
      %4220 = vmatprep.subr.bf16.mxu0 0
      %4221 = vmatpush2.bf16.msra.mxu0 %v4137
      %4222 = vmatprep.subr.bf16.mxu0 0
      %4223 = vmatpush2.bf16.msra.mxu0 %v4136
      %4224 = vmatprep.mubr.bf16.mxu0 %v3926
      %4225 = vmatmul.mubr.bf16.gmra.mxu0 %v3925
      %v4226 = vpop.f32.mrf.mxu0
      %v4227 = vadd.f32 %v3998, %v4226
      %v4228 = vpop.f32.mrf.mxu0
      %v4229 = vpop.f32.mrf.mxu0
      %v4230 = vpop.f32.mrf.mxu0
      %4231 = vdwg.mxu0
      %4232 = vmatprep.subr.bf16.mxu0 0
      %4233 = vmatpush1.bf16.msra.mxu0 %v4151
      %4234 = vmatprep.subr.bf16.mxu0 0
      %4235 = vmatpush1.bf16.msra.mxu0 %v4150
      %4236 = vmatprep.subr.bf16.mxu0 0
      %4237 = vmatpush1.bf16.msra.mxu0 %v4149
      %4238 = vmatprep.subr.bf16.mxu0 0
      %4239 = vmatpush1.bf16.msra.mxu0 %v4148
      %4240 = vmatprep.subr.bf16.mxu0 0
      %4241 = vmatpush1.bf16.msra.mxu0 %v4147
      %4242 = vmatprep.subr.bf16.mxu0 0
      %4243 = vmatpush1.bf16.msra.mxu0 %v4146
      %4244 = vmatprep.subr.bf16.mxu0 0
      %4245 = vmatpush1.bf16.msra.mxu0 %v4145
      %4246 = vmatprep.subr.bf16.mxu0 0
      %4247 = vmatpush1.bf16.msra.mxu0 %v4144
      %4248 = vmatprep.subr.bf16.mxu0 0
      %4249 = vmatpush2.bf16.msra.mxu0 %v4159
      %4250 = vmatprep.subr.bf16.mxu0 0
      %4251 = vmatpush2.bf16.msra.mxu0 %v4158
      %4252 = vmatprep.subr.bf16.mxu0 0
      %4253 = vmatpush2.bf16.msra.mxu0 %v4157
      %4254 = vmatprep.subr.bf16.mxu0 0
      %4255 = vmatpush2.bf16.msra.mxu0 %v4156
      %4256 = vmatprep.subr.bf16.mxu0 0
      %4257 = vmatpush2.bf16.msra.mxu0 %v4155
      %4258 = vmatprep.subr.bf16.mxu0 0
      %4259 = vmatpush2.bf16.msra.mxu0 %v4154
      %4260 = vmatprep.subr.bf16.mxu0 0
      %4261 = vmatpush2.bf16.msra.mxu0 %v4153
      %4262 = vmatprep.subr.bf16.mxu0 0
      %4263 = vmatpush2.bf16.msra.mxu0 %v4152
      %4264 = vmatprep.mubr.bf16.mxu0 %v3928
      %4265 = vmatmul.mubr.bf16.gmra.mxu0 %v3927
      %v4266 = vpop.f32.mrf.mxu0
      %v4267 = vadd.f32 %v4227, %v4266
      %v4268 = vpop.f32.mrf.mxu0
      %v4269 = vpop.f32.mrf.mxu0
      %v4270 = vpop.f32.mrf.mxu0
      %4271 = vdwg.mxu0
      %vm4272 = vcmask 1024
      %4273 = vst.msk [vmem:[%s518] sm:$0x3] %vm4272, %v4267
      %p4274 = scmp.lt.s32.totalorder %s28, 1
      %s4275 = scalar_select %p4274, %s28, 1
      %s4276 = smul.addr %s4275, 2
      %s4277 = scalar_lea.vmem %s15, %s4276
      // Predicated region
      $region81: #{tpu_custom_call.1} parent=79 // pred_check
        %p4278 = pneg %p371
      $region82: #{tpu_custom_call.1} parent=79 // pred_check_branch
        %4280 = sbr.rel (%p4278) target = $region84
      $region83: #{tpu_custom_call.1} parent=79 // pred_region
        _
      $region84: #{tpu_custom_call.1} parent=79 // pred_fallthru
        _
    $region80: #{tpu_custom_call.1} parent=5 // pred_fallthru
      _
    %p4281 = scmp.le.s32.totalorder 2, %s23
    // Predicated region
    $region85: #{tpu_custom_call.1} parent=5 // pred_check
      %p4282 = pneg %p4281
    $region86: #{tpu_custom_call.1} parent=5 // pred_check_branch
      %4284 = sbr.rel (%p4282) target = $region88
    $region87: #{tpu_custom_call.1} parent=5 // pred_region
      %s4285 = ssub.s32 %s23, 2
      // Predicated region
      $region89: #{tpu_custom_call.1} parent=87 // pred_check
        %p4286 = pneg %p377
      $region90: #{tpu_custom_call.1} parent=87 // pred_check_branch
        %4288 = sbr.rel (%p4286) target = $region92
      $region91: #{tpu_custom_call.1} parent=87 // pred_region
        %p4289 = scmp.lt.s32.totalorder %s29, 1
        %s4290 = scalar_select %p4289, %s29, 1
        %s4291 = smul.addr %s4290, 2
        %s4292 = scalar_lea.vmem %s15, %s4291
      $region92: #{tpu_custom_call.1} parent=87 // pred_fallthru
        _
    $region88: #{tpu_custom_call.1} parent=5 // pred_fallthru
      _
  $region6: #{tpu_custom_call.1} parent=0 // loop_footer
    %s27 = sadd.s32 1, %s23
  $region7: #{tpu_custom_call.1} parent=0 // loop_footer_branch
    %22 = sbr.rel target = $region3
  $region8: #{tpu_custom_call.1} parent=0 // loop_exit
    _

</llo_original>
